<compile_context>
chip_gen: v7x
topology: tpu7x:2x2x1
jax: 0.10.0
libtpu: 0.0.40
codegen_flags: <defaults>
</compile_context>

<pallas_src>
import math

import jax
import jax.numpy as jnp
from jax import lax
from jax.experimental import pallas as pl

# ---------------- scaled-down synthetic "roberta-base" config ----------------
B = 2            # batch
S = 8            # sequence length
H = 32           # hidden size
NH = 4           # attention heads
DH = H // NH     # head dim
FF = 64          # FFN intermediate size
L = 2            # encoder layers
V = 100          # vocab size
NUM_LABELS = 1   # task == 'stsb'
EPS = 1e-5
DROP_P = 0.1


# ---------------------------- in-kernel helpers ------------------------------
def _ln(x, g, b):
    mu = jnp.mean(x, axis=-1, keepdims=True)
    var = jnp.mean((x - mu) ** 2, axis=-1, keepdims=True)
    return (x - mu) * lax.rsqrt(var + EPS) * g + b


# --------------------------- fully fused forward kernel -----------------------
def _fused_forward_kernel(emb_ref, bias_ref, drop_ref,
                          emb_ln_g_ref, emb_ln_b_ref,
                          wqkv_ref, bqkv_ref, wo_ref, bo_ref,
                          ln1g_ref, ln1b_ref,
                          w1_ref, b1_ref, w2_ref, b2_ref,
                          ln2g_ref, ln2b_ref,
                          wih_f_ref, whh_f_ref, b_f_ref,
                          wih_r_ref, whh_r_ref, b_r_ref,
                          clf_w_ref, clf_b_ref,
                          o_ref):
    scale = 1.0 / math.sqrt(DH)

    # ------------------ embeddings + LayerNorm ------------------
    x = _ln(emb_ref[...].reshape(B * S, H).astype(jnp.float32),
            emb_ln_g_ref[...], emb_ln_b_ref[...])                       # (B*S, H)
    bias = bias_ref[...]                                                # (B, 1, S) additive mask

    # ------------------ L transformer encoder layers (statically unrolled) ------------------
    for l in range(L):
        wqkv = wqkv_ref[l]
        wo = wo_ref[l]
        qkv = jnp.dot(x, wqkv, preferred_element_type=jnp.float32) + bqkv_ref[l]   # (B*S, 3H)

        attn = bo_ref[l]                                  # (1, H), broadcasts over rows
        for hh in range(NH):                              # static head loop, batched over B
            qh = qkv[:, hh * DH:(hh + 1) * DH].reshape(B, S, DH)
            kh = qkv[:, H + hh * DH:H + (hh + 1) * DH].reshape(B, S, DH)
            vh = qkv[:, 2 * H + hh * DH:2 * H + (hh + 1) * DH].reshape(B, S, DH)

            s = jnp.einsum('bqd,bkd->bqk', qh, kh,
                           preferred_element_type=jnp.float32) * scale + bias      # (B, S, S)
            s = s - jnp.max(s, axis=-1, keepdims=True)
            p = jnp.exp(s)
            p = p / jnp.sum(p, axis=-1, keepdims=True)
            ctx = jnp.einsum('bqk,bkd->bqd', p, vh,
                             preferred_element_type=jnp.float32)                   # (B, S, DH)
            # fold this head's context straight into the output projection
            # (concat_h(ctx_h) @ Wo == sum_h ctx_h @ Wo[h*DH:(h+1)*DH, :]) -> no lane concat
            attn = attn + jnp.dot(ctx.reshape(B * S, DH), wo[hh * DH:(hh + 1) * DH, :],
                                  preferred_element_type=jnp.float32)
        x = _ln(x + attn, ln1g_ref[l], ln1b_ref[l])

        # TODO(synk): HF RoBERTa uses exact (erf) GELU; the tanh approximation is used here for
        #             guaranteed Mosaic lowering (tiny numeric difference).
        hmid = jax.nn.gelu(jnp.dot(x, w1_ref[l], preferred_element_type=jnp.float32)
                           + b1_ref[l])
        ffn = jnp.dot(hmid, w2_ref[l], preferred_element_type=jnp.float32) + b2_ref[l]
        x = _ln(x + ffn, ln2g_ref[l], ln2b_ref[l])

    # ------------------ BiLSTM over the sequence output ------------------
    # Input projections hoisted out of the recurrence: one matmul per direction for all steps.
    gin_f = (jnp.dot(x, wih_f_ref[...], preferred_element_type=jnp.float32)
             + b_f_ref[...]).reshape(B, S, 4 * H)
    gin_r = (jnp.dot(x, wih_r_ref[...], preferred_element_type=jnp.float32)
             + b_r_ref[...]).reshape(B, S, 4 * H)
    whh_f = whh_f_ref[...]
    whh_r = whh_r_ref[...]

    def cell(g, c):                                  # PyTorch gate order: i, f, g, o
        i = jax.nn.sigmoid(g[:, 0 * H:1 * H])
        f = jax.nn.sigmoid(g[:, 1 * H:2 * H])
        gg = jnp.tanh(g[:, 2 * H:3 * H])
        o = jax.nn.sigmoid(g[:, 3 * H:4 * H])
        c = f * c + i * gg
        return o * jnp.tanh(c), c

    h_f = jnp.zeros((B, H), jnp.float32)
    c_f = jnp.zeros((B, H), jnp.float32)
    h_r = jnp.zeros((B, H), jnp.float32)
    c_r = jnp.zeros((B, H), jnp.float32)
    for t in range(S):                               # fully unrolled; fwd and rev interleaved
        g_f = gin_f[:, t, :] + jnp.dot(h_f, whh_f, preferred_element_type=jnp.float32)
        g_r = gin_r[:, S - 1 - t, :] + jnp.dot(h_r, whh_r, preferred_element_type=jnp.float32)
        h_f, c_f = cell(g_f, c_f)
        h_r, c_r = cell(g_r, c_r)

    # hidden == cat(lstm_output[:, -1, :H], lstm_output[:, 0, H:]) == [h_fwd_last ; h_rev_last]
    hidden = jnp.concatenate([h_f, h_r], axis=-1)                         # (B, 2H)

    # ------------------ dropout (precomputed inverted mask) + Linear head ------------------
    hidden = hidden * drop_ref[...]
    o_ref[...] = (jnp.dot(hidden, clf_w_ref[...], preferred_element_type=jnp.float32)
                  + clf_b_ref[...]).astype(o_ref.dtype)


# ------------------------------ parameter init --------------------------------
def init_params(key):
    keys = iter(jax.random.split(key, 32))

    def nrm(shape, scale=0.02):
        return jax.random.normal(next(keys), shape, jnp.float32) * scale

    params = {
        "word_emb": nrm((V, H)),
        "pos_emb": nrm((S, H)),
        "emb_ln_g": jnp.ones((1, H), jnp.float32),
        "emb_ln_b": jnp.zeros((1, H), jnp.float32),
        # per-layer weights stacked on a leading L axis so one kernel holds all layers
        "wqkv": nrm((L, H, 3 * H)),
        "bqkv": jnp.zeros((L, 1, 3 * H), jnp.float32),
        "wo": nrm((L, H, H)),
        "bo": jnp.zeros((L, 1, H), jnp.float32),
        "ln1g": jnp.ones((L, 1, H), jnp.float32),
        "ln1b": jnp.zeros((L, 1, H), jnp.float32),
        "w1": nrm((L, H, FF)),
        "b1": jnp.zeros((L, 1, FF), jnp.float32),
        "w2": nrm((L, FF, H)),
        "b2": jnp.zeros((L, 1, H), jnp.float32),
        "ln2g": jnp.ones((L, 1, H), jnp.float32),
        "ln2b": jnp.zeros((L, 1, H), jnp.float32),
    }

    # BiLSTM (PyTorch gate order i,f,g,o; weights stored transposed: (H, 4H)).
    bound = 1.0 / math.sqrt(H)

    def uni(shape, bnd=bound):
        return jax.random.uniform(next(keys), shape, jnp.float32, -bnd, bnd)

    params["lstm"] = (
        uni((H, 4 * H)), uni((H, 4 * H)), uni((1, 4 * H)) + uni((1, 4 * H)),   # forward dir
        uni((H, 4 * H)), uni((H, 4 * H)), uni((1, 4 * H)) + uni((1, 4 * H)),   # reverse dir
    )

    cb = 1.0 / math.sqrt(2 * H)
    params["clf_w_t"] = uni((2 * H, NUM_LABELS), cb)
    params["clf_b"] = jnp.zeros((1, NUM_LABELS), jnp.float32)
    return params


# ------------------------------ full forward ----------------------------------
def custom_roberta_forward(input_ids, attention_mask, params, dropout_key, training=True):
    # embedding gather is glue (plain JAX); everything else runs in one fused Pallas kernel.
    emb = params["word_emb"][input_ids] + params["pos_emb"][None, :, :]          # (B, S, H)
    bias = ((1.0 - attention_mask.astype(jnp.float32)) * (-1e9)).reshape(B, 1, S)
    if training:  # F.dropout(hidden, 0.1) default training-mode semantics (inverted dropout)
        keep = jax.random.uniform(dropout_key, (B, 2 * H)) >= DROP_P
        drop = keep.astype(jnp.float32) * (1.0 / (1.0 - DROP_P))
    else:
        drop = jnp.ones((B, 2 * H), jnp.float32)

    args = (emb, bias, drop,
            params["emb_ln_g"], params["emb_ln_b"],
            params["wqkv"], params["bqkv"], params["wo"], params["bo"],
            params["ln1g"], params["ln1b"],
            params["w1"], params["b1"], params["w2"], params["b2"],
            params["ln2g"], params["ln2b"],
            *params["lstm"],
            params["clf_w_t"], params["clf_b"])

    # Grid-less call: every operand is a full-array VMEM-resident block (model is tiny),
    # so there is a single kernel launch and zero intermediate HBM round-trips.
    return pl.pallas_call(
        _fused_forward_kernel,
        out_shape=jax.ShapeDtypeStruct((B, NUM_LABELS), jnp.float32),
    )(*args)


if __name__ == "__main__":
    key = jax.random.PRNGKey(0)
    pkey, ikey, dkey = jax.random.split(key, 3)
    params = init_params(pkey)

    input_ids = jax.random.randint(ikey, (B, S), 0, V, dtype=jnp.int32)
    attention_mask = jnp.ones((B, S), jnp.float32).at[1, -2:].set(0.0)   # pad last 2 tokens of ex. 1

    out = custom_roberta_forward(input_ids, attention_mask, params, dkey)
    out = jax.block_until_ready(out)
    assert out.shape == (B, NUM_LABELS) and out.dtype == jnp.float32
    print("KERNEL_OK")
</pallas_src>

<mosaic_0001>
module attributes {stable_mosaic.version = 11 : i64} {
  func.func @_fused_forward_kernel(%arg0: memref<2x8x32xf32, #tpu.memory_space<vmem>>, %arg1: memref<2x1x8xf32, #tpu.memory_space<vmem>>, %arg2: memref<2x64xf32, #tpu.memory_space<vmem>>, %arg3: memref<1x32xf32, #tpu.memory_space<vmem>>, %arg4: memref<1x32xf32, #tpu.memory_space<vmem>>, %arg5: memref<2x32x96xf32, #tpu.memory_space<vmem>>, %arg6: memref<2x1x96xf32, #tpu.memory_space<vmem>>, %arg7: memref<2x32x32xf32, #tpu.memory_space<vmem>>, %arg8: memref<2x1x32xf32, #tpu.memory_space<vmem>>, %arg9: memref<2x1x32xf32, #tpu.memory_space<vmem>>, %arg10: memref<2x1x32xf32, #tpu.memory_space<vmem>>, %arg11: memref<2x32x64xf32, #tpu.memory_space<vmem>>, %arg12: memref<2x1x64xf32, #tpu.memory_space<vmem>>, %arg13: memref<2x64x32xf32, #tpu.memory_space<vmem>>, %arg14: memref<2x1x32xf32, #tpu.memory_space<vmem>>, %arg15: memref<2x1x32xf32, #tpu.memory_space<vmem>>, %arg16: memref<2x1x32xf32, #tpu.memory_space<vmem>>, %arg17: memref<32x128xf32, #tpu.memory_space<vmem>>, %arg18: memref<32x128xf32, #tpu.memory_space<vmem>>, %arg19: memref<1x128xf32, #tpu.memory_space<vmem>>, %arg20: memref<32x128xf32, #tpu.memory_space<vmem>>, %arg21: memref<32x128xf32, #tpu.memory_space<vmem>>, %arg22: memref<1x128xf32, #tpu.memory_space<vmem>>, %arg23: memref<64x1xf32, #tpu.memory_space<vmem>>, %arg24: memref<1x1xf32, #tpu.memory_space<vmem>>, %arg25: memref<2x1xf32, #tpu.memory_space<vmem>>) attributes {dimension_semantics = [], scalar_prefetch = 0 : i64, scratch_operands = 0 : i64, tpu.core_type = #tpu.core_type<tc>} {
    %c0 = arith.constant 0 : index
    %c0_0 = arith.constant 0 : index
    %c0_1 = arith.constant 0 : index
    %0 = vector.load %arg0[%c0, %c0_0, %c0_1] : memref<2x8x32xf32, #tpu.memory_space<vmem>>, vector<2x8x32xf32>
    %1 = vector.shape_cast %0 : vector<2x8x32xf32> to vector<16x32xf32>
    %c0_2 = arith.constant 0 : index
    %c0_3 = arith.constant 0 : index
    %2 = vector.load %arg3[%c0_2, %c0_3] : memref<1x32xf32, #tpu.memory_space<vmem>>, vector<1x32xf32>
    %c0_4 = arith.constant 0 : index
    %c0_5 = arith.constant 0 : index
    %3 = vector.load %arg4[%c0_4, %c0_5] : memref<1x32xf32, #tpu.memory_space<vmem>>, vector<1x32xf32>
    %cst = arith.constant dense<0.000000e+00> : vector<16xf32>
    %4 = vector.multi_reduction <add>, %1, %cst [1] : vector<16x32xf32> to vector<16xf32>
    %5 = vector.shape_cast %4 : vector<16xf32> to vector<16x1xf32>
    %cst_6 = arith.constant 3.200000e+01 : f32
    %6 = vector.broadcast %cst_6 : f32 to vector<16x1xf32>
    %7 = arith.divf %5, %6 : vector<16x1xf32>
    %8 = vector.broadcast %7 : vector<16x1xf32> to vector<16x32xf32>
    %9 = arith.subf %1, %8 : vector<16x32xf32>
    %10 = arith.mulf %9, %9 : vector<16x32xf32>
    %cst_7 = arith.constant dense<0.000000e+00> : vector<16xf32>
    %11 = vector.multi_reduction <add>, %10, %cst_7 [1] : vector<16x32xf32> to vector<16xf32>
    %12 = vector.shape_cast %11 : vector<16xf32> to vector<16x1xf32>
    %cst_8 = arith.constant 3.200000e+01 : f32
    %13 = vector.broadcast %cst_8 : f32 to vector<16x1xf32>
    %14 = arith.divf %12, %13 : vector<16x1xf32>
    %15 = vector.broadcast %7 : vector<16x1xf32> to vector<16x32xf32>
    %16 = arith.subf %1, %15 : vector<16x32xf32>
    %cst_9 = arith.constant 9.99999974E-6 : f32
    %17 = vector.broadcast %cst_9 : f32 to vector<16x1xf32>
    %18 = arith.addf %14, %17 : vector<16x1xf32>
    %19 = math.rsqrt %18 : vector<16x1xf32>
    %20 = vector.broadcast %19 : vector<16x1xf32> to vector<16x32xf32>
    %21 = arith.mulf %16, %20 : vector<16x32xf32>
    %22 = vector.broadcast %2 : vector<1x32xf32> to vector<16x32xf32>
    %23 = arith.mulf %21, %22 : vector<16x32xf32>
    %24 = vector.broadcast %3 : vector<1x32xf32> to vector<16x32xf32>
    %25 = arith.addf %23, %24 : vector<16x32xf32>
    %c0_10 = arith.constant 0 : index
    %c0_11 = arith.constant 0 : index
    %c0_12 = arith.constant 0 : index
    %26 = vector.load %arg1[%c0_10, %c0_11, %c0_12] : memref<2x1x8xf32, #tpu.memory_space<vmem>>, vector<2x1x8xf32>
    %c0_13 = arith.constant 0 : index
    %c0_14 = arith.constant 0 : index
    %c0_15 = arith.constant 0 : index
    %27 = vector.load %arg5[%c0_13, %c0_14, %c0_15] : memref<2x32x96xf32, #tpu.memory_space<vmem>>, vector<1x32x96xf32>
    %28 = vector.shape_cast %27 : vector<1x32x96xf32> to vector<32x96xf32>
    %c0_16 = arith.constant 0 : index
    %c0_17 = arith.constant 0 : index
    %c0_18 = arith.constant 0 : index
    %29 = vector.load %arg7[%c0_16, %c0_17, %c0_18] : memref<2x32x32xf32, #tpu.memory_space<vmem>>, vector<1x32x32xf32>
    %30 = vector.shape_cast %29 : vector<1x32x32xf32> to vector<32x32xf32>
    %cst_19 = arith.constant dense<0.000000e+00> : vector<16x96xf32>
    %31 = tpu.matmul %25, %28, %cst_19 {dimension_numbers = #tpu.dot_dimension_numbers<[1], [0], [0], [1], [0, 0, 1, 1], [], []>} : vector<16x32xf32>, vector<32x96xf32>, vector<16x96xf32> -> vector<16x96xf32>
    %c0_20 = arith.constant 0 : index
    %c0_21 = arith.constant 0 : index
    %c0_22 = arith.constant 0 : index
    %32 = vector.load %arg6[%c0_20, %c0_21, %c0_22] : memref<2x1x96xf32, #tpu.memory_space<vmem>>, vector<1x1x96xf32>
    %33 = vector.shape_cast %32 : vector<1x1x96xf32> to vector<1x96xf32>
    %34 = vector.broadcast %33 : vector<1x96xf32> to vector<16x96xf32>
    %35 = arith.addf %31, %34 : vector<16x96xf32>
    %c0_23 = arith.constant 0 : index
    %c0_24 = arith.constant 0 : index
    %c0_25 = arith.constant 0 : index
    %36 = vector.load %arg8[%c0_23, %c0_24, %c0_25] : memref<2x1x32xf32, #tpu.memory_space<vmem>>, vector<1x1x32xf32>
    %37 = vector.shape_cast %36 : vector<1x1x32xf32> to vector<1x32xf32>
    %38 = vector.extract_strided_slice %35 {offsets = [0, 0], sizes = [16, 8], strides = [1, 1]} : vector<16x96xf32> to vector<16x8xf32>
    %39 = vector.shape_cast %38 : vector<16x8xf32> to vector<2x8x8xf32>
    %40 = vector.extract_strided_slice %35 {offsets = [0, 32], sizes = [16, 8], strides = [1, 1]} : vector<16x96xf32> to vector<16x8xf32>
    %41 = vector.shape_cast %40 : vector<16x8xf32> to vector<2x8x8xf32>
    %42 = vector.extract_strided_slice %35 {offsets = [0, 64], sizes = [16, 8], strides = [1, 1]} : vector<16x96xf32> to vector<16x8xf32>
    %43 = vector.shape_cast %42 : vector<16x8xf32> to vector<2x8x8xf32>
    "tpu.trace_start"() <{level = 10 : i32, message = "bqd,bkd->bqk"}> : () -> ()
    %cst_26 = arith.constant dense<0.000000e+00> : vector<2x8x8xf32>
    %44 = tpu.matmul %39, %41, %cst_26 {dimension_numbers = #tpu.dot_dimension_numbers<[2], [2], [1], [1], [0, 0, 0, 1, 1, 1], [0], [0]>} : vector<2x8x8xf32>, vector<2x8x8xf32>, vector<2x8x8xf32> -> vector<2x8x8xf32>
    "tpu.trace_stop"() : () -> ()
    %cst_27 = arith.constant 0.353553385 : f32
    %45 = vector.broadcast %cst_27 : f32 to vector<2x8x8xf32>
    %46 = arith.mulf %44, %45 : vector<2x8x8xf32>
    %47 = vector.broadcast %26 : vector<2x1x8xf32> to vector<2x8x8xf32>
    %48 = arith.addf %46, %47 : vector<2x8x8xf32>
    %cst_28 = arith.constant dense<0xFF800000> : vector<2x8xf32>
    %49 = vector.multi_reduction <maximumf>, %48, %cst_28 [2] : vector<2x8x8xf32> to vector<2x8xf32>
    %50 = vector.shape_cast %49 : vector<2x8xf32> to vector<2x8x1xf32>
    %51 = vector.broadcast %50 : vector<2x8x1xf32> to vector<2x8x8xf32>
    %52 = arith.subf %48, %51 : vector<2x8x8xf32>
    %53 = math.exp %52 : vector<2x8x8xf32>
    %cst_29 = arith.constant dense<0.000000e+00> : vector<2x8xf32>
    %54 = vector.multi_reduction <add>, %53, %cst_29 [2] : vector<2x8x8xf32> to vector<2x8xf32>
    %55 = vector.shape_cast %54 : vector<2x8xf32> to vector<2x8x1xf32>
    %56 = vector.broadcast %55 : vector<2x8x1xf32> to vector<2x8x8xf32>
    %57 = arith.divf %53, %56 : vector<2x8x8xf32>
    "tpu.trace_start"() <{level = 10 : i32, message = "bqk,bkd->bqd"}> : () -> ()
    %cst_30 = arith.constant dense<0.000000e+00> : vector<2x8x8xf32>
    %58 = tpu.matmul %57, %43, %cst_30 {dimension_numbers = #tpu.dot_dimension_numbers<[2], [1], [1], [2], [0, 0, 0, 1, 1, 2], [0], [0]>} : vector<2x8x8xf32>, vector<2x8x8xf32>, vector<2x8x8xf32> -> vector<2x8x8xf32>
    "tpu.trace_stop"() : () -> ()
    %59 = vector.shape_cast %58 : vector<2x8x8xf32> to vector<16x8xf32>
    %60 = vector.extract_strided_slice %30 {offsets = [0, 0], sizes = [8, 32], strides = [1, 1]} : vector<32x32xf32> to vector<8x32xf32>
    %cst_31 = arith.constant dense<0.000000e+00> : vector<16x32xf32>
    %61 = tpu.matmul %59, %60, %cst_31 {dimension_numbers = #tpu.dot_dimension_numbers<[1], [0], [0], [1], [0, 0, 1, 1], [], []>} : vector<16x8xf32>, vector<8x32xf32>, vector<16x32xf32> -> vector<16x32xf32>
    %62 = vector.broadcast %37 : vector<1x32xf32> to vector<16x32xf32>
    %63 = arith.addf %62, %61 : vector<16x32xf32>
    %64 = vector.extract_strided_slice %35 {offsets = [0, 8], sizes = [16, 8], strides = [1, 1]} : vector<16x96xf32> to vector<16x8xf32>
    %65 = vector.shape_cast %64 : vector<16x8xf32> to vector<2x8x8xf32>
    %66 = vector.extract_strided_slice %35 {offsets = [0, 40], sizes = [16, 8], strides = [1, 1]} : vector<16x96xf32> to vector<16x8xf32>
    %67 = vector.shape_cast %66 : vector<16x8xf32> to vector<2x8x8xf32>
    %68 = vector.extract_strided_slice %35 {offsets = [0, 72], sizes = [16, 8], strides = [1, 1]} : vector<16x96xf32> to vector<16x8xf32>
    %69 = vector.shape_cast %68 : vector<16x8xf32> to vector<2x8x8xf32>
    "tpu.trace_start"() <{level = 10 : i32, message = "bqd,bkd->bqk"}> : () -> ()
    %cst_32 = arith.constant dense<0.000000e+00> : vector<2x8x8xf32>
    %70 = tpu.matmul %65, %67, %cst_32 {dimension_numbers = #tpu.dot_dimension_numbers<[2], [2], [1], [1], [0, 0, 0, 1, 1, 1], [0], [0]>} : vector<2x8x8xf32>, vector<2x8x8xf32>, vector<2x8x8xf32> -> vector<2x8x8xf32>
    "tpu.trace_stop"() : () -> ()
    %cst_33 = arith.constant 0.353553385 : f32
    %71 = vector.broadcast %cst_33 : f32 to vector<2x8x8xf32>
    %72 = arith.mulf %70, %71 : vector<2x8x8xf32>
    %73 = vector.broadcast %26 : vector<2x1x8xf32> to vector<2x8x8xf32>
    %74 = arith.addf %72, %73 : vector<2x8x8xf32>
    %cst_34 = arith.constant dense<0xFF800000> : vector<2x8xf32>
    %75 = vector.multi_reduction <maximumf>, %74, %cst_34 [2] : vector<2x8x8xf32> to vector<2x8xf32>
    %76 = vector.shape_cast %75 : vector<2x8xf32> to vector<2x8x1xf32>
    %77 = vector.broadcast %76 : vector<2x8x1xf32> to vector<2x8x8xf32>
    %78 = arith.subf %74, %77 : vector<2x8x8xf32>
    %79 = math.exp %78 : vector<2x8x8xf32>
    %cst_35 = arith.constant dense<0.000000e+00> : vector<2x8xf32>
    %80 = vector.multi_reduction <add>, %79, %cst_35 [2] : vector<2x8x8xf32> to vector<2x8xf32>
    %81 = vector.shape_cast %80 : vector<2x8xf32> to vector<2x8x1xf32>
    %82 = vector.broadcast %81 : vector<2x8x1xf32> to vector<2x8x8xf32>
    %83 = arith.divf %79, %82 : vector<2x8x8xf32>
    "tpu.trace_start"() <{level = 10 : i32, message = "bqk,bkd->bqd"}> : () -> ()
    %cst_36 = arith.constant dense<0.000000e+00> : vector<2x8x8xf32>
    %84 = tpu.matmul %83, %69, %cst_36 {dimension_numbers = #tpu.dot_dimension_numbers<[2], [1], [1], [2], [0, 0, 0, 1, 1, 2], [0], [0]>} : vector<2x8x8xf32>, vector<2x8x8xf32>, vector<2x8x8xf32> -> vector<2x8x8xf32>
    "tpu.trace_stop"() : () -> ()
    %85 = vector.shape_cast %84 : vector<2x8x8xf32> to vector<16x8xf32>
    %86 = vector.extract_strided_slice %30 {offsets = [8, 0], sizes = [8, 32], strides = [1, 1]} : vector<32x32xf32> to vector<8x32xf32>
    %cst_37 = arith.constant dense<0.000000e+00> : vector<16x32xf32>
    %87 = tpu.matmul %85, %86, %cst_37 {dimension_numbers = #tpu.dot_dimension_numbers<[1], [0], [0], [1], [0, 0, 1, 1], [], []>} : vector<16x8xf32>, vector<8x32xf32>, vector<16x32xf32> -> vector<16x32xf32>
    %88 = arith.addf %63, %87 : vector<16x32xf32>
    %89 = vector.extract_strided_slice %35 {offsets = [0, 16], sizes = [16, 8], strides = [1, 1]} : vector<16x96xf32> to vector<16x8xf32>
    %90 = vector.shape_cast %89 : vector<16x8xf32> to vector<2x8x8xf32>
    %91 = vector.extract_strided_slice %35 {offsets = [0, 48], sizes = [16, 8], strides = [1, 1]} : vector<16x96xf32> to vector<16x8xf32>
    %92 = vector.shape_cast %91 : vector<16x8xf32> to vector<2x8x8xf32>
    %93 = vector.extract_strided_slice %35 {offsets = [0, 80], sizes = [16, 8], strides = [1, 1]} : vector<16x96xf32> to vector<16x8xf32>
    %94 = vector.shape_cast %93 : vector<16x8xf32> to vector<2x8x8xf32>
    "tpu.trace_start"() <{level = 10 : i32, message = "bqd,bkd->bqk"}> : () -> ()
    %cst_38 = arith.constant dense<0.000000e+00> : vector<2x8x8xf32>
    %95 = tpu.matmul %90, %92, %cst_38 {dimension_numbers = #tpu.dot_dimension_numbers<[2], [2], [1], [1], [0, 0, 0, 1, 1, 1], [0], [0]>} : vector<2x8x8xf32>, vector<2x8x8xf32>, vector<2x8x8xf32> -> vector<2x8x8xf32>
    "tpu.trace_stop"() : () -> ()
    %cst_39 = arith.constant 0.353553385 : f32
    %96 = vector.broadcast %cst_39 : f32 to vector<2x8x8xf32>
    %97 = arith.mulf %95, %96 : vector<2x8x8xf32>
    %98 = vector.broadcast %26 : vector<2x1x8xf32> to vector<2x8x8xf32>
    %99 = arith.addf %97, %98 : vector<2x8x8xf32>
    %cst_40 = arith.constant dense<0xFF800000> : vector<2x8xf32>
    %100 = vector.multi_reduction <maximumf>, %99, %cst_40 [2] : vector<2x8x8xf32> to vector<2x8xf32>
    %101 = vector.shape_cast %100 : vector<2x8xf32> to vector<2x8x1xf32>
    %102 = vector.broadcast %101 : vector<2x8x1xf32> to vector<2x8x8xf32>
    %103 = arith.subf %99, %102 : vector<2x8x8xf32>
    %104 = math.exp %103 : vector<2x8x8xf32>
    %cst_41 = arith.constant dense<0.000000e+00> : vector<2x8xf32>
    %105 = vector.multi_reduction <add>, %104, %cst_41 [2] : vector<2x8x8xf32> to vector<2x8xf32>
    %106 = vector.shape_cast %105 : vector<2x8xf32> to vector<2x8x1xf32>
    %107 = vector.broadcast %106 : vector<2x8x1xf32> to vector<2x8x8xf32>
    %108 = arith.divf %104, %107 : vector<2x8x8xf32>
    "tpu.trace_start"() <{level = 10 : i32, message = "bqk,bkd->bqd"}> : () -> ()
    %cst_42 = arith.constant dense<0.000000e+00> : vector<2x8x8xf32>
    %109 = tpu.matmul %108, %94, %cst_42 {dimension_numbers = #tpu.dot_dimension_numbers<[2], [1], [1], [2], [0, 0, 0, 1, 1, 2], [0], [0]>} : vector<2x8x8xf32>, vector<2x8x8xf32>, vector<2x8x8xf32> -> vector<2x8x8xf32>
    "tpu.trace_stop"() : () -> ()
    %110 = vector.shape_cast %109 : vector<2x8x8xf32> to vector<16x8xf32>
    %111 = vector.extract_strided_slice %30 {offsets = [16, 0], sizes = [8, 32], strides = [1, 1]} : vector<32x32xf32> to vector<8x32xf32>
    %cst_43 = arith.constant dense<0.000000e+00> : vector<16x32xf32>
    %112 = tpu.matmul %110, %111, %cst_43 {dimension_numbers = #tpu.dot_dimension_numbers<[1], [0], [0], [1], [0, 0, 1, 1], [], []>} : vector<16x8xf32>, vector<8x32xf32>, vector<16x32xf32> -> vector<16x32xf32>
    %113 = arith.addf %88, %112 : vector<16x32xf32>
    %114 = vector.extract_strided_slice %35 {offsets = [0, 24], sizes = [16, 8], strides = [1, 1]} : vector<16x96xf32> to vector<16x8xf32>
    %115 = vector.shape_cast %114 : vector<16x8xf32> to vector<2x8x8xf32>
    %116 = vector.extract_strided_slice %35 {offsets = [0, 56], sizes = [16, 8], strides = [1, 1]} : vector<16x96xf32> to vector<16x8xf32>
    %117 = vector.shape_cast %116 : vector<16x8xf32> to vector<2x8x8xf32>
    %118 = vector.extract_strided_slice %35 {offsets = [0, 88], sizes = [16, 8], strides = [1, 1]} : vector<16x96xf32> to vector<16x8xf32>
    %119 = vector.shape_cast %118 : vector<16x8xf32> to vector<2x8x8xf32>
    "tpu.trace_start"() <{level = 10 : i32, message = "bqd,bkd->bqk"}> : () -> ()
    %cst_44 = arith.constant dense<0.000000e+00> : vector<2x8x8xf32>
    %120 = tpu.matmul %115, %117, %cst_44 {dimension_numbers = #tpu.dot_dimension_numbers<[2], [2], [1], [1], [0, 0, 0, 1, 1, 1], [0], [0]>} : vector<2x8x8xf32>, vector<2x8x8xf32>, vector<2x8x8xf32> -> vector<2x8x8xf32>
    "tpu.trace_stop"() : () -> ()
    %cst_45 = arith.constant 0.353553385 : f32
    %121 = vector.broadcast %cst_45 : f32 to vector<2x8x8xf32>
    %122 = arith.mulf %120, %121 : vector<2x8x8xf32>
    %123 = vector.broadcast %26 : vector<2x1x8xf32> to vector<2x8x8xf32>
    %124 = arith.addf %122, %123 : vector<2x8x8xf32>
    %cst_46 = arith.constant dense<0xFF800000> : vector<2x8xf32>
    %125 = vector.multi_reduction <maximumf>, %124, %cst_46 [2] : vector<2x8x8xf32> to vector<2x8xf32>
    %126 = vector.shape_cast %125 : vector<2x8xf32> to vector<2x8x1xf32>
    %127 = vector.broadcast %126 : vector<2x8x1xf32> to vector<2x8x8xf32>
    %128 = arith.subf %124, %127 : vector<2x8x8xf32>
    %129 = math.exp %128 : vector<2x8x8xf32>
    %cst_47 = arith.constant dense<0.000000e+00> : vector<2x8xf32>
    %130 = vector.multi_reduction <add>, %129, %cst_47 [2] : vector<2x8x8xf32> to vector<2x8xf32>
    %131 = vector.shape_cast %130 : vector<2x8xf32> to vector<2x8x1xf32>
    %132 = vector.broadcast %131 : vector<2x8x1xf32> to vector<2x8x8xf32>
    %133 = arith.divf %129, %132 : vector<2x8x8xf32>
    "tpu.trace_start"() <{level = 10 : i32, message = "bqk,bkd->bqd"}> : () -> ()
    %cst_48 = arith.constant dense<0.000000e+00> : vector<2x8x8xf32>
    %134 = tpu.matmul %133, %119, %cst_48 {dimension_numbers = #tpu.dot_dimension_numbers<[2], [1], [1], [2], [0, 0, 0, 1, 1, 2], [0], [0]>} : vector<2x8x8xf32>, vector<2x8x8xf32>, vector<2x8x8xf32> -> vector<2x8x8xf32>
    "tpu.trace_stop"() : () -> ()
    %135 = vector.shape_cast %134 : vector<2x8x8xf32> to vector<16x8xf32>
    %136 = vector.extract_strided_slice %30 {offsets = [24, 0], sizes = [8, 32], strides = [1, 1]} : vector<32x32xf32> to vector<8x32xf32>
    %cst_49 = arith.constant dense<0.000000e+00> : vector<16x32xf32>
    %137 = tpu.matmul %135, %136, %cst_49 {dimension_numbers = #tpu.dot_dimension_numbers<[1], [0], [0], [1], [0, 0, 1, 1], [], []>} : vector<16x8xf32>, vector<8x32xf32>, vector<16x32xf32> -> vector<16x32xf32>
    %138 = arith.addf %113, %137 : vector<16x32xf32>
    %139 = arith.addf %25, %138 : vector<16x32xf32>
    %c0_50 = arith.constant 0 : index
    %c0_51 = arith.constant 0 : index
    %c0_52 = arith.constant 0 : index
    %140 = vector.load %arg9[%c0_50, %c0_51, %c0_52] : memref<2x1x32xf32, #tpu.memory_space<vmem>>, vector<1x1x32xf32>
    %141 = vector.shape_cast %140 : vector<1x1x32xf32> to vector<1x32xf32>
    %c0_53 = arith.constant 0 : index
    %c0_54 = arith.constant 0 : index
    %c0_55 = arith.constant 0 : index
    %142 = vector.load %arg10[%c0_53, %c0_54, %c0_55] : memref<2x1x32xf32, #tpu.memory_space<vmem>>, vector<1x1x32xf32>
    %143 = vector.shape_cast %142 : vector<1x1x32xf32> to vector<1x32xf32>
    %cst_56 = arith.constant dense<0.000000e+00> : vector<16xf32>
    %144 = vector.multi_reduction <add>, %139, %cst_56 [1] : vector<16x32xf32> to vector<16xf32>
    %145 = vector.shape_cast %144 : vector<16xf32> to vector<16x1xf32>
    %cst_57 = arith.constant 3.200000e+01 : f32
    %146 = vector.broadcast %cst_57 : f32 to vector<16x1xf32>
    %147 = arith.divf %145, %146 : vector<16x1xf32>
    %148 = vector.broadcast %147 : vector<16x1xf32> to vector<16x32xf32>
    %149 = arith.subf %139, %148 : vector<16x32xf32>
    %150 = arith.mulf %149, %149 : vector<16x32xf32>
    %cst_58 = arith.constant dense<0.000000e+00> : vector<16xf32>
    %151 = vector.multi_reduction <add>, %150, %cst_58 [1] : vector<16x32xf32> to vector<16xf32>
    %152 = vector.shape_cast %151 : vector<16xf32> to vector<16x1xf32>
    %cst_59 = arith.constant 3.200000e+01 : f32
    %153 = vector.broadcast %cst_59 : f32 to vector<16x1xf32>
    %154 = arith.divf %152, %153 : vector<16x1xf32>
    %155 = vector.broadcast %147 : vector<16x1xf32> to vector<16x32xf32>
    %156 = arith.subf %139, %155 : vector<16x32xf32>
    %cst_60 = arith.constant 9.99999974E-6 : f32
    %157 = vector.broadcast %cst_60 : f32 to vector<16x1xf32>
    %158 = arith.addf %154, %157 : vector<16x1xf32>
    %159 = math.rsqrt %158 : vector<16x1xf32>
    %160 = vector.broadcast %159 : vector<16x1xf32> to vector<16x32xf32>
    %161 = arith.mulf %156, %160 : vector<16x32xf32>
    %162 = vector.broadcast %141 : vector<1x32xf32> to vector<16x32xf32>
    %163 = arith.mulf %161, %162 : vector<16x32xf32>
    %164 = vector.broadcast %143 : vector<1x32xf32> to vector<16x32xf32>
    %165 = arith.addf %163, %164 : vector<16x32xf32>
    %c0_61 = arith.constant 0 : index
    %c0_62 = arith.constant 0 : index
    %c0_63 = arith.constant 0 : index
    %166 = vector.load %arg11[%c0_61, %c0_62, %c0_63] : memref<2x32x64xf32, #tpu.memory_space<vmem>>, vector<1x32x64xf32>
    %167 = vector.shape_cast %166 : vector<1x32x64xf32> to vector<32x64xf32>
    %cst_64 = arith.constant dense<0.000000e+00> : vector<16x64xf32>
    %168 = tpu.matmul %165, %167, %cst_64 {dimension_numbers = #tpu.dot_dimension_numbers<[1], [0], [0], [1], [0, 0, 1, 1], [], []>} : vector<16x32xf32>, vector<32x64xf32>, vector<16x64xf32> -> vector<16x64xf32>
    %c0_65 = arith.constant 0 : index
    %c0_66 = arith.constant 0 : index
    %c0_67 = arith.constant 0 : index
    %169 = vector.load %arg12[%c0_65, %c0_66, %c0_67] : memref<2x1x64xf32, #tpu.memory_space<vmem>>, vector<1x1x64xf32>
    %170 = vector.shape_cast %169 : vector<1x1x64xf32> to vector<1x64xf32>
    %171 = vector.broadcast %170 : vector<1x64xf32> to vector<16x64xf32>
    %172 = arith.addf %168, %171 : vector<16x64xf32>
    %173 = arith.mulf %172, %172 : vector<16x64xf32>
    %174 = arith.mulf %172, %173 : vector<16x64xf32>
    %cst_68 = arith.constant 4.471500e-02 : f32
    %175 = vector.broadcast %cst_68 : f32 to vector<16x64xf32>
    %176 = arith.mulf %175, %174 : vector<16x64xf32>
    %177 = arith.addf %172, %176 : vector<16x64xf32>
    %cst_69 = arith.constant 0.797884583 : f32
    %178 = vector.broadcast %cst_69 : f32 to vector<16x64xf32>
    %179 = arith.mulf %178, %177 : vector<16x64xf32>
    %180 = math.tanh %179 : vector<16x64xf32>
    %cst_70 = arith.constant 1.000000e+00 : f32
    %181 = vector.broadcast %cst_70 : f32 to vector<16x64xf32>
    %182 = arith.addf %181, %180 : vector<16x64xf32>
    %cst_71 = arith.constant 5.000000e-01 : f32
    %183 = vector.broadcast %cst_71 : f32 to vector<16x64xf32>
    %184 = arith.mulf %183, %182 : vector<16x64xf32>
    %185 = arith.mulf %172, %184 : vector<16x64xf32>
    %c0_72 = arith.constant 0 : index
    %c0_73 = arith.constant 0 : index
    %c0_74 = arith.constant 0 : index
    %186 = vector.load %arg13[%c0_72, %c0_73, %c0_74] : memref<2x64x32xf32, #tpu.memory_space<vmem>>, vector<1x64x32xf32>
    %187 = vector.shape_cast %186 : vector<1x64x32xf32> to vector<64x32xf32>
    %cst_75 = arith.constant dense<0.000000e+00> : vector<16x32xf32>
    %188 = tpu.matmul %185, %187, %cst_75 {dimension_numbers = #tpu.dot_dimension_numbers<[1], [0], [0], [1], [0, 0, 1, 1], [], []>} : vector<16x64xf32>, vector<64x32xf32>, vector<16x32xf32> -> vector<16x32xf32>
    %c0_76 = arith.constant 0 : index
    %c0_77 = arith.constant 0 : index
    %c0_78 = arith.constant 0 : index
    %189 = vector.load %arg14[%c0_76, %c0_77, %c0_78] : memref<2x1x32xf32, #tpu.memory_space<vmem>>, vector<1x1x32xf32>
    %190 = vector.shape_cast %189 : vector<1x1x32xf32> to vector<1x32xf32>
    %191 = vector.broadcast %190 : vector<1x32xf32> to vector<16x32xf32>
    %192 = arith.addf %188, %191 : vector<16x32xf32>
    %193 = arith.addf %165, %192 : vector<16x32xf32>
    %c0_79 = arith.constant 0 : index
    %c0_80 = arith.constant 0 : index
    %c0_81 = arith.constant 0 : index
    %194 = vector.load %arg15[%c0_79, %c0_80, %c0_81] : memref<2x1x32xf32, #tpu.memory_space<vmem>>, vector<1x1x32xf32>
    %195 = vector.shape_cast %194 : vector<1x1x32xf32> to vector<1x32xf32>
    %c0_82 = arith.constant 0 : index
    %c0_83 = arith.constant 0 : index
    %c0_84 = arith.constant 0 : index
    %196 = vector.load %arg16[%c0_82, %c0_83, %c0_84] : memref<2x1x32xf32, #tpu.memory_space<vmem>>, vector<1x1x32xf32>
    %197 = vector.shape_cast %196 : vector<1x1x32xf32> to vector<1x32xf32>
    %cst_85 = arith.constant dense<0.000000e+00> : vector<16xf32>
    %198 = vector.multi_reduction <add>, %193, %cst_85 [1] : vector<16x32xf32> to vector<16xf32>
    %199 = vector.shape_cast %198 : vector<16xf32> to vector<16x1xf32>
    %cst_86 = arith.constant 3.200000e+01 : f32
    %200 = vector.broadcast %cst_86 : f32 to vector<16x1xf32>
    %201 = arith.divf %199, %200 : vector<16x1xf32>
    %202 = vector.broadcast %201 : vector<16x1xf32> to vector<16x32xf32>
    %203 = arith.subf %193, %202 : vector<16x32xf32>
    %204 = arith.mulf %203, %203 : vector<16x32xf32>
    %cst_87 = arith.constant dense<0.000000e+00> : vector<16xf32>
    %205 = vector.multi_reduction <add>, %204, %cst_87 [1] : vector<16x32xf32> to vector<16xf32>
    %206 = vector.shape_cast %205 : vector<16xf32> to vector<16x1xf32>
    %cst_88 = arith.constant 3.200000e+01 : f32
    %207 = vector.broadcast %cst_88 : f32 to vector<16x1xf32>
    %208 = arith.divf %206, %207 : vector<16x1xf32>
    %209 = vector.broadcast %201 : vector<16x1xf32> to vector<16x32xf32>
    %210 = arith.subf %193, %209 : vector<16x32xf32>
    %cst_89 = arith.constant 9.99999974E-6 : f32
    %211 = vector.broadcast %cst_89 : f32 to vector<16x1xf32>
    %212 = arith.addf %208, %211 : vector<16x1xf32>
    %213 = math.rsqrt %212 : vector<16x1xf32>
    %214 = vector.broadcast %213 : vector<16x1xf32> to vector<16x32xf32>
    %215 = arith.mulf %210, %214 : vector<16x32xf32>
    %216 = vector.broadcast %195 : vector<1x32xf32> to vector<16x32xf32>
    %217 = arith.mulf %215, %216 : vector<16x32xf32>
    %218 = vector.broadcast %197 : vector<1x32xf32> to vector<16x32xf32>
    %219 = arith.addf %217, %218 : vector<16x32xf32>
    %c1 = arith.constant 1 : index
    %c0_90 = arith.constant 0 : index
    %c0_91 = arith.constant 0 : index
    %220 = vector.load %arg5[%c1, %c0_90, %c0_91] : memref<2x32x96xf32, #tpu.memory_space<vmem>>, vector<1x32x96xf32>
    %221 = vector.shape_cast %220 : vector<1x32x96xf32> to vector<32x96xf32>
    %c1_92 = arith.constant 1 : index
    %c0_93 = arith.constant 0 : index
    %c0_94 = arith.constant 0 : index
    %222 = vector.load %arg7[%c1_92, %c0_93, %c0_94] : memref<2x32x32xf32, #tpu.memory_space<vmem>>, vector<1x32x32xf32>
    %223 = vector.shape_cast %222 : vector<1x32x32xf32> to vector<32x32xf32>
    %cst_95 = arith.constant dense<0.000000e+00> : vector<16x96xf32>
    %224 = tpu.matmul %219, %221, %cst_95 {dimension_numbers = #tpu.dot_dimension_numbers<[1], [0], [0], [1], [0, 0, 1, 1], [], []>} : vector<16x32xf32>, vector<32x96xf32>, vector<16x96xf32> -> vector<16x96xf32>
    %c1_96 = arith.constant 1 : index
    %c0_97 = arith.constant 0 : index
    %c0_98 = arith.constant 0 : index
    %225 = vector.load %arg6[%c1_96, %c0_97, %c0_98] : memref<2x1x96xf32, #tpu.memory_space<vmem>>, vector<1x1x96xf32>
    %226 = vector.shape_cast %225 : vector<1x1x96xf32> to vector<1x96xf32>
    %227 = vector.broadcast %226 : vector<1x96xf32> to vector<16x96xf32>
    %228 = arith.addf %224, %227 : vector<16x96xf32>
    %c1_99 = arith.constant 1 : index
    %c0_100 = arith.constant 0 : index
    %c0_101 = arith.constant 0 : index
    %229 = vector.load %arg8[%c1_99, %c0_100, %c0_101] : memref<2x1x32xf32, #tpu.memory_space<vmem>>, vector<1x1x32xf32>
    %230 = vector.shape_cast %229 : vector<1x1x32xf32> to vector<1x32xf32>
    %231 = vector.extract_strided_slice %228 {offsets = [0, 0], sizes = [16, 8], strides = [1, 1]} : vector<16x96xf32> to vector<16x8xf32>
    %232 = vector.shape_cast %231 : vector<16x8xf32> to vector<2x8x8xf32>
    %233 = vector.extract_strided_slice %228 {offsets = [0, 32], sizes = [16, 8], strides = [1, 1]} : vector<16x96xf32> to vector<16x8xf32>
    %234 = vector.shape_cast %233 : vector<16x8xf32> to vector<2x8x8xf32>
    %235 = vector.extract_strided_slice %228 {offsets = [0, 64], sizes = [16, 8], strides = [1, 1]} : vector<16x96xf32> to vector<16x8xf32>
    %236 = vector.shape_cast %235 : vector<16x8xf32> to vector<2x8x8xf32>
    "tpu.trace_start"() <{level = 10 : i32, message = "bqd,bkd->bqk"}> : () -> ()
    %cst_102 = arith.constant dense<0.000000e+00> : vector<2x8x8xf32>
    %237 = tpu.matmul %232, %234, %cst_102 {dimension_numbers = #tpu.dot_dimension_numbers<[2], [2], [1], [1], [0, 0, 0, 1, 1, 1], [0], [0]>} : vector<2x8x8xf32>, vector<2x8x8xf32>, vector<2x8x8xf32> -> vector<2x8x8xf32>
    "tpu.trace_stop"() : () -> ()
    %cst_103 = arith.constant 0.353553385 : f32
    %238 = vector.broadcast %cst_103 : f32 to vector<2x8x8xf32>
    %239 = arith.mulf %237, %238 : vector<2x8x8xf32>
    %240 = vector.broadcast %26 : vector<2x1x8xf32> to vector<2x8x8xf32>
    %241 = arith.addf %239, %240 : vector<2x8x8xf32>
    %cst_104 = arith.constant dense<0xFF800000> : vector<2x8xf32>
    %242 = vector.multi_reduction <maximumf>, %241, %cst_104 [2] : vector<2x8x8xf32> to vector<2x8xf32>
    %243 = vector.shape_cast %242 : vector<2x8xf32> to vector<2x8x1xf32>
    %244 = vector.broadcast %243 : vector<2x8x1xf32> to vector<2x8x8xf32>
    %245 = arith.subf %241, %244 : vector<2x8x8xf32>
    %246 = math.exp %245 : vector<2x8x8xf32>
    %cst_105 = arith.constant dense<0.000000e+00> : vector<2x8xf32>
    %247 = vector.multi_reduction <add>, %246, %cst_105 [2] : vector<2x8x8xf32> to vector<2x8xf32>
    %248 = vector.shape_cast %247 : vector<2x8xf32> to vector<2x8x1xf32>
    %249 = vector.broadcast %248 : vector<2x8x1xf32> to vector<2x8x8xf32>
    %250 = arith.divf %246, %249 : vector<2x8x8xf32>
    "tpu.trace_start"() <{level = 10 : i32, message = "bqk,bkd->bqd"}> : () -> ()
    %cst_106 = arith.constant dense<0.000000e+00> : vector<2x8x8xf32>
    %251 = tpu.matmul %250, %236, %cst_106 {dimension_numbers = #tpu.dot_dimension_numbers<[2], [1], [1], [2], [0, 0, 0, 1, 1, 2], [0], [0]>} : vector<2x8x8xf32>, vector<2x8x8xf32>, vector<2x8x8xf32> -> vector<2x8x8xf32>
    "tpu.trace_stop"() : () -> ()
    %252 = vector.shape_cast %251 : vector<2x8x8xf32> to vector<16x8xf32>
    %253 = vector.extract_strided_slice %223 {offsets = [0, 0], sizes = [8, 32], strides = [1, 1]} : vector<32x32xf32> to vector<8x32xf32>
    %cst_107 = arith.constant dense<0.000000e+00> : vector<16x32xf32>
    %254 = tpu.matmul %252, %253, %cst_107 {dimension_numbers = #tpu.dot_dimension_numbers<[1], [0], [0], [1], [0, 0, 1, 1], [], []>} : vector<16x8xf32>, vector<8x32xf32>, vector<16x32xf32> -> vector<16x32xf32>
    %255 = vector.broadcast %230 : vector<1x32xf32> to vector<16x32xf32>
    %256 = arith.addf %255, %254 : vector<16x32xf32>
    %257 = vector.extract_strided_slice %228 {offsets = [0, 8], sizes = [16, 8], strides = [1, 1]} : vector<16x96xf32> to vector<16x8xf32>
    %258 = vector.shape_cast %257 : vector<16x8xf32> to vector<2x8x8xf32>
    %259 = vector.extract_strided_slice %228 {offsets = [0, 40], sizes = [16, 8], strides = [1, 1]} : vector<16x96xf32> to vector<16x8xf32>
    %260 = vector.shape_cast %259 : vector<16x8xf32> to vector<2x8x8xf32>
    %261 = vector.extract_strided_slice %228 {offsets = [0, 72], sizes = [16, 8], strides = [1, 1]} : vector<16x96xf32> to vector<16x8xf32>
    %262 = vector.shape_cast %261 : vector<16x8xf32> to vector<2x8x8xf32>
    "tpu.trace_start"() <{level = 10 : i32, message = "bqd,bkd->bqk"}> : () -> ()
    %cst_108 = arith.constant dense<0.000000e+00> : vector<2x8x8xf32>
    %263 = tpu.matmul %258, %260, %cst_108 {dimension_numbers = #tpu.dot_dimension_numbers<[2], [2], [1], [1], [0, 0, 0, 1, 1, 1], [0], [0]>} : vector<2x8x8xf32>, vector<2x8x8xf32>, vector<2x8x8xf32> -> vector<2x8x8xf32>
    "tpu.trace_stop"() : () -> ()
    %cst_109 = arith.constant 0.353553385 : f32
    %264 = vector.broadcast %cst_109 : f32 to vector<2x8x8xf32>
    %265 = arith.mulf %263, %264 : vector<2x8x8xf32>
    %266 = vector.broadcast %26 : vector<2x1x8xf32> to vector<2x8x8xf32>
    %267 = arith.addf %265, %266 : vector<2x8x8xf32>
    %cst_110 = arith.constant dense<0xFF800000> : vector<2x8xf32>
    %268 = vector.multi_reduction <maximumf>, %267, %cst_110 [2] : vector<2x8x8xf32> to vector<2x8xf32>
    %269 = vector.shape_cast %268 : vector<2x8xf32> to vector<2x8x1xf32>
    %270 = vector.broadcast %269 : vector<2x8x1xf32> to vector<2x8x8xf32>
    %271 = arith.subf %267, %270 : vector<2x8x8xf32>
    %272 = math.exp %271 : vector<2x8x8xf32>
    %cst_111 = arith.constant dense<0.000000e+00> : vector<2x8xf32>
    %273 = vector.multi_reduction <add>, %272, %cst_111 [2] : vector<2x8x8xf32> to vector<2x8xf32>
    %274 = vector.shape_cast %273 : vector<2x8xf32> to vector<2x8x1xf32>
    %275 = vector.broadcast %274 : vector<2x8x1xf32> to vector<2x8x8xf32>
    %276 = arith.divf %272, %275 : vector<2x8x8xf32>
    "tpu.trace_start"() <{level = 10 : i32, message = "bqk,bkd->bqd"}> : () -> ()
    %cst_112 = arith.constant dense<0.000000e+00> : vector<2x8x8xf32>
    %277 = tpu.matmul %276, %262, %cst_112 {dimension_numbers = #tpu.dot_dimension_numbers<[2], [1], [1], [2], [0, 0, 0, 1, 1, 2], [0], [0]>} : vector<2x8x8xf32>, vector<2x8x8xf32>, vector<2x8x8xf32> -> vector<2x8x8xf32>
    "tpu.trace_stop"() : () -> ()
    %278 = vector.shape_cast %277 : vector<2x8x8xf32> to vector<16x8xf32>
    %279 = vector.extract_strided_slice %223 {offsets = [8, 0], sizes = [8, 32], strides = [1, 1]} : vector<32x32xf32> to vector<8x32xf32>
    %cst_113 = arith.constant dense<0.000000e+00> : vector<16x32xf32>
    %280 = tpu.matmul %278, %279, %cst_113 {dimension_numbers = #tpu.dot_dimension_numbers<[1], [0], [0], [1], [0, 0, 1, 1], [], []>} : vector<16x8xf32>, vector<8x32xf32>, vector<16x32xf32> -> vector<16x32xf32>
    %281 = arith.addf %256, %280 : vector<16x32xf32>
    %282 = vector.extract_strided_slice %228 {offsets = [0, 16], sizes = [16, 8], strides = [1, 1]} : vector<16x96xf32> to vector<16x8xf32>
    %283 = vector.shape_cast %282 : vector<16x8xf32> to vector<2x8x8xf32>
    %284 = vector.extract_strided_slice %228 {offsets = [0, 48], sizes = [16, 8], strides = [1, 1]} : vector<16x96xf32> to vector<16x8xf32>
    %285 = vector.shape_cast %284 : vector<16x8xf32> to vector<2x8x8xf32>
    %286 = vector.extract_strided_slice %228 {offsets = [0, 80], sizes = [16, 8], strides = [1, 1]} : vector<16x96xf32> to vector<16x8xf32>
    %287 = vector.shape_cast %286 : vector<16x8xf32> to vector<2x8x8xf32>
    "tpu.trace_start"() <{level = 10 : i32, message = "bqd,bkd->bqk"}> : () -> ()
    %cst_114 = arith.constant dense<0.000000e+00> : vector<2x8x8xf32>
    %288 = tpu.matmul %283, %285, %cst_114 {dimension_numbers = #tpu.dot_dimension_numbers<[2], [2], [1], [1], [0, 0, 0, 1, 1, 1], [0], [0]>} : vector<2x8x8xf32>, vector<2x8x8xf32>, vector<2x8x8xf32> -> vector<2x8x8xf32>
    "tpu.trace_stop"() : () -> ()
    %cst_115 = arith.constant 0.353553385 : f32
    %289 = vector.broadcast %cst_115 : f32 to vector<2x8x8xf32>
    %290 = arith.mulf %288, %289 : vector<2x8x8xf32>
    %291 = vector.broadcast %26 : vector<2x1x8xf32> to vector<2x8x8xf32>
    %292 = arith.addf %290, %291 : vector<2x8x8xf32>
    %cst_116 = arith.constant dense<0xFF800000> : vector<2x8xf32>
    %293 = vector.multi_reduction <maximumf>, %292, %cst_116 [2] : vector<2x8x8xf32> to vector<2x8xf32>
    %294 = vector.shape_cast %293 : vector<2x8xf32> to vector<2x8x1xf32>
    %295 = vector.broadcast %294 : vector<2x8x1xf32> to vector<2x8x8xf32>
    %296 = arith.subf %292, %295 : vector<2x8x8xf32>
    %297 = math.exp %296 : vector<2x8x8xf32>
    %cst_117 = arith.constant dense<0.000000e+00> : vector<2x8xf32>
    %298 = vector.multi_reduction <add>, %297, %cst_117 [2] : vector<2x8x8xf32> to vector<2x8xf32>
    %299 = vector.shape_cast %298 : vector<2x8xf32> to vector<2x8x1xf32>
    %300 = vector.broadcast %299 : vector<2x8x1xf32> to vector<2x8x8xf32>
    %301 = arith.divf %297, %300 : vector<2x8x8xf32>
    "tpu.trace_start"() <{level = 10 : i32, message = "bqk,bkd->bqd"}> : () -> ()
    %cst_118 = arith.constant dense<0.000000e+00> : vector<2x8x8xf32>
    %302 = tpu.matmul %301, %287, %cst_118 {dimension_numbers = #tpu.dot_dimension_numbers<[2], [1], [1], [2], [0, 0, 0, 1, 1, 2], [0], [0]>} : vector<2x8x8xf32>, vector<2x8x8xf32>, vector<2x8x8xf32> -> vector<2x8x8xf32>
    "tpu.trace_stop"() : () -> ()
    %303 = vector.shape_cast %302 : vector<2x8x8xf32> to vector<16x8xf32>
    %304 = vector.extract_strided_slice %223 {offsets = [16, 0], sizes = [8, 32], strides = [1, 1]} : vector<32x32xf32> to vector<8x32xf32>
    %cst_119 = arith.constant dense<0.000000e+00> : vector<16x32xf32>
    %305 = tpu.matmul %303, %304, %cst_119 {dimension_numbers = #tpu.dot_dimension_numbers<[1], [0], [0], [1], [0, 0, 1, 1], [], []>} : vector<16x8xf32>, vector<8x32xf32>, vector<16x32xf32> -> vector<16x32xf32>
    %306 = arith.addf %281, %305 : vector<16x32xf32>
    %307 = vector.extract_strided_slice %228 {offsets = [0, 24], sizes = [16, 8], strides = [1, 1]} : vector<16x96xf32> to vector<16x8xf32>
    %308 = vector.shape_cast %307 : vector<16x8xf32> to vector<2x8x8xf32>
    %309 = vector.extract_strided_slice %228 {offsets = [0, 56], sizes = [16, 8], strides = [1, 1]} : vector<16x96xf32> to vector<16x8xf32>
    %310 = vector.shape_cast %309 : vector<16x8xf32> to vector<2x8x8xf32>
    %311 = vector.extract_strided_slice %228 {offsets = [0, 88], sizes = [16, 8], strides = [1, 1]} : vector<16x96xf32> to vector<16x8xf32>
    %312 = vector.shape_cast %311 : vector<16x8xf32> to vector<2x8x8xf32>
    "tpu.trace_start"() <{level = 10 : i32, message = "bqd,bkd->bqk"}> : () -> ()
    %cst_120 = arith.constant dense<0.000000e+00> : vector<2x8x8xf32>
    %313 = tpu.matmul %308, %310, %cst_120 {dimension_numbers = #tpu.dot_dimension_numbers<[2], [2], [1], [1], [0, 0, 0, 1, 1, 1], [0], [0]>} : vector<2x8x8xf32>, vector<2x8x8xf32>, vector<2x8x8xf32> -> vector<2x8x8xf32>
    "tpu.trace_stop"() : () -> ()
    %cst_121 = arith.constant 0.353553385 : f32
    %314 = vector.broadcast %cst_121 : f32 to vector<2x8x8xf32>
    %315 = arith.mulf %313, %314 : vector<2x8x8xf32>
    %316 = vector.broadcast %26 : vector<2x1x8xf32> to vector<2x8x8xf32>
    %317 = arith.addf %315, %316 : vector<2x8x8xf32>
    %cst_122 = arith.constant dense<0xFF800000> : vector<2x8xf32>
    %318 = vector.multi_reduction <maximumf>, %317, %cst_122 [2] : vector<2x8x8xf32> to vector<2x8xf32>
    %319 = vector.shape_cast %318 : vector<2x8xf32> to vector<2x8x1xf32>
    %320 = vector.broadcast %319 : vector<2x8x1xf32> to vector<2x8x8xf32>
    %321 = arith.subf %317, %320 : vector<2x8x8xf32>
    %322 = math.exp %321 : vector<2x8x8xf32>
    %cst_123 = arith.constant dense<0.000000e+00> : vector<2x8xf32>
    %323 = vector.multi_reduction <add>, %322, %cst_123 [2] : vector<2x8x8xf32> to vector<2x8xf32>
    %324 = vector.shape_cast %323 : vector<2x8xf32> to vector<2x8x1xf32>
    %325 = vector.broadcast %324 : vector<2x8x1xf32> to vector<2x8x8xf32>
    %326 = arith.divf %322, %325 : vector<2x8x8xf32>
    "tpu.trace_start"() <{level = 10 : i32, message = "bqk,bkd->bqd"}> : () -> ()
    %cst_124 = arith.constant dense<0.000000e+00> : vector<2x8x8xf32>
    %327 = tpu.matmul %326, %312, %cst_124 {dimension_numbers = #tpu.dot_dimension_numbers<[2], [1], [1], [2], [0, 0, 0, 1, 1, 2], [0], [0]>} : vector<2x8x8xf32>, vector<2x8x8xf32>, vector<2x8x8xf32> -> vector<2x8x8xf32>
    "tpu.trace_stop"() : () -> ()
    %328 = vector.shape_cast %327 : vector<2x8x8xf32> to vector<16x8xf32>
    %329 = vector.extract_strided_slice %223 {offsets = [24, 0], sizes = [8, 32], strides = [1, 1]} : vector<32x32xf32> to vector<8x32xf32>
    %cst_125 = arith.constant dense<0.000000e+00> : vector<16x32xf32>
    %330 = tpu.matmul %328, %329, %cst_125 {dimension_numbers = #tpu.dot_dimension_numbers<[1], [0], [0], [1], [0, 0, 1, 1], [], []>} : vector<16x8xf32>, vector<8x32xf32>, vector<16x32xf32> -> vector<16x32xf32>
    %331 = arith.addf %306, %330 : vector<16x32xf32>
    %332 = arith.addf %219, %331 : vector<16x32xf32>
    %c1_126 = arith.constant 1 : index
    %c0_127 = arith.constant 0 : index
    %c0_128 = arith.constant 0 : index
    %333 = vector.load %arg9[%c1_126, %c0_127, %c0_128] : memref<2x1x32xf32, #tpu.memory_space<vmem>>, vector<1x1x32xf32>
    %334 = vector.shape_cast %333 : vector<1x1x32xf32> to vector<1x32xf32>
    %c1_129 = arith.constant 1 : index
    %c0_130 = arith.constant 0 : index
    %c0_131 = arith.constant 0 : index
    %335 = vector.load %arg10[%c1_129, %c0_130, %c0_131] : memref<2x1x32xf32, #tpu.memory_space<vmem>>, vector<1x1x32xf32>
    %336 = vector.shape_cast %335 : vector<1x1x32xf32> to vector<1x32xf32>
    %cst_132 = arith.constant dense<0.000000e+00> : vector<16xf32>
    %337 = vector.multi_reduction <add>, %332, %cst_132 [1] : vector<16x32xf32> to vector<16xf32>
    %338 = vector.shape_cast %337 : vector<16xf32> to vector<16x1xf32>
    %cst_133 = arith.constant 3.200000e+01 : f32
    %339 = vector.broadcast %cst_133 : f32 to vector<16x1xf32>
    %340 = arith.divf %338, %339 : vector<16x1xf32>
    %341 = vector.broadcast %340 : vector<16x1xf32> to vector<16x32xf32>
    %342 = arith.subf %332, %341 : vector<16x32xf32>
    %343 = arith.mulf %342, %342 : vector<16x32xf32>
    %cst_134 = arith.constant dense<0.000000e+00> : vector<16xf32>
    %344 = vector.multi_reduction <add>, %343, %cst_134 [1] : vector<16x32xf32> to vector<16xf32>
    %345 = vector.shape_cast %344 : vector<16xf32> to vector<16x1xf32>
    %cst_135 = arith.constant 3.200000e+01 : f32
    %346 = vector.broadcast %cst_135 : f32 to vector<16x1xf32>
    %347 = arith.divf %345, %346 : vector<16x1xf32>
    %348 = vector.broadcast %340 : vector<16x1xf32> to vector<16x32xf32>
    %349 = arith.subf %332, %348 : vector<16x32xf32>
    %cst_136 = arith.constant 9.99999974E-6 : f32
    %350 = vector.broadcast %cst_136 : f32 to vector<16x1xf32>
    %351 = arith.addf %347, %350 : vector<16x1xf32>
    %352 = math.rsqrt %351 : vector<16x1xf32>
    %353 = vector.broadcast %352 : vector<16x1xf32> to vector<16x32xf32>
    %354 = arith.mulf %349, %353 : vector<16x32xf32>
    %355 = vector.broadcast %334 : vector<1x32xf32> to vector<16x32xf32>
    %356 = arith.mulf %354, %355 : vector<16x32xf32>
    %357 = vector.broadcast %336 : vector<1x32xf32> to vector<16x32xf32>
    %358 = arith.addf %356, %357 : vector<16x32xf32>
    %c1_137 = arith.constant 1 : index
    %c0_138 = arith.constant 0 : index
    %c0_139 = arith.constant 0 : index
    %359 = vector.load %arg11[%c1_137, %c0_138, %c0_139] : memref<2x32x64xf32, #tpu.memory_space<vmem>>, vector<1x32x64xf32>
    %360 = vector.shape_cast %359 : vector<1x32x64xf32> to vector<32x64xf32>
    %cst_140 = arith.constant dense<0.000000e+00> : vector<16x64xf32>
    %361 = tpu.matmul %358, %360, %cst_140 {dimension_numbers = #tpu.dot_dimension_numbers<[1], [0], [0], [1], [0, 0, 1, 1], [], []>} : vector<16x32xf32>, vector<32x64xf32>, vector<16x64xf32> -> vector<16x64xf32>
    %c1_141 = arith.constant 1 : index
    %c0_142 = arith.constant 0 : index
    %c0_143 = arith.constant 0 : index
    %362 = vector.load %arg12[%c1_141, %c0_142, %c0_143] : memref<2x1x64xf32, #tpu.memory_space<vmem>>, vector<1x1x64xf32>
    %363 = vector.shape_cast %362 : vector<1x1x64xf32> to vector<1x64xf32>
    %364 = vector.broadcast %363 : vector<1x64xf32> to vector<16x64xf32>
    %365 = arith.addf %361, %364 : vector<16x64xf32>
    %366 = arith.mulf %365, %365 : vector<16x64xf32>
    %367 = arith.mulf %365, %366 : vector<16x64xf32>
    %cst_144 = arith.constant 4.471500e-02 : f32
    %368 = vector.broadcast %cst_144 : f32 to vector<16x64xf32>
    %369 = arith.mulf %368, %367 : vector<16x64xf32>
    %370 = arith.addf %365, %369 : vector<16x64xf32>
    %cst_145 = arith.constant 0.797884583 : f32
    %371 = vector.broadcast %cst_145 : f32 to vector<16x64xf32>
    %372 = arith.mulf %371, %370 : vector<16x64xf32>
    %373 = math.tanh %372 : vector<16x64xf32>
    %cst_146 = arith.constant 1.000000e+00 : f32
    %374 = vector.broadcast %cst_146 : f32 to vector<16x64xf32>
    %375 = arith.addf %374, %373 : vector<16x64xf32>
    %cst_147 = arith.constant 5.000000e-01 : f32
    %376 = vector.broadcast %cst_147 : f32 to vector<16x64xf32>
    %377 = arith.mulf %376, %375 : vector<16x64xf32>
    %378 = arith.mulf %365, %377 : vector<16x64xf32>
    %c1_148 = arith.constant 1 : index
    %c0_149 = arith.constant 0 : index
    %c0_150 = arith.constant 0 : index
    %379 = vector.load %arg13[%c1_148, %c0_149, %c0_150] : memref<2x64x32xf32, #tpu.memory_space<vmem>>, vector<1x64x32xf32>
    %380 = vector.shape_cast %379 : vector<1x64x32xf32> to vector<64x32xf32>
    %cst_151 = arith.constant dense<0.000000e+00> : vector<16x32xf32>
    %381 = tpu.matmul %378, %380, %cst_151 {dimension_numbers = #tpu.dot_dimension_numbers<[1], [0], [0], [1], [0, 0, 1, 1], [], []>} : vector<16x64xf32>, vector<64x32xf32>, vector<16x32xf32> -> vector<16x32xf32>
    %c1_152 = arith.constant 1 : index
    %c0_153 = arith.constant 0 : index
    %c0_154 = arith.constant 0 : index
    %382 = vector.load %arg14[%c1_152, %c0_153, %c0_154] : memref<2x1x32xf32, #tpu.memory_space<vmem>>, vector<1x1x32xf32>
    %383 = vector.shape_cast %382 : vector<1x1x32xf32> to vector<1x32xf32>
    %384 = vector.broadcast %383 : vector<1x32xf32> to vector<16x32xf32>
    %385 = arith.addf %381, %384 : vector<16x32xf32>
    %386 = arith.addf %358, %385 : vector<16x32xf32>
    %c1_155 = arith.constant 1 : index
    %c0_156 = arith.constant 0 : index
    %c0_157 = arith.constant 0 : index
    %387 = vector.load %arg15[%c1_155, %c0_156, %c0_157] : memref<2x1x32xf32, #tpu.memory_space<vmem>>, vector<1x1x32xf32>
    %388 = vector.shape_cast %387 : vector<1x1x32xf32> to vector<1x32xf32>
    %c1_158 = arith.constant 1 : index
    %c0_159 = arith.constant 0 : index
    %c0_160 = arith.constant 0 : index
    %389 = vector.load %arg16[%c1_158, %c0_159, %c0_160] : memref<2x1x32xf32, #tpu.memory_space<vmem>>, vector<1x1x32xf32>
    %390 = vector.shape_cast %389 : vector<1x1x32xf32> to vector<1x32xf32>
    %cst_161 = arith.constant dense<0.000000e+00> : vector<16xf32>
    %391 = vector.multi_reduction <add>, %386, %cst_161 [1] : vector<16x32xf32> to vector<16xf32>
    %392 = vector.shape_cast %391 : vector<16xf32> to vector<16x1xf32>
    %cst_162 = arith.constant 3.200000e+01 : f32
    %393 = vector.broadcast %cst_162 : f32 to vector<16x1xf32>
    %394 = arith.divf %392, %393 : vector<16x1xf32>
    %395 = vector.broadcast %394 : vector<16x1xf32> to vector<16x32xf32>
    %396 = arith.subf %386, %395 : vector<16x32xf32>
    %397 = arith.mulf %396, %396 : vector<16x32xf32>
    %cst_163 = arith.constant dense<0.000000e+00> : vector<16xf32>
    %398 = vector.multi_reduction <add>, %397, %cst_163 [1] : vector<16x32xf32> to vector<16xf32>
    %399 = vector.shape_cast %398 : vector<16xf32> to vector<16x1xf32>
    %cst_164 = arith.constant 3.200000e+01 : f32
    %400 = vector.broadcast %cst_164 : f32 to vector<16x1xf32>
    %401 = arith.divf %399, %400 : vector<16x1xf32>
    %402 = vector.broadcast %394 : vector<16x1xf32> to vector<16x32xf32>
    %403 = arith.subf %386, %402 : vector<16x32xf32>
    %cst_165 = arith.constant 9.99999974E-6 : f32
    %404 = vector.broadcast %cst_165 : f32 to vector<16x1xf32>
    %405 = arith.addf %401, %404 : vector<16x1xf32>
    %406 = math.rsqrt %405 : vector<16x1xf32>
    %407 = vector.broadcast %406 : vector<16x1xf32> to vector<16x32xf32>
    %408 = arith.mulf %403, %407 : vector<16x32xf32>
    %409 = vector.broadcast %388 : vector<1x32xf32> to vector<16x32xf32>
    %410 = arith.mulf %408, %409 : vector<16x32xf32>
    %411 = vector.broadcast %390 : vector<1x32xf32> to vector<16x32xf32>
    %412 = arith.addf %410, %411 : vector<16x32xf32>
    %c0_166 = arith.constant 0 : index
    %c0_167 = arith.constant 0 : index
    %413 = vector.load %arg17[%c0_166, %c0_167] : memref<32x128xf32, #tpu.memory_space<vmem>>, vector<32x128xf32>
    %cst_168 = arith.constant dense<0.000000e+00> : vector<16x128xf32>
    %414 = tpu.matmul %412, %413, %cst_168 {dimension_numbers = #tpu.dot_dimension_numbers<[1], [0], [0], [1], [0, 0, 1, 1], [], []>} : vector<16x32xf32>, vector<32x128xf32>, vector<16x128xf32> -> vector<16x128xf32>
    %c0_169 = arith.constant 0 : index
    %c0_170 = arith.constant 0 : index
    %415 = vector.load %arg19[%c0_169, %c0_170] : memref<1x128xf32, #tpu.memory_space<vmem>>, vector<1x128xf32>
    %416 = vector.broadcast %415 : vector<1x128xf32> to vector<16x128xf32>
    %417 = arith.addf %414, %416 : vector<16x128xf32>
    %418 = vector.shape_cast %417 : vector<16x128xf32> to vector<2x8x128xf32>
    %c0_171 = arith.constant 0 : index
    %c0_172 = arith.constant 0 : index
    %419 = vector.load %arg20[%c0_171, %c0_172] : memref<32x128xf32, #tpu.memory_space<vmem>>, vector<32x128xf32>
    %cst_173 = arith.constant dense<0.000000e+00> : vector<16x128xf32>
    %420 = tpu.matmul %412, %419, %cst_173 {dimension_numbers = #tpu.dot_dimension_numbers<[1], [0], [0], [1], [0, 0, 1, 1], [], []>} : vector<16x32xf32>, vector<32x128xf32>, vector<16x128xf32> -> vector<16x128xf32>
    %c0_174 = arith.constant 0 : index
    %c0_175 = arith.constant 0 : index
    %421 = vector.load %arg22[%c0_174, %c0_175] : memref<1x128xf32, #tpu.memory_space<vmem>>, vector<1x128xf32>
    %422 = vector.broadcast %421 : vector<1x128xf32> to vector<16x128xf32>
    %423 = arith.addf %420, %422 : vector<16x128xf32>
    %424 = vector.shape_cast %423 : vector<16x128xf32> to vector<2x8x128xf32>
    %c0_176 = arith.constant 0 : index
    %c0_177 = arith.constant 0 : index
    %425 = vector.load %arg18[%c0_176, %c0_177] : memref<32x128xf32, #tpu.memory_space<vmem>>, vector<32x128xf32>
    %c0_178 = arith.constant 0 : index
    %c0_179 = arith.constant 0 : index
    %426 = vector.load %arg21[%c0_178, %c0_179] : memref<32x128xf32, #tpu.memory_space<vmem>>, vector<32x128xf32>
    %cst_180 = arith.constant 0.000000e+00 : f32
    %427 = vector.broadcast %cst_180 : f32 to vector<2x32xf32>
    %cst_181 = arith.constant 0.000000e+00 : f32
    %428 = vector.broadcast %cst_181 : f32 to vector<2x32xf32>
    %cst_182 = arith.constant 0.000000e+00 : f32
    %429 = vector.broadcast %cst_182 : f32 to vector<2x32xf32>
    %cst_183 = arith.constant 0.000000e+00 : f32
    %430 = vector.broadcast %cst_183 : f32 to vector<2x32xf32>
    %431 = vector.extract_strided_slice %418 {offsets = [0, 0, 0], sizes = [2, 1, 128], strides = [1, 1, 1]} : vector<2x8x128xf32> to vector<2x1x128xf32>
    %432 = vector.shape_cast %431 : vector<2x1x128xf32> to vector<2x128xf32>
    %cst_184 = arith.constant dense<0.000000e+00> : vector<2x128xf32>
    %433 = tpu.matmul %427, %425, %cst_184 {dimension_numbers = #tpu.dot_dimension_numbers<[1], [0], [0], [1], [0, 0, 1, 1], [], []>} : vector<2x32xf32>, vector<32x128xf32>, vector<2x128xf32> -> vector<2x128xf32>
    %434 = arith.addf %432, %433 : vector<2x128xf32>
    %435 = vector.extract_strided_slice %424 {offsets = [0, 7, 0], sizes = [2, 1, 128], strides = [1, 1, 1]} : vector<2x8x128xf32> to vector<2x1x128xf32>
    %436 = vector.shape_cast %435 : vector<2x1x128xf32> to vector<2x128xf32>
    %cst_185 = arith.constant dense<0.000000e+00> : vector<2x128xf32>
    %437 = tpu.matmul %429, %426, %cst_185 {dimension_numbers = #tpu.dot_dimension_numbers<[1], [0], [0], [1], [0, 0, 1, 1], [], []>} : vector<2x32xf32>, vector<32x128xf32>, vector<2x128xf32> -> vector<2x128xf32>
    %438 = arith.addf %436, %437 : vector<2x128xf32>
    %439 = vector.extract_strided_slice %434 {offsets = [0, 0], sizes = [2, 32], strides = [1, 1]} : vector<2x128xf32> to vector<2x32xf32>
    %440 = arith.negf %439 : vector<2x32xf32>
    %441 = math.exp %440 : vector<2x32xf32>
    %cst_186 = arith.constant 1.000000e+00 : f32
    %442 = vector.broadcast %cst_186 : f32 to vector<2x32xf32>
    %443 = arith.addf %442, %441 : vector<2x32xf32>
    %444 = arith.divf %442, %443 : vector<2x32xf32>
    %445 = vector.extract_strided_slice %434 {offsets = [0, 32], sizes = [2, 32], strides = [1, 1]} : vector<2x128xf32> to vector<2x32xf32>
    %446 = arith.negf %445 : vector<2x32xf32>
    %447 = math.exp %446 : vector<2x32xf32>
    %cst_187 = arith.constant 1.000000e+00 : f32
    %448 = vector.broadcast %cst_187 : f32 to vector<2x32xf32>
    %449 = arith.addf %448, %447 : vector<2x32xf32>
    %450 = arith.divf %448, %449 : vector<2x32xf32>
    %451 = vector.extract_strided_slice %434 {offsets = [0, 64], sizes = [2, 32], strides = [1, 1]} : vector<2x128xf32> to vector<2x32xf32>
    %452 = math.tanh %451 : vector<2x32xf32>
    %453 = vector.extract_strided_slice %434 {offsets = [0, 96], sizes = [2, 32], strides = [1, 1]} : vector<2x128xf32> to vector<2x32xf32>
    %454 = arith.negf %453 : vector<2x32xf32>
    %455 = math.exp %454 : vector<2x32xf32>
    %cst_188 = arith.constant 1.000000e+00 : f32
    %456 = vector.broadcast %cst_188 : f32 to vector<2x32xf32>
    %457 = arith.addf %456, %455 : vector<2x32xf32>
    %458 = arith.divf %456, %457 : vector<2x32xf32>
    %459 = arith.mulf %450, %428 : vector<2x32xf32>
    %460 = arith.mulf %444, %452 : vector<2x32xf32>
    %461 = arith.addf %459, %460 : vector<2x32xf32>
    %462 = math.tanh %461 : vector<2x32xf32>
    %463 = arith.mulf %458, %462 : vector<2x32xf32>
    %464 = vector.extract_strided_slice %438 {offsets = [0, 0], sizes = [2, 32], strides = [1, 1]} : vector<2x128xf32> to vector<2x32xf32>
    %465 = arith.negf %464 : vector<2x32xf32>
    %466 = math.exp %465 : vector<2x32xf32>
    %cst_189 = arith.constant 1.000000e+00 : f32
    %467 = vector.broadcast %cst_189 : f32 to vector<2x32xf32>
    %468 = arith.addf %467, %466 : vector<2x32xf32>
    %469 = arith.divf %467, %468 : vector<2x32xf32>
    %470 = vector.extract_strided_slice %438 {offsets = [0, 32], sizes = [2, 32], strides = [1, 1]} : vector<2x128xf32> to vector<2x32xf32>
    %471 = arith.negf %470 : vector<2x32xf32>
    %472 = math.exp %471 : vector<2x32xf32>
    %cst_190 = arith.constant 1.000000e+00 : f32
    %473 = vector.broadcast %cst_190 : f32 to vector<2x32xf32>
    %474 = arith.addf %473, %472 : vector<2x32xf32>
    %475 = arith.divf %473, %474 : vector<2x32xf32>
    %476 = vector.extract_strided_slice %438 {offsets = [0, 64], sizes = [2, 32], strides = [1, 1]} : vector<2x128xf32> to vector<2x32xf32>
    %477 = math.tanh %476 : vector<2x32xf32>
    %478 = vector.extract_strided_slice %438 {offsets = [0, 96], sizes = [2, 32], strides = [1, 1]} : vector<2x128xf32> to vector<2x32xf32>
    %479 = arith.negf %478 : vector<2x32xf32>
    %480 = math.exp %479 : vector<2x32xf32>
    %cst_191 = arith.constant 1.000000e+00 : f32
    %481 = vector.broadcast %cst_191 : f32 to vector<2x32xf32>
    %482 = arith.addf %481, %480 : vector<2x32xf32>
    %483 = arith.divf %481, %482 : vector<2x32xf32>
    %484 = arith.mulf %475, %430 : vector<2x32xf32>
    %485 = arith.mulf %469, %477 : vector<2x32xf32>
    %486 = arith.addf %484, %485 : vector<2x32xf32>
    %487 = math.tanh %486 : vector<2x32xf32>
    %488 = arith.mulf %483, %487 : vector<2x32xf32>
    %489 = vector.extract_strided_slice %418 {offsets = [0, 1, 0], sizes = [2, 1, 128], strides = [1, 1, 1]} : vector<2x8x128xf32> to vector<2x1x128xf32>
    %490 = vector.shape_cast %489 : vector<2x1x128xf32> to vector<2x128xf32>
    %cst_192 = arith.constant dense<0.000000e+00> : vector<2x128xf32>
    %491 = tpu.matmul %463, %425, %cst_192 {dimension_numbers = #tpu.dot_dimension_numbers<[1], [0], [0], [1], [0, 0, 1, 1], [], []>} : vector<2x32xf32>, vector<32x128xf32>, vector<2x128xf32> -> vector<2x128xf32>
    %492 = arith.addf %490, %491 : vector<2x128xf32>
    %493 = vector.extract_strided_slice %424 {offsets = [0, 6, 0], sizes = [2, 1, 128], strides = [1, 1, 1]} : vector<2x8x128xf32> to vector<2x1x128xf32>
    %494 = vector.shape_cast %493 : vector<2x1x128xf32> to vector<2x128xf32>
    %cst_193 = arith.constant dense<0.000000e+00> : vector<2x128xf32>
    %495 = tpu.matmul %488, %426, %cst_193 {dimension_numbers = #tpu.dot_dimension_numbers<[1], [0], [0], [1], [0, 0, 1, 1], [], []>} : vector<2x32xf32>, vector<32x128xf32>, vector<2x128xf32> -> vector<2x128xf32>
    %496 = arith.addf %494, %495 : vector<2x128xf32>
    %497 = vector.extract_strided_slice %492 {offsets = [0, 0], sizes = [2, 32], strides = [1, 1]} : vector<2x128xf32> to vector<2x32xf32>
    %498 = arith.negf %497 : vector<2x32xf32>
    %499 = math.exp %498 : vector<2x32xf32>
    %cst_194 = arith.constant 1.000000e+00 : f32
    %500 = vector.broadcast %cst_194 : f32 to vector<2x32xf32>
    %501 = arith.addf %500, %499 : vector<2x32xf32>
    %502 = arith.divf %500, %501 : vector<2x32xf32>
    %503 = vector.extract_strided_slice %492 {offsets = [0, 32], sizes = [2, 32], strides = [1, 1]} : vector<2x128xf32> to vector<2x32xf32>
    %504 = arith.negf %503 : vector<2x32xf32>
    %505 = math.exp %504 : vector<2x32xf32>
    %cst_195 = arith.constant 1.000000e+00 : f32
    %506 = vector.broadcast %cst_195 : f32 to vector<2x32xf32>
    %507 = arith.addf %506, %505 : vector<2x32xf32>
    %508 = arith.divf %506, %507 : vector<2x32xf32>
    %509 = vector.extract_strided_slice %492 {offsets = [0, 64], sizes = [2, 32], strides = [1, 1]} : vector<2x128xf32> to vector<2x32xf32>
    %510 = math.tanh %509 : vector<2x32xf32>
    %511 = vector.extract_strided_slice %492 {offsets = [0, 96], sizes = [2, 32], strides = [1, 1]} : vector<2x128xf32> to vector<2x32xf32>
    %512 = arith.negf %511 : vector<2x32xf32>
    %513 = math.exp %512 : vector<2x32xf32>
    %cst_196 = arith.constant 1.000000e+00 : f32
    %514 = vector.broadcast %cst_196 : f32 to vector<2x32xf32>
    %515 = arith.addf %514, %513 : vector<2x32xf32>
    %516 = arith.divf %514, %515 : vector<2x32xf32>
    %517 = arith.mulf %508, %461 : vector<2x32xf32>
    %518 = arith.mulf %502, %510 : vector<2x32xf32>
    %519 = arith.addf %517, %518 : vector<2x32xf32>
    %520 = math.tanh %519 : vector<2x32xf32>
    %521 = arith.mulf %516, %520 : vector<2x32xf32>
    %522 = vector.extract_strided_slice %496 {offsets = [0, 0], sizes = [2, 32], strides = [1, 1]} : vector<2x128xf32> to vector<2x32xf32>
    %523 = arith.negf %522 : vector<2x32xf32>
    %524 = math.exp %523 : vector<2x32xf32>
    %cst_197 = arith.constant 1.000000e+00 : f32
    %525 = vector.broadcast %cst_197 : f32 to vector<2x32xf32>
    %526 = arith.addf %525, %524 : vector<2x32xf32>
    %527 = arith.divf %525, %526 : vector<2x32xf32>
    %528 = vector.extract_strided_slice %496 {offsets = [0, 32], sizes = [2, 32], strides = [1, 1]} : vector<2x128xf32> to vector<2x32xf32>
    %529 = arith.negf %528 : vector<2x32xf32>
    %530 = math.exp %529 : vector<2x32xf32>
    %cst_198 = arith.constant 1.000000e+00 : f32
    %531 = vector.broadcast %cst_198 : f32 to vector<2x32xf32>
    %532 = arith.addf %531, %530 : vector<2x32xf32>
    %533 = arith.divf %531, %532 : vector<2x32xf32>
    %534 = vector.extract_strided_slice %496 {offsets = [0, 64], sizes = [2, 32], strides = [1, 1]} : vector<2x128xf32> to vector<2x32xf32>
    %535 = math.tanh %534 : vector<2x32xf32>
    %536 = vector.extract_strided_slice %496 {offsets = [0, 96], sizes = [2, 32], strides = [1, 1]} : vector<2x128xf32> to vector<2x32xf32>
    %537 = arith.negf %536 : vector<2x32xf32>
    %538 = math.exp %537 : vector<2x32xf32>
    %cst_199 = arith.constant 1.000000e+00 : f32
    %539 = vector.broadcast %cst_199 : f32 to vector<2x32xf32>
    %540 = arith.addf %539, %538 : vector<2x32xf32>
    %541 = arith.divf %539, %540 : vector<2x32xf32>
    %542 = arith.mulf %533, %486 : vector<2x32xf32>
    %543 = arith.mulf %527, %535 : vector<2x32xf32>
    %544 = arith.addf %542, %543 : vector<2x32xf32>
    %545 = math.tanh %544 : vector<2x32xf32>
    %546 = arith.mulf %541, %545 : vector<2x32xf32>
    %547 = vector.extract_strided_slice %418 {offsets = [0, 2, 0], sizes = [2, 1, 128], strides = [1, 1, 1]} : vector<2x8x128xf32> to vector<2x1x128xf32>
    %548 = vector.shape_cast %547 : vector<2x1x128xf32> to vector<2x128xf32>
    %cst_200 = arith.constant dense<0.000000e+00> : vector<2x128xf32>
    %549 = tpu.matmul %521, %425, %cst_200 {dimension_numbers = #tpu.dot_dimension_numbers<[1], [0], [0], [1], [0, 0, 1, 1], [], []>} : vector<2x32xf32>, vector<32x128xf32>, vector<2x128xf32> -> vector<2x128xf32>
    %550 = arith.addf %548, %549 : vector<2x128xf32>
    %551 = vector.extract_strided_slice %424 {offsets = [0, 5, 0], sizes = [2, 1, 128], strides = [1, 1, 1]} : vector<2x8x128xf32> to vector<2x1x128xf32>
    %552 = vector.shape_cast %551 : vector<2x1x128xf32> to vector<2x128xf32>
    %cst_201 = arith.constant dense<0.000000e+00> : vector<2x128xf32>
    %553 = tpu.matmul %546, %426, %cst_201 {dimension_numbers = #tpu.dot_dimension_numbers<[1], [0], [0], [1], [0, 0, 1, 1], [], []>} : vector<2x32xf32>, vector<32x128xf32>, vector<2x128xf32> -> vector<2x128xf32>
    %554 = arith.addf %552, %553 : vector<2x128xf32>
    %555 = vector.extract_strided_slice %550 {offsets = [0, 0], sizes = [2, 32], strides = [1, 1]} : vector<2x128xf32> to vector<2x32xf32>
    %556 = arith.negf %555 : vector<2x32xf32>
    %557 = math.exp %556 : vector<2x32xf32>
    %cst_202 = arith.constant 1.000000e+00 : f32
    %558 = vector.broadcast %cst_202 : f32 to vector<2x32xf32>
    %559 = arith.addf %558, %557 : vector<2x32xf32>
    %560 = arith.divf %558, %559 : vector<2x32xf32>
    %561 = vector.extract_strided_slice %550 {offsets = [0, 32], sizes = [2, 32], strides = [1, 1]} : vector<2x128xf32> to vector<2x32xf32>
    %562 = arith.negf %561 : vector<2x32xf32>
    %563 = math.exp %562 : vector<2x32xf32>
    %cst_203 = arith.constant 1.000000e+00 : f32
    %564 = vector.broadcast %cst_203 : f32 to vector<2x32xf32>
    %565 = arith.addf %564, %563 : vector<2x32xf32>
    %566 = arith.divf %564, %565 : vector<2x32xf32>
    %567 = vector.extract_strided_slice %550 {offsets = [0, 64], sizes = [2, 32], strides = [1, 1]} : vector<2x128xf32> to vector<2x32xf32>
    %568 = math.tanh %567 : vector<2x32xf32>
    %569 = vector.extract_strided_slice %550 {offsets = [0, 96], sizes = [2, 32], strides = [1, 1]} : vector<2x128xf32> to vector<2x32xf32>
    %570 = arith.negf %569 : vector<2x32xf32>
    %571 = math.exp %570 : vector<2x32xf32>
    %cst_204 = arith.constant 1.000000e+00 : f32
    %572 = vector.broadcast %cst_204 : f32 to vector<2x32xf32>
    %573 = arith.addf %572, %571 : vector<2x32xf32>
    %574 = arith.divf %572, %573 : vector<2x32xf32>
    %575 = arith.mulf %566, %519 : vector<2x32xf32>
    %576 = arith.mulf %560, %568 : vector<2x32xf32>
    %577 = arith.addf %575, %576 : vector<2x32xf32>
    %578 = math.tanh %577 : vector<2x32xf32>
    %579 = arith.mulf %574, %578 : vector<2x32xf32>
    %580 = vector.extract_strided_slice %554 {offsets = [0, 0], sizes = [2, 32], strides = [1, 1]} : vector<2x128xf32> to vector<2x32xf32>
    %581 = arith.negf %580 : vector<2x32xf32>
    %582 = math.exp %581 : vector<2x32xf32>
    %cst_205 = arith.constant 1.000000e+00 : f32
    %583 = vector.broadcast %cst_205 : f32 to vector<2x32xf32>
    %584 = arith.addf %583, %582 : vector<2x32xf32>
    %585 = arith.divf %583, %584 : vector<2x32xf32>
    %586 = vector.extract_strided_slice %554 {offsets = [0, 32], sizes = [2, 32], strides = [1, 1]} : vector<2x128xf32> to vector<2x32xf32>
    %587 = arith.negf %586 : vector<2x32xf32>
    %588 = math.exp %587 : vector<2x32xf32>
    %cst_206 = arith.constant 1.000000e+00 : f32
    %589 = vector.broadcast %cst_206 : f32 to vector<2x32xf32>
    %590 = arith.addf %589, %588 : vector<2x32xf32>
    %591 = arith.divf %589, %590 : vector<2x32xf32>
    %592 = vector.extract_strided_slice %554 {offsets = [0, 64], sizes = [2, 32], strides = [1, 1]} : vector<2x128xf32> to vector<2x32xf32>
    %593 = math.tanh %592 : vector<2x32xf32>
    %594 = vector.extract_strided_slice %554 {offsets = [0, 96], sizes = [2, 32], strides = [1, 1]} : vector<2x128xf32> to vector<2x32xf32>
    %595 = arith.negf %594 : vector<2x32xf32>
    %596 = math.exp %595 : vector<2x32xf32>
    %cst_207 = arith.constant 1.000000e+00 : f32
    %597 = vector.broadcast %cst_207 : f32 to vector<2x32xf32>
    %598 = arith.addf %597, %596 : vector<2x32xf32>
    %599 = arith.divf %597, %598 : vector<2x32xf32>
    %600 = arith.mulf %591, %544 : vector<2x32xf32>
    %601 = arith.mulf %585, %593 : vector<2x32xf32>
    %602 = arith.addf %600, %601 : vector<2x32xf32>
    %603 = math.tanh %602 : vector<2x32xf32>
    %604 = arith.mulf %599, %603 : vector<2x32xf32>
    %605 = vector.extract_strided_slice %418 {offsets = [0, 3, 0], sizes = [2, 1, 128], strides = [1, 1, 1]} : vector<2x8x128xf32> to vector<2x1x128xf32>
    %606 = vector.shape_cast %605 : vector<2x1x128xf32> to vector<2x128xf32>
    %cst_208 = arith.constant dense<0.000000e+00> : vector<2x128xf32>
    %607 = tpu.matmul %579, %425, %cst_208 {dimension_numbers = #tpu.dot_dimension_numbers<[1], [0], [0], [1], [0, 0, 1, 1], [], []>} : vector<2x32xf32>, vector<32x128xf32>, vector<2x128xf32> -> vector<2x128xf32>
    %608 = arith.addf %606, %607 : vector<2x128xf32>
    %609 = vector.extract_strided_slice %424 {offsets = [0, 4, 0], sizes = [2, 1, 128], strides = [1, 1, 1]} : vector<2x8x128xf32> to vector<2x1x128xf32>
    %610 = vector.shape_cast %609 : vector<2x1x128xf32> to vector<2x128xf32>
    %cst_209 = arith.constant dense<0.000000e+00> : vector<2x128xf32>
    %611 = tpu.matmul %604, %426, %cst_209 {dimension_numbers = #tpu.dot_dimension_numbers<[1], [0], [0], [1], [0, 0, 1, 1], [], []>} : vector<2x32xf32>, vector<32x128xf32>, vector<2x128xf32> -> vector<2x128xf32>
    %612 = arith.addf %610, %611 : vector<2x128xf32>
    %613 = vector.extract_strided_slice %608 {offsets = [0, 0], sizes = [2, 32], strides = [1, 1]} : vector<2x128xf32> to vector<2x32xf32>
    %614 = arith.negf %613 : vector<2x32xf32>
    %615 = math.exp %614 : vector<2x32xf32>
    %cst_210 = arith.constant 1.000000e+00 : f32
    %616 = vector.broadcast %cst_210 : f32 to vector<2x32xf32>
    %617 = arith.addf %616, %615 : vector<2x32xf32>
    %618 = arith.divf %616, %617 : vector<2x32xf32>
    %619 = vector.extract_strided_slice %608 {offsets = [0, 32], sizes = [2, 32], strides = [1, 1]} : vector<2x128xf32> to vector<2x32xf32>
    %620 = arith.negf %619 : vector<2x32xf32>
    %621 = math.exp %620 : vector<2x32xf32>
    %cst_211 = arith.constant 1.000000e+00 : f32
    %622 = vector.broadcast %cst_211 : f32 to vector<2x32xf32>
    %623 = arith.addf %622, %621 : vector<2x32xf32>
    %624 = arith.divf %622, %623 : vector<2x32xf32>
    %625 = vector.extract_strided_slice %608 {offsets = [0, 64], sizes = [2, 32], strides = [1, 1]} : vector<2x128xf32> to vector<2x32xf32>
    %626 = math.tanh %625 : vector<2x32xf32>
    %627 = vector.extract_strided_slice %608 {offsets = [0, 96], sizes = [2, 32], strides = [1, 1]} : vector<2x128xf32> to vector<2x32xf32>
    %628 = arith.negf %627 : vector<2x32xf32>
    %629 = math.exp %628 : vector<2x32xf32>
    %cst_212 = arith.constant 1.000000e+00 : f32
    %630 = vector.broadcast %cst_212 : f32 to vector<2x32xf32>
    %631 = arith.addf %630, %629 : vector<2x32xf32>
    %632 = arith.divf %630, %631 : vector<2x32xf32>
    %633 = arith.mulf %624, %577 : vector<2x32xf32>
    %634 = arith.mulf %618, %626 : vector<2x32xf32>
    %635 = arith.addf %633, %634 : vector<2x32xf32>
    %636 = math.tanh %635 : vector<2x32xf32>
    %637 = arith.mulf %632, %636 : vector<2x32xf32>
    %638 = vector.extract_strided_slice %612 {offsets = [0, 0], sizes = [2, 32], strides = [1, 1]} : vector<2x128xf32> to vector<2x32xf32>
    %639 = arith.negf %638 : vector<2x32xf32>
    %640 = math.exp %639 : vector<2x32xf32>
    %cst_213 = arith.constant 1.000000e+00 : f32
    %641 = vector.broadcast %cst_213 : f32 to vector<2x32xf32>
    %642 = arith.addf %641, %640 : vector<2x32xf32>
    %643 = arith.divf %641, %642 : vector<2x32xf32>
    %644 = vector.extract_strided_slice %612 {offsets = [0, 32], sizes = [2, 32], strides = [1, 1]} : vector<2x128xf32> to vector<2x32xf32>
    %645 = arith.negf %644 : vector<2x32xf32>
    %646 = math.exp %645 : vector<2x32xf32>
    %cst_214 = arith.constant 1.000000e+00 : f32
    %647 = vector.broadcast %cst_214 : f32 to vector<2x32xf32>
    %648 = arith.addf %647, %646 : vector<2x32xf32>
    %649 = arith.divf %647, %648 : vector<2x32xf32>
    %650 = vector.extract_strided_slice %612 {offsets = [0, 64], sizes = [2, 32], strides = [1, 1]} : vector<2x128xf32> to vector<2x32xf32>
    %651 = math.tanh %650 : vector<2x32xf32>
    %652 = vector.extract_strided_slice %612 {offsets = [0, 96], sizes = [2, 32], strides = [1, 1]} : vector<2x128xf32> to vector<2x32xf32>
    %653 = arith.negf %652 : vector<2x32xf32>
    %654 = math.exp %653 : vector<2x32xf32>
    %cst_215 = arith.constant 1.000000e+00 : f32
    %655 = vector.broadcast %cst_215 : f32 to vector<2x32xf32>
    %656 = arith.addf %655, %654 : vector<2x32xf32>
    %657 = arith.divf %655, %656 : vector<2x32xf32>
    %658 = arith.mulf %649, %602 : vector<2x32xf32>
    %659 = arith.mulf %643, %651 : vector<2x32xf32>
    %660 = arith.addf %658, %659 : vector<2x32xf32>
    %661 = math.tanh %660 : vector<2x32xf32>
    %662 = arith.mulf %657, %661 : vector<2x32xf32>
    %663 = vector.extract_strided_slice %418 {offsets = [0, 4, 0], sizes = [2, 1, 128], strides = [1, 1, 1]} : vector<2x8x128xf32> to vector<2x1x128xf32>
    %664 = vector.shape_cast %663 : vector<2x1x128xf32> to vector<2x128xf32>
    %cst_216 = arith.constant dense<0.000000e+00> : vector<2x128xf32>
    %665 = tpu.matmul %637, %425, %cst_216 {dimension_numbers = #tpu.dot_dimension_numbers<[1], [0], [0], [1], [0, 0, 1, 1], [], []>} : vector<2x32xf32>, vector<32x128xf32>, vector<2x128xf32> -> vector<2x128xf32>
    %666 = arith.addf %664, %665 : vector<2x128xf32>
    %667 = vector.extract_strided_slice %424 {offsets = [0, 3, 0], sizes = [2, 1, 128], strides = [1, 1, 1]} : vector<2x8x128xf32> to vector<2x1x128xf32>
    %668 = vector.shape_cast %667 : vector<2x1x128xf32> to vector<2x128xf32>
    %cst_217 = arith.constant dense<0.000000e+00> : vector<2x128xf32>
    %669 = tpu.matmul %662, %426, %cst_217 {dimension_numbers = #tpu.dot_dimension_numbers<[1], [0], [0], [1], [0, 0, 1, 1], [], []>} : vector<2x32xf32>, vector<32x128xf32>, vector<2x128xf32> -> vector<2x128xf32>
    %670 = arith.addf %668, %669 : vector<2x128xf32>
    %671 = vector.extract_strided_slice %666 {offsets = [0, 0], sizes = [2, 32], strides = [1, 1]} : vector<2x128xf32> to vector<2x32xf32>
    %672 = arith.negf %671 : vector<2x32xf32>
    %673 = math.exp %672 : vector<2x32xf32>
    %cst_218 = arith.constant 1.000000e+00 : f32
    %674 = vector.broadcast %cst_218 : f32 to vector<2x32xf32>
    %675 = arith.addf %674, %673 : vector<2x32xf32>
    %676 = arith.divf %674, %675 : vector<2x32xf32>
    %677 = vector.extract_strided_slice %666 {offsets = [0, 32], sizes = [2, 32], strides = [1, 1]} : vector<2x128xf32> to vector<2x32xf32>
    %678 = arith.negf %677 : vector<2x32xf32>
    %679 = math.exp %678 : vector<2x32xf32>
    %cst_219 = arith.constant 1.000000e+00 : f32
    %680 = vector.broadcast %cst_219 : f32 to vector<2x32xf32>
    %681 = arith.addf %680, %679 : vector<2x32xf32>
    %682 = arith.divf %680, %681 : vector<2x32xf32>
    %683 = vector.extract_strided_slice %666 {offsets = [0, 64], sizes = [2, 32], strides = [1, 1]} : vector<2x128xf32> to vector<2x32xf32>
    %684 = math.tanh %683 : vector<2x32xf32>
    %685 = vector.extract_strided_slice %666 {offsets = [0, 96], sizes = [2, 32], strides = [1, 1]} : vector<2x128xf32> to vector<2x32xf32>
    %686 = arith.negf %685 : vector<2x32xf32>
    %687 = math.exp %686 : vector<2x32xf32>
    %cst_220 = arith.constant 1.000000e+00 : f32
    %688 = vector.broadcast %cst_220 : f32 to vector<2x32xf32>
    %689 = arith.addf %688, %687 : vector<2x32xf32>
    %690 = arith.divf %688, %689 : vector<2x32xf32>
    %691 = arith.mulf %682, %635 : vector<2x32xf32>
    %692 = arith.mulf %676, %684 : vector<2x32xf32>
    %693 = arith.addf %691, %692 : vector<2x32xf32>
    %694 = math.tanh %693 : vector<2x32xf32>
    %695 = arith.mulf %690, %694 : vector<2x32xf32>
    %696 = vector.extract_strided_slice %670 {offsets = [0, 0], sizes = [2, 32], strides = [1, 1]} : vector<2x128xf32> to vector<2x32xf32>
    %697 = arith.negf %696 : vector<2x32xf32>
    %698 = math.exp %697 : vector<2x32xf32>
    %cst_221 = arith.constant 1.000000e+00 : f32
    %699 = vector.broadcast %cst_221 : f32 to vector<2x32xf32>
    %700 = arith.addf %699, %698 : vector<2x32xf32>
    %701 = arith.divf %699, %700 : vector<2x32xf32>
    %702 = vector.extract_strided_slice %670 {offsets = [0, 32], sizes = [2, 32], strides = [1, 1]} : vector<2x128xf32> to vector<2x32xf32>
    %703 = arith.negf %702 : vector<2x32xf32>
    %704 = math.exp %703 : vector<2x32xf32>
    %cst_222 = arith.constant 1.000000e+00 : f32
    %705 = vector.broadcast %cst_222 : f32 to vector<2x32xf32>
    %706 = arith.addf %705, %704 : vector<2x32xf32>
    %707 = arith.divf %705, %706 : vector<2x32xf32>
    %708 = vector.extract_strided_slice %670 {offsets = [0, 64], sizes = [2, 32], strides = [1, 1]} : vector<2x128xf32> to vector<2x32xf32>
    %709 = math.tanh %708 : vector<2x32xf32>
    %710 = vector.extract_strided_slice %670 {offsets = [0, 96], sizes = [2, 32], strides = [1, 1]} : vector<2x128xf32> to vector<2x32xf32>
    %711 = arith.negf %710 : vector<2x32xf32>
    %712 = math.exp %711 : vector<2x32xf32>
    %cst_223 = arith.constant 1.000000e+00 : f32
    %713 = vector.broadcast %cst_223 : f32 to vector<2x32xf32>
    %714 = arith.addf %713, %712 : vector<2x32xf32>
    %715 = arith.divf %713, %714 : vector<2x32xf32>
    %716 = arith.mulf %707, %660 : vector<2x32xf32>
    %717 = arith.mulf %701, %709 : vector<2x32xf32>
    %718 = arith.addf %716, %717 : vector<2x32xf32>
    %719 = math.tanh %718 : vector<2x32xf32>
    %720 = arith.mulf %715, %719 : vector<2x32xf32>
    %721 = vector.extract_strided_slice %418 {offsets = [0, 5, 0], sizes = [2, 1, 128], strides = [1, 1, 1]} : vector<2x8x128xf32> to vector<2x1x128xf32>
    %722 = vector.shape_cast %721 : vector<2x1x128xf32> to vector<2x128xf32>
    %cst_224 = arith.constant dense<0.000000e+00> : vector<2x128xf32>
    %723 = tpu.matmul %695, %425, %cst_224 {dimension_numbers = #tpu.dot_dimension_numbers<[1], [0], [0], [1], [0, 0, 1, 1], [], []>} : vector<2x32xf32>, vector<32x128xf32>, vector<2x128xf32> -> vector<2x128xf32>
    %724 = arith.addf %722, %723 : vector<2x128xf32>
    %725 = vector.extract_strided_slice %424 {offsets = [0, 2, 0], sizes = [2, 1, 128], strides = [1, 1, 1]} : vector<2x8x128xf32> to vector<2x1x128xf32>
    %726 = vector.shape_cast %725 : vector<2x1x128xf32> to vector<2x128xf32>
    %cst_225 = arith.constant dense<0.000000e+00> : vector<2x128xf32>
    %727 = tpu.matmul %720, %426, %cst_225 {dimension_numbers = #tpu.dot_dimension_numbers<[1], [0], [0], [1], [0, 0, 1, 1], [], []>} : vector<2x32xf32>, vector<32x128xf32>, vector<2x128xf32> -> vector<2x128xf32>
    %728 = arith.addf %726, %727 : vector<2x128xf32>
    %729 = vector.extract_strided_slice %724 {offsets = [0, 0], sizes = [2, 32], strides = [1, 1]} : vector<2x128xf32> to vector<2x32xf32>
    %730 = arith.negf %729 : vector<2x32xf32>
    %731 = math.exp %730 : vector<2x32xf32>
    %cst_226 = arith.constant 1.000000e+00 : f32
    %732 = vector.broadcast %cst_226 : f32 to vector<2x32xf32>
    %733 = arith.addf %732, %731 : vector<2x32xf32>
    %734 = arith.divf %732, %733 : vector<2x32xf32>
    %735 = vector.extract_strided_slice %724 {offsets = [0, 32], sizes = [2, 32], strides = [1, 1]} : vector<2x128xf32> to vector<2x32xf32>
    %736 = arith.negf %735 : vector<2x32xf32>
    %737 = math.exp %736 : vector<2x32xf32>
    %cst_227 = arith.constant 1.000000e+00 : f32
    %738 = vector.broadcast %cst_227 : f32 to vector<2x32xf32>
    %739 = arith.addf %738, %737 : vector<2x32xf32>
    %740 = arith.divf %738, %739 : vector<2x32xf32>
    %741 = vector.extract_strided_slice %724 {offsets = [0, 64], sizes = [2, 32], strides = [1, 1]} : vector<2x128xf32> to vector<2x32xf32>
    %742 = math.tanh %741 : vector<2x32xf32>
    %743 = vector.extract_strided_slice %724 {offsets = [0, 96], sizes = [2, 32], strides = [1, 1]} : vector<2x128xf32> to vector<2x32xf32>
    %744 = arith.negf %743 : vector<2x32xf32>
    %745 = math.exp %744 : vector<2x32xf32>
    %cst_228 = arith.constant 1.000000e+00 : f32
    %746 = vector.broadcast %cst_228 : f32 to vector<2x32xf32>
    %747 = arith.addf %746, %745 : vector<2x32xf32>
    %748 = arith.divf %746, %747 : vector<2x32xf32>
    %749 = arith.mulf %740, %693 : vector<2x32xf32>
    %750 = arith.mulf %734, %742 : vector<2x32xf32>
    %751 = arith.addf %749, %750 : vector<2x32xf32>
    %752 = math.tanh %751 : vector<2x32xf32>
    %753 = arith.mulf %748, %752 : vector<2x32xf32>
    %754 = vector.extract_strided_slice %728 {offsets = [0, 0], sizes = [2, 32], strides = [1, 1]} : vector<2x128xf32> to vector<2x32xf32>
    %755 = arith.negf %754 : vector<2x32xf32>
    %756 = math.exp %755 : vector<2x32xf32>
    %cst_229 = arith.constant 1.000000e+00 : f32
    %757 = vector.broadcast %cst_229 : f32 to vector<2x32xf32>
    %758 = arith.addf %757, %756 : vector<2x32xf32>
    %759 = arith.divf %757, %758 : vector<2x32xf32>
    %760 = vector.extract_strided_slice %728 {offsets = [0, 32], sizes = [2, 32], strides = [1, 1]} : vector<2x128xf32> to vector<2x32xf32>
    %761 = arith.negf %760 : vector<2x32xf32>
    %762 = math.exp %761 : vector<2x32xf32>
    %cst_230 = arith.constant 1.000000e+00 : f32
    %763 = vector.broadcast %cst_230 : f32 to vector<2x32xf32>
    %764 = arith.addf %763, %762 : vector<2x32xf32>
    %765 = arith.divf %763, %764 : vector<2x32xf32>
    %766 = vector.extract_strided_slice %728 {offsets = [0, 64], sizes = [2, 32], strides = [1, 1]} : vector<2x128xf32> to vector<2x32xf32>
    %767 = math.tanh %766 : vector<2x32xf32>
    %768 = vector.extract_strided_slice %728 {offsets = [0, 96], sizes = [2, 32], strides = [1, 1]} : vector<2x128xf32> to vector<2x32xf32>
    %769 = arith.negf %768 : vector<2x32xf32>
    %770 = math.exp %769 : vector<2x32xf32>
    %cst_231 = arith.constant 1.000000e+00 : f32
    %771 = vector.broadcast %cst_231 : f32 to vector<2x32xf32>
    %772 = arith.addf %771, %770 : vector<2x32xf32>
    %773 = arith.divf %771, %772 : vector<2x32xf32>
    %774 = arith.mulf %765, %718 : vector<2x32xf32>
    %775 = arith.mulf %759, %767 : vector<2x32xf32>
    %776 = arith.addf %774, %775 : vector<2x32xf32>
    %777 = math.tanh %776 : vector<2x32xf32>
    %778 = arith.mulf %773, %777 : vector<2x32xf32>
    %779 = vector.extract_strided_slice %418 {offsets = [0, 6, 0], sizes = [2, 1, 128], strides = [1, 1, 1]} : vector<2x8x128xf32> to vector<2x1x128xf32>
    %780 = vector.shape_cast %779 : vector<2x1x128xf32> to vector<2x128xf32>
    %cst_232 = arith.constant dense<0.000000e+00> : vector<2x128xf32>
    %781 = tpu.matmul %753, %425, %cst_232 {dimension_numbers = #tpu.dot_dimension_numbers<[1], [0], [0], [1], [0, 0, 1, 1], [], []>} : vector<2x32xf32>, vector<32x128xf32>, vector<2x128xf32> -> vector<2x128xf32>
    %782 = arith.addf %780, %781 : vector<2x128xf32>
    %783 = vector.extract_strided_slice %424 {offsets = [0, 1, 0], sizes = [2, 1, 128], strides = [1, 1, 1]} : vector<2x8x128xf32> to vector<2x1x128xf32>
    %784 = vector.shape_cast %783 : vector<2x1x128xf32> to vector<2x128xf32>
    %cst_233 = arith.constant dense<0.000000e+00> : vector<2x128xf32>
    %785 = tpu.matmul %778, %426, %cst_233 {dimension_numbers = #tpu.dot_dimension_numbers<[1], [0], [0], [1], [0, 0, 1, 1], [], []>} : vector<2x32xf32>, vector<32x128xf32>, vector<2x128xf32> -> vector<2x128xf32>
    %786 = arith.addf %784, %785 : vector<2x128xf32>
    %787 = vector.extract_strided_slice %782 {offsets = [0, 0], sizes = [2, 32], strides = [1, 1]} : vector<2x128xf32> to vector<2x32xf32>
    %788 = arith.negf %787 : vector<2x32xf32>
    %789 = math.exp %788 : vector<2x32xf32>
    %cst_234 = arith.constant 1.000000e+00 : f32
    %790 = vector.broadcast %cst_234 : f32 to vector<2x32xf32>
    %791 = arith.addf %790, %789 : vector<2x32xf32>
    %792 = arith.divf %790, %791 : vector<2x32xf32>
    %793 = vector.extract_strided_slice %782 {offsets = [0, 32], sizes = [2, 32], strides = [1, 1]} : vector<2x128xf32> to vector<2x32xf32>
    %794 = arith.negf %793 : vector<2x32xf32>
    %795 = math.exp %794 : vector<2x32xf32>
    %cst_235 = arith.constant 1.000000e+00 : f32
    %796 = vector.broadcast %cst_235 : f32 to vector<2x32xf32>
    %797 = arith.addf %796, %795 : vector<2x32xf32>
    %798 = arith.divf %796, %797 : vector<2x32xf32>
    %799 = vector.extract_strided_slice %782 {offsets = [0, 64], sizes = [2, 32], strides = [1, 1]} : vector<2x128xf32> to vector<2x32xf32>
    %800 = math.tanh %799 : vector<2x32xf32>
    %801 = vector.extract_strided_slice %782 {offsets = [0, 96], sizes = [2, 32], strides = [1, 1]} : vector<2x128xf32> to vector<2x32xf32>
    %802 = arith.negf %801 : vector<2x32xf32>
    %803 = math.exp %802 : vector<2x32xf32>
    %cst_236 = arith.constant 1.000000e+00 : f32
    %804 = vector.broadcast %cst_236 : f32 to vector<2x32xf32>
    %805 = arith.addf %804, %803 : vector<2x32xf32>
    %806 = arith.divf %804, %805 : vector<2x32xf32>
    %807 = arith.mulf %798, %751 : vector<2x32xf32>
    %808 = arith.mulf %792, %800 : vector<2x32xf32>
    %809 = arith.addf %807, %808 : vector<2x32xf32>
    %810 = math.tanh %809 : vector<2x32xf32>
    %811 = arith.mulf %806, %810 : vector<2x32xf32>
    %812 = vector.extract_strided_slice %786 {offsets = [0, 0], sizes = [2, 32], strides = [1, 1]} : vector<2x128xf32> to vector<2x32xf32>
    %813 = arith.negf %812 : vector<2x32xf32>
    %814 = math.exp %813 : vector<2x32xf32>
    %cst_237 = arith.constant 1.000000e+00 : f32
    %815 = vector.broadcast %cst_237 : f32 to vector<2x32xf32>
    %816 = arith.addf %815, %814 : vector<2x32xf32>
    %817 = arith.divf %815, %816 : vector<2x32xf32>
    %818 = vector.extract_strided_slice %786 {offsets = [0, 32], sizes = [2, 32], strides = [1, 1]} : vector<2x128xf32> to vector<2x32xf32>
    %819 = arith.negf %818 : vector<2x32xf32>
    %820 = math.exp %819 : vector<2x32xf32>
    %cst_238 = arith.constant 1.000000e+00 : f32
    %821 = vector.broadcast %cst_238 : f32 to vector<2x32xf32>
    %822 = arith.addf %821, %820 : vector<2x32xf32>
    %823 = arith.divf %821, %822 : vector<2x32xf32>
    %824 = vector.extract_strided_slice %786 {offsets = [0, 64], sizes = [2, 32], strides = [1, 1]} : vector<2x128xf32> to vector<2x32xf32>
    %825 = math.tanh %824 : vector<2x32xf32>
    %826 = vector.extract_strided_slice %786 {offsets = [0, 96], sizes = [2, 32], strides = [1, 1]} : vector<2x128xf32> to vector<2x32xf32>
    %827 = arith.negf %826 : vector<2x32xf32>
    %828 = math.exp %827 : vector<2x32xf32>
    %cst_239 = arith.constant 1.000000e+00 : f32
    %829 = vector.broadcast %cst_239 : f32 to vector<2x32xf32>
    %830 = arith.addf %829, %828 : vector<2x32xf32>
    %831 = arith.divf %829, %830 : vector<2x32xf32>
    %832 = arith.mulf %823, %776 : vector<2x32xf32>
    %833 = arith.mulf %817, %825 : vector<2x32xf32>
    %834 = arith.addf %832, %833 : vector<2x32xf32>
    %835 = math.tanh %834 : vector<2x32xf32>
    %836 = arith.mulf %831, %835 : vector<2x32xf32>
    %837 = vector.extract_strided_slice %418 {offsets = [0, 7, 0], sizes = [2, 1, 128], strides = [1, 1, 1]} : vector<2x8x128xf32> to vector<2x1x128xf32>
    %838 = vector.shape_cast %837 : vector<2x1x128xf32> to vector<2x128xf32>
    %cst_240 = arith.constant dense<0.000000e+00> : vector<2x128xf32>
    %839 = tpu.matmul %811, %425, %cst_240 {dimension_numbers = #tpu.dot_dimension_numbers<[1], [0], [0], [1], [0, 0, 1, 1], [], []>} : vector<2x32xf32>, vector<32x128xf32>, vector<2x128xf32> -> vector<2x128xf32>
    %840 = arith.addf %838, %839 : vector<2x128xf32>
    %841 = vector.extract_strided_slice %424 {offsets = [0, 0, 0], sizes = [2, 1, 128], strides = [1, 1, 1]} : vector<2x8x128xf32> to vector<2x1x128xf32>
    %842 = vector.shape_cast %841 : vector<2x1x128xf32> to vector<2x128xf32>
    %cst_241 = arith.constant dense<0.000000e+00> : vector<2x128xf32>
    %843 = tpu.matmul %836, %426, %cst_241 {dimension_numbers = #tpu.dot_dimension_numbers<[1], [0], [0], [1], [0, 0, 1, 1], [], []>} : vector<2x32xf32>, vector<32x128xf32>, vector<2x128xf32> -> vector<2x128xf32>
    %844 = arith.addf %842, %843 : vector<2x128xf32>
    %845 = vector.extract_strided_slice %840 {offsets = [0, 0], sizes = [2, 32], strides = [1, 1]} : vector<2x128xf32> to vector<2x32xf32>
    %846 = arith.negf %845 : vector<2x32xf32>
    %847 = math.exp %846 : vector<2x32xf32>
    %cst_242 = arith.constant 1.000000e+00 : f32
    %848 = vector.broadcast %cst_242 : f32 to vector<2x32xf32>
    %849 = arith.addf %848, %847 : vector<2x32xf32>
    %850 = arith.divf %848, %849 : vector<2x32xf32>
    %851 = vector.extract_strided_slice %840 {offsets = [0, 32], sizes = [2, 32], strides = [1, 1]} : vector<2x128xf32> to vector<2x32xf32>
    %852 = arith.negf %851 : vector<2x32xf32>
    %853 = math.exp %852 : vector<2x32xf32>
    %cst_243 = arith.constant 1.000000e+00 : f32
    %854 = vector.broadcast %cst_243 : f32 to vector<2x32xf32>
    %855 = arith.addf %854, %853 : vector<2x32xf32>
    %856 = arith.divf %854, %855 : vector<2x32xf32>
    %857 = vector.extract_strided_slice %840 {offsets = [0, 64], sizes = [2, 32], strides = [1, 1]} : vector<2x128xf32> to vector<2x32xf32>
    %858 = math.tanh %857 : vector<2x32xf32>
    %859 = vector.extract_strided_slice %840 {offsets = [0, 96], sizes = [2, 32], strides = [1, 1]} : vector<2x128xf32> to vector<2x32xf32>
    %860 = arith.negf %859 : vector<2x32xf32>
    %861 = math.exp %860 : vector<2x32xf32>
    %cst_244 = arith.constant 1.000000e+00 : f32
    %862 = vector.broadcast %cst_244 : f32 to vector<2x32xf32>
    %863 = arith.addf %862, %861 : vector<2x32xf32>
    %864 = arith.divf %862, %863 : vector<2x32xf32>
    %865 = arith.mulf %856, %809 : vector<2x32xf32>
    %866 = arith.mulf %850, %858 : vector<2x32xf32>
    %867 = arith.addf %865, %866 : vector<2x32xf32>
    %868 = math.tanh %867 : vector<2x32xf32>
    %869 = arith.mulf %864, %868 : vector<2x32xf32>
    %870 = vector.extract_strided_slice %844 {offsets = [0, 0], sizes = [2, 32], strides = [1, 1]} : vector<2x128xf32> to vector<2x32xf32>
    %871 = arith.negf %870 : vector<2x32xf32>
    %872 = math.exp %871 : vector<2x32xf32>
    %cst_245 = arith.constant 1.000000e+00 : f32
    %873 = vector.broadcast %cst_245 : f32 to vector<2x32xf32>
    %874 = arith.addf %873, %872 : vector<2x32xf32>
    %875 = arith.divf %873, %874 : vector<2x32xf32>
    %876 = vector.extract_strided_slice %844 {offsets = [0, 32], sizes = [2, 32], strides = [1, 1]} : vector<2x128xf32> to vector<2x32xf32>
    %877 = arith.negf %876 : vector<2x32xf32>
    %878 = math.exp %877 : vector<2x32xf32>
    %cst_246 = arith.constant 1.000000e+00 : f32
    %879 = vector.broadcast %cst_246 : f32 to vector<2x32xf32>
    %880 = arith.addf %879, %878 : vector<2x32xf32>
    %881 = arith.divf %879, %880 : vector<2x32xf32>
    %882 = vector.extract_strided_slice %844 {offsets = [0, 64], sizes = [2, 32], strides = [1, 1]} : vector<2x128xf32> to vector<2x32xf32>
    %883 = math.tanh %882 : vector<2x32xf32>
    %884 = vector.extract_strided_slice %844 {offsets = [0, 96], sizes = [2, 32], strides = [1, 1]} : vector<2x128xf32> to vector<2x32xf32>
    %885 = arith.negf %884 : vector<2x32xf32>
    %886 = math.exp %885 : vector<2x32xf32>
    %cst_247 = arith.constant 1.000000e+00 : f32
    %887 = vector.broadcast %cst_247 : f32 to vector<2x32xf32>
    %888 = arith.addf %887, %886 : vector<2x32xf32>
    %889 = arith.divf %887, %888 : vector<2x32xf32>
    %890 = arith.mulf %881, %834 : vector<2x32xf32>
    %891 = arith.mulf %875, %883 : vector<2x32xf32>
    %892 = arith.addf %890, %891 : vector<2x32xf32>
    %893 = math.tanh %892 : vector<2x32xf32>
    %894 = arith.mulf %889, %893 : vector<2x32xf32>
    %895 = tpu.concatenate %869, %894 in 1 : vector<2x32xf32>, vector<2x32xf32> -> vector<2x64xf32>
    %c0_248 = arith.constant 0 : index
    %c0_249 = arith.constant 0 : index
    %896 = vector.load %arg2[%c0_248, %c0_249] : memref<2x64xf32, #tpu.memory_space<vmem>>, vector<2x64xf32>
    %897 = arith.mulf %895, %896 : vector<2x64xf32>
    %c0_250 = arith.constant 0 : index
    %c0_251 = arith.constant 0 : index
    %898 = vector.load %arg23[%c0_250, %c0_251] : memref<64x1xf32, #tpu.memory_space<vmem>>, vector<64x1xf32>
    %cst_252 = arith.constant dense<0.000000e+00> : vector<2x1xf32>
    %899 = tpu.matmul %897, %898, %cst_252 {dimension_numbers = #tpu.dot_dimension_numbers<[1], [0], [0], [1], [0, 0, 1, 1], [], []>} : vector<2x64xf32>, vector<64x1xf32>, vector<2x1xf32> -> vector<2x1xf32>
    %c0_253 = arith.constant 0 : index
    %c0_254 = arith.constant 0 : index
    %900 = vector.load %arg24[%c0_253, %c0_254] : memref<1x1xf32, #tpu.memory_space<vmem>>, vector<1x1xf32>
    %901 = vector.broadcast %900 : vector<1x1xf32> to vector<2x1xf32>
    %902 = arith.addf %899, %901 : vector<2x1xf32>
    %c0_255 = arith.constant 0 : index
    %c0_256 = arith.constant 0 : index
    %903 = vector.load %arg25[%c0_255, %c0_256] : memref<2x1xf32, #tpu.memory_space<vmem>>, vector<2x1xf32>
    tpu.vector_store %arg25[%c0_255, %c0_256], %902 {strides = array<i32>} : memref<2x1xf32, #tpu.memory_space<vmem>>, vector<2x1xf32>,
    return
  }
}

</mosaic_0001>

<llo_original>
// kernel: tpu_custom_call.1
$region0: #{tpu_custom_call.1}
  #allocation0 [shape = 'u32[]', space=smem, size = 0x4, offset = 0x4, fixed_abs, tag = 'smem constant byte address 0x4 - core index']
  #allocation1 [shape = 'u32[144,128]{1,0:T(1,128)}', space=vmem, size = 0x12000, scoped, tag = 'internal scratch']
  #allocation2 [shape = 'f32[1,1]{1,0:T(1,128)S(1)}', space=vmem, size = 0x200, scoped, tag = 'scoped memory for tpu_custom_call.1']
  %s0 = inlined_call_operand.hbm [shape: f32[2,8,32], index: 0, kind: input, shape index: {}]
  %s1 = inlined_call_operand.hbm [shape: f32[2,1,8], index: 1, kind: input, shape index: {}]
  %s2 = inlined_call_operand.hbm [shape: f32[2,64], index: 2, kind: input, shape index: {}]
  %s3 = inlined_call_operand.hbm [shape: f32[1,32], index: 3, kind: input, shape index: {}]
  %s4 = inlined_call_operand.hbm [shape: f32[1,32], index: 4, kind: input, shape index: {}]
  %s5 = inlined_call_operand.vmem [shape: f32[2,32,96], index: 5, kind: input, shape index: {}]
  %s6 = inlined_call_operand.hbm [shape: f32[2,1,96], index: 6, kind: input, shape index: {}]
  %s7 = inlined_call_operand.vmem [shape: f32[2,32,32], index: 7, kind: input, shape index: {}]
  %s8 = inlined_call_operand.hbm [shape: f32[2,1,32], index: 8, kind: input, shape index: {}]
  %s9 = inlined_call_operand.hbm [shape: f32[2,1,32], index: 9, kind: input, shape index: {}]
  %s10 = inlined_call_operand.hbm [shape: f32[2,1,32], index: 10, kind: input, shape index: {}]
  %s11 = inlined_call_operand.vmem [shape: f32[2,32,64], index: 11, kind: input, shape index: {}]
  %s12 = inlined_call_operand.hbm [shape: f32[2,1,64], index: 12, kind: input, shape index: {}]
  %s13 = inlined_call_operand.vmem [shape: f32[2,64,32], index: 13, kind: input, shape index: {}]
  %s14 = inlined_call_operand.hbm [shape: f32[2,1,32], index: 14, kind: input, shape index: {}]
  %s15 = inlined_call_operand.hbm [shape: f32[2,1,32], index: 15, kind: input, shape index: {}]
  %s16 = inlined_call_operand.hbm [shape: f32[2,1,32], index: 16, kind: input, shape index: {}]
  %s17 = inlined_call_operand.vmem [shape: f32[32,128], index: 17, kind: input, shape index: {}]
  %s18 = inlined_call_operand.vmem [shape: f32[32,128], index: 18, kind: input, shape index: {}]
  %s19 = inlined_call_operand.vmem [shape: f32[1,128], index: 19, kind: input, shape index: {}]
  %s20 = inlined_call_operand.hbm [shape: f32[32,128], index: 20, kind: input, shape index: {}]
  %s21 = inlined_call_operand.hbm [shape: f32[32,128], index: 21, kind: input, shape index: {}]
  %s22 = inlined_call_operand.vmem [shape: f32[1,128], index: 22, kind: input, shape index: {}]
  %s23 = inlined_call_operand.vmem [shape: f32[64,1], index: 23, kind: input, shape index: {}]
  %s24 = inlined_call_operand.<no memory space> [shape: f32[1,1], index: 24, kind: input, shape index: {}]
  %s25 = inlined_call_operand.vmem [shape: f32[2,1], index: 25, kind: output, shape index: {}]
  %s26 = sld [smem:[#allocation0]]
  $region170: #{tpu_custom_call.1} parent=0
    _
  %s28 = ssub.s32 1, %s26
  %s29 = scalar_select 0, %s28, %s26
  %v30 = vstv %s24
  %31 = vst [vmem:[#allocation2] sm:$0x1] %v30
  $region1: #{tpu_custom_call.1} parent=0
    #allocation3 [shape = 'u8[8192]{0}', space=vmem, size = 0x2000, scoped, tag = 'input window, operand 0, single buffered']
    #allocation4 [shape = 's32[1]{0}', space=sflag, size = 0x4, scoped, tag = 'scoped memory for tpu_custom_call.1']
    #allocation5 [shape = 'u8[1024]{0}', space=vmem, size = 0x400, scoped, tag = 'input window, operand 1, single buffered']
    #allocation6 [shape = 's32[1]{0}', space=sflag, size = 0x4, scoped, tag = 'scoped memory for tpu_custom_call.1']
    #allocation7 [shape = 'u8[1024]{0}', space=vmem, size = 0x400, scoped, tag = 'input window, operand 2, single buffered']
    #allocation8 [shape = 'u8[512]{0}', space=vmem, size = 0x400, scoped, tag = 'input window, operand 3, single buffered']
    #allocation9 [shape = 's32[1]{0}', space=sflag, size = 0x4, scoped, tag = 'scoped memory for tpu_custom_call.1']
    #allocation10 [shape = 'u8[512]{0}', space=vmem, size = 0x400, scoped, tag = 'input window, operand 4, single buffered']
    #allocation11 [shape = 'u8[1024]{0}', space=vmem, size = 0x400, scoped, tag = 'input window, operand 6, single buffered']
    #allocation12 [shape = 's32[1]{0}', space=sflag, size = 0x4, scoped, tag = 'scoped memory for tpu_custom_call.1']
    #allocation13 [shape = 'u8[1024]{0}', space=vmem, size = 0x400, scoped, tag = 'input window, operand 8, single buffered']
    #allocation14 [shape = 'u8[1024]{0}', space=vmem, size = 0x400, scoped, tag = 'input window, operand 9, single buffered']
    #allocation15 [shape = 's32[1]{0}', space=sflag, size = 0x4, scoped, tag = 'scoped memory for tpu_custom_call.1']
    #allocation16 [shape = 'u8[1024]{0}', space=vmem, size = 0x400, scoped, tag = 'input window, operand 10, single buffered']
    #allocation17 [shape = 'u8[1024]{0}', space=vmem, size = 0x400, scoped, tag = 'input window, operand 12, single buffered']
    #allocation18 [shape = 's32[1]{0}', space=sflag, size = 0x4, scoped, tag = 'scoped memory for tpu_custom_call.1']
    #allocation19 [shape = 'u8[1024]{0}', space=vmem, size = 0x400, scoped, tag = 'input window, operand 14, single buffered']
    #allocation20 [shape = 'u8[1024]{0}', space=vmem, size = 0x400, scoped, tag = 'input window, operand 15, single buffered']
    #allocation21 [shape = 's32[1]{0}', space=sflag, size = 0x4, scoped, tag = 'scoped memory for tpu_custom_call.1']
    #allocation22 [shape = 'u8[1024]{0}', space=vmem, size = 0x400, scoped, tag = 'input window, operand 16, single buffered']
    #allocation23 [shape = 'u8[16384]{0}', space=vmem, size = 0x4000, scoped, tag = 'input window, operand 20, single buffered']
    #allocation24 [shape = 's32[1]{0}', space=sflag, size = 0x4, scoped, tag = 'scoped memory for tpu_custom_call.1']
    #allocation25 [shape = 'u8[16384]{0}', space=vmem, size = 0x4000, scoped, tag = 'input window, operand 21, single buffered']
    %32 = vsyncpa [#allocation4], 0
    %33 = vsyncpa [#allocation6], 0
    %34 = vsyncpa [#allocation9], 0
    %35 = vsyncpa [#allocation12], 0
    %36 = vsyncpa [#allocation15], 0
    %37 = vsyncpa [#allocation18], 0
    %38 = vsyncpa [#allocation21], 0
    %39 = vsyncpa [#allocation24], 0
    // Predicated region
    $region2: #{tpu_custom_call.1} parent=1 // pred_check
      _
    $region3: #{tpu_custom_call.1} parent=1 // pred_check_branch
      %41 = sbr.rel (0) target = $region5
    $region4: #{tpu_custom_call.1} parent=1 // pred_region
      %s43 = ssub.s32 256, 256
      %44 = vsyncadd [#allocation4], %s43
      %s45 = sshll.u32 [#allocation3], 4
      %s46 = int_to_ptr.vmem [resolvable:$true] %s45
      %51 = dma.hbm_to_vmem [thread:$0]  %s0, 256, %s46, [#allocation4], 128, 128, 8
    $region5: #{tpu_custom_call.1} parent=1 // pred_fallthru
      _
    // Predicated region
    $region6: #{tpu_custom_call.1} parent=1 // pred_check
      _
    $region7: #{tpu_custom_call.1} parent=1 // pred_check_branch
      %53 = sbr.rel (0) target = $region9
    $region8: #{tpu_custom_call.1} parent=1 // pred_region
      %s55 = ssub.s32 32, 32
      %56 = vsyncadd [#allocation6], %s55
      %s57 = sshll.u32 [#allocation5], 4
      %s58 = int_to_ptr.vmem [resolvable:$true] %s57
      %63 = dma.hbm_to_vmem [thread:$0]  %s1, 32, %s58, [#allocation6], 16, 16, 1
    $region9: #{tpu_custom_call.1} parent=1 // pred_fallthru
      _
    // Predicated region
    $region10: #{tpu_custom_call.1} parent=1 // pred_check
      _
    $region11: #{tpu_custom_call.1} parent=1 // pred_check_branch
      %65 = sbr.rel (0) target = $region13
    $region12: #{tpu_custom_call.1} parent=1 // pred_region
      %s67 = ssub.s32 32, 32
      %68 = vsyncadd [#allocation6], %s67
      %s70 = sshll.u32 [#allocation7], 4
      %s71 = int_to_ptr.vmem [resolvable:$true] %s70
      %73 = dma.hbm_to_vmem [thread:$0]  %s2, 32, %s71, [#allocation6]
    $region13: #{tpu_custom_call.1} parent=1 // pred_fallthru
      _
    // Predicated region
    $region14: #{tpu_custom_call.1} parent=1 // pred_check
      _
    $region15: #{tpu_custom_call.1} parent=1 // pred_check_branch
      %75 = sbr.rel (0) target = $region17
    $region16: #{tpu_custom_call.1} parent=1 // pred_region
      %s77 = ssub.s32 16, 16
      %78 = vsyncadd [#allocation9], %s77
      %s80 = sshll.u32 [#allocation8], 4
      %s81 = int_to_ptr.vmem [resolvable:$true] %s80
      %83 = dma.hbm_to_vmem [thread:$0]  %s3, 16, %s81, [#allocation9]
    $region17: #{tpu_custom_call.1} parent=1 // pred_fallthru
      _
    // Predicated region
    $region18: #{tpu_custom_call.1} parent=1 // pred_check
      _
    $region19: #{tpu_custom_call.1} parent=1 // pred_check_branch
      %85 = sbr.rel (0) target = $region21
    $region20: #{tpu_custom_call.1} parent=1 // pred_region
      %s87 = ssub.s32 16, 16
      %88 = vsyncadd [#allocation9], %s87
      %s90 = sshll.u32 [#allocation10], 4
      %s91 = int_to_ptr.vmem [resolvable:$true] %s90
      %93 = dma.hbm_to_vmem [thread:$0]  %s4, 16, %s91, [#allocation9]
    $region21: #{tpu_custom_call.1} parent=1 // pred_fallthru
      _
    // Predicated region
    $region22: #{tpu_custom_call.1} parent=1 // pred_check
      _
    $region23: #{tpu_custom_call.1} parent=1 // pred_check_branch
      %95 = sbr.rel (0) target = $region25
    $region24: #{tpu_custom_call.1} parent=1 // pred_region
      _
    $region25: #{tpu_custom_call.1} parent=1 // pred_fallthru
      _
    // Predicated region
    $region26: #{tpu_custom_call.1} parent=1 // pred_check
      _
    $region27: #{tpu_custom_call.1} parent=1 // pred_check_branch
      %97 = sbr.rel (0) target = $region29
    $region28: #{tpu_custom_call.1} parent=1 // pred_region
      %s99 = ssub.s32 32, 32
      %100 = vsyncadd [#allocation12], %s99
      %s101 = sshll.u32 [#allocation11], 4
      %s102 = int_to_ptr.vmem [resolvable:$true] %s101
      %107 = dma.hbm_to_vmem [thread:$0]  %s6, 32, %s102, [#allocation12], 16, 16, 1
    $region29: #{tpu_custom_call.1} parent=1 // pred_fallthru
      _
    // Predicated region
    $region30: #{tpu_custom_call.1} parent=1 // pred_check
      _
    $region31: #{tpu_custom_call.1} parent=1 // pred_check_branch
      %109 = sbr.rel (0) target = $region33
    $region32: #{tpu_custom_call.1} parent=1 // pred_region
      _
    $region33: #{tpu_custom_call.1} parent=1 // pred_fallthru
      _
    // Predicated region
    $region34: #{tpu_custom_call.1} parent=1 // pred_check
      _
    $region35: #{tpu_custom_call.1} parent=1 // pred_check_branch
      %111 = sbr.rel (0) target = $region37
    $region36: #{tpu_custom_call.1} parent=1 // pred_region
      %s113 = ssub.s32 32, 32
      %114 = vsyncadd [#allocation12], %s113
      %s115 = sshll.u32 [#allocation13], 4
      %s116 = int_to_ptr.vmem [resolvable:$true] %s115
      %121 = dma.hbm_to_vmem [thread:$0]  %s8, 32, %s116, [#allocation12], 16, 16, 1
    $region37: #{tpu_custom_call.1} parent=1 // pred_fallthru
      _
    // Predicated region
    $region38: #{tpu_custom_call.1} parent=1 // pred_check
      _
    $region39: #{tpu_custom_call.1} parent=1 // pred_check_branch
      %123 = sbr.rel (0) target = $region41
    $region40: #{tpu_custom_call.1} parent=1 // pred_region
      %s125 = ssub.s32 32, 32
      %126 = vsyncadd [#allocation15], %s125
      %s127 = sshll.u32 [#allocation14], 4
      %s128 = int_to_ptr.vmem [resolvable:$true] %s127
      %133 = dma.hbm_to_vmem [thread:$0]  %s9, 32, %s128, [#allocation15], 16, 16, 1
    $region41: #{tpu_custom_call.1} parent=1 // pred_fallthru
      _
    // Predicated region
    $region42: #{tpu_custom_call.1} parent=1 // pred_check
      _
    $region43: #{tpu_custom_call.1} parent=1 // pred_check_branch
      %135 = sbr.rel (0) target = $region45
    $region44: #{tpu_custom_call.1} parent=1 // pred_region
      %s137 = ssub.s32 32, 32
      %138 = vsyncadd [#allocation15], %s137
      %s139 = sshll.u32 [#allocation16], 4
      %s140 = int_to_ptr.vmem [resolvable:$true] %s139
      %145 = dma.hbm_to_vmem [thread:$0]  %s10, 32, %s140, [#allocation15], 16, 16, 1
    $region45: #{tpu_custom_call.1} parent=1 // pred_fallthru
      _
    // Predicated region
    $region46: #{tpu_custom_call.1} parent=1 // pred_check
      _
    $region47: #{tpu_custom_call.1} parent=1 // pred_check_branch
      %147 = sbr.rel (0) target = $region49
    $region48: #{tpu_custom_call.1} parent=1 // pred_region
      _
    $region49: #{tpu_custom_call.1} parent=1 // pred_fallthru
      _
    // Predicated region
    $region50: #{tpu_custom_call.1} parent=1 // pred_check
      _
    $region51: #{tpu_custom_call.1} parent=1 // pred_check_branch
      %149 = sbr.rel (0) target = $region53
    $region52: #{tpu_custom_call.1} parent=1 // pred_region
      %s151 = ssub.s32 32, 32
      %152 = vsyncadd [#allocation18], %s151
      %s153 = sshll.u32 [#allocation17], 4
      %s154 = int_to_ptr.vmem [resolvable:$true] %s153
      %159 = dma.hbm_to_vmem [thread:$0]  %s12, 32, %s154, [#allocation18], 16, 16, 1
    $region53: #{tpu_custom_call.1} parent=1 // pred_fallthru
      _
    // Predicated region
    $region54: #{tpu_custom_call.1} parent=1 // pred_check
      _
    $region55: #{tpu_custom_call.1} parent=1 // pred_check_branch
      %161 = sbr.rel (0) target = $region57
    $region56: #{tpu_custom_call.1} parent=1 // pred_region
      _
    $region57: #{tpu_custom_call.1} parent=1 // pred_fallthru
      _
    // Predicated region
    $region58: #{tpu_custom_call.1} parent=1 // pred_check
      _
    $region59: #{tpu_custom_call.1} parent=1 // pred_check_branch
      %163 = sbr.rel (0) target = $region61
    $region60: #{tpu_custom_call.1} parent=1 // pred_region
      %s165 = ssub.s32 32, 32
      %166 = vsyncadd [#allocation18], %s165
      %s167 = sshll.u32 [#allocation19], 4
      %s168 = int_to_ptr.vmem [resolvable:$true] %s167
      %173 = dma.hbm_to_vmem [thread:$0]  %s14, 32, %s168, [#allocation18], 16, 16, 1
    $region61: #{tpu_custom_call.1} parent=1 // pred_fallthru
      _
    // Predicated region
    $region62: #{tpu_custom_call.1} parent=1 // pred_check
      _
    $region63: #{tpu_custom_call.1} parent=1 // pred_check_branch
      %175 = sbr.rel (0) target = $region65
    $region64: #{tpu_custom_call.1} parent=1 // pred_region
      %s177 = ssub.s32 32, 32
      %178 = vsyncadd [#allocation21], %s177
      %s179 = sshll.u32 [#allocation20], 4
      %s180 = int_to_ptr.vmem [resolvable:$true] %s179
      %185 = dma.hbm_to_vmem [thread:$0]  %s15, 32, %s180, [#allocation21], 16, 16, 1
    $region65: #{tpu_custom_call.1} parent=1 // pred_fallthru
      _
    // Predicated region
    $region66: #{tpu_custom_call.1} parent=1 // pred_check
      _
    $region67: #{tpu_custom_call.1} parent=1 // pred_check_branch
      %187 = sbr.rel (0) target = $region69
    $region68: #{tpu_custom_call.1} parent=1 // pred_region
      %s189 = ssub.s32 32, 32
      %190 = vsyncadd [#allocation21], %s189
      %s191 = sshll.u32 [#allocation22], 4
      %s192 = int_to_ptr.vmem [resolvable:$true] %s191
      %197 = dma.hbm_to_vmem [thread:$0]  %s16, 32, %s192, [#allocation21], 16, 16, 1
    $region69: #{tpu_custom_call.1} parent=1 // pred_fallthru
      _
    // Predicated region
    $region70: #{tpu_custom_call.1} parent=1 // pred_check
      _
    $region71: #{tpu_custom_call.1} parent=1 // pred_check_branch
      %199 = sbr.rel (0) target = $region73
    $region72: #{tpu_custom_call.1} parent=1 // pred_region
      _
    $region73: #{tpu_custom_call.1} parent=1 // pred_fallthru
      _
    // Predicated region
    $region74: #{tpu_custom_call.1} parent=1 // pred_check
      _
    $region75: #{tpu_custom_call.1} parent=1 // pred_check_branch
      %201 = sbr.rel (0) target = $region77
    $region76: #{tpu_custom_call.1} parent=1 // pred_region
      _
    $region77: #{tpu_custom_call.1} parent=1 // pred_fallthru
      _
    // Predicated region
    $region78: #{tpu_custom_call.1} parent=1 // pred_check
      _
    $region79: #{tpu_custom_call.1} parent=1 // pred_check_branch
      %203 = sbr.rel (0) target = $region81
    $region80: #{tpu_custom_call.1} parent=1 // pred_region
      _
    $region81: #{tpu_custom_call.1} parent=1 // pred_fallthru
      _
    // Predicated region
    $region82: #{tpu_custom_call.1} parent=1 // pred_check
      _
    $region83: #{tpu_custom_call.1} parent=1 // pred_check_branch
      %205 = sbr.rel (0) target = $region85
    $region84: #{tpu_custom_call.1} parent=1 // pred_region
      %s207 = ssub.s32 512, 512
      %208 = vsyncadd [#allocation24], %s207
      %s209 = sshll.u32 [#allocation23], 4
      %s210 = int_to_ptr.vmem [resolvable:$true] %s209
      %215 = dma.hbm_to_vmem [thread:$0]  %s20, 512, %s210, [#allocation24], 128, 128, 8
    $region85: #{tpu_custom_call.1} parent=1 // pred_fallthru
      _
    // Predicated region
    $region86: #{tpu_custom_call.1} parent=1 // pred_check
      _
    $region87: #{tpu_custom_call.1} parent=1 // pred_check_branch
      %217 = sbr.rel (0) target = $region89
    $region88: #{tpu_custom_call.1} parent=1 // pred_region
      %s219 = ssub.s32 512, 512
      %220 = vsyncadd [#allocation24], %s219
      %s221 = sshll.u32 [#allocation25], 4
      %s222 = int_to_ptr.vmem [resolvable:$true] %s221
      %227 = dma.hbm_to_vmem [thread:$0]  %s21, 512, %s222, [#allocation24], 128, 128, 8
    $region89: #{tpu_custom_call.1} parent=1 // pred_fallthru
      _
    // Predicated region
    $region90: #{tpu_custom_call.1} parent=1 // pred_check
      _
    $region91: #{tpu_custom_call.1} parent=1 // pred_check_branch
      %229 = sbr.rel (0) target = $region93
    $region92: #{tpu_custom_call.1} parent=1 // pred_region
      _
    $region93: #{tpu_custom_call.1} parent=1 // pred_fallthru
      _
    // Predicated region
    $region94: #{tpu_custom_call.1} parent=1 // pred_check
      _
    $region95: #{tpu_custom_call.1} parent=1 // pred_check_branch
      %231 = sbr.rel (0) target = $region97
    $region96: #{tpu_custom_call.1} parent=1 // pred_region
      _
    $region97: #{tpu_custom_call.1} parent=1 // pred_fallthru
      _
    // Predicated region
    $region98: #{tpu_custom_call.1} parent=1 // pred_check
      _
    $region99: #{tpu_custom_call.1} parent=1 // pred_check_branch
      %233 = sbr.rel (0) target = $region101
    $region100: #{tpu_custom_call.1} parent=1 // pred_region
      _
    $region101: #{tpu_custom_call.1} parent=1 // pred_fallthru
      _
    // Predicated region
    $region102: #{tpu_custom_call.1} parent=1 // pred_check
      _
    $region103: #{tpu_custom_call.1} parent=1 // pred_check_branch
      %235 = sbr.rel (0) target = $region105
    $region104: #{tpu_custom_call.1} parent=1 // pred_region
      %236 = dma.done [#allocation4], 256
    $region105: #{tpu_custom_call.1} parent=1 // pred_fallthru
      _
    // Predicated region
    $region106: #{tpu_custom_call.1} parent=1 // pred_check
      _
    $region107: #{tpu_custom_call.1} parent=1 // pred_check_branch
      %238 = sbr.rel (0) target = $region109
    $region108: #{tpu_custom_call.1} parent=1 // pred_region
      %239 = dma.done [#allocation6], 32
    $region109: #{tpu_custom_call.1} parent=1 // pred_fallthru
      _
    // Predicated region
    $region110: #{tpu_custom_call.1} parent=1 // pred_check
      _
    $region111: #{tpu_custom_call.1} parent=1 // pred_check_branch
      %241 = sbr.rel (0) target = $region113
    $region112: #{tpu_custom_call.1} parent=1 // pred_region
      %242 = dma.done [#allocation6], 32
    $region113: #{tpu_custom_call.1} parent=1 // pred_fallthru
      _
    // Predicated region
    $region114: #{tpu_custom_call.1} parent=1 // pred_check
      _
    $region115: #{tpu_custom_call.1} parent=1 // pred_check_branch
      %244 = sbr.rel (0) target = $region117
    $region116: #{tpu_custom_call.1} parent=1 // pred_region
      %245 = dma.done [#allocation9], 16
    $region117: #{tpu_custom_call.1} parent=1 // pred_fallthru
      _
    // Predicated region
    $region118: #{tpu_custom_call.1} parent=1 // pred_check
      _
    $region119: #{tpu_custom_call.1} parent=1 // pred_check_branch
      %247 = sbr.rel (0) target = $region121
    $region120: #{tpu_custom_call.1} parent=1 // pred_region
      %248 = dma.done [#allocation9], 16
    $region121: #{tpu_custom_call.1} parent=1 // pred_fallthru
      _
    // Predicated region
    $region122: #{tpu_custom_call.1} parent=1 // pred_check
      _
    $region123: #{tpu_custom_call.1} parent=1 // pred_check_branch
      %250 = sbr.rel (0) target = $region125
    $region124: #{tpu_custom_call.1} parent=1 // pred_region
      %251 = dma.done [#allocation12], 32
    $region125: #{tpu_custom_call.1} parent=1 // pred_fallthru
      _
    // Predicated region
    $region126: #{tpu_custom_call.1} parent=1 // pred_check
      _
    $region127: #{tpu_custom_call.1} parent=1 // pred_check_branch
      %253 = sbr.rel (0) target = $region129
    $region128: #{tpu_custom_call.1} parent=1 // pred_region
      %254 = dma.done [#allocation12], 32
    $region129: #{tpu_custom_call.1} parent=1 // pred_fallthru
      _
    // Predicated region
    $region130: #{tpu_custom_call.1} parent=1 // pred_check
      _
    $region131: #{tpu_custom_call.1} parent=1 // pred_check_branch
      %256 = sbr.rel (0) target = $region133
    $region132: #{tpu_custom_call.1} parent=1 // pred_region
      %257 = dma.done [#allocation15], 32
    $region133: #{tpu_custom_call.1} parent=1 // pred_fallthru
      _
    // Predicated region
    $region134: #{tpu_custom_call.1} parent=1 // pred_check
      _
    $region135: #{tpu_custom_call.1} parent=1 // pred_check_branch
      %259 = sbr.rel (0) target = $region137
    $region136: #{tpu_custom_call.1} parent=1 // pred_region
      %260 = dma.done [#allocation15], 32
    $region137: #{tpu_custom_call.1} parent=1 // pred_fallthru
      _
    // Predicated region
    $region138: #{tpu_custom_call.1} parent=1 // pred_check
      _
    $region139: #{tpu_custom_call.1} parent=1 // pred_check_branch
      %262 = sbr.rel (0) target = $region141
    $region140: #{tpu_custom_call.1} parent=1 // pred_region
      %263 = dma.done [#allocation18], 32
    $region141: #{tpu_custom_call.1} parent=1 // pred_fallthru
      _
    // Predicated region
    $region142: #{tpu_custom_call.1} parent=1 // pred_check
      _
    $region143: #{tpu_custom_call.1} parent=1 // pred_check_branch
      %265 = sbr.rel (0) target = $region145
    $region144: #{tpu_custom_call.1} parent=1 // pred_region
      %266 = dma.done [#allocation18], 32
    $region145: #{tpu_custom_call.1} parent=1 // pred_fallthru
      _
    // Predicated region
    $region146: #{tpu_custom_call.1} parent=1 // pred_check
      _
    $region147: #{tpu_custom_call.1} parent=1 // pred_check_branch
      %268 = sbr.rel (0) target = $region149
    $region148: #{tpu_custom_call.1} parent=1 // pred_region
      %269 = dma.done [#allocation21], 32
    $region149: #{tpu_custom_call.1} parent=1 // pred_fallthru
      _
    // Predicated region
    $region150: #{tpu_custom_call.1} parent=1 // pred_check
      _
    $region151: #{tpu_custom_call.1} parent=1 // pred_check_branch
      %271 = sbr.rel (0) target = $region153
    $region152: #{tpu_custom_call.1} parent=1 // pred_region
      %272 = dma.done [#allocation21], 32
    $region153: #{tpu_custom_call.1} parent=1 // pred_fallthru
      _
    // Predicated region
    $region154: #{tpu_custom_call.1} parent=1 // pred_check
      _
    $region155: #{tpu_custom_call.1} parent=1 // pred_check_branch
      %274 = sbr.rel (0) target = $region157
    $region156: #{tpu_custom_call.1} parent=1 // pred_region
      %275 = dma.done [#allocation24], 512
    $region157: #{tpu_custom_call.1} parent=1 // pred_fallthru
      _
    // Predicated region
    $region158: #{tpu_custom_call.1} parent=1 // pred_check
      _
    $region159: #{tpu_custom_call.1} parent=1 // pred_check_branch
      %277 = sbr.rel (0) target = $region161
    $region160: #{tpu_custom_call.1} parent=1 // pred_region
      %278 = dma.done [#allocation24], 512
    $region161: #{tpu_custom_call.1} parent=1 // pred_fallthru
      _
    %v279 = vld [vmem:[#allocation3] sm:$0xff]
    %v280 = vld [vmem:[#allocation3 + $0x8] sm:$0xff]
    %v281 = vld [vmem:[#allocation8] sm:$0x1]
    %v282 = vld [vmem:[#allocation10] sm:$0x1]
    %vm283 = vcmask 261120
    %v284 = vsel %vm283, %v279, 0.0
    %285 = vadd.xlane.f32.xlu0 %v284
    %v286 = vpop.xlane.xlu0 %285
    %v287 = vsel %vm283, %v280, 0.0
    %288 = vadd.xlane.f32.xlu0 %v287
    %v289 = vpop.xlane.xlu0 %288
    %v290 = vrcp.pop 32.0
    %v291 = vmul.f32 %v286, %v290
    %v292 = vmul.f32 %v289, %v290
    %v293 = vsub.f32 %v279, %v291
    %v294 = vsub.f32 %v280, %v292
    %v295 = vmul.f32 %v293, %v293
    %v296 = vmul.f32 %v294, %v294
    %v297 = vsel %vm283, %v295, 0.0
    %298 = vadd.xlane.f32.xlu0 %v297
    %v299 = vpop.xlane.xlu0 %298
    %v300 = vsel %vm283, %v296, 0.0
    %301 = vadd.xlane.f32.xlu0 %v300
    %v302 = vpop.xlane.xlu0 %301
    %v303 = vmul.f32 %v299, %v290
    %v304 = vmul.f32 %v302, %v290
    %v305 = vadd.f32 %v303, 1e-05
    %v306 = vadd.f32 %v304, 1e-05
    %v307 = vrsqrt.pop %v305
    %v308 = vrsqrt.pop %v306
    %v309 = vmul.f32 %v293, %v307
    %v310 = vmul.f32 %v294, %v308
    %v312 = vlaneseq
    %v313 = vshrl.u32 %v312, 7
    %v314 = vsub.s32 0, %v313
    %v315 = vrot.slane %v281, %v314
    %v317 = vmul.f32 %v309, %v315
    %v318 = vmul.f32 %v310, %v315
    %v320 = vlaneseq
    %v321 = vshrl.u32 %v320, 7
    %v322 = vsub.s32 0, %v321
    %v323 = vrot.slane %v282, %v322
    %v325 = vadd.f32 %v317, %v323
    %v326 = vadd.f32 %v318, %v323
    %v327 = vld [vmem:[#allocation5] sm:$0x1]
    %v328 = vld [vmem:[#allocation5 + $0x1] sm:$0x1]
    %v329 = vld [vmem:[%s5] sm:$0xff]
    %v330 = vld [vmem:[%s5 + $0x8] sm:$0xff]
    %v331 = vld [vmem:[%s5 + $0x10] sm:$0xff]
    %v332 = vld [vmem:[%s5 + $0x18] sm:$0xff]
    %v333 = vld [vmem:[%s7] sm:$0xff]
    %v334 = vld [vmem:[%s7 + $0x8] sm:$0xff]
    %v335 = vld [vmem:[%s7 + $0x10] sm:$0xff]
    %v336 = vld [vmem:[%s7 + $0x18] sm:$0xff]
    %v337 = vld [vmem:[#allocation11] sm:$0x1]
    %v339 = vlaneseq
    %v340 = vshrl.u32 %v339, 7
    %v341 = vsub.s32 0, %v340
    %v342 = vrot.slane %v337, %v341
    %v345 = vsel %vm283, %v325, 0
    %v348 = vsel %vm283, %v326, 0
    %350 = vmatprep.subr.mxu0 0.0
    %351 = vmatpush1.msra.mxu0 %v329
    %352 = vmatprep.subr.mxu0 0.0
    %353 = vmatpush1.msra.mxu0 %v330
    %354 = vmatprep.subr.mxu0 0.0
    %355 = vmatpush1.msra.mxu0 %v331
    %356 = vmatprep.subr.mxu0 0.0
    %357 = vmatpush1.msra.mxu0 %v332
    %358 = vmatprep.subr.mxu0 0.0
    %359 = vmatpush1.msra.mxu0 0.0
    %360 = vmatprep.subr.mxu0 0.0
    %361 = vmatpush1.msra.mxu0 0.0
    %362 = vmatprep.subr.mxu0 0.0
    %363 = vmatpush1.msra.mxu0 0.0
    %364 = vmatprep.subr.mxu0 0.0
    %365 = vmatpush1.msra.mxu0 0.0
    %366 = vmatprep.subr.mxu0 0.0
    %367 = vmatpush1.msra.mxu0 0.0
    %368 = vmatprep.subr.mxu0 0.0
    %369 = vmatpush1.msra.mxu0 0.0
    %370 = vmatprep.subr.mxu0 0.0
    %371 = vmatpush1.msra.mxu0 0.0
    %372 = vmatprep.subr.mxu0 0.0
    %373 = vmatpush1.msra.mxu0 0.0
    %374 = vmatprep.subr.mxu0 0.0
    %375 = vmatpush1.msra.mxu0 0.0
    %376 = vmatprep.subr.mxu0 0.0
    %377 = vmatpush1.msra.mxu0 0.0
    %378 = vmatprep.subr.mxu0 0.0
    %379 = vmatpush1.msra.mxu0 0.0
    %380 = vmatprep.subr.mxu0 0.0
    %381 = vmatpush1.msra.mxu0 0.0
    %382 = vmatprep.subr.mxu0 0.0
    %383 = vmatpush1.msra.mxu0 0.0
    %384 = vmatprep.subr.mxu0 0.0
    %385 = vmatpush1.msra.mxu0 0.0
    %386 = vmatprep.subr.mxu0 0.0
    %387 = vmatpush1.msra.mxu0 0.0
    %388 = vmatprep.subr.mxu0 0.0
    %389 = vmatpush1.msra.mxu0 0.0
    %390 = vmatprep.subr.mxu0 0.0
    %391 = vmatpush1.msra.mxu0 0.0
    %392 = vmatprep.subr.mxu0 0.0
    %393 = vmatpush1.msra.mxu0 0.0
    %394 = vmatprep.subr.mxu0 0.0
    %395 = vmatpush1.msra.mxu0 0.0
    %396 = vmatprep.subr.mxu0 0.0
    %397 = vmatpush1.msra.mxu0 0.0
    %398 = vmatprep.subr.mxu0 0.0
    %399 = vmatpush1.msra.mxu0 0.0
    %400 = vmatprep.subr.mxu0 0.0
    %401 = vmatpush1.msra.mxu0 0.0
    %402 = vmatprep.subr.mxu0 0.0
    %403 = vmatpush1.msra.mxu0 0.0
    %404 = vmatprep.subr.mxu0 0.0
    %405 = vmatpush1.msra.mxu0 0.0
    %406 = vmatprep.subr.mxu0 0.0
    %407 = vmatpush1.msra.mxu0 0.0
    %408 = vmatprep.subr.mxu0 0.0
    %409 = vmatpush1.msra.mxu0 0.0
    %410 = vmatprep.subr.mxu0 0.0
    %411 = vmatpush1.msra.mxu0 0.0
    %412 = vmatprep.subr.mxu0 0.0
    %413 = vmatpush1.msra.mxu0 0.0
    %414 = vmatprep.mubr.f32.mxu0 0.0
    %415 = vmatmul.mubr.f32.gmra.mrb[0].mxu0 %v345
    %v416 = vpop.f32.mrb[0].mxu0
    %v417 = vadd.f32 %v342, %v416
    %v418 = vpop.f32.mrb[0].mxu0
    %419 = vmatprep.mubr.f32.mxu0 0.0
    %420 = vmatmul.mubr.f32.gmra.mrb[0].mxu0 %v348
    %v421 = vpop.f32.mrb[0].mxu0
    %v422 = vadd.f32 %v342, %v421
    %v423 = vpop.f32.mrb[0].mxu0
    %424 = vdwg.mxu0
    %v425 = vld [vmem:[#allocation13] sm:$0x1]
    %427 = vrot.lane.b32.xlu0 %v417, 96
    %v428 = vpop.permute.xlu0 %427
    %vm429 = vcmask 64512
    %v430 = vsel %vm429, %v417, 0
    %v432 = vsel %vm429, %v428, 0
    %434 = vmatprep.subr.mxu0 0.0
    %435 = vmatpush1.xpose.msra.mxu0 %v432
    %436 = vmatprep.subr.mxu0 0.0
    %437 = vmatpush1.xpose.msra.mxu0 0.0
    %438 = vmatprep.subr.mxu0 0.0
    %439 = vmatpush1.xpose.msra.mxu0 0.0
    %440 = vmatprep.subr.mxu0 0.0
    %441 = vmatpush1.xpose.msra.mxu0 0.0
    %442 = vmatprep.subr.mxu0 0.0
    %443 = vmatpush1.xpose.msra.mxu0 0.0
    %444 = vmatprep.subr.mxu0 0.0
    %445 = vmatpush1.xpose.msra.mxu0 0.0
    %446 = vmatprep.subr.mxu0 0.0
    %447 = vmatpush1.xpose.msra.mxu0 0.0
    %448 = vmatprep.subr.mxu0 0.0
    %449 = vmatpush1.xpose.msra.mxu0 0.0
    %450 = vmatprep.subr.mxu0 0.0
    %451 = vmatpush1.xpose.msra.mxu0 0.0
    %452 = vmatprep.subr.mxu0 0.0
    %453 = vmatpush1.xpose.msra.mxu0 0.0
    %454 = vmatprep.subr.mxu0 0.0
    %455 = vmatpush1.xpose.msra.mxu0 0.0
    %456 = vmatprep.subr.mxu0 0.0
    %457 = vmatpush1.xpose.msra.mxu0 0.0
    %458 = vmatprep.subr.mxu0 0.0
    %459 = vmatpush1.xpose.msra.mxu0 0.0
    %460 = vmatprep.subr.mxu0 0.0
    %461 = vmatpush1.xpose.msra.mxu0 0.0
    %462 = vmatprep.subr.mxu0 0.0
    %463 = vmatpush1.xpose.msra.mxu0 0.0
    %464 = vmatprep.subr.mxu0 0.0
    %465 = vmatpush1.xpose.msra.mxu0 0.0
    %466 = vmatprep.subr.mxu0 0.0
    %467 = vmatpush1.xpose.msra.mxu0 0.0
    %468 = vmatprep.subr.mxu0 0.0
    %469 = vmatpush1.xpose.msra.mxu0 0.0
    %470 = vmatprep.subr.mxu0 0.0
    %471 = vmatpush1.xpose.msra.mxu0 0.0
    %472 = vmatprep.subr.mxu0 0.0
    %473 = vmatpush1.xpose.msra.mxu0 0.0
    %474 = vmatprep.subr.mxu0 0.0
    %475 = vmatpush1.xpose.msra.mxu0 0.0
    %476 = vmatprep.subr.mxu0 0.0
    %477 = vmatpush1.xpose.msra.mxu0 0.0
    %478 = vmatprep.subr.mxu0 0.0
    %479 = vmatpush1.xpose.msra.mxu0 0.0
    %480 = vmatprep.subr.mxu0 0.0
    %481 = vmatpush1.xpose.msra.mxu0 0.0
    %482 = vmatprep.subr.mxu0 0.0
    %483 = vmatpush1.xpose.msra.mxu0 0.0
    %484 = vmatprep.subr.mxu0 0.0
    %485 = vmatpush1.xpose.msra.mxu0 0.0
    %486 = vmatprep.subr.mxu0 0.0
    %487 = vmatpush1.xpose.msra.mxu0 0.0
    %488 = vmatprep.subr.mxu0 0.0
    %489 = vmatpush1.xpose.msra.mxu0 0.0
    %490 = vmatprep.subr.mxu0 0.0
    %491 = vmatpush1.xpose.msra.mxu0 0.0
    %492 = vmatprep.subr.mxu0 0.0
    %493 = vmatpush1.xpose.msra.mxu0 0.0
    %494 = vmatprep.subr.mxu0 0.0
    %495 = vmatpush1.xpose.msra.mxu0 0.0
    %496 = vmatprep.subr.mxu0 0.0
    %497 = vmatpush1.xpose.msra.mxu0 0.0
    %498 = vmatprep.mubr.f32.mxu0 0.0
    %499 = vmatmul.mubr.f32.gmra.mrb[0].mxu0 %v430
    %v500 = vpop.f32.mrb[0].mxu0
    %v501 = vadd.f32 0.0, %v500
    %v502 = vpop.f32.mrb[0].mxu0
    %503 = vdwg.mxu0
    %505 = vrot.lane.b32.xlu0 %v422, 96
    %v506 = vpop.permute.xlu0 %505
    %v507 = vsel %vm429, %v422, 0
    %v509 = vsel %vm429, %v506, 0
    %511 = vmatprep.subr.mxu0 0.0
    %512 = vmatpush1.xpose.msra.mxu0 %v509
    %513 = vmatprep.subr.mxu0 0.0
    %514 = vmatpush1.xpose.msra.mxu0 0.0
    %515 = vmatprep.subr.mxu0 0.0
    %516 = vmatpush1.xpose.msra.mxu0 0.0
    %517 = vmatprep.subr.mxu0 0.0
    %518 = vmatpush1.xpose.msra.mxu0 0.0
    %519 = vmatprep.subr.mxu0 0.0
    %520 = vmatpush1.xpose.msra.mxu0 0.0
    %521 = vmatprep.subr.mxu0 0.0
    %522 = vmatpush1.xpose.msra.mxu0 0.0
    %523 = vmatprep.subr.mxu0 0.0
    %524 = vmatpush1.xpose.msra.mxu0 0.0
    %525 = vmatprep.subr.mxu0 0.0
    %526 = vmatpush1.xpose.msra.mxu0 0.0
    %527 = vmatprep.subr.mxu0 0.0
    %528 = vmatpush1.xpose.msra.mxu0 0.0
    %529 = vmatprep.subr.mxu0 0.0
    %530 = vmatpush1.xpose.msra.mxu0 0.0
    %531 = vmatprep.subr.mxu0 0.0
    %532 = vmatpush1.xpose.msra.mxu0 0.0
    %533 = vmatprep.subr.mxu0 0.0
    %534 = vmatpush1.xpose.msra.mxu0 0.0
    %535 = vmatprep.subr.mxu0 0.0
    %536 = vmatpush1.xpose.msra.mxu0 0.0
    %537 = vmatprep.subr.mxu0 0.0
    %538 = vmatpush1.xpose.msra.mxu0 0.0
    %539 = vmatprep.subr.mxu0 0.0
    %540 = vmatpush1.xpose.msra.mxu0 0.0
    %541 = vmatprep.subr.mxu0 0.0
    %542 = vmatpush1.xpose.msra.mxu0 0.0
    %543 = vmatprep.subr.mxu0 0.0
    %544 = vmatpush1.xpose.msra.mxu0 0.0
    %545 = vmatprep.subr.mxu0 0.0
    %546 = vmatpush1.xpose.msra.mxu0 0.0
    %547 = vmatprep.subr.mxu0 0.0
    %548 = vmatpush1.xpose.msra.mxu0 0.0
    %549 = vmatprep.subr.mxu0 0.0
    %550 = vmatpush1.xpose.msra.mxu0 0.0
    %551 = vmatprep.subr.mxu0 0.0
    %552 = vmatpush1.xpose.msra.mxu0 0.0
    %553 = vmatprep.subr.mxu0 0.0
    %554 = vmatpush1.xpose.msra.mxu0 0.0
    %555 = vmatprep.subr.mxu0 0.0
    %556 = vmatpush1.xpose.msra.mxu0 0.0
    %557 = vmatprep.subr.mxu0 0.0
    %558 = vmatpush1.xpose.msra.mxu0 0.0
    %559 = vmatprep.subr.mxu0 0.0
    %560 = vmatpush1.xpose.msra.mxu0 0.0
    %561 = vmatprep.subr.mxu0 0.0
    %562 = vmatpush1.xpose.msra.mxu0 0.0
    %563 = vmatprep.subr.mxu0 0.0
    %564 = vmatpush1.xpose.msra.mxu0 0.0
    %565 = vmatprep.subr.mxu0 0.0
    %566 = vmatpush1.xpose.msra.mxu0 0.0
    %567 = vmatprep.subr.mxu0 0.0
    %568 = vmatpush1.xpose.msra.mxu0 0.0
    %569 = vmatprep.subr.mxu0 0.0
    %570 = vmatpush1.xpose.msra.mxu0 0.0
    %571 = vmatprep.subr.mxu0 0.0
    %572 = vmatpush1.xpose.msra.mxu0 0.0
    %573 = vmatprep.subr.mxu0 0.0
    %574 = vmatpush1.xpose.msra.mxu0 0.0
    %575 = vmatprep.mubr.f32.mxu0 0.0
    %576 = vmatmul.mubr.f32.gmra.mrb[0].mxu0 %v507
    %v577 = vpop.f32.mrb[0].mxu0
    %v578 = vadd.f32 0.0, %v577
    %v579 = vpop.f32.mrb[0].mxu0
    %580 = vdwg.mxu0
    %v581 = vmul.f32 %v501, 0.35355338
    %v582 = vmul.f32 %v578, 0.35355338
    %v585 = vlaneseq
    %v586 = vshrl.u32 %v585, 7
    %v587 = vsub.s32 0, %v586
    %v588 = vrot.slane %v327, %v587
    %v589 = vlaneseq
    %v590 = vshrl.u32 %v589, 7
    %v591 = vsub.s32 0, %v590
    %v592 = vrot.slane %v328, %v591
    %v595 = vadd.f32 %v581, %v588
    %v596 = vadd.f32 %v582, %v592
    %v597 = vsel %vm429, %v595, -inf
    %598 = vmax.xlane.f32.xlu0 %v597
    %v599 = vpop.xlane.xlu0 %598
    %v600 = vsel %vm429, %v596, -inf
    %601 = vmax.xlane.f32.xlu0 %v600
    %v602 = vpop.xlane.xlu0 %601
    %v603 = vsub.f32 %v595, %v599
    %v604 = vsub.f32 %v596, %v602
    %v605 = vmul.f32 %v603, 1.442695
    %v606 = vpow.pop %v605
    %v607 = vmul.f32 %v604, 1.442695
    %v608 = vpow.pop %v607
    %v609 = vsel %vm429, %v606, 0.0
    %610 = vadd.xlane.f32.xlu0 %v609
    %v611 = vpop.xlane.xlu0 %610
    %v612 = vsel %vm429, %v608, 0.0
    %613 = vadd.xlane.f32.xlu0 %v612
    %v614 = vpop.xlane.xlu0 %613
    %v615 = vrcp.pop %v611
    %v616 = vmul.f32 %v606, %v615
    %v617 = vrcp.pop %v614
    %v618 = vmul.f32 %v608, %v617
    %619 = vrot.lane.b32.xlu0 %v417, 64
    %v620 = vpop.permute.xlu0 %619
    %v623 = vsel %vm429, %v616, 0
    %625 = vmatprep.subr.mxu0 0.0
    %626 = vmatpush1.msra.mxu0 %v620
    %627 = vmatprep.subr.mxu0 0.0
    %628 = vmatpush1.msra.mxu0 0.0
    %629 = vmatprep.subr.mxu0 0.0
    %630 = vmatpush1.msra.mxu0 0.0
    %631 = vmatprep.subr.mxu0 0.0
    %632 = vmatpush1.msra.mxu0 0.0
    %633 = vmatprep.subr.mxu0 0.0
    %634 = vmatpush1.msra.mxu0 0.0
    %635 = vmatprep.subr.mxu0 0.0
    %636 = vmatpush1.msra.mxu0 0.0
    %637 = vmatprep.subr.mxu0 0.0
    %638 = vmatpush1.msra.mxu0 0.0
    %639 = vmatprep.subr.mxu0 0.0
    %640 = vmatpush1.msra.mxu0 0.0
    %641 = vmatprep.subr.mxu0 0.0
    %642 = vmatpush1.msra.mxu0 0.0
    %643 = vmatprep.subr.mxu0 0.0
    %644 = vmatpush1.msra.mxu0 0.0
    %645 = vmatprep.subr.mxu0 0.0
    %646 = vmatpush1.msra.mxu0 0.0
    %647 = vmatprep.subr.mxu0 0.0
    %648 = vmatpush1.msra.mxu0 0.0
    %649 = vmatprep.subr.mxu0 0.0
    %650 = vmatpush1.msra.mxu0 0.0
    %651 = vmatprep.subr.mxu0 0.0
    %652 = vmatpush1.msra.mxu0 0.0
    %653 = vmatprep.subr.mxu0 0.0
    %654 = vmatpush1.msra.mxu0 0.0
    %655 = vmatprep.subr.mxu0 0.0
    %656 = vmatpush1.msra.mxu0 0.0
    %657 = vmatprep.subr.mxu0 0.0
    %658 = vmatpush1.msra.mxu0 0.0
    %659 = vmatprep.subr.mxu0 0.0
    %660 = vmatpush1.msra.mxu0 0.0
    %661 = vmatprep.subr.mxu0 0.0
    %662 = vmatpush1.msra.mxu0 0.0
    %663 = vmatprep.subr.mxu0 0.0
    %664 = vmatpush1.msra.mxu0 0.0
    %665 = vmatprep.subr.mxu0 0.0
    %666 = vmatpush1.msra.mxu0 0.0
    %667 = vmatprep.subr.mxu0 0.0
    %668 = vmatpush1.msra.mxu0 0.0
    %669 = vmatprep.subr.mxu0 0.0
    %670 = vmatpush1.msra.mxu0 0.0
    %671 = vmatprep.subr.mxu0 0.0
    %672 = vmatpush1.msra.mxu0 0.0
    %673 = vmatprep.subr.mxu0 0.0
    %674 = vmatpush1.msra.mxu0 0.0
    %675 = vmatprep.subr.mxu0 0.0
    %676 = vmatpush1.msra.mxu0 0.0
    %677 = vmatprep.subr.mxu0 0.0
    %678 = vmatpush1.msra.mxu0 0.0
    %679 = vmatprep.subr.mxu0 0.0
    %680 = vmatpush1.msra.mxu0 0.0
    %681 = vmatprep.subr.mxu0 0.0
    %682 = vmatpush1.msra.mxu0 0.0
    %683 = vmatprep.subr.mxu0 0.0
    %684 = vmatpush1.msra.mxu0 0.0
    %685 = vmatprep.subr.mxu0 0.0
    %686 = vmatpush1.msra.mxu0 0.0
    %687 = vmatprep.subr.mxu0 0.0
    %688 = vmatpush1.msra.mxu0 0.0
    %689 = vmatprep.mubr.f32.mxu0 0.0
    %690 = vmatmul.mubr.f32.gmra.mrb[0].mxu0 %v623
    %v691 = vpop.f32.mrb[0].mxu0
    %v692 = vadd.f32 0.0, %v691
    %v693 = vpop.f32.mrb[0].mxu0
    %694 = vdwg.mxu0
    %695 = vrot.lane.b32.xlu0 %v422, 64
    %v696 = vpop.permute.xlu0 %695
    %v699 = vsel %vm429, %v618, 0
    %701 = vmatprep.subr.mxu0 0.0
    %702 = vmatpush1.msra.mxu0 %v696
    %703 = vmatprep.subr.mxu0 0.0
    %704 = vmatpush1.msra.mxu0 0.0
    %705 = vmatprep.subr.mxu0 0.0
    %706 = vmatpush1.msra.mxu0 0.0
    %707 = vmatprep.subr.mxu0 0.0
    %708 = vmatpush1.msra.mxu0 0.0
    %709 = vmatprep.subr.mxu0 0.0
    %710 = vmatpush1.msra.mxu0 0.0
    %711 = vmatprep.subr.mxu0 0.0
    %712 = vmatpush1.msra.mxu0 0.0
    %713 = vmatprep.subr.mxu0 0.0
    %714 = vmatpush1.msra.mxu0 0.0
    %715 = vmatprep.subr.mxu0 0.0
    %716 = vmatpush1.msra.mxu0 0.0
    %717 = vmatprep.subr.mxu0 0.0
    %718 = vmatpush1.msra.mxu0 0.0
    %719 = vmatprep.subr.mxu0 0.0
    %720 = vmatpush1.msra.mxu0 0.0
    %721 = vmatprep.subr.mxu0 0.0
    %722 = vmatpush1.msra.mxu0 0.0
    %723 = vmatprep.subr.mxu0 0.0
    %724 = vmatpush1.msra.mxu0 0.0
    %725 = vmatprep.subr.mxu0 0.0
    %726 = vmatpush1.msra.mxu0 0.0
    %727 = vmatprep.subr.mxu0 0.0
    %728 = vmatpush1.msra.mxu0 0.0
    %729 = vmatprep.subr.mxu0 0.0
    %730 = vmatpush1.msra.mxu0 0.0
    %731 = vmatprep.subr.mxu0 0.0
    %732 = vmatpush1.msra.mxu0 0.0
    %733 = vmatprep.subr.mxu0 0.0
    %734 = vmatpush1.msra.mxu0 0.0
    %735 = vmatprep.subr.mxu0 0.0
    %736 = vmatpush1.msra.mxu0 0.0
    %737 = vmatprep.subr.mxu0 0.0
    %738 = vmatpush1.msra.mxu0 0.0
    %739 = vmatprep.subr.mxu0 0.0
    %740 = vmatpush1.msra.mxu0 0.0
    %741 = vmatprep.subr.mxu0 0.0
    %742 = vmatpush1.msra.mxu0 0.0
    %743 = vmatprep.subr.mxu0 0.0
    %744 = vmatpush1.msra.mxu0 0.0
    %745 = vmatprep.subr.mxu0 0.0
    %746 = vmatpush1.msra.mxu0 0.0
    %747 = vmatprep.subr.mxu0 0.0
    %748 = vmatpush1.msra.mxu0 0.0
    %749 = vmatprep.subr.mxu0 0.0
    %750 = vmatpush1.msra.mxu0 0.0
    %751 = vmatprep.subr.mxu0 0.0
    %752 = vmatpush1.msra.mxu0 0.0
    %753 = vmatprep.subr.mxu0 0.0
    %754 = vmatpush1.msra.mxu0 0.0
    %755 = vmatprep.subr.mxu0 0.0
    %756 = vmatpush1.msra.mxu0 0.0
    %757 = vmatprep.subr.mxu0 0.0
    %758 = vmatpush1.msra.mxu0 0.0
    %759 = vmatprep.subr.mxu0 0.0
    %760 = vmatpush1.msra.mxu0 0.0
    %761 = vmatprep.subr.mxu0 0.0
    %762 = vmatpush1.msra.mxu0 0.0
    %763 = vmatprep.subr.mxu0 0.0
    %764 = vmatpush1.msra.mxu0 0.0
    %765 = vmatprep.mubr.f32.mxu0 0.0
    %766 = vmatmul.mubr.f32.gmra.mrb[0].mxu0 %v699
    %v767 = vpop.f32.mrb[0].mxu0
    %v768 = vadd.f32 0.0, %v767
    %v769 = vpop.f32.mrb[0].mxu0
    %770 = vdwg.mxu0
    %v772 = vsel %vm429, %v692, 0
    %v775 = vsel %vm429, %v768, 0
    %777 = vmatprep.subr.mxu0 0.0
    %778 = vmatpush1.msra.mxu0 %v333
    %779 = vmatprep.subr.mxu0 0.0
    %780 = vmatpush1.msra.mxu0 0.0
    %781 = vmatprep.subr.mxu0 0.0
    %782 = vmatpush1.msra.mxu0 0.0
    %783 = vmatprep.subr.mxu0 0.0
    %784 = vmatpush1.msra.mxu0 0.0
    %785 = vmatprep.subr.mxu0 0.0
    %786 = vmatpush1.msra.mxu0 0.0
    %787 = vmatprep.subr.mxu0 0.0
    %788 = vmatpush1.msra.mxu0 0.0
    %789 = vmatprep.subr.mxu0 0.0
    %790 = vmatpush1.msra.mxu0 0.0
    %791 = vmatprep.subr.mxu0 0.0
    %792 = vmatpush1.msra.mxu0 0.0
    %793 = vmatprep.subr.mxu0 0.0
    %794 = vmatpush1.msra.mxu0 0.0
    %795 = vmatprep.subr.mxu0 0.0
    %796 = vmatpush1.msra.mxu0 0.0
    %797 = vmatprep.subr.mxu0 0.0
    %798 = vmatpush1.msra.mxu0 0.0
    %799 = vmatprep.subr.mxu0 0.0
    %800 = vmatpush1.msra.mxu0 0.0
    %801 = vmatprep.subr.mxu0 0.0
    %802 = vmatpush1.msra.mxu0 0.0
    %803 = vmatprep.subr.mxu0 0.0
    %804 = vmatpush1.msra.mxu0 0.0
    %805 = vmatprep.subr.mxu0 0.0
    %806 = vmatpush1.msra.mxu0 0.0
    %807 = vmatprep.subr.mxu0 0.0
    %808 = vmatpush1.msra.mxu0 0.0
    %809 = vmatprep.subr.mxu0 0.0
    %810 = vmatpush1.msra.mxu0 0.0
    %811 = vmatprep.subr.mxu0 0.0
    %812 = vmatpush1.msra.mxu0 0.0
    %813 = vmatprep.subr.mxu0 0.0
    %814 = vmatpush1.msra.mxu0 0.0
    %815 = vmatprep.subr.mxu0 0.0
    %816 = vmatpush1.msra.mxu0 0.0
    %817 = vmatprep.subr.mxu0 0.0
    %818 = vmatpush1.msra.mxu0 0.0
    %819 = vmatprep.subr.mxu0 0.0
    %820 = vmatpush1.msra.mxu0 0.0
    %821 = vmatprep.subr.mxu0 0.0
    %822 = vmatpush1.msra.mxu0 0.0
    %823 = vmatprep.subr.mxu0 0.0
    %824 = vmatpush1.msra.mxu0 0.0
    %825 = vmatprep.subr.mxu0 0.0
    %826 = vmatpush1.msra.mxu0 0.0
    %827 = vmatprep.subr.mxu0 0.0
    %828 = vmatpush1.msra.mxu0 0.0
    %829 = vmatprep.subr.mxu0 0.0
    %830 = vmatpush1.msra.mxu0 0.0
    %831 = vmatprep.subr.mxu0 0.0
    %832 = vmatpush1.msra.mxu0 0.0
    %833 = vmatprep.subr.mxu0 0.0
    %834 = vmatpush1.msra.mxu0 0.0
    %835 = vmatprep.subr.mxu0 0.0
    %836 = vmatpush1.msra.mxu0 0.0
    %837 = vmatprep.subr.mxu0 0.0
    %838 = vmatpush1.msra.mxu0 0.0
    %839 = vmatprep.subr.mxu0 0.0
    %840 = vmatpush1.msra.mxu0 0.0
    %841 = vmatprep.mubr.f32.mxu0 0.0
    %842 = vmatmul.mubr.f32.gmra.mrb[0].mxu0 %v772
    %v843 = vpop.f32.mrb[0].mxu0
    %v844 = vadd.f32 0.0, %v843
    %v845 = vpop.f32.mrb[0].mxu0
    %846 = vmatprep.mubr.f32.mxu0 0.0
    %847 = vmatmul.mubr.f32.gmra.mrb[0].mxu0 %v775
    %v848 = vpop.f32.mrb[0].mxu0
    %v849 = vadd.f32 0.0, %v848
    %v850 = vpop.f32.mrb[0].mxu0
    %851 = vdwg.mxu0
    %v853 = vlaneseq
    %v854 = vshrl.u32 %v853, 7
    %v855 = vsub.s32 0, %v854
    %v856 = vrot.slane %v425, %v855
    %v858 = vadd.f32 %v856, %v844
    %v859 = vadd.f32 %v856, %v849
    %860 = vrot.lane.b32.xlu0 %v417, 120
    %v861 = vpop.permute.xlu0 %860
    %862 = vrot.lane.b32.xlu0 %v417, 88
    %v863 = vpop.permute.xlu0 %862
    %v864 = vsel %vm429, %v861, 0
    %v866 = vsel %vm429, %v863, 0
    %868 = vmatprep.subr.mxu0 0.0
    %869 = vmatpush1.xpose.msra.mxu0 %v866
    %870 = vmatprep.subr.mxu0 0.0
    %871 = vmatpush1.xpose.msra.mxu0 0.0
    %872 = vmatprep.subr.mxu0 0.0
    %873 = vmatpush1.xpose.msra.mxu0 0.0
    %874 = vmatprep.subr.mxu0 0.0
    %875 = vmatpush1.xpose.msra.mxu0 0.0
    %876 = vmatprep.subr.mxu0 0.0
    %877 = vmatpush1.xpose.msra.mxu0 0.0
    %878 = vmatprep.subr.mxu0 0.0
    %879 = vmatpush1.xpose.msra.mxu0 0.0
    %880 = vmatprep.subr.mxu0 0.0
    %881 = vmatpush1.xpose.msra.mxu0 0.0
    %882 = vmatprep.subr.mxu0 0.0
    %883 = vmatpush1.xpose.msra.mxu0 0.0
    %884 = vmatprep.subr.mxu0 0.0
    %885 = vmatpush1.xpose.msra.mxu0 0.0
    %886 = vmatprep.subr.mxu0 0.0
    %887 = vmatpush1.xpose.msra.mxu0 0.0
    %888 = vmatprep.subr.mxu0 0.0
    %889 = vmatpush1.xpose.msra.mxu0 0.0
    %890 = vmatprep.subr.mxu0 0.0
    %891 = vmatpush1.xpose.msra.mxu0 0.0
    %892 = vmatprep.subr.mxu0 0.0
    %893 = vmatpush1.xpose.msra.mxu0 0.0
    %894 = vmatprep.subr.mxu0 0.0
    %895 = vmatpush1.xpose.msra.mxu0 0.0
    %896 = vmatprep.subr.mxu0 0.0
    %897 = vmatpush1.xpose.msra.mxu0 0.0
    %898 = vmatprep.subr.mxu0 0.0
    %899 = vmatpush1.xpose.msra.mxu0 0.0
    %900 = vmatprep.subr.mxu0 0.0
    %901 = vmatpush1.xpose.msra.mxu0 0.0
    %902 = vmatprep.subr.mxu0 0.0
    %903 = vmatpush1.xpose.msra.mxu0 0.0
    %904 = vmatprep.subr.mxu0 0.0
    %905 = vmatpush1.xpose.msra.mxu0 0.0
    %906 = vmatprep.subr.mxu0 0.0
    %907 = vmatpush1.xpose.msra.mxu0 0.0
    %908 = vmatprep.subr.mxu0 0.0
    %909 = vmatpush1.xpose.msra.mxu0 0.0
    %910 = vmatprep.subr.mxu0 0.0
    %911 = vmatpush1.xpose.msra.mxu0 0.0
    %912 = vmatprep.subr.mxu0 0.0
    %913 = vmatpush1.xpose.msra.mxu0 0.0
    %914 = vmatprep.subr.mxu0 0.0
    %915 = vmatpush1.xpose.msra.mxu0 0.0
    %916 = vmatprep.subr.mxu0 0.0
    %917 = vmatpush1.xpose.msra.mxu0 0.0
    %918 = vmatprep.subr.mxu0 0.0
    %919 = vmatpush1.xpose.msra.mxu0 0.0
    %920 = vmatprep.subr.mxu0 0.0
    %921 = vmatpush1.xpose.msra.mxu0 0.0
    %922 = vmatprep.subr.mxu0 0.0
    %923 = vmatpush1.xpose.msra.mxu0 0.0
    %924 = vmatprep.subr.mxu0 0.0
    %925 = vmatpush1.xpose.msra.mxu0 0.0
    %926 = vmatprep.subr.mxu0 0.0
    %927 = vmatpush1.xpose.msra.mxu0 0.0
    %928 = vmatprep.subr.mxu0 0.0
    %929 = vmatpush1.xpose.msra.mxu0 0.0
    %930 = vmatprep.subr.mxu0 0.0
    %931 = vmatpush1.xpose.msra.mxu0 0.0
    %932 = vmatprep.mubr.f32.mxu0 0.0
    %933 = vmatmul.mubr.f32.gmra.mrb[0].mxu0 %v864
    %v934 = vpop.f32.mrb[0].mxu0
    %v935 = vadd.f32 0.0, %v934
    %v936 = vpop.f32.mrb[0].mxu0
    %937 = vdwg.mxu0
    %938 = vrot.lane.b32.xlu0 %v422, 120
    %v939 = vpop.permute.xlu0 %938
    %940 = vrot.lane.b32.xlu0 %v422, 88
    %v941 = vpop.permute.xlu0 %940
    %v942 = vsel %vm429, %v939, 0
    %v944 = vsel %vm429, %v941, 0
    %946 = vmatprep.subr.mxu0 0.0
    %947 = vmatpush1.xpose.msra.mxu0 %v944
    %948 = vmatprep.subr.mxu0 0.0
    %949 = vmatpush1.xpose.msra.mxu0 0.0
    %950 = vmatprep.subr.mxu0 0.0
    %951 = vmatpush1.xpose.msra.mxu0 0.0
    %952 = vmatprep.subr.mxu0 0.0
    %953 = vmatpush1.xpose.msra.mxu0 0.0
    %954 = vmatprep.subr.mxu0 0.0
    %955 = vmatpush1.xpose.msra.mxu0 0.0
    %956 = vmatprep.subr.mxu0 0.0
    %957 = vmatpush1.xpose.msra.mxu0 0.0
    %958 = vmatprep.subr.mxu0 0.0
    %959 = vmatpush1.xpose.msra.mxu0 0.0
    %960 = vmatprep.subr.mxu0 0.0
    %961 = vmatpush1.xpose.msra.mxu0 0.0
    %962 = vmatprep.subr.mxu0 0.0
    %963 = vmatpush1.xpose.msra.mxu0 0.0
    %964 = vmatprep.subr.mxu0 0.0
    %965 = vmatpush1.xpose.msra.mxu0 0.0
    %966 = vmatprep.subr.mxu0 0.0
    %967 = vmatpush1.xpose.msra.mxu0 0.0
    %968 = vmatprep.subr.mxu0 0.0
    %969 = vmatpush1.xpose.msra.mxu0 0.0
    %970 = vmatprep.subr.mxu0 0.0
    %971 = vmatpush1.xpose.msra.mxu0 0.0
    %972 = vmatprep.subr.mxu0 0.0
    %973 = vmatpush1.xpose.msra.mxu0 0.0
    %974 = vmatprep.subr.mxu0 0.0
    %975 = vmatpush1.xpose.msra.mxu0 0.0
    %976 = vmatprep.subr.mxu0 0.0
    %977 = vmatpush1.xpose.msra.mxu0 0.0
    %978 = vmatprep.subr.mxu0 0.0
    %979 = vmatpush1.xpose.msra.mxu0 0.0
    %980 = vmatprep.subr.mxu0 0.0
    %981 = vmatpush1.xpose.msra.mxu0 0.0
    %982 = vmatprep.subr.mxu0 0.0
    %983 = vmatpush1.xpose.msra.mxu0 0.0
    %984 = vmatprep.subr.mxu0 0.0
    %985 = vmatpush1.xpose.msra.mxu0 0.0
    %986 = vmatprep.subr.mxu0 0.0
    %987 = vmatpush1.xpose.msra.mxu0 0.0
    %988 = vmatprep.subr.mxu0 0.0
    %989 = vmatpush1.xpose.msra.mxu0 0.0
    %990 = vmatprep.subr.mxu0 0.0
    %991 = vmatpush1.xpose.msra.mxu0 0.0
    %992 = vmatprep.subr.mxu0 0.0
    %993 = vmatpush1.xpose.msra.mxu0 0.0
    %994 = vmatprep.subr.mxu0 0.0
    %995 = vmatpush1.xpose.msra.mxu0 0.0
    %996 = vmatprep.subr.mxu0 0.0
    %997 = vmatpush1.xpose.msra.mxu0 0.0
    %998 = vmatprep.subr.mxu0 0.0
    %999 = vmatpush1.xpose.msra.mxu0 0.0
    %1000 = vmatprep.subr.mxu0 0.0
    %1001 = vmatpush1.xpose.msra.mxu0 0.0
    %1002 = vmatprep.subr.mxu0 0.0
    %1003 = vmatpush1.xpose.msra.mxu0 0.0
    %1004 = vmatprep.subr.mxu0 0.0
    %1005 = vmatpush1.xpose.msra.mxu0 0.0
    %1006 = vmatprep.subr.mxu0 0.0
    %1007 = vmatpush1.xpose.msra.mxu0 0.0
    %1008 = vmatprep.subr.mxu0 0.0
    %1009 = vmatpush1.xpose.msra.mxu0 0.0
    %1010 = vmatprep.mubr.f32.mxu0 0.0
    %1011 = vmatmul.mubr.f32.gmra.mrb[0].mxu0 %v942
    %v1012 = vpop.f32.mrb[0].mxu0
    %v1013 = vadd.f32 0.0, %v1012
    %v1014 = vpop.f32.mrb[0].mxu0
    %1015 = vdwg.mxu0
    %v1016 = vmul.f32 %v935, 0.35355338
    %v1017 = vmul.f32 %v1013, 0.35355338
    %v1018 = vadd.f32 %v1016, %v588
    %v1019 = vadd.f32 %v1017, %v592
    %v1020 = vsel %vm429, %v1018, -inf
    %1021 = vmax.xlane.f32.xlu0 %v1020
    %v1022 = vpop.xlane.xlu0 %1021
    %v1023 = vsel %vm429, %v1019, -inf
    %1024 = vmax.xlane.f32.xlu0 %v1023
    %v1025 = vpop.xlane.xlu0 %1024
    %v1026 = vsub.f32 %v1018, %v1022
    %v1027 = vsub.f32 %v1019, %v1025
    %v1028 = vmul.f32 %v1026, 1.442695
    %v1029 = vpow.pop %v1028
    %v1030 = vmul.f32 %v1027, 1.442695
    %v1031 = vpow.pop %v1030
    %v1032 = vsel %vm429, %v1029, 0.0
    %1033 = vadd.xlane.f32.xlu0 %v1032
    %v1034 = vpop.xlane.xlu0 %1033
    %v1035 = vsel %vm429, %v1031, 0.0
    %1036 = vadd.xlane.f32.xlu0 %v1035
    %v1037 = vpop.xlane.xlu0 %1036
    %v1038 = vrcp.pop %v1034
    %v1039 = vmul.f32 %v1029, %v1038
    %v1040 = vrcp.pop %v1037
    %v1041 = vmul.f32 %v1031, %v1040
    %1042 = vrot.lane.b32.xlu0 %v417, 56
    %v1043 = vpop.permute.xlu0 %1042
    %v1046 = vsel %vm429, %v1039, 0
    %1048 = vmatprep.subr.mxu0 0.0
    %1049 = vmatpush1.msra.mxu0 %v1043
    %1050 = vmatprep.subr.mxu0 0.0
    %1051 = vmatpush1.msra.mxu0 0.0
    %1052 = vmatprep.subr.mxu0 0.0
    %1053 = vmatpush1.msra.mxu0 0.0
    %1054 = vmatprep.subr.mxu0 0.0
    %1055 = vmatpush1.msra.mxu0 0.0
    %1056 = vmatprep.subr.mxu0 0.0
    %1057 = vmatpush1.msra.mxu0 0.0
    %1058 = vmatprep.subr.mxu0 0.0
    %1059 = vmatpush1.msra.mxu0 0.0
    %1060 = vmatprep.subr.mxu0 0.0
    %1061 = vmatpush1.msra.mxu0 0.0
    %1062 = vmatprep.subr.mxu0 0.0
    %1063 = vmatpush1.msra.mxu0 0.0
    %1064 = vmatprep.subr.mxu0 0.0
    %1065 = vmatpush1.msra.mxu0 0.0
    %1066 = vmatprep.subr.mxu0 0.0
    %1067 = vmatpush1.msra.mxu0 0.0
    %1068 = vmatprep.subr.mxu0 0.0
    %1069 = vmatpush1.msra.mxu0 0.0
    %1070 = vmatprep.subr.mxu0 0.0
    %1071 = vmatpush1.msra.mxu0 0.0
    %1072 = vmatprep.subr.mxu0 0.0
    %1073 = vmatpush1.msra.mxu0 0.0
    %1074 = vmatprep.subr.mxu0 0.0
    %1075 = vmatpush1.msra.mxu0 0.0
    %1076 = vmatprep.subr.mxu0 0.0
    %1077 = vmatpush1.msra.mxu0 0.0
    %1078 = vmatprep.subr.mxu0 0.0
    %1079 = vmatpush1.msra.mxu0 0.0
    %1080 = vmatprep.subr.mxu0 0.0
    %1081 = vmatpush1.msra.mxu0 0.0
    %1082 = vmatprep.subr.mxu0 0.0
    %1083 = vmatpush1.msra.mxu0 0.0
    %1084 = vmatprep.subr.mxu0 0.0
    %1085 = vmatpush1.msra.mxu0 0.0
    %1086 = vmatprep.subr.mxu0 0.0
    %1087 = vmatpush1.msra.mxu0 0.0
    %1088 = vmatprep.subr.mxu0 0.0
    %1089 = vmatpush1.msra.mxu0 0.0
    %1090 = vmatprep.subr.mxu0 0.0
    %1091 = vmatpush1.msra.mxu0 0.0
    %1092 = vmatprep.subr.mxu0 0.0
    %1093 = vmatpush1.msra.mxu0 0.0
    %1094 = vmatprep.subr.mxu0 0.0
    %1095 = vmatpush1.msra.mxu0 0.0
    %1096 = vmatprep.subr.mxu0 0.0
    %1097 = vmatpush1.msra.mxu0 0.0
    %1098 = vmatprep.subr.mxu0 0.0
    %1099 = vmatpush1.msra.mxu0 0.0
    %1100 = vmatprep.subr.mxu0 0.0
    %1101 = vmatpush1.msra.mxu0 0.0
    %1102 = vmatprep.subr.mxu0 0.0
    %1103 = vmatpush1.msra.mxu0 0.0
    %1104 = vmatprep.subr.mxu0 0.0
    %1105 = vmatpush1.msra.mxu0 0.0
    %1106 = vmatprep.subr.mxu0 0.0
    %1107 = vmatpush1.msra.mxu0 0.0
    %1108 = vmatprep.subr.mxu0 0.0
    %1109 = vmatpush1.msra.mxu0 0.0
    %1110 = vmatprep.subr.mxu0 0.0
    %1111 = vmatpush1.msra.mxu0 0.0
    %1112 = vmatprep.mubr.f32.mxu0 0.0
    %1113 = vmatmul.mubr.f32.gmra.mrb[0].mxu0 %v1046
    %v1114 = vpop.f32.mrb[0].mxu0
    %v1115 = vadd.f32 0.0, %v1114
    %v1116 = vpop.f32.mrb[0].mxu0
    %1117 = vdwg.mxu0
    %1118 = vrot.lane.b32.xlu0 %v422, 56
    %v1119 = vpop.permute.xlu0 %1118
    %v1122 = vsel %vm429, %v1041, 0
    %1124 = vmatprep.subr.mxu0 0.0
    %1125 = vmatpush1.msra.mxu0 %v1119
    %1126 = vmatprep.subr.mxu0 0.0
    %1127 = vmatpush1.msra.mxu0 0.0
    %1128 = vmatprep.subr.mxu0 0.0
    %1129 = vmatpush1.msra.mxu0 0.0
    %1130 = vmatprep.subr.mxu0 0.0
    %1131 = vmatpush1.msra.mxu0 0.0
    %1132 = vmatprep.subr.mxu0 0.0
    %1133 = vmatpush1.msra.mxu0 0.0
    %1134 = vmatprep.subr.mxu0 0.0
    %1135 = vmatpush1.msra.mxu0 0.0
    %1136 = vmatprep.subr.mxu0 0.0
    %1137 = vmatpush1.msra.mxu0 0.0
    %1138 = vmatprep.subr.mxu0 0.0
    %1139 = vmatpush1.msra.mxu0 0.0
    %1140 = vmatprep.subr.mxu0 0.0
    %1141 = vmatpush1.msra.mxu0 0.0
    %1142 = vmatprep.subr.mxu0 0.0
    %1143 = vmatpush1.msra.mxu0 0.0
    %1144 = vmatprep.subr.mxu0 0.0
    %1145 = vmatpush1.msra.mxu0 0.0
    %1146 = vmatprep.subr.mxu0 0.0
    %1147 = vmatpush1.msra.mxu0 0.0
    %1148 = vmatprep.subr.mxu0 0.0
    %1149 = vmatpush1.msra.mxu0 0.0
    %1150 = vmatprep.subr.mxu0 0.0
    %1151 = vmatpush1.msra.mxu0 0.0
    %1152 = vmatprep.subr.mxu0 0.0
    %1153 = vmatpush1.msra.mxu0 0.0
    %1154 = vmatprep.subr.mxu0 0.0
    %1155 = vmatpush1.msra.mxu0 0.0
    %1156 = vmatprep.subr.mxu0 0.0
    %1157 = vmatpush1.msra.mxu0 0.0
    %1158 = vmatprep.subr.mxu0 0.0
    %1159 = vmatpush1.msra.mxu0 0.0
    %1160 = vmatprep.subr.mxu0 0.0
    %1161 = vmatpush1.msra.mxu0 0.0
    %1162 = vmatprep.subr.mxu0 0.0
    %1163 = vmatpush1.msra.mxu0 0.0
    %1164 = vmatprep.subr.mxu0 0.0
    %1165 = vmatpush1.msra.mxu0 0.0
    %1166 = vmatprep.subr.mxu0 0.0
    %1167 = vmatpush1.msra.mxu0 0.0
    %1168 = vmatprep.subr.mxu0 0.0
    %1169 = vmatpush1.msra.mxu0 0.0
    %1170 = vmatprep.subr.mxu0 0.0
    %1171 = vmatpush1.msra.mxu0 0.0
    %1172 = vmatprep.subr.mxu0 0.0
    %1173 = vmatpush1.msra.mxu0 0.0
    %1174 = vmatprep.subr.mxu0 0.0
    %1175 = vmatpush1.msra.mxu0 0.0
    %1176 = vmatprep.subr.mxu0 0.0
    %1177 = vmatpush1.msra.mxu0 0.0
    %1178 = vmatprep.subr.mxu0 0.0
    %1179 = vmatpush1.msra.mxu0 0.0
    %1180 = vmatprep.subr.mxu0 0.0
    %1181 = vmatpush1.msra.mxu0 0.0
    %1182 = vmatprep.subr.mxu0 0.0
    %1183 = vmatpush1.msra.mxu0 0.0
    %1184 = vmatprep.subr.mxu0 0.0
    %1185 = vmatpush1.msra.mxu0 0.0
    %1186 = vmatprep.subr.mxu0 0.0
    %1187 = vmatpush1.msra.mxu0 0.0
    %1188 = vmatprep.mubr.f32.mxu0 0.0
    %1189 = vmatmul.mubr.f32.gmra.mrb[0].mxu0 %v1122
    %v1190 = vpop.f32.mrb[0].mxu0
    %v1191 = vadd.f32 0.0, %v1190
    %v1192 = vpop.f32.mrb[0].mxu0
    %1193 = vdwg.mxu0
    %v1195 = vsel %vm429, %v1115, 0
    %v1198 = vsel %vm429, %v1191, 0
    %1200 = vmatprep.subr.mxu0 0.0
    %1201 = vmatpush1.msra.mxu0 %v334
    %1202 = vmatprep.subr.mxu0 0.0
    %1203 = vmatpush1.msra.mxu0 0.0
    %1204 = vmatprep.subr.mxu0 0.0
    %1205 = vmatpush1.msra.mxu0 0.0
    %1206 = vmatprep.subr.mxu0 0.0
    %1207 = vmatpush1.msra.mxu0 0.0
    %1208 = vmatprep.subr.mxu0 0.0
    %1209 = vmatpush1.msra.mxu0 0.0
    %1210 = vmatprep.subr.mxu0 0.0
    %1211 = vmatpush1.msra.mxu0 0.0
    %1212 = vmatprep.subr.mxu0 0.0
    %1213 = vmatpush1.msra.mxu0 0.0
    %1214 = vmatprep.subr.mxu0 0.0
    %1215 = vmatpush1.msra.mxu0 0.0
    %1216 = vmatprep.subr.mxu0 0.0
    %1217 = vmatpush1.msra.mxu0 0.0
    %1218 = vmatprep.subr.mxu0 0.0
    %1219 = vmatpush1.msra.mxu0 0.0
    %1220 = vmatprep.subr.mxu0 0.0
    %1221 = vmatpush1.msra.mxu0 0.0
    %1222 = vmatprep.subr.mxu0 0.0
    %1223 = vmatpush1.msra.mxu0 0.0
    %1224 = vmatprep.subr.mxu0 0.0
    %1225 = vmatpush1.msra.mxu0 0.0
    %1226 = vmatprep.subr.mxu0 0.0
    %1227 = vmatpush1.msra.mxu0 0.0
    %1228 = vmatprep.subr.mxu0 0.0
    %1229 = vmatpush1.msra.mxu0 0.0
    %1230 = vmatprep.subr.mxu0 0.0
    %1231 = vmatpush1.msra.mxu0 0.0
    %1232 = vmatprep.subr.mxu0 0.0
    %1233 = vmatpush1.msra.mxu0 0.0
    %1234 = vmatprep.subr.mxu0 0.0
    %1235 = vmatpush1.msra.mxu0 0.0
    %1236 = vmatprep.subr.mxu0 0.0
    %1237 = vmatpush1.msra.mxu0 0.0
    %1238 = vmatprep.subr.mxu0 0.0
    %1239 = vmatpush1.msra.mxu0 0.0
    %1240 = vmatprep.subr.mxu0 0.0
    %1241 = vmatpush1.msra.mxu0 0.0
    %1242 = vmatprep.subr.mxu0 0.0
    %1243 = vmatpush1.msra.mxu0 0.0
    %1244 = vmatprep.subr.mxu0 0.0
    %1245 = vmatpush1.msra.mxu0 0.0
    %1246 = vmatprep.subr.mxu0 0.0
    %1247 = vmatpush1.msra.mxu0 0.0
    %1248 = vmatprep.subr.mxu0 0.0
    %1249 = vmatpush1.msra.mxu0 0.0
    %1250 = vmatprep.subr.mxu0 0.0
    %1251 = vmatpush1.msra.mxu0 0.0
    %1252 = vmatprep.subr.mxu0 0.0
    %1253 = vmatpush1.msra.mxu0 0.0
    %1254 = vmatprep.subr.mxu0 0.0
    %1255 = vmatpush1.msra.mxu0 0.0
    %1256 = vmatprep.subr.mxu0 0.0
    %1257 = vmatpush1.msra.mxu0 0.0
    %1258 = vmatprep.subr.mxu0 0.0
    %1259 = vmatpush1.msra.mxu0 0.0
    %1260 = vmatprep.subr.mxu0 0.0
    %1261 = vmatpush1.msra.mxu0 0.0
    %1262 = vmatprep.subr.mxu0 0.0
    %1263 = vmatpush1.msra.mxu0 0.0
    %1264 = vmatprep.mubr.f32.mxu0 0.0
    %1265 = vmatmul.mubr.f32.gmra.mrb[0].mxu0 %v1195
    %v1266 = vpop.f32.mrb[0].mxu0
    %v1267 = vadd.f32 0.0, %v1266
    %v1268 = vpop.f32.mrb[0].mxu0
    %1269 = vmatprep.mubr.f32.mxu0 0.0
    %1270 = vmatmul.mubr.f32.gmra.mrb[0].mxu0 %v1198
    %v1271 = vpop.f32.mrb[0].mxu0
    %v1272 = vadd.f32 0.0, %v1271
    %v1273 = vpop.f32.mrb[0].mxu0
    %1274 = vdwg.mxu0
    %v1275 = vadd.f32 %v858, %v1267
    %v1276 = vadd.f32 %v859, %v1272
    %1277 = vrot.lane.b32.xlu0 %v417, 112
    %v1278 = vpop.permute.xlu0 %1277
    %1279 = vrot.lane.b32.xlu0 %v417, 80
    %v1280 = vpop.permute.xlu0 %1279
    %v1281 = vsel %vm429, %v1278, 0
    %v1283 = vsel %vm429, %v1280, 0
    %1285 = vmatprep.subr.mxu0 0.0
    %1286 = vmatpush1.xpose.msra.mxu0 %v1283
    %1287 = vmatprep.subr.mxu0 0.0
    %1288 = vmatpush1.xpose.msra.mxu0 0.0
    %1289 = vmatprep.subr.mxu0 0.0
    %1290 = vmatpush1.xpose.msra.mxu0 0.0
    %1291 = vmatprep.subr.mxu0 0.0
    %1292 = vmatpush1.xpose.msra.mxu0 0.0
    %1293 = vmatprep.subr.mxu0 0.0
    %1294 = vmatpush1.xpose.msra.mxu0 0.0
    %1295 = vmatprep.subr.mxu0 0.0
    %1296 = vmatpush1.xpose.msra.mxu0 0.0
    %1297 = vmatprep.subr.mxu0 0.0
    %1298 = vmatpush1.xpose.msra.mxu0 0.0
    %1299 = vmatprep.subr.mxu0 0.0
    %1300 = vmatpush1.xpose.msra.mxu0 0.0
    %1301 = vmatprep.subr.mxu0 0.0
    %1302 = vmatpush1.xpose.msra.mxu0 0.0
    %1303 = vmatprep.subr.mxu0 0.0
    %1304 = vmatpush1.xpose.msra.mxu0 0.0
    %1305 = vmatprep.subr.mxu0 0.0
    %1306 = vmatpush1.xpose.msra.mxu0 0.0
    %1307 = vmatprep.subr.mxu0 0.0
    %1308 = vmatpush1.xpose.msra.mxu0 0.0
    %1309 = vmatprep.subr.mxu0 0.0
    %1310 = vmatpush1.xpose.msra.mxu0 0.0
    %1311 = vmatprep.subr.mxu0 0.0
    %1312 = vmatpush1.xpose.msra.mxu0 0.0
    %1313 = vmatprep.subr.mxu0 0.0
    %1314 = vmatpush1.xpose.msra.mxu0 0.0
    %1315 = vmatprep.subr.mxu0 0.0
    %1316 = vmatpush1.xpose.msra.mxu0 0.0
    %1317 = vmatprep.subr.mxu0 0.0
    %1318 = vmatpush1.xpose.msra.mxu0 0.0
    %1319 = vmatprep.subr.mxu0 0.0
    %1320 = vmatpush1.xpose.msra.mxu0 0.0
    %1321 = vmatprep.subr.mxu0 0.0
    %1322 = vmatpush1.xpose.msra.mxu0 0.0
    %1323 = vmatprep.subr.mxu0 0.0
    %1324 = vmatpush1.xpose.msra.mxu0 0.0
    %1325 = vmatprep.subr.mxu0 0.0
    %1326 = vmatpush1.xpose.msra.mxu0 0.0
    %1327 = vmatprep.subr.mxu0 0.0
    %1328 = vmatpush1.xpose.msra.mxu0 0.0
    %1329 = vmatprep.subr.mxu0 0.0
    %1330 = vmatpush1.xpose.msra.mxu0 0.0
    %1331 = vmatprep.subr.mxu0 0.0
    %1332 = vmatpush1.xpose.msra.mxu0 0.0
    %1333 = vmatprep.subr.mxu0 0.0
    %1334 = vmatpush1.xpose.msra.mxu0 0.0
    %1335 = vmatprep.subr.mxu0 0.0
    %1336 = vmatpush1.xpose.msra.mxu0 0.0
    %1337 = vmatprep.subr.mxu0 0.0
    %1338 = vmatpush1.xpose.msra.mxu0 0.0
    %1339 = vmatprep.subr.mxu0 0.0
    %1340 = vmatpush1.xpose.msra.mxu0 0.0
    %1341 = vmatprep.subr.mxu0 0.0
    %1342 = vmatpush1.xpose.msra.mxu0 0.0
    %1343 = vmatprep.subr.mxu0 0.0
    %1344 = vmatpush1.xpose.msra.mxu0 0.0
    %1345 = vmatprep.subr.mxu0 0.0
    %1346 = vmatpush1.xpose.msra.mxu0 0.0
    %1347 = vmatprep.subr.mxu0 0.0
    %1348 = vmatpush1.xpose.msra.mxu0 0.0
    %1349 = vmatprep.mubr.f32.mxu0 0.0
    %1350 = vmatmul.mubr.f32.gmra.mrb[0].mxu0 %v1281
    %v1351 = vpop.f32.mrb[0].mxu0
    %v1352 = vadd.f32 0.0, %v1351
    %v1353 = vpop.f32.mrb[0].mxu0
    %1354 = vdwg.mxu0
    %1355 = vrot.lane.b32.xlu0 %v422, 112
    %v1356 = vpop.permute.xlu0 %1355
    %1357 = vrot.lane.b32.xlu0 %v422, 80
    %v1358 = vpop.permute.xlu0 %1357
    %v1359 = vsel %vm429, %v1356, 0
    %v1361 = vsel %vm429, %v1358, 0
    %1363 = vmatprep.subr.mxu0 0.0
    %1364 = vmatpush1.xpose.msra.mxu0 %v1361
    %1365 = vmatprep.subr.mxu0 0.0
    %1366 = vmatpush1.xpose.msra.mxu0 0.0
    %1367 = vmatprep.subr.mxu0 0.0
    %1368 = vmatpush1.xpose.msra.mxu0 0.0
    %1369 = vmatprep.subr.mxu0 0.0
    %1370 = vmatpush1.xpose.msra.mxu0 0.0
    %1371 = vmatprep.subr.mxu0 0.0
    %1372 = vmatpush1.xpose.msra.mxu0 0.0
    %1373 = vmatprep.subr.mxu0 0.0
    %1374 = vmatpush1.xpose.msra.mxu0 0.0
    %1375 = vmatprep.subr.mxu0 0.0
    %1376 = vmatpush1.xpose.msra.mxu0 0.0
    %1377 = vmatprep.subr.mxu0 0.0
    %1378 = vmatpush1.xpose.msra.mxu0 0.0
    %1379 = vmatprep.subr.mxu0 0.0
    %1380 = vmatpush1.xpose.msra.mxu0 0.0
    %1381 = vmatprep.subr.mxu0 0.0
    %1382 = vmatpush1.xpose.msra.mxu0 0.0
    %1383 = vmatprep.subr.mxu0 0.0
    %1384 = vmatpush1.xpose.msra.mxu0 0.0
    %1385 = vmatprep.subr.mxu0 0.0
    %1386 = vmatpush1.xpose.msra.mxu0 0.0
    %1387 = vmatprep.subr.mxu0 0.0
    %1388 = vmatpush1.xpose.msra.mxu0 0.0
    %1389 = vmatprep.subr.mxu0 0.0
    %1390 = vmatpush1.xpose.msra.mxu0 0.0
    %1391 = vmatprep.subr.mxu0 0.0
    %1392 = vmatpush1.xpose.msra.mxu0 0.0
    %1393 = vmatprep.subr.mxu0 0.0
    %1394 = vmatpush1.xpose.msra.mxu0 0.0
    %1395 = vmatprep.subr.mxu0 0.0
    %1396 = vmatpush1.xpose.msra.mxu0 0.0
    %1397 = vmatprep.subr.mxu0 0.0
    %1398 = vmatpush1.xpose.msra.mxu0 0.0
    %1399 = vmatprep.subr.mxu0 0.0
    %1400 = vmatpush1.xpose.msra.mxu0 0.0
    %1401 = vmatprep.subr.mxu0 0.0
    %1402 = vmatpush1.xpose.msra.mxu0 0.0
    %1403 = vmatprep.subr.mxu0 0.0
    %1404 = vmatpush1.xpose.msra.mxu0 0.0
    %1405 = vmatprep.subr.mxu0 0.0
    %1406 = vmatpush1.xpose.msra.mxu0 0.0
    %1407 = vmatprep.subr.mxu0 0.0
    %1408 = vmatpush1.xpose.msra.mxu0 0.0
    %1409 = vmatprep.subr.mxu0 0.0
    %1410 = vmatpush1.xpose.msra.mxu0 0.0
    %1411 = vmatprep.subr.mxu0 0.0
    %1412 = vmatpush1.xpose.msra.mxu0 0.0
    %1413 = vmatprep.subr.mxu0 0.0
    %1414 = vmatpush1.xpose.msra.mxu0 0.0
    %1415 = vmatprep.subr.mxu0 0.0
    %1416 = vmatpush1.xpose.msra.mxu0 0.0
    %1417 = vmatprep.subr.mxu0 0.0
    %1418 = vmatpush1.xpose.msra.mxu0 0.0
    %1419 = vmatprep.subr.mxu0 0.0
    %1420 = vmatpush1.xpose.msra.mxu0 0.0
    %1421 = vmatprep.subr.mxu0 0.0
    %1422 = vmatpush1.xpose.msra.mxu0 0.0
    %1423 = vmatprep.subr.mxu0 0.0
    %1424 = vmatpush1.xpose.msra.mxu0 0.0
    %1425 = vmatprep.subr.mxu0 0.0
    %1426 = vmatpush1.xpose.msra.mxu0 0.0
    %1427 = vmatprep.mubr.f32.mxu0 0.0
    %1428 = vmatmul.mubr.f32.gmra.mrb[0].mxu0 %v1359
    %v1429 = vpop.f32.mrb[0].mxu0
    %v1430 = vadd.f32 0.0, %v1429
    %v1431 = vpop.f32.mrb[0].mxu0
    %1432 = vdwg.mxu0
    %v1433 = vmul.f32 %v1352, 0.35355338
    %v1434 = vmul.f32 %v1430, 0.35355338
    %v1435 = vadd.f32 %v1433, %v588
    %v1436 = vadd.f32 %v1434, %v592
    %v1437 = vsel %vm429, %v1435, -inf
    %1438 = vmax.xlane.f32.xlu0 %v1437
    %v1439 = vpop.xlane.xlu0 %1438
    %v1440 = vsel %vm429, %v1436, -inf
    %1441 = vmax.xlane.f32.xlu0 %v1440
    %v1442 = vpop.xlane.xlu0 %1441
    %v1443 = vsub.f32 %v1435, %v1439
    %v1444 = vsub.f32 %v1436, %v1442
    %v1445 = vmul.f32 %v1443, 1.442695
    %v1446 = vpow.pop %v1445
    %v1447 = vmul.f32 %v1444, 1.442695
    %v1448 = vpow.pop %v1447
    %v1449 = vsel %vm429, %v1446, 0.0
    %1450 = vadd.xlane.f32.xlu0 %v1449
    %v1451 = vpop.xlane.xlu0 %1450
    %v1452 = vsel %vm429, %v1448, 0.0
    %1453 = vadd.xlane.f32.xlu0 %v1452
    %v1454 = vpop.xlane.xlu0 %1453
    %v1455 = vrcp.pop %v1451
    %v1456 = vmul.f32 %v1446, %v1455
    %v1457 = vrcp.pop %v1454
    %v1458 = vmul.f32 %v1448, %v1457
    %1459 = vrot.lane.b32.xlu0 %v417, 48
    %v1460 = vpop.permute.xlu0 %1459
    %v1463 = vsel %vm429, %v1456, 0
    %1465 = vmatprep.subr.mxu0 0.0
    %1466 = vmatpush1.msra.mxu0 %v1460
    %1467 = vmatprep.subr.mxu0 0.0
    %1468 = vmatpush1.msra.mxu0 0.0
    %1469 = vmatprep.subr.mxu0 0.0
    %1470 = vmatpush1.msra.mxu0 0.0
    %1471 = vmatprep.subr.mxu0 0.0
    %1472 = vmatpush1.msra.mxu0 0.0
    %1473 = vmatprep.subr.mxu0 0.0
    %1474 = vmatpush1.msra.mxu0 0.0
    %1475 = vmatprep.subr.mxu0 0.0
    %1476 = vmatpush1.msra.mxu0 0.0
    %1477 = vmatprep.subr.mxu0 0.0
    %1478 = vmatpush1.msra.mxu0 0.0
    %1479 = vmatprep.subr.mxu0 0.0
    %1480 = vmatpush1.msra.mxu0 0.0
    %1481 = vmatprep.subr.mxu0 0.0
    %1482 = vmatpush1.msra.mxu0 0.0
    %1483 = vmatprep.subr.mxu0 0.0
    %1484 = vmatpush1.msra.mxu0 0.0
    %1485 = vmatprep.subr.mxu0 0.0
    %1486 = vmatpush1.msra.mxu0 0.0
    %1487 = vmatprep.subr.mxu0 0.0
    %1488 = vmatpush1.msra.mxu0 0.0
    %1489 = vmatprep.subr.mxu0 0.0
    %1490 = vmatpush1.msra.mxu0 0.0
    %1491 = vmatprep.subr.mxu0 0.0
    %1492 = vmatpush1.msra.mxu0 0.0
    %1493 = vmatprep.subr.mxu0 0.0
    %1494 = vmatpush1.msra.mxu0 0.0
    %1495 = vmatprep.subr.mxu0 0.0
    %1496 = vmatpush1.msra.mxu0 0.0
    %1497 = vmatprep.subr.mxu0 0.0
    %1498 = vmatpush1.msra.mxu0 0.0
    %1499 = vmatprep.subr.mxu0 0.0
    %1500 = vmatpush1.msra.mxu0 0.0
    %1501 = vmatprep.subr.mxu0 0.0
    %1502 = vmatpush1.msra.mxu0 0.0
    %1503 = vmatprep.subr.mxu0 0.0
    %1504 = vmatpush1.msra.mxu0 0.0
    %1505 = vmatprep.subr.mxu0 0.0
    %1506 = vmatpush1.msra.mxu0 0.0
    %1507 = vmatprep.subr.mxu0 0.0
    %1508 = vmatpush1.msra.mxu0 0.0
    %1509 = vmatprep.subr.mxu0 0.0
    %1510 = vmatpush1.msra.mxu0 0.0
    %1511 = vmatprep.subr.mxu0 0.0
    %1512 = vmatpush1.msra.mxu0 0.0
    %1513 = vmatprep.subr.mxu0 0.0
    %1514 = vmatpush1.msra.mxu0 0.0
    %1515 = vmatprep.subr.mxu0 0.0
    %1516 = vmatpush1.msra.mxu0 0.0
    %1517 = vmatprep.subr.mxu0 0.0
    %1518 = vmatpush1.msra.mxu0 0.0
    %1519 = vmatprep.subr.mxu0 0.0
    %1520 = vmatpush1.msra.mxu0 0.0
    %1521 = vmatprep.subr.mxu0 0.0
    %1522 = vmatpush1.msra.mxu0 0.0
    %1523 = vmatprep.subr.mxu0 0.0
    %1524 = vmatpush1.msra.mxu0 0.0
    %1525 = vmatprep.subr.mxu0 0.0
    %1526 = vmatpush1.msra.mxu0 0.0
    %1527 = vmatprep.subr.mxu0 0.0
    %1528 = vmatpush1.msra.mxu0 0.0
    %1529 = vmatprep.mubr.f32.mxu0 0.0
    %1530 = vmatmul.mubr.f32.gmra.mrb[0].mxu0 %v1463
    %v1531 = vpop.f32.mrb[0].mxu0
    %v1532 = vadd.f32 0.0, %v1531
    %v1533 = vpop.f32.mrb[0].mxu0
    %1534 = vdwg.mxu0
    %1535 = vrot.lane.b32.xlu0 %v422, 48
    %v1536 = vpop.permute.xlu0 %1535
    %v1539 = vsel %vm429, %v1458, 0
    %1541 = vmatprep.subr.mxu0 0.0
    %1542 = vmatpush1.msra.mxu0 %v1536
    %1543 = vmatprep.subr.mxu0 0.0
    %1544 = vmatpush1.msra.mxu0 0.0
    %1545 = vmatprep.subr.mxu0 0.0
    %1546 = vmatpush1.msra.mxu0 0.0
    %1547 = vmatprep.subr.mxu0 0.0
    %1548 = vmatpush1.msra.mxu0 0.0
    %1549 = vmatprep.subr.mxu0 0.0
    %1550 = vmatpush1.msra.mxu0 0.0
    %1551 = vmatprep.subr.mxu0 0.0
    %1552 = vmatpush1.msra.mxu0 0.0
    %1553 = vmatprep.subr.mxu0 0.0
    %1554 = vmatpush1.msra.mxu0 0.0
    %1555 = vmatprep.subr.mxu0 0.0
    %1556 = vmatpush1.msra.mxu0 0.0
    %1557 = vmatprep.subr.mxu0 0.0
    %1558 = vmatpush1.msra.mxu0 0.0
    %1559 = vmatprep.subr.mxu0 0.0
    %1560 = vmatpush1.msra.mxu0 0.0
    %1561 = vmatprep.subr.mxu0 0.0
    %1562 = vmatpush1.msra.mxu0 0.0
    %1563 = vmatprep.subr.mxu0 0.0
    %1564 = vmatpush1.msra.mxu0 0.0
    %1565 = vmatprep.subr.mxu0 0.0
    %1566 = vmatpush1.msra.mxu0 0.0
    %1567 = vmatprep.subr.mxu0 0.0
    %1568 = vmatpush1.msra.mxu0 0.0
    %1569 = vmatprep.subr.mxu0 0.0
    %1570 = vmatpush1.msra.mxu0 0.0
    %1571 = vmatprep.subr.mxu0 0.0
    %1572 = vmatpush1.msra.mxu0 0.0
    %1573 = vmatprep.subr.mxu0 0.0
    %1574 = vmatpush1.msra.mxu0 0.0
    %1575 = vmatprep.subr.mxu0 0.0
    %1576 = vmatpush1.msra.mxu0 0.0
    %1577 = vmatprep.subr.mxu0 0.0
    %1578 = vmatpush1.msra.mxu0 0.0
    %1579 = vmatprep.subr.mxu0 0.0
    %1580 = vmatpush1.msra.mxu0 0.0
    %1581 = vmatprep.subr.mxu0 0.0
    %1582 = vmatpush1.msra.mxu0 0.0
    %1583 = vmatprep.subr.mxu0 0.0
    %1584 = vmatpush1.msra.mxu0 0.0
    %1585 = vmatprep.subr.mxu0 0.0
    %1586 = vmatpush1.msra.mxu0 0.0
    %1587 = vmatprep.subr.mxu0 0.0
    %1588 = vmatpush1.msra.mxu0 0.0
    %1589 = vmatprep.subr.mxu0 0.0
    %1590 = vmatpush1.msra.mxu0 0.0
    %1591 = vmatprep.subr.mxu0 0.0
    %1592 = vmatpush1.msra.mxu0 0.0
    %1593 = vmatprep.subr.mxu0 0.0
    %1594 = vmatpush1.msra.mxu0 0.0
    %1595 = vmatprep.subr.mxu0 0.0
    %1596 = vmatpush1.msra.mxu0 0.0
    %1597 = vmatprep.subr.mxu0 0.0
    %1598 = vmatpush1.msra.mxu0 0.0
    %1599 = vmatprep.subr.mxu0 0.0
    %1600 = vmatpush1.msra.mxu0 0.0
    %1601 = vmatprep.subr.mxu0 0.0
    %1602 = vmatpush1.msra.mxu0 0.0
    %1603 = vmatprep.subr.mxu0 0.0
    %1604 = vmatpush1.msra.mxu0 0.0
    %1605 = vmatprep.mubr.f32.mxu0 0.0
    %1606 = vmatmul.mubr.f32.gmra.mrb[0].mxu0 %v1539
    %v1607 = vpop.f32.mrb[0].mxu0
    %v1608 = vadd.f32 0.0, %v1607
    %v1609 = vpop.f32.mrb[0].mxu0
    %1610 = vdwg.mxu0
    %v1612 = vsel %vm429, %v1532, 0
    %v1615 = vsel %vm429, %v1608, 0
    %1617 = vmatprep.subr.mxu0 0.0
    %1618 = vmatpush1.msra.mxu0 %v335
    %1619 = vmatprep.subr.mxu0 0.0
    %1620 = vmatpush1.msra.mxu0 0.0
    %1621 = vmatprep.subr.mxu0 0.0
    %1622 = vmatpush1.msra.mxu0 0.0
    %1623 = vmatprep.subr.mxu0 0.0
    %1624 = vmatpush1.msra.mxu0 0.0
    %1625 = vmatprep.subr.mxu0 0.0
    %1626 = vmatpush1.msra.mxu0 0.0
    %1627 = vmatprep.subr.mxu0 0.0
    %1628 = vmatpush1.msra.mxu0 0.0
    %1629 = vmatprep.subr.mxu0 0.0
    %1630 = vmatpush1.msra.mxu0 0.0
    %1631 = vmatprep.subr.mxu0 0.0
    %1632 = vmatpush1.msra.mxu0 0.0
    %1633 = vmatprep.subr.mxu0 0.0
    %1634 = vmatpush1.msra.mxu0 0.0
    %1635 = vmatprep.subr.mxu0 0.0
    %1636 = vmatpush1.msra.mxu0 0.0
    %1637 = vmatprep.subr.mxu0 0.0
    %1638 = vmatpush1.msra.mxu0 0.0
    %1639 = vmatprep.subr.mxu0 0.0
    %1640 = vmatpush1.msra.mxu0 0.0
    %1641 = vmatprep.subr.mxu0 0.0
    %1642 = vmatpush1.msra.mxu0 0.0
    %1643 = vmatprep.subr.mxu0 0.0
    %1644 = vmatpush1.msra.mxu0 0.0
    %1645 = vmatprep.subr.mxu0 0.0
    %1646 = vmatpush1.msra.mxu0 0.0
    %1647 = vmatprep.subr.mxu0 0.0
    %1648 = vmatpush1.msra.mxu0 0.0
    %1649 = vmatprep.subr.mxu0 0.0
    %1650 = vmatpush1.msra.mxu0 0.0
    %1651 = vmatprep.subr.mxu0 0.0
    %1652 = vmatpush1.msra.mxu0 0.0
    %1653 = vmatprep.subr.mxu0 0.0
    %1654 = vmatpush1.msra.mxu0 0.0
    %1655 = vmatprep.subr.mxu0 0.0
    %1656 = vmatpush1.msra.mxu0 0.0
    %1657 = vmatprep.subr.mxu0 0.0
    %1658 = vmatpush1.msra.mxu0 0.0
    %1659 = vmatprep.subr.mxu0 0.0
    %1660 = vmatpush1.msra.mxu0 0.0
    %1661 = vmatprep.subr.mxu0 0.0
    %1662 = vmatpush1.msra.mxu0 0.0
    %1663 = vmatprep.subr.mxu0 0.0
    %1664 = vmatpush1.msra.mxu0 0.0
    %1665 = vmatprep.subr.mxu0 0.0
    %1666 = vmatpush1.msra.mxu0 0.0
    %1667 = vmatprep.subr.mxu0 0.0
    %1668 = vmatpush1.msra.mxu0 0.0
    %1669 = vmatprep.subr.mxu0 0.0
    %1670 = vmatpush1.msra.mxu0 0.0
    %1671 = vmatprep.subr.mxu0 0.0
    %1672 = vmatpush1.msra.mxu0 0.0
    %1673 = vmatprep.subr.mxu0 0.0
    %1674 = vmatpush1.msra.mxu0 0.0
    %1675 = vmatprep.subr.mxu0 0.0
    %1676 = vmatpush1.msra.mxu0 0.0
    %1677 = vmatprep.subr.mxu0 0.0
    %1678 = vmatpush1.msra.mxu0 0.0
    %1679 = vmatprep.subr.mxu0 0.0
    %1680 = vmatpush1.msra.mxu0 0.0
    %1681 = vmatprep.mubr.f32.mxu0 0.0
    %1682 = vmatmul.mubr.f32.gmra.mrb[0].mxu0 %v1612
    %v1683 = vpop.f32.mrb[0].mxu0
    %v1684 = vadd.f32 0.0, %v1683
    %v1685 = vpop.f32.mrb[0].mxu0
    %1686 = vmatprep.mubr.f32.mxu0 0.0
    %1687 = vmatmul.mubr.f32.gmra.mrb[0].mxu0 %v1615
    %v1688 = vpop.f32.mrb[0].mxu0
    %v1689 = vadd.f32 0.0, %v1688
    %v1690 = vpop.f32.mrb[0].mxu0
    %1691 = vdwg.mxu0
    %v1692 = vadd.f32 %v1275, %v1684
    %v1693 = vadd.f32 %v1276, %v1689
    %1694 = vrot.lane.b32.xlu0 %v417, 104
    %v1695 = vpop.permute.xlu0 %1694
    %1696 = vrot.lane.b32.xlu0 %v417, 72
    %v1697 = vpop.permute.xlu0 %1696
    %v1698 = vsel %vm429, %v1695, 0
    %v1700 = vsel %vm429, %v1697, 0
    %1702 = vmatprep.subr.mxu0 0.0
    %1703 = vmatpush1.xpose.msra.mxu0 %v1700
    %1704 = vmatprep.subr.mxu0 0.0
    %1705 = vmatpush1.xpose.msra.mxu0 0.0
    %1706 = vmatprep.subr.mxu0 0.0
    %1707 = vmatpush1.xpose.msra.mxu0 0.0
    %1708 = vmatprep.subr.mxu0 0.0
    %1709 = vmatpush1.xpose.msra.mxu0 0.0
    %1710 = vmatprep.subr.mxu0 0.0
    %1711 = vmatpush1.xpose.msra.mxu0 0.0
    %1712 = vmatprep.subr.mxu0 0.0
    %1713 = vmatpush1.xpose.msra.mxu0 0.0
    %1714 = vmatprep.subr.mxu0 0.0
    %1715 = vmatpush1.xpose.msra.mxu0 0.0
    %1716 = vmatprep.subr.mxu0 0.0
    %1717 = vmatpush1.xpose.msra.mxu0 0.0
    %1718 = vmatprep.subr.mxu0 0.0
    %1719 = vmatpush1.xpose.msra.mxu0 0.0
    %1720 = vmatprep.subr.mxu0 0.0
    %1721 = vmatpush1.xpose.msra.mxu0 0.0
    %1722 = vmatprep.subr.mxu0 0.0
    %1723 = vmatpush1.xpose.msra.mxu0 0.0
    %1724 = vmatprep.subr.mxu0 0.0
    %1725 = vmatpush1.xpose.msra.mxu0 0.0
    %1726 = vmatprep.subr.mxu0 0.0
    %1727 = vmatpush1.xpose.msra.mxu0 0.0
    %1728 = vmatprep.subr.mxu0 0.0
    %1729 = vmatpush1.xpose.msra.mxu0 0.0
    %1730 = vmatprep.subr.mxu0 0.0
    %1731 = vmatpush1.xpose.msra.mxu0 0.0
    %1732 = vmatprep.subr.mxu0 0.0
    %1733 = vmatpush1.xpose.msra.mxu0 0.0
    %1734 = vmatprep.subr.mxu0 0.0
    %1735 = vmatpush1.xpose.msra.mxu0 0.0
    %1736 = vmatprep.subr.mxu0 0.0
    %1737 = vmatpush1.xpose.msra.mxu0 0.0
    %1738 = vmatprep.subr.mxu0 0.0
    %1739 = vmatpush1.xpose.msra.mxu0 0.0
    %1740 = vmatprep.subr.mxu0 0.0
    %1741 = vmatpush1.xpose.msra.mxu0 0.0
    %1742 = vmatprep.subr.mxu0 0.0
    %1743 = vmatpush1.xpose.msra.mxu0 0.0
    %1744 = vmatprep.subr.mxu0 0.0
    %1745 = vmatpush1.xpose.msra.mxu0 0.0
    %1746 = vmatprep.subr.mxu0 0.0
    %1747 = vmatpush1.xpose.msra.mxu0 0.0
    %1748 = vmatprep.subr.mxu0 0.0
    %1749 = vmatpush1.xpose.msra.mxu0 0.0
    %1750 = vmatprep.subr.mxu0 0.0
    %1751 = vmatpush1.xpose.msra.mxu0 0.0
    %1752 = vmatprep.subr.mxu0 0.0
    %1753 = vmatpush1.xpose.msra.mxu0 0.0
    %1754 = vmatprep.subr.mxu0 0.0
    %1755 = vmatpush1.xpose.msra.mxu0 0.0
    %1756 = vmatprep.subr.mxu0 0.0
    %1757 = vmatpush1.xpose.msra.mxu0 0.0
    %1758 = vmatprep.subr.mxu0 0.0
    %1759 = vmatpush1.xpose.msra.mxu0 0.0
    %1760 = vmatprep.subr.mxu0 0.0
    %1761 = vmatpush1.xpose.msra.mxu0 0.0
    %1762 = vmatprep.subr.mxu0 0.0
    %1763 = vmatpush1.xpose.msra.mxu0 0.0
    %1764 = vmatprep.subr.mxu0 0.0
    %1765 = vmatpush1.xpose.msra.mxu0 0.0
    %1766 = vmatprep.mubr.f32.mxu0 0.0
    %1767 = vmatmul.mubr.f32.gmra.mrb[0].mxu0 %v1698
    %v1768 = vpop.f32.mrb[0].mxu0
    %v1769 = vadd.f32 0.0, %v1768
    %v1770 = vpop.f32.mrb[0].mxu0
    %1771 = vdwg.mxu0
    %1772 = vrot.lane.b32.xlu0 %v422, 104
    %v1773 = vpop.permute.xlu0 %1772
    %1774 = vrot.lane.b32.xlu0 %v422, 72
    %v1775 = vpop.permute.xlu0 %1774
    %v1776 = vsel %vm429, %v1773, 0
    %v1778 = vsel %vm429, %v1775, 0
    %1780 = vmatprep.subr.mxu0 0.0
    %1781 = vmatpush1.xpose.msra.mxu0 %v1778
    %1782 = vmatprep.subr.mxu0 0.0
    %1783 = vmatpush1.xpose.msra.mxu0 0.0
    %1784 = vmatprep.subr.mxu0 0.0
    %1785 = vmatpush1.xpose.msra.mxu0 0.0
    %1786 = vmatprep.subr.mxu0 0.0
    %1787 = vmatpush1.xpose.msra.mxu0 0.0
    %1788 = vmatprep.subr.mxu0 0.0
    %1789 = vmatpush1.xpose.msra.mxu0 0.0
    %1790 = vmatprep.subr.mxu0 0.0
    %1791 = vmatpush1.xpose.msra.mxu0 0.0
    %1792 = vmatprep.subr.mxu0 0.0
    %1793 = vmatpush1.xpose.msra.mxu0 0.0
    %1794 = vmatprep.subr.mxu0 0.0
    %1795 = vmatpush1.xpose.msra.mxu0 0.0
    %1796 = vmatprep.subr.mxu0 0.0
    %1797 = vmatpush1.xpose.msra.mxu0 0.0
    %1798 = vmatprep.subr.mxu0 0.0
    %1799 = vmatpush1.xpose.msra.mxu0 0.0
    %1800 = vmatprep.subr.mxu0 0.0
    %1801 = vmatpush1.xpose.msra.mxu0 0.0
    %1802 = vmatprep.subr.mxu0 0.0
    %1803 = vmatpush1.xpose.msra.mxu0 0.0
    %1804 = vmatprep.subr.mxu0 0.0
    %1805 = vmatpush1.xpose.msra.mxu0 0.0
    %1806 = vmatprep.subr.mxu0 0.0
    %1807 = vmatpush1.xpose.msra.mxu0 0.0
    %1808 = vmatprep.subr.mxu0 0.0
    %1809 = vmatpush1.xpose.msra.mxu0 0.0
    %1810 = vmatprep.subr.mxu0 0.0
    %1811 = vmatpush1.xpose.msra.mxu0 0.0
    %1812 = vmatprep.subr.mxu0 0.0
    %1813 = vmatpush1.xpose.msra.mxu0 0.0
    %1814 = vmatprep.subr.mxu0 0.0
    %1815 = vmatpush1.xpose.msra.mxu0 0.0
    %1816 = vmatprep.subr.mxu0 0.0
    %1817 = vmatpush1.xpose.msra.mxu0 0.0
    %1818 = vmatprep.subr.mxu0 0.0
    %1819 = vmatpush1.xpose.msra.mxu0 0.0
    %1820 = vmatprep.subr.mxu0 0.0
    %1821 = vmatpush1.xpose.msra.mxu0 0.0
    %1822 = vmatprep.subr.mxu0 0.0
    %1823 = vmatpush1.xpose.msra.mxu0 0.0
    %1824 = vmatprep.subr.mxu0 0.0
    %1825 = vmatpush1.xpose.msra.mxu0 0.0
    %1826 = vmatprep.subr.mxu0 0.0
    %1827 = vmatpush1.xpose.msra.mxu0 0.0
    %1828 = vmatprep.subr.mxu0 0.0
    %1829 = vmatpush1.xpose.msra.mxu0 0.0
    %1830 = vmatprep.subr.mxu0 0.0
    %1831 = vmatpush1.xpose.msra.mxu0 0.0
    %1832 = vmatprep.subr.mxu0 0.0
    %1833 = vmatpush1.xpose.msra.mxu0 0.0
    %1834 = vmatprep.subr.mxu0 0.0
    %1835 = vmatpush1.xpose.msra.mxu0 0.0
    %1836 = vmatprep.subr.mxu0 0.0
    %1837 = vmatpush1.xpose.msra.mxu0 0.0
    %1838 = vmatprep.subr.mxu0 0.0
    %1839 = vmatpush1.xpose.msra.mxu0 0.0
    %1840 = vmatprep.subr.mxu0 0.0
    %1841 = vmatpush1.xpose.msra.mxu0 0.0
    %1842 = vmatprep.subr.mxu0 0.0
    %1843 = vmatpush1.xpose.msra.mxu0 0.0
    %1844 = vmatprep.mubr.f32.mxu0 0.0
    %1845 = vmatmul.mubr.f32.gmra.mrb[0].mxu0 %v1776
    %v1846 = vpop.f32.mrb[0].mxu0
    %v1847 = vadd.f32 0.0, %v1846
    %v1848 = vpop.f32.mrb[0].mxu0
    %1849 = vdwg.mxu0
    %v1850 = vmul.f32 %v1769, 0.35355338
    %v1851 = vmul.f32 %v1847, 0.35355338
    %v1852 = vadd.f32 %v1850, %v588
    %v1853 = vadd.f32 %v1851, %v592
    %v1854 = vsel %vm429, %v1852, -inf
    %1855 = vmax.xlane.f32.xlu0 %v1854
    %v1856 = vpop.xlane.xlu0 %1855
    %v1857 = vsel %vm429, %v1853, -inf
    %1858 = vmax.xlane.f32.xlu0 %v1857
    %v1859 = vpop.xlane.xlu0 %1858
    %v1860 = vsub.f32 %v1852, %v1856
    %v1861 = vsub.f32 %v1853, %v1859
    %v1862 = vmul.f32 %v1860, 1.442695
    %v1863 = vpow.pop %v1862
    %v1864 = vmul.f32 %v1861, 1.442695
    %v1865 = vpow.pop %v1864
    %v1866 = vsel %vm429, %v1863, 0.0
    %1867 = vadd.xlane.f32.xlu0 %v1866
    %v1868 = vpop.xlane.xlu0 %1867
    %v1869 = vsel %vm429, %v1865, 0.0
    %1870 = vadd.xlane.f32.xlu0 %v1869
    %v1871 = vpop.xlane.xlu0 %1870
    %v1872 = vrcp.pop %v1868
    %v1873 = vmul.f32 %v1863, %v1872
    %v1874 = vrcp.pop %v1871
    %v1875 = vmul.f32 %v1865, %v1874
    %1876 = vrot.lane.b32.xlu0 %v417, 40
    %v1877 = vpop.permute.xlu0 %1876
    %v1880 = vsel %vm429, %v1873, 0
    %1882 = vmatprep.subr.mxu0 0.0
    %1883 = vmatpush1.msra.mxu0 %v1877
    %1884 = vmatprep.subr.mxu0 0.0
    %1885 = vmatpush1.msra.mxu0 0.0
    %1886 = vmatprep.subr.mxu0 0.0
    %1887 = vmatpush1.msra.mxu0 0.0
    %1888 = vmatprep.subr.mxu0 0.0
    %1889 = vmatpush1.msra.mxu0 0.0
    %1890 = vmatprep.subr.mxu0 0.0
    %1891 = vmatpush1.msra.mxu0 0.0
    %1892 = vmatprep.subr.mxu0 0.0
    %1893 = vmatpush1.msra.mxu0 0.0
    %1894 = vmatprep.subr.mxu0 0.0
    %1895 = vmatpush1.msra.mxu0 0.0
    %1896 = vmatprep.subr.mxu0 0.0
    %1897 = vmatpush1.msra.mxu0 0.0
    %1898 = vmatprep.subr.mxu0 0.0
    %1899 = vmatpush1.msra.mxu0 0.0
    %1900 = vmatprep.subr.mxu0 0.0
    %1901 = vmatpush1.msra.mxu0 0.0
    %1902 = vmatprep.subr.mxu0 0.0
    %1903 = vmatpush1.msra.mxu0 0.0
    %1904 = vmatprep.subr.mxu0 0.0
    %1905 = vmatpush1.msra.mxu0 0.0
    %1906 = vmatprep.subr.mxu0 0.0
    %1907 = vmatpush1.msra.mxu0 0.0
    %1908 = vmatprep.subr.mxu0 0.0
    %1909 = vmatpush1.msra.mxu0 0.0
    %1910 = vmatprep.subr.mxu0 0.0
    %1911 = vmatpush1.msra.mxu0 0.0
    %1912 = vmatprep.subr.mxu0 0.0
    %1913 = vmatpush1.msra.mxu0 0.0
    %1914 = vmatprep.subr.mxu0 0.0
    %1915 = vmatpush1.msra.mxu0 0.0
    %1916 = vmatprep.subr.mxu0 0.0
    %1917 = vmatpush1.msra.mxu0 0.0
    %1918 = vmatprep.subr.mxu0 0.0
    %1919 = vmatpush1.msra.mxu0 0.0
    %1920 = vmatprep.subr.mxu0 0.0
    %1921 = vmatpush1.msra.mxu0 0.0
    %1922 = vmatprep.subr.mxu0 0.0
    %1923 = vmatpush1.msra.mxu0 0.0
    %1924 = vmatprep.subr.mxu0 0.0
    %1925 = vmatpush1.msra.mxu0 0.0
    %1926 = vmatprep.subr.mxu0 0.0
    %1927 = vmatpush1.msra.mxu0 0.0
    %1928 = vmatprep.subr.mxu0 0.0
    %1929 = vmatpush1.msra.mxu0 0.0
    %1930 = vmatprep.subr.mxu0 0.0
    %1931 = vmatpush1.msra.mxu0 0.0
    %1932 = vmatprep.subr.mxu0 0.0
    %1933 = vmatpush1.msra.mxu0 0.0
    %1934 = vmatprep.subr.mxu0 0.0
    %1935 = vmatpush1.msra.mxu0 0.0
    %1936 = vmatprep.subr.mxu0 0.0
    %1937 = vmatpush1.msra.mxu0 0.0
    %1938 = vmatprep.subr.mxu0 0.0
    %1939 = vmatpush1.msra.mxu0 0.0
    %1940 = vmatprep.subr.mxu0 0.0
    %1941 = vmatpush1.msra.mxu0 0.0
    %1942 = vmatprep.subr.mxu0 0.0
    %1943 = vmatpush1.msra.mxu0 0.0
    %1944 = vmatprep.subr.mxu0 0.0
    %1945 = vmatpush1.msra.mxu0 0.0
    %1946 = vmatprep.mubr.f32.mxu0 0.0
    %1947 = vmatmul.mubr.f32.gmra.mrb[0].mxu0 %v1880
    %v1948 = vpop.f32.mrb[0].mxu0
    %v1949 = vadd.f32 0.0, %v1948
    %v1950 = vpop.f32.mrb[0].mxu0
    %1951 = vdwg.mxu0
    %1952 = vrot.lane.b32.xlu0 %v422, 40
    %v1953 = vpop.permute.xlu0 %1952
    %v1956 = vsel %vm429, %v1875, 0
    %1958 = vmatprep.subr.mxu0 0.0
    %1959 = vmatpush1.msra.mxu0 %v1953
    %1960 = vmatprep.subr.mxu0 0.0
    %1961 = vmatpush1.msra.mxu0 0.0
    %1962 = vmatprep.subr.mxu0 0.0
    %1963 = vmatpush1.msra.mxu0 0.0
    %1964 = vmatprep.subr.mxu0 0.0
    %1965 = vmatpush1.msra.mxu0 0.0
    %1966 = vmatprep.subr.mxu0 0.0
    %1967 = vmatpush1.msra.mxu0 0.0
    %1968 = vmatprep.subr.mxu0 0.0
    %1969 = vmatpush1.msra.mxu0 0.0
    %1970 = vmatprep.subr.mxu0 0.0
    %1971 = vmatpush1.msra.mxu0 0.0
    %1972 = vmatprep.subr.mxu0 0.0
    %1973 = vmatpush1.msra.mxu0 0.0
    %1974 = vmatprep.subr.mxu0 0.0
    %1975 = vmatpush1.msra.mxu0 0.0
    %1976 = vmatprep.subr.mxu0 0.0
    %1977 = vmatpush1.msra.mxu0 0.0
    %1978 = vmatprep.subr.mxu0 0.0
    %1979 = vmatpush1.msra.mxu0 0.0
    %1980 = vmatprep.subr.mxu0 0.0
    %1981 = vmatpush1.msra.mxu0 0.0
    %1982 = vmatprep.subr.mxu0 0.0
    %1983 = vmatpush1.msra.mxu0 0.0
    %1984 = vmatprep.subr.mxu0 0.0
    %1985 = vmatpush1.msra.mxu0 0.0
    %1986 = vmatprep.subr.mxu0 0.0
    %1987 = vmatpush1.msra.mxu0 0.0
    %1988 = vmatprep.subr.mxu0 0.0
    %1989 = vmatpush1.msra.mxu0 0.0
    %1990 = vmatprep.subr.mxu0 0.0
    %1991 = vmatpush1.msra.mxu0 0.0
    %1992 = vmatprep.subr.mxu0 0.0
    %1993 = vmatpush1.msra.mxu0 0.0
    %1994 = vmatprep.subr.mxu0 0.0
    %1995 = vmatpush1.msra.mxu0 0.0
    %1996 = vmatprep.subr.mxu0 0.0
    %1997 = vmatpush1.msra.mxu0 0.0
    %1998 = vmatprep.subr.mxu0 0.0
    %1999 = vmatpush1.msra.mxu0 0.0
    %2000 = vmatprep.subr.mxu0 0.0
    %2001 = vmatpush1.msra.mxu0 0.0
    %2002 = vmatprep.subr.mxu0 0.0
    %2003 = vmatpush1.msra.mxu0 0.0
    %2004 = vmatprep.subr.mxu0 0.0
    %2005 = vmatpush1.msra.mxu0 0.0
    %2006 = vmatprep.subr.mxu0 0.0
    %2007 = vmatpush1.msra.mxu0 0.0
    %2008 = vmatprep.subr.mxu0 0.0
    %2009 = vmatpush1.msra.mxu0 0.0
    %2010 = vmatprep.subr.mxu0 0.0
    %2011 = vmatpush1.msra.mxu0 0.0
    %2012 = vmatprep.subr.mxu0 0.0
    %2013 = vmatpush1.msra.mxu0 0.0
    %2014 = vmatprep.subr.mxu0 0.0
    %2015 = vmatpush1.msra.mxu0 0.0
    %2016 = vmatprep.subr.mxu0 0.0
    %2017 = vmatpush1.msra.mxu0 0.0
    %2018 = vmatprep.subr.mxu0 0.0
    %2019 = vmatpush1.msra.mxu0 0.0
    %2020 = vmatprep.subr.mxu0 0.0
    %2021 = vmatpush1.msra.mxu0 0.0
    %2022 = vmatprep.mubr.f32.mxu0 0.0
    %2023 = vmatmul.mubr.f32.gmra.mrb[0].mxu0 %v1956
    %v2024 = vpop.f32.mrb[0].mxu0
    %v2025 = vadd.f32 0.0, %v2024
    %v2026 = vpop.f32.mrb[0].mxu0
    %2027 = vdwg.mxu0
    %v2029 = vsel %vm429, %v1949, 0
    %v2032 = vsel %vm429, %v2025, 0
    %2034 = vmatprep.subr.mxu0 0.0
    %2035 = vmatpush1.msra.mxu0 %v336
    %2036 = vmatprep.subr.mxu0 0.0
    %2037 = vmatpush1.msra.mxu0 0.0
    %2038 = vmatprep.subr.mxu0 0.0
    %2039 = vmatpush1.msra.mxu0 0.0
    %2040 = vmatprep.subr.mxu0 0.0
    %2041 = vmatpush1.msra.mxu0 0.0
    %2042 = vmatprep.subr.mxu0 0.0
    %2043 = vmatpush1.msra.mxu0 0.0
    %2044 = vmatprep.subr.mxu0 0.0
    %2045 = vmatpush1.msra.mxu0 0.0
    %2046 = vmatprep.subr.mxu0 0.0
    %2047 = vmatpush1.msra.mxu0 0.0
    %2048 = vmatprep.subr.mxu0 0.0
    %2049 = vmatpush1.msra.mxu0 0.0
    %2050 = vmatprep.subr.mxu0 0.0
    %2051 = vmatpush1.msra.mxu0 0.0
    %2052 = vmatprep.subr.mxu0 0.0
    %2053 = vmatpush1.msra.mxu0 0.0
    %2054 = vmatprep.subr.mxu0 0.0
    %2055 = vmatpush1.msra.mxu0 0.0
    %2056 = vmatprep.subr.mxu0 0.0
    %2057 = vmatpush1.msra.mxu0 0.0
    %2058 = vmatprep.subr.mxu0 0.0
    %2059 = vmatpush1.msra.mxu0 0.0
    %2060 = vmatprep.subr.mxu0 0.0
    %2061 = vmatpush1.msra.mxu0 0.0
    %2062 = vmatprep.subr.mxu0 0.0
    %2063 = vmatpush1.msra.mxu0 0.0
    %2064 = vmatprep.subr.mxu0 0.0
    %2065 = vmatpush1.msra.mxu0 0.0
    %2066 = vmatprep.subr.mxu0 0.0
    %2067 = vmatpush1.msra.mxu0 0.0
    %2068 = vmatprep.subr.mxu0 0.0
    %2069 = vmatpush1.msra.mxu0 0.0
    %2070 = vmatprep.subr.mxu0 0.0
    %2071 = vmatpush1.msra.mxu0 0.0
    %2072 = vmatprep.subr.mxu0 0.0
    %2073 = vmatpush1.msra.mxu0 0.0
    %2074 = vmatprep.subr.mxu0 0.0
    %2075 = vmatpush1.msra.mxu0 0.0
    %2076 = vmatprep.subr.mxu0 0.0
    %2077 = vmatpush1.msra.mxu0 0.0
    %2078 = vmatprep.subr.mxu0 0.0
    %2079 = vmatpush1.msra.mxu0 0.0
    %2080 = vmatprep.subr.mxu0 0.0
    %2081 = vmatpush1.msra.mxu0 0.0
    %2082 = vmatprep.subr.mxu0 0.0
    %2083 = vmatpush1.msra.mxu0 0.0
    %2084 = vmatprep.subr.mxu0 0.0
    %2085 = vmatpush1.msra.mxu0 0.0
    %2086 = vmatprep.subr.mxu0 0.0
    %2087 = vmatpush1.msra.mxu0 0.0
    %2088 = vmatprep.subr.mxu0 0.0
    %2089 = vmatpush1.msra.mxu0 0.0
    %2090 = vmatprep.subr.mxu0 0.0
    %2091 = vmatpush1.msra.mxu0 0.0
    %2092 = vmatprep.subr.mxu0 0.0
    %2093 = vmatpush1.msra.mxu0 0.0
    %2094 = vmatprep.subr.mxu0 0.0
    %2095 = vmatpush1.msra.mxu0 0.0
    %2096 = vmatprep.subr.mxu0 0.0
    %2097 = vmatpush1.msra.mxu0 0.0
    %2098 = vmatprep.mubr.f32.mxu0 0.0
    %2099 = vmatmul.mubr.f32.gmra.mrb[0].mxu0 %v2029
    %v2100 = vpop.f32.mrb[0].mxu0
    %v2101 = vadd.f32 0.0, %v2100
    %v2102 = vpop.f32.mrb[0].mxu0
    %2103 = vmatprep.mubr.f32.mxu0 0.0
    %2104 = vmatmul.mubr.f32.gmra.mrb[0].mxu0 %v2032
    %v2105 = vpop.f32.mrb[0].mxu0
    %v2106 = vadd.f32 0.0, %v2105
    %v2107 = vpop.f32.mrb[0].mxu0
    %2108 = vdwg.mxu0
    %v2109 = vadd.f32 %v1692, %v2101
    %v2110 = vadd.f32 %v1693, %v2106
    %v2111 = vadd.f32 %v325, %v2109
    %v2112 = vadd.f32 %v326, %v2110
    %v2113 = vld [vmem:[#allocation14] sm:$0x1]
    %v2114 = vld [vmem:[#allocation16] sm:$0x1]
    %v2115 = vsel %vm283, %v2111, 0.0
    %2116 = vadd.xlane.f32.xlu0 %v2115
    %v2117 = vpop.xlane.xlu0 %2116
    %v2118 = vsel %vm283, %v2112, 0.0
    %2119 = vadd.xlane.f32.xlu0 %v2118
    %v2120 = vpop.xlane.xlu0 %2119
    %v2121 = vmul.f32 %v2117, %v290
    %v2122 = vmul.f32 %v2120, %v290
    %v2123 = vsub.f32 %v2111, %v2121
    %v2124 = vsub.f32 %v2112, %v2122
    %v2125 = vmul.f32 %v2123, %v2123
    %v2126 = vmul.f32 %v2124, %v2124
    %v2127 = vsel %vm283, %v2125, 0.0
    %2128 = vadd.xlane.f32.xlu0 %v2127
    %v2129 = vpop.xlane.xlu0 %2128
    %v2130 = vsel %vm283, %v2126, 0.0
    %2131 = vadd.xlane.f32.xlu0 %v2130
    %v2132 = vpop.xlane.xlu0 %2131
    %v2133 = vmul.f32 %v2129, %v290
    %v2134 = vmul.f32 %v2132, %v290
    %v2135 = vadd.f32 %v2133, 1e-05
    %v2136 = vadd.f32 %v2134, 1e-05
    %v2137 = vrsqrt.pop %v2135
    %v2138 = vrsqrt.pop %v2136
    %v2139 = vmul.f32 %v2123, %v2137
    %v2140 = vmul.f32 %v2124, %v2138
    %v2142 = vlaneseq
    %v2143 = vshrl.u32 %v2142, 7
    %v2144 = vsub.s32 0, %v2143
    %v2145 = vrot.slane %v2113, %v2144
    %v2147 = vmul.f32 %v2139, %v2145
    %v2148 = vmul.f32 %v2140, %v2145
    %v2150 = vlaneseq
    %v2151 = vshrl.u32 %v2150, 7
    %v2152 = vsub.s32 0, %v2151
    %v2153 = vrot.slane %v2114, %v2152
    %v2155 = vadd.f32 %v2147, %v2153
    %v2156 = vadd.f32 %v2148, %v2153
    %v2157 = vld [vmem:[%s11] sm:$0xff]
    %v2158 = vld [vmem:[%s11 + $0x8] sm:$0xff]
    %v2159 = vld [vmem:[%s11 + $0x10] sm:$0xff]
    %v2160 = vld [vmem:[%s11 + $0x18] sm:$0xff]
    %v2161 = vld [vmem:[#allocation17] sm:$0x1]
    %v2163 = vlaneseq
    %v2164 = vshrl.u32 %v2163, 7
    %v2165 = vsub.s32 0, %v2164
    %v2166 = vrot.slane %v2161, %v2165
    %v2169 = vsel %vm283, %v2155, 0
    %v2172 = vsel %vm283, %v2156, 0
    %2174 = vmatprep.subr.mxu0 0.0
    %2175 = vmatpush1.msra.mxu0 %v2157
    %2176 = vmatprep.subr.mxu0 0.0
    %2177 = vmatpush1.msra.mxu0 %v2158
    %2178 = vmatprep.subr.mxu0 0.0
    %2179 = vmatpush1.msra.mxu0 %v2159
    %2180 = vmatprep.subr.mxu0 0.0
    %2181 = vmatpush1.msra.mxu0 %v2160
    %2182 = vmatprep.subr.mxu0 0.0
    %2183 = vmatpush1.msra.mxu0 0.0
    %2184 = vmatprep.subr.mxu0 0.0
    %2185 = vmatpush1.msra.mxu0 0.0
    %2186 = vmatprep.subr.mxu0 0.0
    %2187 = vmatpush1.msra.mxu0 0.0
    %2188 = vmatprep.subr.mxu0 0.0
    %2189 = vmatpush1.msra.mxu0 0.0
    %2190 = vmatprep.subr.mxu0 0.0
    %2191 = vmatpush1.msra.mxu0 0.0
    %2192 = vmatprep.subr.mxu0 0.0
    %2193 = vmatpush1.msra.mxu0 0.0
    %2194 = vmatprep.subr.mxu0 0.0
    %2195 = vmatpush1.msra.mxu0 0.0
    %2196 = vmatprep.subr.mxu0 0.0
    %2197 = vmatpush1.msra.mxu0 0.0
    %2198 = vmatprep.subr.mxu0 0.0
    %2199 = vmatpush1.msra.mxu0 0.0
    %2200 = vmatprep.subr.mxu0 0.0
    %2201 = vmatpush1.msra.mxu0 0.0
    %2202 = vmatprep.subr.mxu0 0.0
    %2203 = vmatpush1.msra.mxu0 0.0
    %2204 = vmatprep.subr.mxu0 0.0
    %2205 = vmatpush1.msra.mxu0 0.0
    %2206 = vmatprep.subr.mxu0 0.0
    %2207 = vmatpush1.msra.mxu0 0.0
    %2208 = vmatprep.subr.mxu0 0.0
    %2209 = vmatpush1.msra.mxu0 0.0
    %2210 = vmatprep.subr.mxu0 0.0
    %2211 = vmatpush1.msra.mxu0 0.0
    %2212 = vmatprep.subr.mxu0 0.0
    %2213 = vmatpush1.msra.mxu0 0.0
    %2214 = vmatprep.subr.mxu0 0.0
    %2215 = vmatpush1.msra.mxu0 0.0
    %2216 = vmatprep.subr.mxu0 0.0
    %2217 = vmatpush1.msra.mxu0 0.0
    %2218 = vmatprep.subr.mxu0 0.0
    %2219 = vmatpush1.msra.mxu0 0.0
    %2220 = vmatprep.subr.mxu0 0.0
    %2221 = vmatpush1.msra.mxu0 0.0
    %2222 = vmatprep.subr.mxu0 0.0
    %2223 = vmatpush1.msra.mxu0 0.0
    %2224 = vmatprep.subr.mxu0 0.0
    %2225 = vmatpush1.msra.mxu0 0.0
    %2226 = vmatprep.subr.mxu0 0.0
    %2227 = vmatpush1.msra.mxu0 0.0
    %2228 = vmatprep.subr.mxu0 0.0
    %2229 = vmatpush1.msra.mxu0 0.0
    %2230 = vmatprep.subr.mxu0 0.0
    %2231 = vmatpush1.msra.mxu0 0.0
    %2232 = vmatprep.subr.mxu0 0.0
    %2233 = vmatpush1.msra.mxu0 0.0
    %2234 = vmatprep.subr.mxu0 0.0
    %2235 = vmatpush1.msra.mxu0 0.0
    %2236 = vmatprep.subr.mxu0 0.0
    %2237 = vmatpush1.msra.mxu0 0.0
    %2238 = vmatprep.mubr.f32.mxu0 0.0
    %2239 = vmatmul.mubr.f32.gmra.mrb[0].mxu0 %v2169
    %v2240 = vpop.f32.mrb[0].mxu0
    %v2241 = vadd.f32 %v2166, %v2240
    %v2242 = vpop.f32.mrb[0].mxu0
    %2243 = vmatprep.mubr.f32.mxu0 0.0
    %2244 = vmatmul.mubr.f32.gmra.mrb[0].mxu0 %v2172
    %v2245 = vpop.f32.mrb[0].mxu0
    %v2246 = vadd.f32 %v2166, %v2245
    %v2247 = vpop.f32.mrb[0].mxu0
    %2248 = vdwg.mxu0
    %v2249 = vmul.f32 %v2241, %v2241
    %v2250 = vmul.f32 %v2246, %v2246
    %v2251 = vmul.f32 %v2241, %v2249
    %v2252 = vmul.f32 %v2246, %v2250
    %v2253 = vmul.f32 %v2251, 0.044715
    %v2254 = vmul.f32 %v2252, 0.044715
    %v2255 = vadd.f32 %v2241, %v2253
    %v2256 = vadd.f32 %v2246, %v2254
    %v2257 = vmul.f32 %v2255, 0.7978846
    %v2258 = vmul.f32 %v2256, 0.7978846
    %v2259 = vtanh.pop %v2257
    %v2260 = vtanh.pop %v2258
    %v2261 = vadd.f32 %v2259, 1.0
    %v2262 = vadd.f32 %v2260, 1.0
    %v2263 = vmul.f32 %v2261, 0.5
    %v2264 = vmul.f32 %v2262, 0.5
    %v2265 = vmul.f32 %v2241, %v2263
    %v2266 = vmul.f32 %v2246, %v2264
    %v2267 = vld [vmem:[%s13] sm:$0xff]
    %v2268 = vld [vmem:[%s13 + $0x8] sm:$0xff]
    %v2269 = vld [vmem:[%s13 + $0x10] sm:$0xff]
    %v2270 = vld [vmem:[%s13 + $0x18] sm:$0xff]
    %v2271 = vld [vmem:[%s13 + $0x20] sm:$0xff]
    %v2272 = vld [vmem:[%s13 + $0x28] sm:$0xff]
    %v2273 = vld [vmem:[%s13 + $0x30] sm:$0xff]
    %v2274 = vld [vmem:[%s13 + $0x38] sm:$0xff]
    %v2275 = vld [vmem:[#allocation19] sm:$0x1]
    %v2277 = vlaneseq
    %v2278 = vshrl.u32 %v2277, 7
    %v2279 = vsub.s32 0, %v2278
    %v2280 = vrot.slane %v2275, %v2279
    %vm2282 = vcmask 523264
    %v2284 = vsel %vm2282, %v2265, 0
    %v2287 = vsel %vm2282, %v2266, 0
    %2289 = vmatprep.subr.mxu0 0.0
    %2290 = vmatpush1.msra.mxu0 %v2267
    %2291 = vmatprep.subr.mxu0 0.0
    %2292 = vmatpush1.msra.mxu0 %v2268
    %2293 = vmatprep.subr.mxu0 0.0
    %2294 = vmatpush1.msra.mxu0 %v2269
    %2295 = vmatprep.subr.mxu0 0.0
    %2296 = vmatpush1.msra.mxu0 %v2270
    %2297 = vmatprep.subr.mxu0 0.0
    %2298 = vmatpush1.msra.mxu0 %v2271
    %2299 = vmatprep.subr.mxu0 0.0
    %2300 = vmatpush1.msra.mxu0 %v2272
    %2301 = vmatprep.subr.mxu0 0.0
    %2302 = vmatpush1.msra.mxu0 %v2273
    %2303 = vmatprep.subr.mxu0 0.0
    %2304 = vmatpush1.msra.mxu0 %v2274
    %2305 = vmatprep.subr.mxu0 0.0
    %2306 = vmatpush1.msra.mxu0 0.0
    %2307 = vmatprep.subr.mxu0 0.0
    %2308 = vmatpush1.msra.mxu0 0.0
    %2309 = vmatprep.subr.mxu0 0.0
    %2310 = vmatpush1.msra.mxu0 0.0
    %2311 = vmatprep.subr.mxu0 0.0
    %2312 = vmatpush1.msra.mxu0 0.0
    %2313 = vmatprep.subr.mxu0 0.0
    %2314 = vmatpush1.msra.mxu0 0.0
    %2315 = vmatprep.subr.mxu0 0.0
    %2316 = vmatpush1.msra.mxu0 0.0
    %2317 = vmatprep.subr.mxu0 0.0
    %2318 = vmatpush1.msra.mxu0 0.0
    %2319 = vmatprep.subr.mxu0 0.0
    %2320 = vmatpush1.msra.mxu0 0.0
    %2321 = vmatprep.subr.mxu0 0.0
    %2322 = vmatpush1.msra.mxu0 0.0
    %2323 = vmatprep.subr.mxu0 0.0
    %2324 = vmatpush1.msra.mxu0 0.0
    %2325 = vmatprep.subr.mxu0 0.0
    %2326 = vmatpush1.msra.mxu0 0.0
    %2327 = vmatprep.subr.mxu0 0.0
    %2328 = vmatpush1.msra.mxu0 0.0
    %2329 = vmatprep.subr.mxu0 0.0
    %2330 = vmatpush1.msra.mxu0 0.0
    %2331 = vmatprep.subr.mxu0 0.0
    %2332 = vmatpush1.msra.mxu0 0.0
    %2333 = vmatprep.subr.mxu0 0.0
    %2334 = vmatpush1.msra.mxu0 0.0
    %2335 = vmatprep.subr.mxu0 0.0
    %2336 = vmatpush1.msra.mxu0 0.0
    %2337 = vmatprep.subr.mxu0 0.0
    %2338 = vmatpush1.msra.mxu0 0.0
    %2339 = vmatprep.subr.mxu0 0.0
    %2340 = vmatpush1.msra.mxu0 0.0
    %2341 = vmatprep.subr.mxu0 0.0
    %2342 = vmatpush1.msra.mxu0 0.0
    %2343 = vmatprep.subr.mxu0 0.0
    %2344 = vmatpush1.msra.mxu0 0.0
    %2345 = vmatprep.subr.mxu0 0.0
    %2346 = vmatpush1.msra.mxu0 0.0
    %2347 = vmatprep.subr.mxu0 0.0
    %2348 = vmatpush1.msra.mxu0 0.0
    %2349 = vmatprep.subr.mxu0 0.0
    %2350 = vmatpush1.msra.mxu0 0.0
    %2351 = vmatprep.subr.mxu0 0.0
    %2352 = vmatpush1.msra.mxu0 0.0
    %2353 = vmatprep.mubr.f32.mxu0 0.0
    %2354 = vmatmul.mubr.f32.gmra.mrb[0].mxu0 %v2284
    %v2355 = vpop.f32.mrb[0].mxu0
    %v2356 = vadd.f32 %v2280, %v2355
    %v2357 = vpop.f32.mrb[0].mxu0
    %2358 = vmatprep.mubr.f32.mxu0 0.0
    %2359 = vmatmul.mubr.f32.gmra.mrb[0].mxu0 %v2287
    %v2360 = vpop.f32.mrb[0].mxu0
    %v2361 = vadd.f32 %v2280, %v2360
    %v2362 = vpop.f32.mrb[0].mxu0
    %2363 = vdwg.mxu0
    %v2364 = vadd.f32 %v2155, %v2356
    %v2365 = vadd.f32 %v2156, %v2361
    %v2366 = vld [vmem:[#allocation20] sm:$0x1]
    %v2367 = vld [vmem:[#allocation22] sm:$0x1]
    %v2368 = vsel %vm283, %v2364, 0.0
    %2369 = vadd.xlane.f32.xlu0 %v2368
    %v2370 = vpop.xlane.xlu0 %2369
    %v2371 = vsel %vm283, %v2365, 0.0
    %2372 = vadd.xlane.f32.xlu0 %v2371
    %v2373 = vpop.xlane.xlu0 %2372
    %v2374 = vmul.f32 %v2370, %v290
    %v2375 = vmul.f32 %v2373, %v290
    %v2376 = vsub.f32 %v2364, %v2374
    %v2377 = vsub.f32 %v2365, %v2375
    %v2378 = vmul.f32 %v2376, %v2376
    %v2379 = vmul.f32 %v2377, %v2377
    %v2380 = vsel %vm283, %v2378, 0.0
    %2381 = vadd.xlane.f32.xlu0 %v2380
    %v2382 = vpop.xlane.xlu0 %2381
    %v2383 = vsel %vm283, %v2379, 0.0
    %2384 = vadd.xlane.f32.xlu0 %v2383
    %v2385 = vpop.xlane.xlu0 %2384
    %v2386 = vmul.f32 %v2382, %v290
    %v2387 = vmul.f32 %v2385, %v290
    %v2388 = vadd.f32 %v2386, 1e-05
    %v2389 = vadd.f32 %v2387, 1e-05
    %v2390 = vrsqrt.pop %v2388
    %v2391 = vrsqrt.pop %v2389
    %v2392 = vmul.f32 %v2376, %v2390
    %v2393 = vmul.f32 %v2377, %v2391
    %v2395 = vlaneseq
    %v2396 = vshrl.u32 %v2395, 7
    %v2397 = vsub.s32 0, %v2396
    %v2398 = vrot.slane %v2366, %v2397
    %v2400 = vmul.f32 %v2392, %v2398
    %v2401 = vmul.f32 %v2393, %v2398
    %v2403 = vlaneseq
    %v2404 = vshrl.u32 %v2403, 7
    %v2405 = vsub.s32 0, %v2404
    %v2406 = vrot.slane %v2367, %v2405
    %v2408 = vadd.f32 %v2400, %v2406
    %v2409 = vadd.f32 %v2401, %v2406
    %s2410 = scalar_lea.vmem %s5, 32
    %v2411 = vld [vmem:[%s2410] sm:$0xff]
    %v2412 = vld [vmem:[%s2410 + $0x8] sm:$0xff]
    %v2413 = vld [vmem:[%s2410 + $0x10] sm:$0xff]
    %v2414 = vld [vmem:[%s2410 + $0x18] sm:$0xff]
    %s2415 = scalar_lea.vmem %s7, 32
    %v2416 = vld [vmem:[%s2415] sm:$0xff]
    %v2417 = vld [vmem:[%s2415 + $0x8] sm:$0xff]
    %v2418 = vld [vmem:[%s2415 + $0x10] sm:$0xff]
    %v2419 = vld [vmem:[%s2415 + $0x18] sm:$0xff]
    %s2420 = scalar_lea.vmem [#allocation11], 1
    %v2421 = vld [vmem:[%s2420] sm:$0x1]
    %v2423 = vlaneseq
    %v2424 = vshrl.u32 %v2423, 7
    %v2425 = vsub.s32 0, %v2424
    %v2426 = vrot.slane %v2421, %v2425
    %v2429 = vsel %vm283, %v2408, 0
    %v2432 = vsel %vm283, %v2409, 0
    %2434 = vmatprep.subr.mxu0 0.0
    %2435 = vmatpush1.msra.mxu0 %v2411
    %2436 = vmatprep.subr.mxu0 0.0
    %2437 = vmatpush1.msra.mxu0 %v2412
    %2438 = vmatprep.subr.mxu0 0.0
    %2439 = vmatpush1.msra.mxu0 %v2413
    %2440 = vmatprep.subr.mxu0 0.0
    %2441 = vmatpush1.msra.mxu0 %v2414
    %2442 = vmatprep.subr.mxu0 0.0
    %2443 = vmatpush1.msra.mxu0 0.0
    %2444 = vmatprep.subr.mxu0 0.0
    %2445 = vmatpush1.msra.mxu0 0.0
    %2446 = vmatprep.subr.mxu0 0.0
    %2447 = vmatpush1.msra.mxu0 0.0
    %2448 = vmatprep.subr.mxu0 0.0
    %2449 = vmatpush1.msra.mxu0 0.0
    %2450 = vmatprep.subr.mxu0 0.0
    %2451 = vmatpush1.msra.mxu0 0.0
    %2452 = vmatprep.subr.mxu0 0.0
    %2453 = vmatpush1.msra.mxu0 0.0
    %2454 = vmatprep.subr.mxu0 0.0
    %2455 = vmatpush1.msra.mxu0 0.0
    %2456 = vmatprep.subr.mxu0 0.0
    %2457 = vmatpush1.msra.mxu0 0.0
    %2458 = vmatprep.subr.mxu0 0.0
    %2459 = vmatpush1.msra.mxu0 0.0
    %2460 = vmatprep.subr.mxu0 0.0
    %2461 = vmatpush1.msra.mxu0 0.0
    %2462 = vmatprep.subr.mxu0 0.0
    %2463 = vmatpush1.msra.mxu0 0.0
    %2464 = vmatprep.subr.mxu0 0.0
    %2465 = vmatpush1.msra.mxu0 0.0
    %2466 = vmatprep.subr.mxu0 0.0
    %2467 = vmatpush1.msra.mxu0 0.0
    %2468 = vmatprep.subr.mxu0 0.0
    %2469 = vmatpush1.msra.mxu0 0.0
    %2470 = vmatprep.subr.mxu0 0.0
    %2471 = vmatpush1.msra.mxu0 0.0
    %2472 = vmatprep.subr.mxu0 0.0
    %2473 = vmatpush1.msra.mxu0 0.0
    %2474 = vmatprep.subr.mxu0 0.0
    %2475 = vmatpush1.msra.mxu0 0.0
    %2476 = vmatprep.subr.mxu0 0.0
    %2477 = vmatpush1.msra.mxu0 0.0
    %2478 = vmatprep.subr.mxu0 0.0
    %2479 = vmatpush1.msra.mxu0 0.0
    %2480 = vmatprep.subr.mxu0 0.0
    %2481 = vmatpush1.msra.mxu0 0.0
    %2482 = vmatprep.subr.mxu0 0.0
    %2483 = vmatpush1.msra.mxu0 0.0
    %2484 = vmatprep.subr.mxu0 0.0
    %2485 = vmatpush1.msra.mxu0 0.0
    %2486 = vmatprep.subr.mxu0 0.0
    %2487 = vmatpush1.msra.mxu0 0.0
    %2488 = vmatprep.subr.mxu0 0.0
    %2489 = vmatpush1.msra.mxu0 0.0
    %2490 = vmatprep.subr.mxu0 0.0
    %2491 = vmatpush1.msra.mxu0 0.0
    %2492 = vmatprep.subr.mxu0 0.0
    %2493 = vmatpush1.msra.mxu0 0.0
    %2494 = vmatprep.subr.mxu0 0.0
    %2495 = vmatpush1.msra.mxu0 0.0
    %2496 = vmatprep.subr.mxu0 0.0
    %2497 = vmatpush1.msra.mxu0 0.0
    %2498 = vmatprep.mubr.f32.mxu0 0.0
    %2499 = vmatmul.mubr.f32.gmra.mrb[0].mxu0 %v2429
    %v2500 = vpop.f32.mrb[0].mxu0
    %v2501 = vadd.f32 %v2426, %v2500
    %v2502 = vpop.f32.mrb[0].mxu0
    %2503 = vmatprep.mubr.f32.mxu0 0.0
    %2504 = vmatmul.mubr.f32.gmra.mrb[0].mxu0 %v2432
    %v2505 = vpop.f32.mrb[0].mxu0
    %v2506 = vadd.f32 %v2426, %v2505
    %v2507 = vpop.f32.mrb[0].mxu0
    %2508 = vdwg.mxu0
    %s2509 = scalar_lea.vmem [#allocation13], 1
    %v2510 = vld [vmem:[%s2509] sm:$0x1]
    %2512 = vrot.lane.b32.xlu0 %v2501, 96
    %v2513 = vpop.permute.xlu0 %2512
    %v2514 = vsel %vm429, %v2501, 0
    %v2516 = vsel %vm429, %v2513, 0
    %2518 = vmatprep.subr.mxu0 0.0
    %2519 = vmatpush1.xpose.msra.mxu0 %v2516
    %2520 = vmatprep.subr.mxu0 0.0
    %2521 = vmatpush1.xpose.msra.mxu0 0.0
    %2522 = vmatprep.subr.mxu0 0.0
    %2523 = vmatpush1.xpose.msra.mxu0 0.0
    %2524 = vmatprep.subr.mxu0 0.0
    %2525 = vmatpush1.xpose.msra.mxu0 0.0
    %2526 = vmatprep.subr.mxu0 0.0
    %2527 = vmatpush1.xpose.msra.mxu0 0.0
    %2528 = vmatprep.subr.mxu0 0.0
    %2529 = vmatpush1.xpose.msra.mxu0 0.0
    %2530 = vmatprep.subr.mxu0 0.0
    %2531 = vmatpush1.xpose.msra.mxu0 0.0
    %2532 = vmatprep.subr.mxu0 0.0
    %2533 = vmatpush1.xpose.msra.mxu0 0.0
    %2534 = vmatprep.subr.mxu0 0.0
    %2535 = vmatpush1.xpose.msra.mxu0 0.0
    %2536 = vmatprep.subr.mxu0 0.0
    %2537 = vmatpush1.xpose.msra.mxu0 0.0
    %2538 = vmatprep.subr.mxu0 0.0
    %2539 = vmatpush1.xpose.msra.mxu0 0.0
    %2540 = vmatprep.subr.mxu0 0.0
    %2541 = vmatpush1.xpose.msra.mxu0 0.0
    %2542 = vmatprep.subr.mxu0 0.0
    %2543 = vmatpush1.xpose.msra.mxu0 0.0
    %2544 = vmatprep.subr.mxu0 0.0
    %2545 = vmatpush1.xpose.msra.mxu0 0.0
    %2546 = vmatprep.subr.mxu0 0.0
    %2547 = vmatpush1.xpose.msra.mxu0 0.0
    %2548 = vmatprep.subr.mxu0 0.0
    %2549 = vmatpush1.xpose.msra.mxu0 0.0
    %2550 = vmatprep.subr.mxu0 0.0
    %2551 = vmatpush1.xpose.msra.mxu0 0.0
    %2552 = vmatprep.subr.mxu0 0.0
    %2553 = vmatpush1.xpose.msra.mxu0 0.0
    %2554 = vmatprep.subr.mxu0 0.0
    %2555 = vmatpush1.xpose.msra.mxu0 0.0
    %2556 = vmatprep.subr.mxu0 0.0
    %2557 = vmatpush1.xpose.msra.mxu0 0.0
    %2558 = vmatprep.subr.mxu0 0.0
    %2559 = vmatpush1.xpose.msra.mxu0 0.0
    %2560 = vmatprep.subr.mxu0 0.0
    %2561 = vmatpush1.xpose.msra.mxu0 0.0
    %2562 = vmatprep.subr.mxu0 0.0
    %2563 = vmatpush1.xpose.msra.mxu0 0.0
    %2564 = vmatprep.subr.mxu0 0.0
    %2565 = vmatpush1.xpose.msra.mxu0 0.0
    %2566 = vmatprep.subr.mxu0 0.0
    %2567 = vmatpush1.xpose.msra.mxu0 0.0
    %2568 = vmatprep.subr.mxu0 0.0
    %2569 = vmatpush1.xpose.msra.mxu0 0.0
    %2570 = vmatprep.subr.mxu0 0.0
    %2571 = vmatpush1.xpose.msra.mxu0 0.0
    %2572 = vmatprep.subr.mxu0 0.0
    %2573 = vmatpush1.xpose.msra.mxu0 0.0
    %2574 = vmatprep.subr.mxu0 0.0
    %2575 = vmatpush1.xpose.msra.mxu0 0.0
    %2576 = vmatprep.subr.mxu0 0.0
    %2577 = vmatpush1.xpose.msra.mxu0 0.0
    %2578 = vmatprep.subr.mxu0 0.0
    %2579 = vmatpush1.xpose.msra.mxu0 0.0
    %2580 = vmatprep.subr.mxu0 0.0
    %2581 = vmatpush1.xpose.msra.mxu0 0.0
    %2582 = vmatprep.mubr.f32.mxu0 0.0
    %2583 = vmatmul.mubr.f32.gmra.mrb[0].mxu0 %v2514
    %v2584 = vpop.f32.mrb[0].mxu0
    %v2585 = vadd.f32 0.0, %v2584
    %v2586 = vpop.f32.mrb[0].mxu0
    %2587 = vdwg.mxu0
    %2589 = vrot.lane.b32.xlu0 %v2506, 96
    %v2590 = vpop.permute.xlu0 %2589
    %v2591 = vsel %vm429, %v2506, 0
    %v2593 = vsel %vm429, %v2590, 0
    %2595 = vmatprep.subr.mxu0 0.0
    %2596 = vmatpush1.xpose.msra.mxu0 %v2593
    %2597 = vmatprep.subr.mxu0 0.0
    %2598 = vmatpush1.xpose.msra.mxu0 0.0
    %2599 = vmatprep.subr.mxu0 0.0
    %2600 = vmatpush1.xpose.msra.mxu0 0.0
    %2601 = vmatprep.subr.mxu0 0.0
    %2602 = vmatpush1.xpose.msra.mxu0 0.0
    %2603 = vmatprep.subr.mxu0 0.0
    %2604 = vmatpush1.xpose.msra.mxu0 0.0
    %2605 = vmatprep.subr.mxu0 0.0
    %2606 = vmatpush1.xpose.msra.mxu0 0.0
    %2607 = vmatprep.subr.mxu0 0.0
    %2608 = vmatpush1.xpose.msra.mxu0 0.0
    %2609 = vmatprep.subr.mxu0 0.0
    %2610 = vmatpush1.xpose.msra.mxu0 0.0
    %2611 = vmatprep.subr.mxu0 0.0
    %2612 = vmatpush1.xpose.msra.mxu0 0.0
    %2613 = vmatprep.subr.mxu0 0.0
    %2614 = vmatpush1.xpose.msra.mxu0 0.0
    %2615 = vmatprep.subr.mxu0 0.0
    %2616 = vmatpush1.xpose.msra.mxu0 0.0
    %2617 = vmatprep.subr.mxu0 0.0
    %2618 = vmatpush1.xpose.msra.mxu0 0.0
    %2619 = vmatprep.subr.mxu0 0.0
    %2620 = vmatpush1.xpose.msra.mxu0 0.0
    %2621 = vmatprep.subr.mxu0 0.0
    %2622 = vmatpush1.xpose.msra.mxu0 0.0
    %2623 = vmatprep.subr.mxu0 0.0
    %2624 = vmatpush1.xpose.msra.mxu0 0.0
    %2625 = vmatprep.subr.mxu0 0.0
    %2626 = vmatpush1.xpose.msra.mxu0 0.0
    %2627 = vmatprep.subr.mxu0 0.0
    %2628 = vmatpush1.xpose.msra.mxu0 0.0
    %2629 = vmatprep.subr.mxu0 0.0
    %2630 = vmatpush1.xpose.msra.mxu0 0.0
    %2631 = vmatprep.subr.mxu0 0.0
    %2632 = vmatpush1.xpose.msra.mxu0 0.0
    %2633 = vmatprep.subr.mxu0 0.0
    %2634 = vmatpush1.xpose.msra.mxu0 0.0
    %2635 = vmatprep.subr.mxu0 0.0
    %2636 = vmatpush1.xpose.msra.mxu0 0.0
    %2637 = vmatprep.subr.mxu0 0.0
    %2638 = vmatpush1.xpose.msra.mxu0 0.0
    %2639 = vmatprep.subr.mxu0 0.0
    %2640 = vmatpush1.xpose.msra.mxu0 0.0
    %2641 = vmatprep.subr.mxu0 0.0
    %2642 = vmatpush1.xpose.msra.mxu0 0.0
    %2643 = vmatprep.subr.mxu0 0.0
    %2644 = vmatpush1.xpose.msra.mxu0 0.0
    %2645 = vmatprep.subr.mxu0 0.0
    %2646 = vmatpush1.xpose.msra.mxu0 0.0
    %2647 = vmatprep.subr.mxu0 0.0
    %2648 = vmatpush1.xpose.msra.mxu0 0.0
    %2649 = vmatprep.subr.mxu0 0.0
    %2650 = vmatpush1.xpose.msra.mxu0 0.0
    %2651 = vmatprep.subr.mxu0 0.0
    %2652 = vmatpush1.xpose.msra.mxu0 0.0
    %2653 = vmatprep.subr.mxu0 0.0
    %2654 = vmatpush1.xpose.msra.mxu0 0.0
    %2655 = vmatprep.subr.mxu0 0.0
    %2656 = vmatpush1.xpose.msra.mxu0 0.0
    %2657 = vmatprep.subr.mxu0 0.0
    %2658 = vmatpush1.xpose.msra.mxu0 0.0
    %2659 = vmatprep.mubr.f32.mxu0 0.0
    %2660 = vmatmul.mubr.f32.gmra.mrb[0].mxu0 %v2591
    %v2661 = vpop.f32.mrb[0].mxu0
    %v2662 = vadd.f32 0.0, %v2661
    %v2663 = vpop.f32.mrb[0].mxu0
    %2664 = vdwg.mxu0
    %v2665 = vmul.f32 %v2585, 0.35355338
    %v2666 = vmul.f32 %v2662, 0.35355338
    %v2667 = vadd.f32 %v2665, %v588
    %v2668 = vadd.f32 %v2666, %v592
    %v2669 = vsel %vm429, %v2667, -inf
    %2670 = vmax.xlane.f32.xlu0 %v2669
    %v2671 = vpop.xlane.xlu0 %2670
    %v2672 = vsel %vm429, %v2668, -inf
    %2673 = vmax.xlane.f32.xlu0 %v2672
    %v2674 = vpop.xlane.xlu0 %2673
    %v2675 = vsub.f32 %v2667, %v2671
    %v2676 = vsub.f32 %v2668, %v2674
    %v2677 = vmul.f32 %v2675, 1.442695
    %v2678 = vpow.pop %v2677
    %v2679 = vmul.f32 %v2676, 1.442695
    %v2680 = vpow.pop %v2679
    %v2681 = vsel %vm429, %v2678, 0.0
    %2682 = vadd.xlane.f32.xlu0 %v2681
    %v2683 = vpop.xlane.xlu0 %2682
    %v2684 = vsel %vm429, %v2680, 0.0
    %2685 = vadd.xlane.f32.xlu0 %v2684
    %v2686 = vpop.xlane.xlu0 %2685
    %v2687 = vrcp.pop %v2683
    %v2688 = vmul.f32 %v2678, %v2687
    %v2689 = vrcp.pop %v2686
    %v2690 = vmul.f32 %v2680, %v2689
    %2691 = vrot.lane.b32.xlu0 %v2501, 64
    %v2692 = vpop.permute.xlu0 %2691
    %v2695 = vsel %vm429, %v2688, 0
    %2697 = vmatprep.subr.mxu0 0.0
    %2698 = vmatpush1.msra.mxu0 %v2692
    %2699 = vmatprep.subr.mxu0 0.0
    %2700 = vmatpush1.msra.mxu0 0.0
    %2701 = vmatprep.subr.mxu0 0.0
    %2702 = vmatpush1.msra.mxu0 0.0
    %2703 = vmatprep.subr.mxu0 0.0
    %2704 = vmatpush1.msra.mxu0 0.0
    %2705 = vmatprep.subr.mxu0 0.0
    %2706 = vmatpush1.msra.mxu0 0.0
    %2707 = vmatprep.subr.mxu0 0.0
    %2708 = vmatpush1.msra.mxu0 0.0
    %2709 = vmatprep.subr.mxu0 0.0
    %2710 = vmatpush1.msra.mxu0 0.0
    %2711 = vmatprep.subr.mxu0 0.0
    %2712 = vmatpush1.msra.mxu0 0.0
    %2713 = vmatprep.subr.mxu0 0.0
    %2714 = vmatpush1.msra.mxu0 0.0
    %2715 = vmatprep.subr.mxu0 0.0
    %2716 = vmatpush1.msra.mxu0 0.0
    %2717 = vmatprep.subr.mxu0 0.0
    %2718 = vmatpush1.msra.mxu0 0.0
    %2719 = vmatprep.subr.mxu0 0.0
    %2720 = vmatpush1.msra.mxu0 0.0
    %2721 = vmatprep.subr.mxu0 0.0
    %2722 = vmatpush1.msra.mxu0 0.0
    %2723 = vmatprep.subr.mxu0 0.0
    %2724 = vmatpush1.msra.mxu0 0.0
    %2725 = vmatprep.subr.mxu0 0.0
    %2726 = vmatpush1.msra.mxu0 0.0
    %2727 = vmatprep.subr.mxu0 0.0
    %2728 = vmatpush1.msra.mxu0 0.0
    %2729 = vmatprep.subr.mxu0 0.0
    %2730 = vmatpush1.msra.mxu0 0.0
    %2731 = vmatprep.subr.mxu0 0.0
    %2732 = vmatpush1.msra.mxu0 0.0
    %2733 = vmatprep.subr.mxu0 0.0
    %2734 = vmatpush1.msra.mxu0 0.0
    %2735 = vmatprep.subr.mxu0 0.0
    %2736 = vmatpush1.msra.mxu0 0.0
    %2737 = vmatprep.subr.mxu0 0.0
    %2738 = vmatpush1.msra.mxu0 0.0
    %2739 = vmatprep.subr.mxu0 0.0
    %2740 = vmatpush1.msra.mxu0 0.0
    %2741 = vmatprep.subr.mxu0 0.0
    %2742 = vmatpush1.msra.mxu0 0.0
    %2743 = vmatprep.subr.mxu0 0.0
    %2744 = vmatpush1.msra.mxu0 0.0
    %2745 = vmatprep.subr.mxu0 0.0
    %2746 = vmatpush1.msra.mxu0 0.0
    %2747 = vmatprep.subr.mxu0 0.0
    %2748 = vmatpush1.msra.mxu0 0.0
    %2749 = vmatprep.subr.mxu0 0.0
    %2750 = vmatpush1.msra.mxu0 0.0
    %2751 = vmatprep.subr.mxu0 0.0
    %2752 = vmatpush1.msra.mxu0 0.0
    %2753 = vmatprep.subr.mxu0 0.0
    %2754 = vmatpush1.msra.mxu0 0.0
    %2755 = vmatprep.subr.mxu0 0.0
    %2756 = vmatpush1.msra.mxu0 0.0
    %2757 = vmatprep.subr.mxu0 0.0
    %2758 = vmatpush1.msra.mxu0 0.0
    %2759 = vmatprep.subr.mxu0 0.0
    %2760 = vmatpush1.msra.mxu0 0.0
    %2761 = vmatprep.mubr.f32.mxu0 0.0
    %2762 = vmatmul.mubr.f32.gmra.mrb[0].mxu0 %v2695
    %v2763 = vpop.f32.mrb[0].mxu0
    %v2764 = vadd.f32 0.0, %v2763
    %v2765 = vpop.f32.mrb[0].mxu0
    %2766 = vdwg.mxu0
    %2767 = vrot.lane.b32.xlu0 %v2506, 64
    %v2768 = vpop.permute.xlu0 %2767
    %v2771 = vsel %vm429, %v2690, 0
    %2773 = vmatprep.subr.mxu0 0.0
    %2774 = vmatpush1.msra.mxu0 %v2768
    %2775 = vmatprep.subr.mxu0 0.0
    %2776 = vmatpush1.msra.mxu0 0.0
    %2777 = vmatprep.subr.mxu0 0.0
    %2778 = vmatpush1.msra.mxu0 0.0
    %2779 = vmatprep.subr.mxu0 0.0
    %2780 = vmatpush1.msra.mxu0 0.0
    %2781 = vmatprep.subr.mxu0 0.0
    %2782 = vmatpush1.msra.mxu0 0.0
    %2783 = vmatprep.subr.mxu0 0.0
    %2784 = vmatpush1.msra.mxu0 0.0
    %2785 = vmatprep.subr.mxu0 0.0
    %2786 = vmatpush1.msra.mxu0 0.0
    %2787 = vmatprep.subr.mxu0 0.0
    %2788 = vmatpush1.msra.mxu0 0.0
    %2789 = vmatprep.subr.mxu0 0.0
    %2790 = vmatpush1.msra.mxu0 0.0
    %2791 = vmatprep.subr.mxu0 0.0
    %2792 = vmatpush1.msra.mxu0 0.0
    %2793 = vmatprep.subr.mxu0 0.0
    %2794 = vmatpush1.msra.mxu0 0.0
    %2795 = vmatprep.subr.mxu0 0.0
    %2796 = vmatpush1.msra.mxu0 0.0
    %2797 = vmatprep.subr.mxu0 0.0
    %2798 = vmatpush1.msra.mxu0 0.0
    %2799 = vmatprep.subr.mxu0 0.0
    %2800 = vmatpush1.msra.mxu0 0.0
    %2801 = vmatprep.subr.mxu0 0.0
    %2802 = vmatpush1.msra.mxu0 0.0
    %2803 = vmatprep.subr.mxu0 0.0
    %2804 = vmatpush1.msra.mxu0 0.0
    %2805 = vmatprep.subr.mxu0 0.0
    %2806 = vmatpush1.msra.mxu0 0.0
    %2807 = vmatprep.subr.mxu0 0.0
    %2808 = vmatpush1.msra.mxu0 0.0
    %2809 = vmatprep.subr.mxu0 0.0
    %2810 = vmatpush1.msra.mxu0 0.0
    %2811 = vmatprep.subr.mxu0 0.0
    %2812 = vmatpush1.msra.mxu0 0.0
    %2813 = vmatprep.subr.mxu0 0.0
    %2814 = vmatpush1.msra.mxu0 0.0
    %2815 = vmatprep.subr.mxu0 0.0
    %2816 = vmatpush1.msra.mxu0 0.0
    %2817 = vmatprep.subr.mxu0 0.0
    %2818 = vmatpush1.msra.mxu0 0.0
    %2819 = vmatprep.subr.mxu0 0.0
    %2820 = vmatpush1.msra.mxu0 0.0
    %2821 = vmatprep.subr.mxu0 0.0
    %2822 = vmatpush1.msra.mxu0 0.0
    %2823 = vmatprep.subr.mxu0 0.0
    %2824 = vmatpush1.msra.mxu0 0.0
    %2825 = vmatprep.subr.mxu0 0.0
    %2826 = vmatpush1.msra.mxu0 0.0
    %2827 = vmatprep.subr.mxu0 0.0
    %2828 = vmatpush1.msra.mxu0 0.0
    %2829 = vmatprep.subr.mxu0 0.0
    %2830 = vmatpush1.msra.mxu0 0.0
    %2831 = vmatprep.subr.mxu0 0.0
    %2832 = vmatpush1.msra.mxu0 0.0
    %2833 = vmatprep.subr.mxu0 0.0
    %2834 = vmatpush1.msra.mxu0 0.0
    %2835 = vmatprep.subr.mxu0 0.0
    %2836 = vmatpush1.msra.mxu0 0.0
    %2837 = vmatprep.mubr.f32.mxu0 0.0
    %2838 = vmatmul.mubr.f32.gmra.mrb[0].mxu0 %v2771
    %v2839 = vpop.f32.mrb[0].mxu0
    %v2840 = vadd.f32 0.0, %v2839
    %v2841 = vpop.f32.mrb[0].mxu0
    %2842 = vdwg.mxu0
    %v2844 = vsel %vm429, %v2764, 0
    %v2847 = vsel %vm429, %v2840, 0
    %2849 = vmatprep.subr.mxu0 0.0
    %2850 = vmatpush1.msra.mxu0 %v2416
    %2851 = vmatprep.subr.mxu0 0.0
    %2852 = vmatpush1.msra.mxu0 0.0
    %2853 = vmatprep.subr.mxu0 0.0
    %2854 = vmatpush1.msra.mxu0 0.0
    %2855 = vmatprep.subr.mxu0 0.0
    %2856 = vmatpush1.msra.mxu0 0.0
    %2857 = vmatprep.subr.mxu0 0.0
    %2858 = vmatpush1.msra.mxu0 0.0
    %2859 = vmatprep.subr.mxu0 0.0
    %2860 = vmatpush1.msra.mxu0 0.0
    %2861 = vmatprep.subr.mxu0 0.0
    %2862 = vmatpush1.msra.mxu0 0.0
    %2863 = vmatprep.subr.mxu0 0.0
    %2864 = vmatpush1.msra.mxu0 0.0
    %2865 = vmatprep.subr.mxu0 0.0
    %2866 = vmatpush1.msra.mxu0 0.0
    %2867 = vmatprep.subr.mxu0 0.0
    %2868 = vmatpush1.msra.mxu0 0.0
    %2869 = vmatprep.subr.mxu0 0.0
    %2870 = vmatpush1.msra.mxu0 0.0
    %2871 = vmatprep.subr.mxu0 0.0
    %2872 = vmatpush1.msra.mxu0 0.0
    %2873 = vmatprep.subr.mxu0 0.0
    %2874 = vmatpush1.msra.mxu0 0.0
    %2875 = vmatprep.subr.mxu0 0.0
    %2876 = vmatpush1.msra.mxu0 0.0
    %2877 = vmatprep.subr.mxu0 0.0
    %2878 = vmatpush1.msra.mxu0 0.0
    %2879 = vmatprep.subr.mxu0 0.0
    %2880 = vmatpush1.msra.mxu0 0.0
    %2881 = vmatprep.subr.mxu0 0.0
    %2882 = vmatpush1.msra.mxu0 0.0
    %2883 = vmatprep.subr.mxu0 0.0
    %2884 = vmatpush1.msra.mxu0 0.0
    %2885 = vmatprep.subr.mxu0 0.0
    %2886 = vmatpush1.msra.mxu0 0.0
    %2887 = vmatprep.subr.mxu0 0.0
    %2888 = vmatpush1.msra.mxu0 0.0
    %2889 = vmatprep.subr.mxu0 0.0
    %2890 = vmatpush1.msra.mxu0 0.0
    %2891 = vmatprep.subr.mxu0 0.0
    %2892 = vmatpush1.msra.mxu0 0.0
    %2893 = vmatprep.subr.mxu0 0.0
    %2894 = vmatpush1.msra.mxu0 0.0
    %2895 = vmatprep.subr.mxu0 0.0
    %2896 = vmatpush1.msra.mxu0 0.0
    %2897 = vmatprep.subr.mxu0 0.0
    %2898 = vmatpush1.msra.mxu0 0.0
    %2899 = vmatprep.subr.mxu0 0.0
    %2900 = vmatpush1.msra.mxu0 0.0
    %2901 = vmatprep.subr.mxu0 0.0
    %2902 = vmatpush1.msra.mxu0 0.0
    %2903 = vmatprep.subr.mxu0 0.0
    %2904 = vmatpush1.msra.mxu0 0.0
    %2905 = vmatprep.subr.mxu0 0.0
    %2906 = vmatpush1.msra.mxu0 0.0
    %2907 = vmatprep.subr.mxu0 0.0
    %2908 = vmatpush1.msra.mxu0 0.0
    %2909 = vmatprep.subr.mxu0 0.0
    %2910 = vmatpush1.msra.mxu0 0.0
    %2911 = vmatprep.subr.mxu0 0.0
    %2912 = vmatpush1.msra.mxu0 0.0
    %2913 = vmatprep.mubr.f32.mxu0 0.0
    %2914 = vmatmul.mubr.f32.gmra.mrb[0].mxu0 %v2844
    %v2915 = vpop.f32.mrb[0].mxu0
    %v2916 = vadd.f32 0.0, %v2915
    %v2917 = vpop.f32.mrb[0].mxu0
    %2918 = vmatprep.mubr.f32.mxu0 0.0
    %2919 = vmatmul.mubr.f32.gmra.mrb[0].mxu0 %v2847
    %v2920 = vpop.f32.mrb[0].mxu0
    %v2921 = vadd.f32 0.0, %v2920
    %v2922 = vpop.f32.mrb[0].mxu0
    %2923 = vdwg.mxu0
    %v2925 = vlaneseq
    %v2926 = vshrl.u32 %v2925, 7
    %v2927 = vsub.s32 0, %v2926
    %v2928 = vrot.slane %v2510, %v2927
    %v2930 = vadd.f32 %v2928, %v2916
    %v2931 = vadd.f32 %v2928, %v2921
    %2932 = vrot.lane.b32.xlu0 %v2501, 120
    %v2933 = vpop.permute.xlu0 %2932
    %2934 = vrot.lane.b32.xlu0 %v2501, 88
    %v2935 = vpop.permute.xlu0 %2934
    %v2936 = vsel %vm429, %v2933, 0
    %v2938 = vsel %vm429, %v2935, 0
    %2940 = vmatprep.subr.mxu0 0.0
    %2941 = vmatpush1.xpose.msra.mxu0 %v2938
    %2942 = vmatprep.subr.mxu0 0.0
    %2943 = vmatpush1.xpose.msra.mxu0 0.0
    %2944 = vmatprep.subr.mxu0 0.0
    %2945 = vmatpush1.xpose.msra.mxu0 0.0
    %2946 = vmatprep.subr.mxu0 0.0
    %2947 = vmatpush1.xpose.msra.mxu0 0.0
    %2948 = vmatprep.subr.mxu0 0.0
    %2949 = vmatpush1.xpose.msra.mxu0 0.0
    %2950 = vmatprep.subr.mxu0 0.0
    %2951 = vmatpush1.xpose.msra.mxu0 0.0
    %2952 = vmatprep.subr.mxu0 0.0
    %2953 = vmatpush1.xpose.msra.mxu0 0.0
    %2954 = vmatprep.subr.mxu0 0.0
    %2955 = vmatpush1.xpose.msra.mxu0 0.0
    %2956 = vmatprep.subr.mxu0 0.0
    %2957 = vmatpush1.xpose.msra.mxu0 0.0
    %2958 = vmatprep.subr.mxu0 0.0
    %2959 = vmatpush1.xpose.msra.mxu0 0.0
    %2960 = vmatprep.subr.mxu0 0.0
    %2961 = vmatpush1.xpose.msra.mxu0 0.0
    %2962 = vmatprep.subr.mxu0 0.0
    %2963 = vmatpush1.xpose.msra.mxu0 0.0
    %2964 = vmatprep.subr.mxu0 0.0
    %2965 = vmatpush1.xpose.msra.mxu0 0.0
    %2966 = vmatprep.subr.mxu0 0.0
    %2967 = vmatpush1.xpose.msra.mxu0 0.0
    %2968 = vmatprep.subr.mxu0 0.0
    %2969 = vmatpush1.xpose.msra.mxu0 0.0
    %2970 = vmatprep.subr.mxu0 0.0
    %2971 = vmatpush1.xpose.msra.mxu0 0.0
    %2972 = vmatprep.subr.mxu0 0.0
    %2973 = vmatpush1.xpose.msra.mxu0 0.0
    %2974 = vmatprep.subr.mxu0 0.0
    %2975 = vmatpush1.xpose.msra.mxu0 0.0
    %2976 = vmatprep.subr.mxu0 0.0
    %2977 = vmatpush1.xpose.msra.mxu0 0.0
    %2978 = vmatprep.subr.mxu0 0.0
    %2979 = vmatpush1.xpose.msra.mxu0 0.0
    %2980 = vmatprep.subr.mxu0 0.0
    %2981 = vmatpush1.xpose.msra.mxu0 0.0
    %2982 = vmatprep.subr.mxu0 0.0
    %2983 = vmatpush1.xpose.msra.mxu0 0.0
    %2984 = vmatprep.subr.mxu0 0.0
    %2985 = vmatpush1.xpose.msra.mxu0 0.0
    %2986 = vmatprep.subr.mxu0 0.0
    %2987 = vmatpush1.xpose.msra.mxu0 0.0
    %2988 = vmatprep.subr.mxu0 0.0
    %2989 = vmatpush1.xpose.msra.mxu0 0.0
    %2990 = vmatprep.subr.mxu0 0.0
    %2991 = vmatpush1.xpose.msra.mxu0 0.0
    %2992 = vmatprep.subr.mxu0 0.0
    %2993 = vmatpush1.xpose.msra.mxu0 0.0
    %2994 = vmatprep.subr.mxu0 0.0
    %2995 = vmatpush1.xpose.msra.mxu0 0.0
    %2996 = vmatprep.subr.mxu0 0.0
    %2997 = vmatpush1.xpose.msra.mxu0 0.0
    %2998 = vmatprep.subr.mxu0 0.0
    %2999 = vmatpush1.xpose.msra.mxu0 0.0
    %3000 = vmatprep.subr.mxu0 0.0
    %3001 = vmatpush1.xpose.msra.mxu0 0.0
    %3002 = vmatprep.subr.mxu0 0.0
    %3003 = vmatpush1.xpose.msra.mxu0 0.0
    %3004 = vmatprep.mubr.f32.mxu0 0.0
    %3005 = vmatmul.mubr.f32.gmra.mrb[0].mxu0 %v2936
    %v3006 = vpop.f32.mrb[0].mxu0
    %v3007 = vadd.f32 0.0, %v3006
    %v3008 = vpop.f32.mrb[0].mxu0
    %3009 = vdwg.mxu0
    %3010 = vrot.lane.b32.xlu0 %v2506, 120
    %v3011 = vpop.permute.xlu0 %3010
    %3012 = vrot.lane.b32.xlu0 %v2506, 88
    %v3013 = vpop.permute.xlu0 %3012
    %v3014 = vsel %vm429, %v3011, 0
    %v3016 = vsel %vm429, %v3013, 0
    %3018 = vmatprep.subr.mxu0 0.0
    %3019 = vmatpush1.xpose.msra.mxu0 %v3016
    %3020 = vmatprep.subr.mxu0 0.0
    %3021 = vmatpush1.xpose.msra.mxu0 0.0
    %3022 = vmatprep.subr.mxu0 0.0
    %3023 = vmatpush1.xpose.msra.mxu0 0.0
    %3024 = vmatprep.subr.mxu0 0.0
    %3025 = vmatpush1.xpose.msra.mxu0 0.0
    %3026 = vmatprep.subr.mxu0 0.0
    %3027 = vmatpush1.xpose.msra.mxu0 0.0
    %3028 = vmatprep.subr.mxu0 0.0
    %3029 = vmatpush1.xpose.msra.mxu0 0.0
    %3030 = vmatprep.subr.mxu0 0.0
    %3031 = vmatpush1.xpose.msra.mxu0 0.0
    %3032 = vmatprep.subr.mxu0 0.0
    %3033 = vmatpush1.xpose.msra.mxu0 0.0
    %3034 = vmatprep.subr.mxu0 0.0
    %3035 = vmatpush1.xpose.msra.mxu0 0.0
    %3036 = vmatprep.subr.mxu0 0.0
    %3037 = vmatpush1.xpose.msra.mxu0 0.0
    %3038 = vmatprep.subr.mxu0 0.0
    %3039 = vmatpush1.xpose.msra.mxu0 0.0
    %3040 = vmatprep.subr.mxu0 0.0
    %3041 = vmatpush1.xpose.msra.mxu0 0.0
    %3042 = vmatprep.subr.mxu0 0.0
    %3043 = vmatpush1.xpose.msra.mxu0 0.0
    %3044 = vmatprep.subr.mxu0 0.0
    %3045 = vmatpush1.xpose.msra.mxu0 0.0
    %3046 = vmatprep.subr.mxu0 0.0
    %3047 = vmatpush1.xpose.msra.mxu0 0.0
    %3048 = vmatprep.subr.mxu0 0.0
    %3049 = vmatpush1.xpose.msra.mxu0 0.0
    %3050 = vmatprep.subr.mxu0 0.0
    %3051 = vmatpush1.xpose.msra.mxu0 0.0
    %3052 = vmatprep.subr.mxu0 0.0
    %3053 = vmatpush1.xpose.msra.mxu0 0.0
    %3054 = vmatprep.subr.mxu0 0.0
    %3055 = vmatpush1.xpose.msra.mxu0 0.0
    %3056 = vmatprep.subr.mxu0 0.0
    %3057 = vmatpush1.xpose.msra.mxu0 0.0
    %3058 = vmatprep.subr.mxu0 0.0
    %3059 = vmatpush1.xpose.msra.mxu0 0.0
    %3060 = vmatprep.subr.mxu0 0.0
    %3061 = vmatpush1.xpose.msra.mxu0 0.0
    %3062 = vmatprep.subr.mxu0 0.0
    %3063 = vmatpush1.xpose.msra.mxu0 0.0
    %3064 = vmatprep.subr.mxu0 0.0
    %3065 = vmatpush1.xpose.msra.mxu0 0.0
    %3066 = vmatprep.subr.mxu0 0.0
    %3067 = vmatpush1.xpose.msra.mxu0 0.0
    %3068 = vmatprep.subr.mxu0 0.0
    %3069 = vmatpush1.xpose.msra.mxu0 0.0
    %3070 = vmatprep.subr.mxu0 0.0
    %3071 = vmatpush1.xpose.msra.mxu0 0.0
    %3072 = vmatprep.subr.mxu0 0.0
    %3073 = vmatpush1.xpose.msra.mxu0 0.0
    %3074 = vmatprep.subr.mxu0 0.0
    %3075 = vmatpush1.xpose.msra.mxu0 0.0
    %3076 = vmatprep.subr.mxu0 0.0
    %3077 = vmatpush1.xpose.msra.mxu0 0.0
    %3078 = vmatprep.subr.mxu0 0.0
    %3079 = vmatpush1.xpose.msra.mxu0 0.0
    %3080 = vmatprep.subr.mxu0 0.0
    %3081 = vmatpush1.xpose.msra.mxu0 0.0
    %3082 = vmatprep.mubr.f32.mxu0 0.0
    %3083 = vmatmul.mubr.f32.gmra.mrb[0].mxu0 %v3014
    %v3084 = vpop.f32.mrb[0].mxu0
    %v3085 = vadd.f32 0.0, %v3084
    %v3086 = vpop.f32.mrb[0].mxu0
    %3087 = vdwg.mxu0
    %v3088 = vmul.f32 %v3007, 0.35355338
    %v3089 = vmul.f32 %v3085, 0.35355338
    %v3090 = vadd.f32 %v3088, %v588
    %v3091 = vadd.f32 %v3089, %v592
    %v3092 = vsel %vm429, %v3090, -inf
    %3093 = vmax.xlane.f32.xlu0 %v3092
    %v3094 = vpop.xlane.xlu0 %3093
    %v3095 = vsel %vm429, %v3091, -inf
    %3096 = vmax.xlane.f32.xlu0 %v3095
    %v3097 = vpop.xlane.xlu0 %3096
    %v3098 = vsub.f32 %v3090, %v3094
    %v3099 = vsub.f32 %v3091, %v3097
    %v3100 = vmul.f32 %v3098, 1.442695
    %v3101 = vpow.pop %v3100
    %v3102 = vmul.f32 %v3099, 1.442695
    %v3103 = vpow.pop %v3102
    %v3104 = vsel %vm429, %v3101, 0.0
    %3105 = vadd.xlane.f32.xlu0 %v3104
    %v3106 = vpop.xlane.xlu0 %3105
    %v3107 = vsel %vm429, %v3103, 0.0
    %3108 = vadd.xlane.f32.xlu0 %v3107
    %v3109 = vpop.xlane.xlu0 %3108
    %v3110 = vrcp.pop %v3106
    %v3111 = vmul.f32 %v3101, %v3110
    %v3112 = vrcp.pop %v3109
    %v3113 = vmul.f32 %v3103, %v3112
    %3114 = vrot.lane.b32.xlu0 %v2501, 56
    %v3115 = vpop.permute.xlu0 %3114
    %v3118 = vsel %vm429, %v3111, 0
    %3120 = vmatprep.subr.mxu0 0.0
    %3121 = vmatpush1.msra.mxu0 %v3115
    %3122 = vmatprep.subr.mxu0 0.0
    %3123 = vmatpush1.msra.mxu0 0.0
    %3124 = vmatprep.subr.mxu0 0.0
    %3125 = vmatpush1.msra.mxu0 0.0
    %3126 = vmatprep.subr.mxu0 0.0
    %3127 = vmatpush1.msra.mxu0 0.0
    %3128 = vmatprep.subr.mxu0 0.0
    %3129 = vmatpush1.msra.mxu0 0.0
    %3130 = vmatprep.subr.mxu0 0.0
    %3131 = vmatpush1.msra.mxu0 0.0
    %3132 = vmatprep.subr.mxu0 0.0
    %3133 = vmatpush1.msra.mxu0 0.0
    %3134 = vmatprep.subr.mxu0 0.0
    %3135 = vmatpush1.msra.mxu0 0.0
    %3136 = vmatprep.subr.mxu0 0.0
    %3137 = vmatpush1.msra.mxu0 0.0
    %3138 = vmatprep.subr.mxu0 0.0
    %3139 = vmatpush1.msra.mxu0 0.0
    %3140 = vmatprep.subr.mxu0 0.0
    %3141 = vmatpush1.msra.mxu0 0.0
    %3142 = vmatprep.subr.mxu0 0.0
    %3143 = vmatpush1.msra.mxu0 0.0
    %3144 = vmatprep.subr.mxu0 0.0
    %3145 = vmatpush1.msra.mxu0 0.0
    %3146 = vmatprep.subr.mxu0 0.0
    %3147 = vmatpush1.msra.mxu0 0.0
    %3148 = vmatprep.subr.mxu0 0.0
    %3149 = vmatpush1.msra.mxu0 0.0
    %3150 = vmatprep.subr.mxu0 0.0
    %3151 = vmatpush1.msra.mxu0 0.0
    %3152 = vmatprep.subr.mxu0 0.0
    %3153 = vmatpush1.msra.mxu0 0.0
    %3154 = vmatprep.subr.mxu0 0.0
    %3155 = vmatpush1.msra.mxu0 0.0
    %3156 = vmatprep.subr.mxu0 0.0
    %3157 = vmatpush1.msra.mxu0 0.0
    %3158 = vmatprep.subr.mxu0 0.0
    %3159 = vmatpush1.msra.mxu0 0.0
    %3160 = vmatprep.subr.mxu0 0.0
    %3161 = vmatpush1.msra.mxu0 0.0
    %3162 = vmatprep.subr.mxu0 0.0
    %3163 = vmatpush1.msra.mxu0 0.0
    %3164 = vmatprep.subr.mxu0 0.0
    %3165 = vmatpush1.msra.mxu0 0.0
    %3166 = vmatprep.subr.mxu0 0.0
    %3167 = vmatpush1.msra.mxu0 0.0
    %3168 = vmatprep.subr.mxu0 0.0
    %3169 = vmatpush1.msra.mxu0 0.0
    %3170 = vmatprep.subr.mxu0 0.0
    %3171 = vmatpush1.msra.mxu0 0.0
    %3172 = vmatprep.subr.mxu0 0.0
    %3173 = vmatpush1.msra.mxu0 0.0
    %3174 = vmatprep.subr.mxu0 0.0
    %3175 = vmatpush1.msra.mxu0 0.0
    %3176 = vmatprep.subr.mxu0 0.0
    %3177 = vmatpush1.msra.mxu0 0.0
    %3178 = vmatprep.subr.mxu0 0.0
    %3179 = vmatpush1.msra.mxu0 0.0
    %3180 = vmatprep.subr.mxu0 0.0
    %3181 = vmatpush1.msra.mxu0 0.0
    %3182 = vmatprep.subr.mxu0 0.0
    %3183 = vmatpush1.msra.mxu0 0.0
    %3184 = vmatprep.mubr.f32.mxu0 0.0
    %3185 = vmatmul.mubr.f32.gmra.mrb[0].mxu0 %v3118
    %v3186 = vpop.f32.mrb[0].mxu0
    %v3187 = vadd.f32 0.0, %v3186
    %v3188 = vpop.f32.mrb[0].mxu0
    %3189 = vdwg.mxu0
    %3190 = vrot.lane.b32.xlu0 %v2506, 56
    %v3191 = vpop.permute.xlu0 %3190
    %v3194 = vsel %vm429, %v3113, 0
    %3196 = vmatprep.subr.mxu0 0.0
    %3197 = vmatpush1.msra.mxu0 %v3191
    %3198 = vmatprep.subr.mxu0 0.0
    %3199 = vmatpush1.msra.mxu0 0.0
    %3200 = vmatprep.subr.mxu0 0.0
    %3201 = vmatpush1.msra.mxu0 0.0
    %3202 = vmatprep.subr.mxu0 0.0
    %3203 = vmatpush1.msra.mxu0 0.0
    %3204 = vmatprep.subr.mxu0 0.0
    %3205 = vmatpush1.msra.mxu0 0.0
    %3206 = vmatprep.subr.mxu0 0.0
    %3207 = vmatpush1.msra.mxu0 0.0
    %3208 = vmatprep.subr.mxu0 0.0
    %3209 = vmatpush1.msra.mxu0 0.0
    %3210 = vmatprep.subr.mxu0 0.0
    %3211 = vmatpush1.msra.mxu0 0.0
    %3212 = vmatprep.subr.mxu0 0.0
    %3213 = vmatpush1.msra.mxu0 0.0
    %3214 = vmatprep.subr.mxu0 0.0
    %3215 = vmatpush1.msra.mxu0 0.0
    %3216 = vmatprep.subr.mxu0 0.0
    %3217 = vmatpush1.msra.mxu0 0.0
    %3218 = vmatprep.subr.mxu0 0.0
    %3219 = vmatpush1.msra.mxu0 0.0
    %3220 = vmatprep.subr.mxu0 0.0
    %3221 = vmatpush1.msra.mxu0 0.0
    %3222 = vmatprep.subr.mxu0 0.0
    %3223 = vmatpush1.msra.mxu0 0.0
    %3224 = vmatprep.subr.mxu0 0.0
    %3225 = vmatpush1.msra.mxu0 0.0
    %3226 = vmatprep.subr.mxu0 0.0
    %3227 = vmatpush1.msra.mxu0 0.0
    %3228 = vmatprep.subr.mxu0 0.0
    %3229 = vmatpush1.msra.mxu0 0.0
    %3230 = vmatprep.subr.mxu0 0.0
    %3231 = vmatpush1.msra.mxu0 0.0
    %3232 = vmatprep.subr.mxu0 0.0
    %3233 = vmatpush1.msra.mxu0 0.0
    %3234 = vmatprep.subr.mxu0 0.0
    %3235 = vmatpush1.msra.mxu0 0.0
    %3236 = vmatprep.subr.mxu0 0.0
    %3237 = vmatpush1.msra.mxu0 0.0
    %3238 = vmatprep.subr.mxu0 0.0
    %3239 = vmatpush1.msra.mxu0 0.0
    %3240 = vmatprep.subr.mxu0 0.0
    %3241 = vmatpush1.msra.mxu0 0.0
    %3242 = vmatprep.subr.mxu0 0.0
    %3243 = vmatpush1.msra.mxu0 0.0
    %3244 = vmatprep.subr.mxu0 0.0
    %3245 = vmatpush1.msra.mxu0 0.0
    %3246 = vmatprep.subr.mxu0 0.0
    %3247 = vmatpush1.msra.mxu0 0.0
    %3248 = vmatprep.subr.mxu0 0.0
    %3249 = vmatpush1.msra.mxu0 0.0
    %3250 = vmatprep.subr.mxu0 0.0
    %3251 = vmatpush1.msra.mxu0 0.0
    %3252 = vmatprep.subr.mxu0 0.0
    %3253 = vmatpush1.msra.mxu0 0.0
    %3254 = vmatprep.subr.mxu0 0.0
    %3255 = vmatpush1.msra.mxu0 0.0
    %3256 = vmatprep.subr.mxu0 0.0
    %3257 = vmatpush1.msra.mxu0 0.0
    %3258 = vmatprep.subr.mxu0 0.0
    %3259 = vmatpush1.msra.mxu0 0.0
    %3260 = vmatprep.mubr.f32.mxu0 0.0
    %3261 = vmatmul.mubr.f32.gmra.mrb[0].mxu0 %v3194
    %v3262 = vpop.f32.mrb[0].mxu0
    %v3263 = vadd.f32 0.0, %v3262
    %v3264 = vpop.f32.mrb[0].mxu0
    %3265 = vdwg.mxu0
    %v3267 = vsel %vm429, %v3187, 0
    %v3270 = vsel %vm429, %v3263, 0
    %3272 = vmatprep.subr.mxu0 0.0
    %3273 = vmatpush1.msra.mxu0 %v2417
    %3274 = vmatprep.subr.mxu0 0.0
    %3275 = vmatpush1.msra.mxu0 0.0
    %3276 = vmatprep.subr.mxu0 0.0
    %3277 = vmatpush1.msra.mxu0 0.0
    %3278 = vmatprep.subr.mxu0 0.0
    %3279 = vmatpush1.msra.mxu0 0.0
    %3280 = vmatprep.subr.mxu0 0.0
    %3281 = vmatpush1.msra.mxu0 0.0
    %3282 = vmatprep.subr.mxu0 0.0
    %3283 = vmatpush1.msra.mxu0 0.0
    %3284 = vmatprep.subr.mxu0 0.0
    %3285 = vmatpush1.msra.mxu0 0.0
    %3286 = vmatprep.subr.mxu0 0.0
    %3287 = vmatpush1.msra.mxu0 0.0
    %3288 = vmatprep.subr.mxu0 0.0
    %3289 = vmatpush1.msra.mxu0 0.0
    %3290 = vmatprep.subr.mxu0 0.0
    %3291 = vmatpush1.msra.mxu0 0.0
    %3292 = vmatprep.subr.mxu0 0.0
    %3293 = vmatpush1.msra.mxu0 0.0
    %3294 = vmatprep.subr.mxu0 0.0
    %3295 = vmatpush1.msra.mxu0 0.0
    %3296 = vmatprep.subr.mxu0 0.0
    %3297 = vmatpush1.msra.mxu0 0.0
    %3298 = vmatprep.subr.mxu0 0.0
    %3299 = vmatpush1.msra.mxu0 0.0
    %3300 = vmatprep.subr.mxu0 0.0
    %3301 = vmatpush1.msra.mxu0 0.0
    %3302 = vmatprep.subr.mxu0 0.0
    %3303 = vmatpush1.msra.mxu0 0.0
    %3304 = vmatprep.subr.mxu0 0.0
    %3305 = vmatpush1.msra.mxu0 0.0
    %3306 = vmatprep.subr.mxu0 0.0
    %3307 = vmatpush1.msra.mxu0 0.0
    %3308 = vmatprep.subr.mxu0 0.0
    %3309 = vmatpush1.msra.mxu0 0.0
    %3310 = vmatprep.subr.mxu0 0.0
    %3311 = vmatpush1.msra.mxu0 0.0
    %3312 = vmatprep.subr.mxu0 0.0
    %3313 = vmatpush1.msra.mxu0 0.0
    %3314 = vmatprep.subr.mxu0 0.0
    %3315 = vmatpush1.msra.mxu0 0.0
    %3316 = vmatprep.subr.mxu0 0.0
    %3317 = vmatpush1.msra.mxu0 0.0
    %3318 = vmatprep.subr.mxu0 0.0
    %3319 = vmatpush1.msra.mxu0 0.0
    %3320 = vmatprep.subr.mxu0 0.0
    %3321 = vmatpush1.msra.mxu0 0.0
    %3322 = vmatprep.subr.mxu0 0.0
    %3323 = vmatpush1.msra.mxu0 0.0
    %3324 = vmatprep.subr.mxu0 0.0
    %3325 = vmatpush1.msra.mxu0 0.0
    %3326 = vmatprep.subr.mxu0 0.0
    %3327 = vmatpush1.msra.mxu0 0.0
    %3328 = vmatprep.subr.mxu0 0.0
    %3329 = vmatpush1.msra.mxu0 0.0
    %3330 = vmatprep.subr.mxu0 0.0
    %3331 = vmatpush1.msra.mxu0 0.0
    %3332 = vmatprep.subr.mxu0 0.0
    %3333 = vmatpush1.msra.mxu0 0.0
    %3334 = vmatprep.subr.mxu0 0.0
    %3335 = vmatpush1.msra.mxu0 0.0
    %3336 = vmatprep.mubr.f32.mxu0 0.0
    %3337 = vmatmul.mubr.f32.gmra.mrb[0].mxu0 %v3267
    %v3338 = vpop.f32.mrb[0].mxu0
    %v3339 = vadd.f32 0.0, %v3338
    %v3340 = vpop.f32.mrb[0].mxu0
    %3341 = vmatprep.mubr.f32.mxu0 0.0
    %3342 = vmatmul.mubr.f32.gmra.mrb[0].mxu0 %v3270
    %v3343 = vpop.f32.mrb[0].mxu0
    %v3344 = vadd.f32 0.0, %v3343
    %v3345 = vpop.f32.mrb[0].mxu0
    %3346 = vdwg.mxu0
    %v3347 = vadd.f32 %v2930, %v3339
    %v3348 = vadd.f32 %v2931, %v3344
    %3349 = vrot.lane.b32.xlu0 %v2501, 112
    %v3350 = vpop.permute.xlu0 %3349
    %3351 = vrot.lane.b32.xlu0 %v2501, 80
    %v3352 = vpop.permute.xlu0 %3351
    %v3353 = vsel %vm429, %v3350, 0
    %v3355 = vsel %vm429, %v3352, 0
    %3357 = vmatprep.subr.mxu0 0.0
    %3358 = vmatpush1.xpose.msra.mxu0 %v3355
    %3359 = vmatprep.subr.mxu0 0.0
    %3360 = vmatpush1.xpose.msra.mxu0 0.0
    %3361 = vmatprep.subr.mxu0 0.0
    %3362 = vmatpush1.xpose.msra.mxu0 0.0
    %3363 = vmatprep.subr.mxu0 0.0
    %3364 = vmatpush1.xpose.msra.mxu0 0.0
    %3365 = vmatprep.subr.mxu0 0.0
    %3366 = vmatpush1.xpose.msra.mxu0 0.0
    %3367 = vmatprep.subr.mxu0 0.0
    %3368 = vmatpush1.xpose.msra.mxu0 0.0
    %3369 = vmatprep.subr.mxu0 0.0
    %3370 = vmatpush1.xpose.msra.mxu0 0.0
    %3371 = vmatprep.subr.mxu0 0.0
    %3372 = vmatpush1.xpose.msra.mxu0 0.0
    %3373 = vmatprep.subr.mxu0 0.0
    %3374 = vmatpush1.xpose.msra.mxu0 0.0
    %3375 = vmatprep.subr.mxu0 0.0
    %3376 = vmatpush1.xpose.msra.mxu0 0.0
    %3377 = vmatprep.subr.mxu0 0.0
    %3378 = vmatpush1.xpose.msra.mxu0 0.0
    %3379 = vmatprep.subr.mxu0 0.0
    %3380 = vmatpush1.xpose.msra.mxu0 0.0
    %3381 = vmatprep.subr.mxu0 0.0
    %3382 = vmatpush1.xpose.msra.mxu0 0.0
    %3383 = vmatprep.subr.mxu0 0.0
    %3384 = vmatpush1.xpose.msra.mxu0 0.0
    %3385 = vmatprep.subr.mxu0 0.0
    %3386 = vmatpush1.xpose.msra.mxu0 0.0
    %3387 = vmatprep.subr.mxu0 0.0
    %3388 = vmatpush1.xpose.msra.mxu0 0.0
    %3389 = vmatprep.subr.mxu0 0.0
    %3390 = vmatpush1.xpose.msra.mxu0 0.0
    %3391 = vmatprep.subr.mxu0 0.0
    %3392 = vmatpush1.xpose.msra.mxu0 0.0
    %3393 = vmatprep.subr.mxu0 0.0
    %3394 = vmatpush1.xpose.msra.mxu0 0.0
    %3395 = vmatprep.subr.mxu0 0.0
    %3396 = vmatpush1.xpose.msra.mxu0 0.0
    %3397 = vmatprep.subr.mxu0 0.0
    %3398 = vmatpush1.xpose.msra.mxu0 0.0
    %3399 = vmatprep.subr.mxu0 0.0
    %3400 = vmatpush1.xpose.msra.mxu0 0.0
    %3401 = vmatprep.subr.mxu0 0.0
    %3402 = vmatpush1.xpose.msra.mxu0 0.0
    %3403 = vmatprep.subr.mxu0 0.0
    %3404 = vmatpush1.xpose.msra.mxu0 0.0
    %3405 = vmatprep.subr.mxu0 0.0
    %3406 = vmatpush1.xpose.msra.mxu0 0.0
    %3407 = vmatprep.subr.mxu0 0.0
    %3408 = vmatpush1.xpose.msra.mxu0 0.0
    %3409 = vmatprep.subr.mxu0 0.0
    %3410 = vmatpush1.xpose.msra.mxu0 0.0
    %3411 = vmatprep.subr.mxu0 0.0
    %3412 = vmatpush1.xpose.msra.mxu0 0.0
    %3413 = vmatprep.subr.mxu0 0.0
    %3414 = vmatpush1.xpose.msra.mxu0 0.0
    %3415 = vmatprep.subr.mxu0 0.0
    %3416 = vmatpush1.xpose.msra.mxu0 0.0
    %3417 = vmatprep.subr.mxu0 0.0
    %3418 = vmatpush1.xpose.msra.mxu0 0.0
    %3419 = vmatprep.subr.mxu0 0.0
    %3420 = vmatpush1.xpose.msra.mxu0 0.0
    %3421 = vmatprep.mubr.f32.mxu0 0.0
    %3422 = vmatmul.mubr.f32.gmra.mrb[0].mxu0 %v3353
    %v3423 = vpop.f32.mrb[0].mxu0
    %v3424 = vadd.f32 0.0, %v3423
    %v3425 = vpop.f32.mrb[0].mxu0
    %3426 = vdwg.mxu0
    %3427 = vrot.lane.b32.xlu0 %v2506, 112
    %v3428 = vpop.permute.xlu0 %3427
    %3429 = vrot.lane.b32.xlu0 %v2506, 80
    %v3430 = vpop.permute.xlu0 %3429
    %v3431 = vsel %vm429, %v3428, 0
    %v3433 = vsel %vm429, %v3430, 0
    %3435 = vmatprep.subr.mxu0 0.0
    %3436 = vmatpush1.xpose.msra.mxu0 %v3433
    %3437 = vmatprep.subr.mxu0 0.0
    %3438 = vmatpush1.xpose.msra.mxu0 0.0
    %3439 = vmatprep.subr.mxu0 0.0
    %3440 = vmatpush1.xpose.msra.mxu0 0.0
    %3441 = vmatprep.subr.mxu0 0.0
    %3442 = vmatpush1.xpose.msra.mxu0 0.0
    %3443 = vmatprep.subr.mxu0 0.0
    %3444 = vmatpush1.xpose.msra.mxu0 0.0
    %3445 = vmatprep.subr.mxu0 0.0
    %3446 = vmatpush1.xpose.msra.mxu0 0.0
    %3447 = vmatprep.subr.mxu0 0.0
    %3448 = vmatpush1.xpose.msra.mxu0 0.0
    %3449 = vmatprep.subr.mxu0 0.0
    %3450 = vmatpush1.xpose.msra.mxu0 0.0
    %3451 = vmatprep.subr.mxu0 0.0
    %3452 = vmatpush1.xpose.msra.mxu0 0.0
    %3453 = vmatprep.subr.mxu0 0.0
    %3454 = vmatpush1.xpose.msra.mxu0 0.0
    %3455 = vmatprep.subr.mxu0 0.0
    %3456 = vmatpush1.xpose.msra.mxu0 0.0
    %3457 = vmatprep.subr.mxu0 0.0
    %3458 = vmatpush1.xpose.msra.mxu0 0.0
    %3459 = vmatprep.subr.mxu0 0.0
    %3460 = vmatpush1.xpose.msra.mxu0 0.0
    %3461 = vmatprep.subr.mxu0 0.0
    %3462 = vmatpush1.xpose.msra.mxu0 0.0
    %3463 = vmatprep.subr.mxu0 0.0
    %3464 = vmatpush1.xpose.msra.mxu0 0.0
    %3465 = vmatprep.subr.mxu0 0.0
    %3466 = vmatpush1.xpose.msra.mxu0 0.0
    %3467 = vmatprep.subr.mxu0 0.0
    %3468 = vmatpush1.xpose.msra.mxu0 0.0
    %3469 = vmatprep.subr.mxu0 0.0
    %3470 = vmatpush1.xpose.msra.mxu0 0.0
    %3471 = vmatprep.subr.mxu0 0.0
    %3472 = vmatpush1.xpose.msra.mxu0 0.0
    %3473 = vmatprep.subr.mxu0 0.0
    %3474 = vmatpush1.xpose.msra.mxu0 0.0
    %3475 = vmatprep.subr.mxu0 0.0
    %3476 = vmatpush1.xpose.msra.mxu0 0.0
    %3477 = vmatprep.subr.mxu0 0.0
    %3478 = vmatpush1.xpose.msra.mxu0 0.0
    %3479 = vmatprep.subr.mxu0 0.0
    %3480 = vmatpush1.xpose.msra.mxu0 0.0
    %3481 = vmatprep.subr.mxu0 0.0
    %3482 = vmatpush1.xpose.msra.mxu0 0.0
    %3483 = vmatprep.subr.mxu0 0.0
    %3484 = vmatpush1.xpose.msra.mxu0 0.0
    %3485 = vmatprep.subr.mxu0 0.0
    %3486 = vmatpush1.xpose.msra.mxu0 0.0
    %3487 = vmatprep.subr.mxu0 0.0
    %3488 = vmatpush1.xpose.msra.mxu0 0.0
    %3489 = vmatprep.subr.mxu0 0.0
    %3490 = vmatpush1.xpose.msra.mxu0 0.0
    %3491 = vmatprep.subr.mxu0 0.0
    %3492 = vmatpush1.xpose.msra.mxu0 0.0
    %3493 = vmatprep.subr.mxu0 0.0
    %3494 = vmatpush1.xpose.msra.mxu0 0.0
    %3495 = vmatprep.subr.mxu0 0.0
    %3496 = vmatpush1.xpose.msra.mxu0 0.0
    %3497 = vmatprep.subr.mxu0 0.0
    %3498 = vmatpush1.xpose.msra.mxu0 0.0
    %3499 = vmatprep.mubr.f32.mxu0 0.0
    %3500 = vmatmul.mubr.f32.gmra.mrb[0].mxu0 %v3431
    %v3501 = vpop.f32.mrb[0].mxu0
    %v3502 = vadd.f32 0.0, %v3501
    %v3503 = vpop.f32.mrb[0].mxu0
    %3504 = vdwg.mxu0
    %v3505 = vmul.f32 %v3424, 0.35355338
    %v3506 = vmul.f32 %v3502, 0.35355338
    %v3507 = vadd.f32 %v3505, %v588
    %v3508 = vadd.f32 %v3506, %v592
    %v3509 = vsel %vm429, %v3507, -inf
    %3510 = vmax.xlane.f32.xlu0 %v3509
    %v3511 = vpop.xlane.xlu0 %3510
    %v3512 = vsel %vm429, %v3508, -inf
    %3513 = vmax.xlane.f32.xlu0 %v3512
    %v3514 = vpop.xlane.xlu0 %3513
    %v3515 = vsub.f32 %v3507, %v3511
    %v3516 = vsub.f32 %v3508, %v3514
    %v3517 = vmul.f32 %v3515, 1.442695
    %v3518 = vpow.pop %v3517
    %v3519 = vmul.f32 %v3516, 1.442695
    %v3520 = vpow.pop %v3519
    %v3521 = vsel %vm429, %v3518, 0.0
    %3522 = vadd.xlane.f32.xlu0 %v3521
    %v3523 = vpop.xlane.xlu0 %3522
    %v3524 = vsel %vm429, %v3520, 0.0
    %3525 = vadd.xlane.f32.xlu0 %v3524
    %v3526 = vpop.xlane.xlu0 %3525
    %v3527 = vrcp.pop %v3523
    %v3528 = vmul.f32 %v3518, %v3527
    %v3529 = vrcp.pop %v3526
    %v3530 = vmul.f32 %v3520, %v3529
    %3531 = vrot.lane.b32.xlu0 %v2501, 48
    %v3532 = vpop.permute.xlu0 %3531
    %v3535 = vsel %vm429, %v3528, 0
    %3537 = vmatprep.subr.mxu0 0.0
    %3538 = vmatpush1.msra.mxu0 %v3532
    %3539 = vmatprep.subr.mxu0 0.0
    %3540 = vmatpush1.msra.mxu0 0.0
    %3541 = vmatprep.subr.mxu0 0.0
    %3542 = vmatpush1.msra.mxu0 0.0
    %3543 = vmatprep.subr.mxu0 0.0
    %3544 = vmatpush1.msra.mxu0 0.0
    %3545 = vmatprep.subr.mxu0 0.0
    %3546 = vmatpush1.msra.mxu0 0.0
    %3547 = vmatprep.subr.mxu0 0.0
    %3548 = vmatpush1.msra.mxu0 0.0
    %3549 = vmatprep.subr.mxu0 0.0
    %3550 = vmatpush1.msra.mxu0 0.0
    %3551 = vmatprep.subr.mxu0 0.0
    %3552 = vmatpush1.msra.mxu0 0.0
    %3553 = vmatprep.subr.mxu0 0.0
    %3554 = vmatpush1.msra.mxu0 0.0
    %3555 = vmatprep.subr.mxu0 0.0
    %3556 = vmatpush1.msra.mxu0 0.0
    %3557 = vmatprep.subr.mxu0 0.0
    %3558 = vmatpush1.msra.mxu0 0.0
    %3559 = vmatprep.subr.mxu0 0.0
    %3560 = vmatpush1.msra.mxu0 0.0
    %3561 = vmatprep.subr.mxu0 0.0
    %3562 = vmatpush1.msra.mxu0 0.0
    %3563 = vmatprep.subr.mxu0 0.0
    %3564 = vmatpush1.msra.mxu0 0.0
    %3565 = vmatprep.subr.mxu0 0.0
    %3566 = vmatpush1.msra.mxu0 0.0
    %3567 = vmatprep.subr.mxu0 0.0
    %3568 = vmatpush1.msra.mxu0 0.0
    %3569 = vmatprep.subr.mxu0 0.0
    %3570 = vmatpush1.msra.mxu0 0.0
    %3571 = vmatprep.subr.mxu0 0.0
    %3572 = vmatpush1.msra.mxu0 0.0
    %3573 = vmatprep.subr.mxu0 0.0
    %3574 = vmatpush1.msra.mxu0 0.0
    %3575 = vmatprep.subr.mxu0 0.0
    %3576 = vmatpush1.msra.mxu0 0.0
    %3577 = vmatprep.subr.mxu0 0.0
    %3578 = vmatpush1.msra.mxu0 0.0
    %3579 = vmatprep.subr.mxu0 0.0
    %3580 = vmatpush1.msra.mxu0 0.0
    %3581 = vmatprep.subr.mxu0 0.0
    %3582 = vmatpush1.msra.mxu0 0.0
    %3583 = vmatprep.subr.mxu0 0.0
    %3584 = vmatpush1.msra.mxu0 0.0
    %3585 = vmatprep.subr.mxu0 0.0
    %3586 = vmatpush1.msra.mxu0 0.0
    %3587 = vmatprep.subr.mxu0 0.0
    %3588 = vmatpush1.msra.mxu0 0.0
    %3589 = vmatprep.subr.mxu0 0.0
    %3590 = vmatpush1.msra.mxu0 0.0
    %3591 = vmatprep.subr.mxu0 0.0
    %3592 = vmatpush1.msra.mxu0 0.0
    %3593 = vmatprep.subr.mxu0 0.0
    %3594 = vmatpush1.msra.mxu0 0.0
    %3595 = vmatprep.subr.mxu0 0.0
    %3596 = vmatpush1.msra.mxu0 0.0
    %3597 = vmatprep.subr.mxu0 0.0
    %3598 = vmatpush1.msra.mxu0 0.0
    %3599 = vmatprep.subr.mxu0 0.0
    %3600 = vmatpush1.msra.mxu0 0.0
    %3601 = vmatprep.mubr.f32.mxu0 0.0
    %3602 = vmatmul.mubr.f32.gmra.mrb[0].mxu0 %v3535
    %v3603 = vpop.f32.mrb[0].mxu0
    %v3604 = vadd.f32 0.0, %v3603
    %v3605 = vpop.f32.mrb[0].mxu0
    %3606 = vdwg.mxu0
    %3607 = vrot.lane.b32.xlu0 %v2506, 48
    %v3608 = vpop.permute.xlu0 %3607
    %v3611 = vsel %vm429, %v3530, 0
    %3613 = vmatprep.subr.mxu0 0.0
    %3614 = vmatpush1.msra.mxu0 %v3608
    %3615 = vmatprep.subr.mxu0 0.0
    %3616 = vmatpush1.msra.mxu0 0.0
    %3617 = vmatprep.subr.mxu0 0.0
    %3618 = vmatpush1.msra.mxu0 0.0
    %3619 = vmatprep.subr.mxu0 0.0
    %3620 = vmatpush1.msra.mxu0 0.0
    %3621 = vmatprep.subr.mxu0 0.0
    %3622 = vmatpush1.msra.mxu0 0.0
    %3623 = vmatprep.subr.mxu0 0.0
    %3624 = vmatpush1.msra.mxu0 0.0
    %3625 = vmatprep.subr.mxu0 0.0
    %3626 = vmatpush1.msra.mxu0 0.0
    %3627 = vmatprep.subr.mxu0 0.0
    %3628 = vmatpush1.msra.mxu0 0.0
    %3629 = vmatprep.subr.mxu0 0.0
    %3630 = vmatpush1.msra.mxu0 0.0
    %3631 = vmatprep.subr.mxu0 0.0
    %3632 = vmatpush1.msra.mxu0 0.0
    %3633 = vmatprep.subr.mxu0 0.0
    %3634 = vmatpush1.msra.mxu0 0.0
    %3635 = vmatprep.subr.mxu0 0.0
    %3636 = vmatpush1.msra.mxu0 0.0
    %3637 = vmatprep.subr.mxu0 0.0
    %3638 = vmatpush1.msra.mxu0 0.0
    %3639 = vmatprep.subr.mxu0 0.0
    %3640 = vmatpush1.msra.mxu0 0.0
    %3641 = vmatprep.subr.mxu0 0.0
    %3642 = vmatpush1.msra.mxu0 0.0
    %3643 = vmatprep.subr.mxu0 0.0
    %3644 = vmatpush1.msra.mxu0 0.0
    %3645 = vmatprep.subr.mxu0 0.0
    %3646 = vmatpush1.msra.mxu0 0.0
    %3647 = vmatprep.subr.mxu0 0.0
    %3648 = vmatpush1.msra.mxu0 0.0
    %3649 = vmatprep.subr.mxu0 0.0
    %3650 = vmatpush1.msra.mxu0 0.0
    %3651 = vmatprep.subr.mxu0 0.0
    %3652 = vmatpush1.msra.mxu0 0.0
    %3653 = vmatprep.subr.mxu0 0.0
    %3654 = vmatpush1.msra.mxu0 0.0
    %3655 = vmatprep.subr.mxu0 0.0
    %3656 = vmatpush1.msra.mxu0 0.0
    %3657 = vmatprep.subr.mxu0 0.0
    %3658 = vmatpush1.msra.mxu0 0.0
    %3659 = vmatprep.subr.mxu0 0.0
    %3660 = vmatpush1.msra.mxu0 0.0
    %3661 = vmatprep.subr.mxu0 0.0
    %3662 = vmatpush1.msra.mxu0 0.0
    %3663 = vmatprep.subr.mxu0 0.0
    %3664 = vmatpush1.msra.mxu0 0.0
    %3665 = vmatprep.subr.mxu0 0.0
    %3666 = vmatpush1.msra.mxu0 0.0
    %3667 = vmatprep.subr.mxu0 0.0
    %3668 = vmatpush1.msra.mxu0 0.0
    %3669 = vmatprep.subr.mxu0 0.0
    %3670 = vmatpush1.msra.mxu0 0.0
    %3671 = vmatprep.subr.mxu0 0.0
    %3672 = vmatpush1.msra.mxu0 0.0
    %3673 = vmatprep.subr.mxu0 0.0
    %3674 = vmatpush1.msra.mxu0 0.0
    %3675 = vmatprep.subr.mxu0 0.0
    %3676 = vmatpush1.msra.mxu0 0.0
    %3677 = vmatprep.mubr.f32.mxu0 0.0
    %3678 = vmatmul.mubr.f32.gmra.mrb[0].mxu0 %v3611
    %v3679 = vpop.f32.mrb[0].mxu0
    %v3680 = vadd.f32 0.0, %v3679
    %v3681 = vpop.f32.mrb[0].mxu0
    %3682 = vdwg.mxu0
    %v3684 = vsel %vm429, %v3604, 0
    %v3687 = vsel %vm429, %v3680, 0
    %3689 = vmatprep.subr.mxu0 0.0
    %3690 = vmatpush1.msra.mxu0 %v2418
    %3691 = vmatprep.subr.mxu0 0.0
    %3692 = vmatpush1.msra.mxu0 0.0
    %3693 = vmatprep.subr.mxu0 0.0
    %3694 = vmatpush1.msra.mxu0 0.0
    %3695 = vmatprep.subr.mxu0 0.0
    %3696 = vmatpush1.msra.mxu0 0.0
    %3697 = vmatprep.subr.mxu0 0.0
    %3698 = vmatpush1.msra.mxu0 0.0
    %3699 = vmatprep.subr.mxu0 0.0
    %3700 = vmatpush1.msra.mxu0 0.0
    %3701 = vmatprep.subr.mxu0 0.0
    %3702 = vmatpush1.msra.mxu0 0.0
    %3703 = vmatprep.subr.mxu0 0.0
    %3704 = vmatpush1.msra.mxu0 0.0
    %3705 = vmatprep.subr.mxu0 0.0
    %3706 = vmatpush1.msra.mxu0 0.0
    %3707 = vmatprep.subr.mxu0 0.0
    %3708 = vmatpush1.msra.mxu0 0.0
    %3709 = vmatprep.subr.mxu0 0.0
    %3710 = vmatpush1.msra.mxu0 0.0
    %3711 = vmatprep.subr.mxu0 0.0
    %3712 = vmatpush1.msra.mxu0 0.0
    %3713 = vmatprep.subr.mxu0 0.0
    %3714 = vmatpush1.msra.mxu0 0.0
    %3715 = vmatprep.subr.mxu0 0.0
    %3716 = vmatpush1.msra.mxu0 0.0
    %3717 = vmatprep.subr.mxu0 0.0
    %3718 = vmatpush1.msra.mxu0 0.0
    %3719 = vmatprep.subr.mxu0 0.0
    %3720 = vmatpush1.msra.mxu0 0.0
    %3721 = vmatprep.subr.mxu0 0.0
    %3722 = vmatpush1.msra.mxu0 0.0
    %3723 = vmatprep.subr.mxu0 0.0
    %3724 = vmatpush1.msra.mxu0 0.0
    %3725 = vmatprep.subr.mxu0 0.0
    %3726 = vmatpush1.msra.mxu0 0.0
    %3727 = vmatprep.subr.mxu0 0.0
    %3728 = vmatpush1.msra.mxu0 0.0
    %3729 = vmatprep.subr.mxu0 0.0
    %3730 = vmatpush1.msra.mxu0 0.0
    %3731 = vmatprep.subr.mxu0 0.0
    %3732 = vmatpush1.msra.mxu0 0.0
    %3733 = vmatprep.subr.mxu0 0.0
    %3734 = vmatpush1.msra.mxu0 0.0
    %3735 = vmatprep.subr.mxu0 0.0
    %3736 = vmatpush1.msra.mxu0 0.0
    %3737 = vmatprep.subr.mxu0 0.0
    %3738 = vmatpush1.msra.mxu0 0.0
    %3739 = vmatprep.subr.mxu0 0.0
    %3740 = vmatpush1.msra.mxu0 0.0
    %3741 = vmatprep.subr.mxu0 0.0
    %3742 = vmatpush1.msra.mxu0 0.0
    %3743 = vmatprep.subr.mxu0 0.0
    %3744 = vmatpush1.msra.mxu0 0.0
    %3745 = vmatprep.subr.mxu0 0.0
    %3746 = vmatpush1.msra.mxu0 0.0
    %3747 = vmatprep.subr.mxu0 0.0
    %3748 = vmatpush1.msra.mxu0 0.0
    %3749 = vmatprep.subr.mxu0 0.0
    %3750 = vmatpush1.msra.mxu0 0.0
    %3751 = vmatprep.subr.mxu0 0.0
    %3752 = vmatpush1.msra.mxu0 0.0
    %3753 = vmatprep.mubr.f32.mxu0 0.0
    %3754 = vmatmul.mubr.f32.gmra.mrb[0].mxu0 %v3684
    %v3755 = vpop.f32.mrb[0].mxu0
    %v3756 = vadd.f32 0.0, %v3755
    %v3757 = vpop.f32.mrb[0].mxu0
    %3758 = vmatprep.mubr.f32.mxu0 0.0
    %3759 = vmatmul.mubr.f32.gmra.mrb[0].mxu0 %v3687
    %v3760 = vpop.f32.mrb[0].mxu0
    %v3761 = vadd.f32 0.0, %v3760
    %v3762 = vpop.f32.mrb[0].mxu0
    %3763 = vdwg.mxu0
    %v3764 = vadd.f32 %v3347, %v3756
    %v3765 = vadd.f32 %v3348, %v3761
    %3766 = vrot.lane.b32.xlu0 %v2501, 104
    %v3767 = vpop.permute.xlu0 %3766
    %3768 = vrot.lane.b32.xlu0 %v2501, 72
    %v3769 = vpop.permute.xlu0 %3768
    %v3770 = vsel %vm429, %v3767, 0
    %v3772 = vsel %vm429, %v3769, 0
    %3774 = vmatprep.subr.mxu0 0.0
    %3775 = vmatpush1.xpose.msra.mxu0 %v3772
    %3776 = vmatprep.subr.mxu0 0.0
    %3777 = vmatpush1.xpose.msra.mxu0 0.0
    %3778 = vmatprep.subr.mxu0 0.0
    %3779 = vmatpush1.xpose.msra.mxu0 0.0
    %3780 = vmatprep.subr.mxu0 0.0
    %3781 = vmatpush1.xpose.msra.mxu0 0.0
    %3782 = vmatprep.subr.mxu0 0.0
    %3783 = vmatpush1.xpose.msra.mxu0 0.0
    %3784 = vmatprep.subr.mxu0 0.0
    %3785 = vmatpush1.xpose.msra.mxu0 0.0
    %3786 = vmatprep.subr.mxu0 0.0
    %3787 = vmatpush1.xpose.msra.mxu0 0.0
    %3788 = vmatprep.subr.mxu0 0.0
    %3789 = vmatpush1.xpose.msra.mxu0 0.0
    %3790 = vmatprep.subr.mxu0 0.0
    %3791 = vmatpush1.xpose.msra.mxu0 0.0
    %3792 = vmatprep.subr.mxu0 0.0
    %3793 = vmatpush1.xpose.msra.mxu0 0.0
    %3794 = vmatprep.subr.mxu0 0.0
    %3795 = vmatpush1.xpose.msra.mxu0 0.0
    %3796 = vmatprep.subr.mxu0 0.0
    %3797 = vmatpush1.xpose.msra.mxu0 0.0
    %3798 = vmatprep.subr.mxu0 0.0
    %3799 = vmatpush1.xpose.msra.mxu0 0.0
    %3800 = vmatprep.subr.mxu0 0.0
    %3801 = vmatpush1.xpose.msra.mxu0 0.0
    %3802 = vmatprep.subr.mxu0 0.0
    %3803 = vmatpush1.xpose.msra.mxu0 0.0
    %3804 = vmatprep.subr.mxu0 0.0
    %3805 = vmatpush1.xpose.msra.mxu0 0.0
    %3806 = vmatprep.subr.mxu0 0.0
    %3807 = vmatpush1.xpose.msra.mxu0 0.0
    %3808 = vmatprep.subr.mxu0 0.0
    %3809 = vmatpush1.xpose.msra.mxu0 0.0
    %3810 = vmatprep.subr.mxu0 0.0
    %3811 = vmatpush1.xpose.msra.mxu0 0.0
    %3812 = vmatprep.subr.mxu0 0.0
    %3813 = vmatpush1.xpose.msra.mxu0 0.0
    %3814 = vmatprep.subr.mxu0 0.0
    %3815 = vmatpush1.xpose.msra.mxu0 0.0
    %3816 = vmatprep.subr.mxu0 0.0
    %3817 = vmatpush1.xpose.msra.mxu0 0.0
    %3818 = vmatprep.subr.mxu0 0.0
    %3819 = vmatpush1.xpose.msra.mxu0 0.0
    %3820 = vmatprep.subr.mxu0 0.0
    %3821 = vmatpush1.xpose.msra.mxu0 0.0
    %3822 = vmatprep.subr.mxu0 0.0
    %3823 = vmatpush1.xpose.msra.mxu0 0.0
    %3824 = vmatprep.subr.mxu0 0.0
    %3825 = vmatpush1.xpose.msra.mxu0 0.0
    %3826 = vmatprep.subr.mxu0 0.0
    %3827 = vmatpush1.xpose.msra.mxu0 0.0
    %3828 = vmatprep.subr.mxu0 0.0
    %3829 = vmatpush1.xpose.msra.mxu0 0.0
    %3830 = vmatprep.subr.mxu0 0.0
    %3831 = vmatpush1.xpose.msra.mxu0 0.0
    %3832 = vmatprep.subr.mxu0 0.0
    %3833 = vmatpush1.xpose.msra.mxu0 0.0
    %3834 = vmatprep.subr.mxu0 0.0
    %3835 = vmatpush1.xpose.msra.mxu0 0.0
    %3836 = vmatprep.subr.mxu0 0.0
    %3837 = vmatpush1.xpose.msra.mxu0 0.0
    %3838 = vmatprep.mubr.f32.mxu0 0.0
    %3839 = vmatmul.mubr.f32.gmra.mrb[0].mxu0 %v3770
    %v3840 = vpop.f32.mrb[0].mxu0
    %v3841 = vadd.f32 0.0, %v3840
    %v3842 = vpop.f32.mrb[0].mxu0
    %3843 = vdwg.mxu0
    %3844 = vrot.lane.b32.xlu0 %v2506, 104
    %v3845 = vpop.permute.xlu0 %3844
    %3846 = vrot.lane.b32.xlu0 %v2506, 72
    %v3847 = vpop.permute.xlu0 %3846
    %v3848 = vsel %vm429, %v3845, 0
    %v3850 = vsel %vm429, %v3847, 0
    %3852 = vmatprep.subr.mxu0 0.0
    %3853 = vmatpush1.xpose.msra.mxu0 %v3850
    %3854 = vmatprep.subr.mxu0 0.0
    %3855 = vmatpush1.xpose.msra.mxu0 0.0
    %3856 = vmatprep.subr.mxu0 0.0
    %3857 = vmatpush1.xpose.msra.mxu0 0.0
    %3858 = vmatprep.subr.mxu0 0.0
    %3859 = vmatpush1.xpose.msra.mxu0 0.0
    %3860 = vmatprep.subr.mxu0 0.0
    %3861 = vmatpush1.xpose.msra.mxu0 0.0
    %3862 = vmatprep.subr.mxu0 0.0
    %3863 = vmatpush1.xpose.msra.mxu0 0.0
    %3864 = vmatprep.subr.mxu0 0.0
    %3865 = vmatpush1.xpose.msra.mxu0 0.0
    %3866 = vmatprep.subr.mxu0 0.0
    %3867 = vmatpush1.xpose.msra.mxu0 0.0
    %3868 = vmatprep.subr.mxu0 0.0
    %3869 = vmatpush1.xpose.msra.mxu0 0.0
    %3870 = vmatprep.subr.mxu0 0.0
    %3871 = vmatpush1.xpose.msra.mxu0 0.0
    %3872 = vmatprep.subr.mxu0 0.0
    %3873 = vmatpush1.xpose.msra.mxu0 0.0
    %3874 = vmatprep.subr.mxu0 0.0
    %3875 = vmatpush1.xpose.msra.mxu0 0.0
    %3876 = vmatprep.subr.mxu0 0.0
    %3877 = vmatpush1.xpose.msra.mxu0 0.0
    %3878 = vmatprep.subr.mxu0 0.0
    %3879 = vmatpush1.xpose.msra.mxu0 0.0
    %3880 = vmatprep.subr.mxu0 0.0
    %3881 = vmatpush1.xpose.msra.mxu0 0.0
    %3882 = vmatprep.subr.mxu0 0.0
    %3883 = vmatpush1.xpose.msra.mxu0 0.0
    %3884 = vmatprep.subr.mxu0 0.0
    %3885 = vmatpush1.xpose.msra.mxu0 0.0
    %3886 = vmatprep.subr.mxu0 0.0
    %3887 = vmatpush1.xpose.msra.mxu0 0.0
    %3888 = vmatprep.subr.mxu0 0.0
    %3889 = vmatpush1.xpose.msra.mxu0 0.0
    %3890 = vmatprep.subr.mxu0 0.0
    %3891 = vmatpush1.xpose.msra.mxu0 0.0
    %3892 = vmatprep.subr.mxu0 0.0
    %3893 = vmatpush1.xpose.msra.mxu0 0.0
    %3894 = vmatprep.subr.mxu0 0.0
    %3895 = vmatpush1.xpose.msra.mxu0 0.0
    %3896 = vmatprep.subr.mxu0 0.0
    %3897 = vmatpush1.xpose.msra.mxu0 0.0
    %3898 = vmatprep.subr.mxu0 0.0
    %3899 = vmatpush1.xpose.msra.mxu0 0.0
    %3900 = vmatprep.subr.mxu0 0.0
    %3901 = vmatpush1.xpose.msra.mxu0 0.0
    %3902 = vmatprep.subr.mxu0 0.0
    %3903 = vmatpush1.xpose.msra.mxu0 0.0
    %3904 = vmatprep.subr.mxu0 0.0
    %3905 = vmatpush1.xpose.msra.mxu0 0.0
    %3906 = vmatprep.subr.mxu0 0.0
    %3907 = vmatpush1.xpose.msra.mxu0 0.0
    %3908 = vmatprep.subr.mxu0 0.0
    %3909 = vmatpush1.xpose.msra.mxu0 0.0
    %3910 = vmatprep.subr.mxu0 0.0
    %3911 = vmatpush1.xpose.msra.mxu0 0.0
    %3912 = vmatprep.subr.mxu0 0.0
    %3913 = vmatpush1.xpose.msra.mxu0 0.0
    %3914 = vmatprep.subr.mxu0 0.0
    %3915 = vmatpush1.xpose.msra.mxu0 0.0
    %3916 = vmatprep.mubr.f32.mxu0 0.0
    %3917 = vmatmul.mubr.f32.gmra.mrb[0].mxu0 %v3848
    %v3918 = vpop.f32.mrb[0].mxu0
    %v3919 = vadd.f32 0.0, %v3918
    %v3920 = vpop.f32.mrb[0].mxu0
    %3921 = vdwg.mxu0
    %v3922 = vmul.f32 %v3841, 0.35355338
    %v3923 = vmul.f32 %v3919, 0.35355338
    %v3924 = vadd.f32 %v3922, %v588
    %v3925 = vadd.f32 %v3923, %v592
    %v3926 = vsel %vm429, %v3924, -inf
    %3927 = vmax.xlane.f32.xlu0 %v3926
    %v3928 = vpop.xlane.xlu0 %3927
    %v3929 = vsel %vm429, %v3925, -inf
    %3930 = vmax.xlane.f32.xlu0 %v3929
    %v3931 = vpop.xlane.xlu0 %3930
    %v3932 = vsub.f32 %v3924, %v3928
    %v3933 = vsub.f32 %v3925, %v3931
    %v3934 = vmul.f32 %v3932, 1.442695
    %v3935 = vpow.pop %v3934
    %v3936 = vmul.f32 %v3933, 1.442695
    %v3937 = vpow.pop %v3936
    %v3938 = vsel %vm429, %v3935, 0.0
    %3939 = vadd.xlane.f32.xlu0 %v3938
    %v3940 = vpop.xlane.xlu0 %3939
    %v3941 = vsel %vm429, %v3937, 0.0
    %3942 = vadd.xlane.f32.xlu0 %v3941
    %v3943 = vpop.xlane.xlu0 %3942
    %v3944 = vrcp.pop %v3940
    %v3945 = vmul.f32 %v3935, %v3944
    %v3946 = vrcp.pop %v3943
    %v3947 = vmul.f32 %v3937, %v3946
    %3948 = vrot.lane.b32.xlu0 %v2501, 40
    %v3949 = vpop.permute.xlu0 %3948
    %v3952 = vsel %vm429, %v3945, 0
    %3954 = vmatprep.subr.mxu0 0.0
    %3955 = vmatpush1.msra.mxu0 %v3949
    %3956 = vmatprep.subr.mxu0 0.0
    %3957 = vmatpush1.msra.mxu0 0.0
    %3958 = vmatprep.subr.mxu0 0.0
    %3959 = vmatpush1.msra.mxu0 0.0
    %3960 = vmatprep.subr.mxu0 0.0
    %3961 = vmatpush1.msra.mxu0 0.0
    %3962 = vmatprep.subr.mxu0 0.0
    %3963 = vmatpush1.msra.mxu0 0.0
    %3964 = vmatprep.subr.mxu0 0.0
    %3965 = vmatpush1.msra.mxu0 0.0
    %3966 = vmatprep.subr.mxu0 0.0
    %3967 = vmatpush1.msra.mxu0 0.0
    %3968 = vmatprep.subr.mxu0 0.0
    %3969 = vmatpush1.msra.mxu0 0.0
    %3970 = vmatprep.subr.mxu0 0.0
    %3971 = vmatpush1.msra.mxu0 0.0
    %3972 = vmatprep.subr.mxu0 0.0
    %3973 = vmatpush1.msra.mxu0 0.0
    %3974 = vmatprep.subr.mxu0 0.0
    %3975 = vmatpush1.msra.mxu0 0.0
    %3976 = vmatprep.subr.mxu0 0.0
    %3977 = vmatpush1.msra.mxu0 0.0
    %3978 = vmatprep.subr.mxu0 0.0
    %3979 = vmatpush1.msra.mxu0 0.0
    %3980 = vmatprep.subr.mxu0 0.0
    %3981 = vmatpush1.msra.mxu0 0.0
    %3982 = vmatprep.subr.mxu0 0.0
    %3983 = vmatpush1.msra.mxu0 0.0
    %3984 = vmatprep.subr.mxu0 0.0
    %3985 = vmatpush1.msra.mxu0 0.0
    %3986 = vmatprep.subr.mxu0 0.0
    %3987 = vmatpush1.msra.mxu0 0.0
    %3988 = vmatprep.subr.mxu0 0.0
    %3989 = vmatpush1.msra.mxu0 0.0
    %3990 = vmatprep.subr.mxu0 0.0
    %3991 = vmatpush1.msra.mxu0 0.0
    %3992 = vmatprep.subr.mxu0 0.0
    %3993 = vmatpush1.msra.mxu0 0.0
    %3994 = vmatprep.subr.mxu0 0.0
    %3995 = vmatpush1.msra.mxu0 0.0
    %3996 = vmatprep.subr.mxu0 0.0
    %3997 = vmatpush1.msra.mxu0 0.0
    %3998 = vmatprep.subr.mxu0 0.0
    %3999 = vmatpush1.msra.mxu0 0.0
    %4000 = vmatprep.subr.mxu0 0.0
    %4001 = vmatpush1.msra.mxu0 0.0
    %4002 = vmatprep.subr.mxu0 0.0
    %4003 = vmatpush1.msra.mxu0 0.0
    %4004 = vmatprep.subr.mxu0 0.0
    %4005 = vmatpush1.msra.mxu0 0.0
    %4006 = vmatprep.subr.mxu0 0.0
    %4007 = vmatpush1.msra.mxu0 0.0
    %4008 = vmatprep.subr.mxu0 0.0
    %4009 = vmatpush1.msra.mxu0 0.0
    %4010 = vmatprep.subr.mxu0 0.0
    %4011 = vmatpush1.msra.mxu0 0.0
    %4012 = vmatprep.subr.mxu0 0.0
    %4013 = vmatpush1.msra.mxu0 0.0
    %4014 = vmatprep.subr.mxu0 0.0
    %4015 = vmatpush1.msra.mxu0 0.0
    %4016 = vmatprep.subr.mxu0 0.0
    %4017 = vmatpush1.msra.mxu0 0.0
    %4018 = vmatprep.mubr.f32.mxu0 0.0
    %4019 = vmatmul.mubr.f32.gmra.mrb[0].mxu0 %v3952
    %v4020 = vpop.f32.mrb[0].mxu0
    %v4021 = vadd.f32 0.0, %v4020
    %v4022 = vpop.f32.mrb[0].mxu0
    %4023 = vdwg.mxu0
    %4024 = vrot.lane.b32.xlu0 %v2506, 40
    %v4025 = vpop.permute.xlu0 %4024
    %v4028 = vsel %vm429, %v3947, 0
    %4030 = vmatprep.subr.mxu0 0.0
    %4031 = vmatpush1.msra.mxu0 %v4025
    %4032 = vmatprep.subr.mxu0 0.0
    %4033 = vmatpush1.msra.mxu0 0.0
    %4034 = vmatprep.subr.mxu0 0.0
    %4035 = vmatpush1.msra.mxu0 0.0
    %4036 = vmatprep.subr.mxu0 0.0
    %4037 = vmatpush1.msra.mxu0 0.0
    %4038 = vmatprep.subr.mxu0 0.0
    %4039 = vmatpush1.msra.mxu0 0.0
    %4040 = vmatprep.subr.mxu0 0.0
    %4041 = vmatpush1.msra.mxu0 0.0
    %4042 = vmatprep.subr.mxu0 0.0
    %4043 = vmatpush1.msra.mxu0 0.0
    %4044 = vmatprep.subr.mxu0 0.0
    %4045 = vmatpush1.msra.mxu0 0.0
    %4046 = vmatprep.subr.mxu0 0.0
    %4047 = vmatpush1.msra.mxu0 0.0
    %4048 = vmatprep.subr.mxu0 0.0
    %4049 = vmatpush1.msra.mxu0 0.0
    %4050 = vmatprep.subr.mxu0 0.0
    %4051 = vmatpush1.msra.mxu0 0.0
    %4052 = vmatprep.subr.mxu0 0.0
    %4053 = vmatpush1.msra.mxu0 0.0
    %4054 = vmatprep.subr.mxu0 0.0
    %4055 = vmatpush1.msra.mxu0 0.0
    %4056 = vmatprep.subr.mxu0 0.0
    %4057 = vmatpush1.msra.mxu0 0.0
    %4058 = vmatprep.subr.mxu0 0.0
    %4059 = vmatpush1.msra.mxu0 0.0
    %4060 = vmatprep.subr.mxu0 0.0
    %4061 = vmatpush1.msra.mxu0 0.0
    %4062 = vmatprep.subr.mxu0 0.0
    %4063 = vmatpush1.msra.mxu0 0.0
    %4064 = vmatprep.subr.mxu0 0.0
    %4065 = vmatpush1.msra.mxu0 0.0
    %4066 = vmatprep.subr.mxu0 0.0
    %4067 = vmatpush1.msra.mxu0 0.0
    %4068 = vmatprep.subr.mxu0 0.0
    %4069 = vmatpush1.msra.mxu0 0.0
    %4070 = vmatprep.subr.mxu0 0.0
    %4071 = vmatpush1.msra.mxu0 0.0
    %4072 = vmatprep.subr.mxu0 0.0
    %4073 = vmatpush1.msra.mxu0 0.0
    %4074 = vmatprep.subr.mxu0 0.0
    %4075 = vmatpush1.msra.mxu0 0.0
    %4076 = vmatprep.subr.mxu0 0.0
    %4077 = vmatpush1.msra.mxu0 0.0
    %4078 = vmatprep.subr.mxu0 0.0
    %4079 = vmatpush1.msra.mxu0 0.0
    %4080 = vmatprep.subr.mxu0 0.0
    %4081 = vmatpush1.msra.mxu0 0.0
    %4082 = vmatprep.subr.mxu0 0.0
    %4083 = vmatpush1.msra.mxu0 0.0
    %4084 = vmatprep.subr.mxu0 0.0
    %4085 = vmatpush1.msra.mxu0 0.0
    %4086 = vmatprep.subr.mxu0 0.0
    %4087 = vmatpush1.msra.mxu0 0.0
    %4088 = vmatprep.subr.mxu0 0.0
    %4089 = vmatpush1.msra.mxu0 0.0
    %4090 = vmatprep.subr.mxu0 0.0
    %4091 = vmatpush1.msra.mxu0 0.0
    %4092 = vmatprep.subr.mxu0 0.0
    %4093 = vmatpush1.msra.mxu0 0.0
    %4094 = vmatprep.mubr.f32.mxu0 0.0
    %4095 = vmatmul.mubr.f32.gmra.mrb[0].mxu0 %v4028
    %v4096 = vpop.f32.mrb[0].mxu0
    %v4097 = vadd.f32 0.0, %v4096
    %v4098 = vpop.f32.mrb[0].mxu0
    %4099 = vdwg.mxu0
    %v4101 = vsel %vm429, %v4021, 0
    %v4104 = vsel %vm429, %v4097, 0
    %4106 = vmatprep.subr.mxu0 0.0
    %4107 = vmatpush1.msra.mxu0 %v2419
    %4108 = vmatprep.subr.mxu0 0.0
    %4109 = vmatpush1.msra.mxu0 0.0
    %4110 = vmatprep.subr.mxu0 0.0
    %4111 = vmatpush1.msra.mxu0 0.0
    %4112 = vmatprep.subr.mxu0 0.0
    %4113 = vmatpush1.msra.mxu0 0.0
    %4114 = vmatprep.subr.mxu0 0.0
    %4115 = vmatpush1.msra.mxu0 0.0
    %4116 = vmatprep.subr.mxu0 0.0
    %4117 = vmatpush1.msra.mxu0 0.0
    %4118 = vmatprep.subr.mxu0 0.0
    %4119 = vmatpush1.msra.mxu0 0.0
    %4120 = vmatprep.subr.mxu0 0.0
    %4121 = vmatpush1.msra.mxu0 0.0
    %4122 = vmatprep.subr.mxu0 0.0
    %4123 = vmatpush1.msra.mxu0 0.0
    %4124 = vmatprep.subr.mxu0 0.0
    %4125 = vmatpush1.msra.mxu0 0.0
    %4126 = vmatprep.subr.mxu0 0.0
    %4127 = vmatpush1.msra.mxu0 0.0
    %4128 = vmatprep.subr.mxu0 0.0
    %4129 = vmatpush1.msra.mxu0 0.0
    %4130 = vmatprep.subr.mxu0 0.0
    %4131 = vmatpush1.msra.mxu0 0.0
    %4132 = vmatprep.subr.mxu0 0.0
    %4133 = vmatpush1.msra.mxu0 0.0
    %4134 = vmatprep.subr.mxu0 0.0
    %4135 = vmatpush1.msra.mxu0 0.0
    %4136 = vmatprep.subr.mxu0 0.0
    %4137 = vmatpush1.msra.mxu0 0.0
    %4138 = vmatprep.subr.mxu0 0.0
    %4139 = vmatpush1.msra.mxu0 0.0
    %4140 = vmatprep.subr.mxu0 0.0
    %4141 = vmatpush1.msra.mxu0 0.0
    %4142 = vmatprep.subr.mxu0 0.0
    %4143 = vmatpush1.msra.mxu0 0.0
    %4144 = vmatprep.subr.mxu0 0.0
    %4145 = vmatpush1.msra.mxu0 0.0
    %4146 = vmatprep.subr.mxu0 0.0
    %4147 = vmatpush1.msra.mxu0 0.0
    %4148 = vmatprep.subr.mxu0 0.0
    %4149 = vmatpush1.msra.mxu0 0.0
    %4150 = vmatprep.subr.mxu0 0.0
    %4151 = vmatpush1.msra.mxu0 0.0
    %4152 = vmatprep.subr.mxu0 0.0
    %4153 = vmatpush1.msra.mxu0 0.0
    %4154 = vmatprep.subr.mxu0 0.0
    %4155 = vmatpush1.msra.mxu0 0.0
    %4156 = vmatprep.subr.mxu0 0.0
    %4157 = vmatpush1.msra.mxu0 0.0
    %4158 = vmatprep.subr.mxu0 0.0
    %4159 = vmatpush1.msra.mxu0 0.0
    %4160 = vmatprep.subr.mxu0 0.0
    %4161 = vmatpush1.msra.mxu0 0.0
    %4162 = vmatprep.subr.mxu0 0.0
    %4163 = vmatpush1.msra.mxu0 0.0
    %4164 = vmatprep.subr.mxu0 0.0
    %4165 = vmatpush1.msra.mxu0 0.0
    %4166 = vmatprep.subr.mxu0 0.0
    %4167 = vmatpush1.msra.mxu0 0.0
    %4168 = vmatprep.subr.mxu0 0.0
    %4169 = vmatpush1.msra.mxu0 0.0
    %4170 = vmatprep.mubr.f32.mxu0 0.0
    %4171 = vmatmul.mubr.f32.gmra.mrb[0].mxu0 %v4101
    %v4172 = vpop.f32.mrb[0].mxu0
    %v4173 = vadd.f32 0.0, %v4172
    %v4174 = vpop.f32.mrb[0].mxu0
    %4175 = vmatprep.mubr.f32.mxu0 0.0
    %4176 = vmatmul.mubr.f32.gmra.mrb[0].mxu0 %v4104
    %v4177 = vpop.f32.mrb[0].mxu0
    %v4178 = vadd.f32 0.0, %v4177
    %v4179 = vpop.f32.mrb[0].mxu0
    %4180 = vdwg.mxu0
    %v4181 = vadd.f32 %v3764, %v4173
    %v4182 = vadd.f32 %v3765, %v4178
    %v4183 = vadd.f32 %v2408, %v4181
    %v4184 = vadd.f32 %v2409, %v4182
    %s4185 = scalar_lea.vmem [#allocation14], 1
    %v4186 = vld [vmem:[%s4185] sm:$0x1]
    %s4187 = scalar_lea.vmem [#allocation16], 1
    %v4188 = vld [vmem:[%s4187] sm:$0x1]
    %v4189 = vsel %vm283, %v4183, 0.0
    %4190 = vadd.xlane.f32.xlu0 %v4189
    %v4191 = vpop.xlane.xlu0 %4190
    %v4192 = vsel %vm283, %v4184, 0.0
    %4193 = vadd.xlane.f32.xlu0 %v4192
    %v4194 = vpop.xlane.xlu0 %4193
    %v4195 = vmul.f32 %v4191, %v290
    %v4196 = vmul.f32 %v4194, %v290
    %v4197 = vsub.f32 %v4183, %v4195
    %v4198 = vsub.f32 %v4184, %v4196
    %v4199 = vmul.f32 %v4197, %v4197
    %v4200 = vmul.f32 %v4198, %v4198
    %v4201 = vsel %vm283, %v4199, 0.0
    %4202 = vadd.xlane.f32.xlu0 %v4201
    %v4203 = vpop.xlane.xlu0 %4202
    %v4204 = vsel %vm283, %v4200, 0.0
    %4205 = vadd.xlane.f32.xlu0 %v4204
    %v4206 = vpop.xlane.xlu0 %4205
    %v4207 = vmul.f32 %v4203, %v290
    %v4208 = vmul.f32 %v4206, %v290
    %v4209 = vadd.f32 %v4207, 1e-05
    %v4210 = vadd.f32 %v4208, 1e-05
    %v4211 = vrsqrt.pop %v4209
    %v4212 = vrsqrt.pop %v4210
    %v4213 = vmul.f32 %v4197, %v4211
    %v4214 = vmul.f32 %v4198, %v4212
    %v4216 = vlaneseq
    %v4217 = vshrl.u32 %v4216, 7
    %v4218 = vsub.s32 0, %v4217
    %v4219 = vrot.slane %v4186, %v4218
    %v4221 = vmul.f32 %v4213, %v4219
    %v4222 = vmul.f32 %v4214, %v4219
    %v4224 = vlaneseq
    %v4225 = vshrl.u32 %v4224, 7
    %v4226 = vsub.s32 0, %v4225
    %v4227 = vrot.slane %v4188, %v4226
    %v4229 = vadd.f32 %v4221, %v4227
    %v4230 = vadd.f32 %v4222, %v4227
    %s4231 = scalar_lea.vmem %s11, 32
    %v4232 = vld [vmem:[%s4231] sm:$0xff]
    %v4233 = vld [vmem:[%s4231 + $0x8] sm:$0xff]
    %v4234 = vld [vmem:[%s4231 + $0x10] sm:$0xff]
    %v4235 = vld [vmem:[%s4231 + $0x18] sm:$0xff]
    %s4236 = scalar_lea.vmem [#allocation17], 1
    %v4237 = vld [vmem:[%s4236] sm:$0x1]
    %v4239 = vlaneseq
    %v4240 = vshrl.u32 %v4239, 7
    %v4241 = vsub.s32 0, %v4240
    %v4242 = vrot.slane %v4237, %v4241
    %v4245 = vsel %vm283, %v4229, 0
    %v4248 = vsel %vm283, %v4230, 0
    %4250 = vmatprep.subr.mxu0 0.0
    %4251 = vmatpush1.msra.mxu0 %v4232
    %4252 = vmatprep.subr.mxu0 0.0
    %4253 = vmatpush1.msra.mxu0 %v4233
    %4254 = vmatprep.subr.mxu0 0.0
    %4255 = vmatpush1.msra.mxu0 %v4234
    %4256 = vmatprep.subr.mxu0 0.0
    %4257 = vmatpush1.msra.mxu0 %v4235
    %4258 = vmatprep.subr.mxu0 0.0
    %4259 = vmatpush1.msra.mxu0 0.0
    %4260 = vmatprep.subr.mxu0 0.0
    %4261 = vmatpush1.msra.mxu0 0.0
    %4262 = vmatprep.subr.mxu0 0.0
    %4263 = vmatpush1.msra.mxu0 0.0
    %4264 = vmatprep.subr.mxu0 0.0
    %4265 = vmatpush1.msra.mxu0 0.0
    %4266 = vmatprep.subr.mxu0 0.0
    %4267 = vmatpush1.msra.mxu0 0.0
    %4268 = vmatprep.subr.mxu0 0.0
    %4269 = vmatpush1.msra.mxu0 0.0
    %4270 = vmatprep.subr.mxu0 0.0
    %4271 = vmatpush1.msra.mxu0 0.0
    %4272 = vmatprep.subr.mxu0 0.0
    %4273 = vmatpush1.msra.mxu0 0.0
    %4274 = vmatprep.subr.mxu0 0.0
    %4275 = vmatpush1.msra.mxu0 0.0
    %4276 = vmatprep.subr.mxu0 0.0
    %4277 = vmatpush1.msra.mxu0 0.0
    %4278 = vmatprep.subr.mxu0 0.0
    %4279 = vmatpush1.msra.mxu0 0.0
    %4280 = vmatprep.subr.mxu0 0.0
    %4281 = vmatpush1.msra.mxu0 0.0
    %4282 = vmatprep.subr.mxu0 0.0
    %4283 = vmatpush1.msra.mxu0 0.0
    %4284 = vmatprep.subr.mxu0 0.0
    %4285 = vmatpush1.msra.mxu0 0.0
    %4286 = vmatprep.subr.mxu0 0.0
    %4287 = vmatpush1.msra.mxu0 0.0
    %4288 = vmatprep.subr.mxu0 0.0
    %4289 = vmatpush1.msra.mxu0 0.0
    %4290 = vmatprep.subr.mxu0 0.0
    %4291 = vmatpush1.msra.mxu0 0.0
    %4292 = vmatprep.subr.mxu0 0.0
    %4293 = vmatpush1.msra.mxu0 0.0
    %4294 = vmatprep.subr.mxu0 0.0
    %4295 = vmatpush1.msra.mxu0 0.0
    %4296 = vmatprep.subr.mxu0 0.0
    %4297 = vmatpush1.msra.mxu0 0.0
    %4298 = vmatprep.subr.mxu0 0.0
    %4299 = vmatpush1.msra.mxu0 0.0
    %4300 = vmatprep.subr.mxu0 0.0
    %4301 = vmatpush1.msra.mxu0 0.0
    %4302 = vmatprep.subr.mxu0 0.0
    %4303 = vmatpush1.msra.mxu0 0.0
    %4304 = vmatprep.subr.mxu0 0.0
    %4305 = vmatpush1.msra.mxu0 0.0
    %4306 = vmatprep.subr.mxu0 0.0
    %4307 = vmatpush1.msra.mxu0 0.0
    %4308 = vmatprep.subr.mxu0 0.0
    %4309 = vmatpush1.msra.mxu0 0.0
    %4310 = vmatprep.subr.mxu0 0.0
    %4311 = vmatpush1.msra.mxu0 0.0
    %4312 = vmatprep.subr.mxu0 0.0
    %4313 = vmatpush1.msra.mxu0 0.0
    %4314 = vmatprep.mubr.f32.mxu0 0.0
    %4315 = vmatmul.mubr.f32.gmra.mrb[0].mxu0 %v4245
    %v4316 = vpop.f32.mrb[0].mxu0
    %v4317 = vadd.f32 %v4242, %v4316
    %v4318 = vpop.f32.mrb[0].mxu0
    %4319 = vmatprep.mubr.f32.mxu0 0.0
    %4320 = vmatmul.mubr.f32.gmra.mrb[0].mxu0 %v4248
    %v4321 = vpop.f32.mrb[0].mxu0
    %v4322 = vadd.f32 %v4242, %v4321
    %v4323 = vpop.f32.mrb[0].mxu0
    %4324 = vdwg.mxu0
    %v4325 = vmul.f32 %v4317, %v4317
    %v4326 = vmul.f32 %v4322, %v4322
    %v4327 = vmul.f32 %v4317, %v4325
    %v4328 = vmul.f32 %v4322, %v4326
    %v4329 = vmul.f32 %v4327, 0.044715
    %v4330 = vmul.f32 %v4328, 0.044715
    %v4331 = vadd.f32 %v4317, %v4329
    %v4332 = vadd.f32 %v4322, %v4330
    %v4333 = vmul.f32 %v4331, 0.7978846
    %v4334 = vmul.f32 %v4332, 0.7978846
    %v4335 = vtanh.pop %v4333
    %v4336 = vtanh.pop %v4334
    %v4337 = vadd.f32 %v4335, 1.0
    %v4338 = vadd.f32 %v4336, 1.0
    %v4339 = vmul.f32 %v4337, 0.5
    %v4340 = vmul.f32 %v4338, 0.5
    %v4341 = vmul.f32 %v4317, %v4339
    %v4342 = vmul.f32 %v4322, %v4340
    %s4343 = scalar_lea.vmem %s13, 64
    %v4344 = vld [vmem:[%s4343] sm:$0xff]
    %v4345 = vld [vmem:[%s4343 + $0x8] sm:$0xff]
    %v4346 = vld [vmem:[%s4343 + $0x10] sm:$0xff]
    %v4347 = vld [vmem:[%s4343 + $0x18] sm:$0xff]
    %v4348 = vld [vmem:[%s4343 + $0x20] sm:$0xff]
    %v4349 = vld [vmem:[%s4343 + $0x28] sm:$0xff]
    %v4350 = vld [vmem:[%s4343 + $0x30] sm:$0xff]
    %v4351 = vld [vmem:[%s4343 + $0x38] sm:$0xff]
    %s4352 = scalar_lea.vmem [#allocation19], 1
    %v4353 = vld [vmem:[%s4352] sm:$0x1]
    %v4355 = vlaneseq
    %v4356 = vshrl.u32 %v4355, 7
    %v4357 = vsub.s32 0, %v4356
    %v4358 = vrot.slane %v4353, %v4357
    %v4361 = vsel %vm2282, %v4341, 0
    %v4364 = vsel %vm2282, %v4342, 0
    %4366 = vmatprep.subr.mxu0 0.0
    %4367 = vmatpush1.msra.mxu0 %v4344
    %4368 = vmatprep.subr.mxu0 0.0
    %4369 = vmatpush1.msra.mxu0 %v4345
    %4370 = vmatprep.subr.mxu0 0.0
    %4371 = vmatpush1.msra.mxu0 %v4346
    %4372 = vmatprep.subr.mxu0 0.0
    %4373 = vmatpush1.msra.mxu0 %v4347
    %4374 = vmatprep.subr.mxu0 0.0
    %4375 = vmatpush1.msra.mxu0 %v4348
    %4376 = vmatprep.subr.mxu0 0.0
    %4377 = vmatpush1.msra.mxu0 %v4349
    %4378 = vmatprep.subr.mxu0 0.0
    %4379 = vmatpush1.msra.mxu0 %v4350
    %4380 = vmatprep.subr.mxu0 0.0
    %4381 = vmatpush1.msra.mxu0 %v4351
    %4382 = vmatprep.subr.mxu0 0.0
    %4383 = vmatpush1.msra.mxu0 0.0
    %4384 = vmatprep.subr.mxu0 0.0
    %4385 = vmatpush1.msra.mxu0 0.0
    %4386 = vmatprep.subr.mxu0 0.0
    %4387 = vmatpush1.msra.mxu0 0.0
    %4388 = vmatprep.subr.mxu0 0.0
    %4389 = vmatpush1.msra.mxu0 0.0
    %4390 = vmatprep.subr.mxu0 0.0
    %4391 = vmatpush1.msra.mxu0 0.0
    %4392 = vmatprep.subr.mxu0 0.0
    %4393 = vmatpush1.msra.mxu0 0.0
    %4394 = vmatprep.subr.mxu0 0.0
    %4395 = vmatpush1.msra.mxu0 0.0
    %4396 = vmatprep.subr.mxu0 0.0
    %4397 = vmatpush1.msra.mxu0 0.0
    %4398 = vmatprep.subr.mxu0 0.0
    %4399 = vmatpush1.msra.mxu0 0.0
    %4400 = vmatprep.subr.mxu0 0.0
    %4401 = vmatpush1.msra.mxu0 0.0
    %4402 = vmatprep.subr.mxu0 0.0
    %4403 = vmatpush1.msra.mxu0 0.0
    %4404 = vmatprep.subr.mxu0 0.0
    %4405 = vmatpush1.msra.mxu0 0.0
    %4406 = vmatprep.subr.mxu0 0.0
    %4407 = vmatpush1.msra.mxu0 0.0
    %4408 = vmatprep.subr.mxu0 0.0
    %4409 = vmatpush1.msra.mxu0 0.0
    %4410 = vmatprep.subr.mxu0 0.0
    %4411 = vmatpush1.msra.mxu0 0.0
    %4412 = vmatprep.subr.mxu0 0.0
    %4413 = vmatpush1.msra.mxu0 0.0
    %4414 = vmatprep.subr.mxu0 0.0
    %4415 = vmatpush1.msra.mxu0 0.0
    %4416 = vmatprep.subr.mxu0 0.0
    %4417 = vmatpush1.msra.mxu0 0.0
    %4418 = vmatprep.subr.mxu0 0.0
    %4419 = vmatpush1.msra.mxu0 0.0
    %4420 = vmatprep.subr.mxu0 0.0
    %4421 = vmatpush1.msra.mxu0 0.0
    %4422 = vmatprep.subr.mxu0 0.0
    %4423 = vmatpush1.msra.mxu0 0.0
    %4424 = vmatprep.subr.mxu0 0.0
    %4425 = vmatpush1.msra.mxu0 0.0
    %4426 = vmatprep.subr.mxu0 0.0
    %4427 = vmatpush1.msra.mxu0 0.0
    %4428 = vmatprep.subr.mxu0 0.0
    %4429 = vmatpush1.msra.mxu0 0.0
    %4430 = vmatprep.mubr.f32.mxu0 0.0
    %4431 = vmatmul.mubr.f32.gmra.mrb[0].mxu0 %v4361
    %v4432 = vpop.f32.mrb[0].mxu0
    %v4433 = vadd.f32 %v4358, %v4432
    %v4434 = vpop.f32.mrb[0].mxu0
    %4435 = vmatprep.mubr.f32.mxu0 0.0
    %4436 = vmatmul.mubr.f32.gmra.mrb[0].mxu0 %v4364
    %v4437 = vpop.f32.mrb[0].mxu0
    %v4438 = vadd.f32 %v4358, %v4437
    %v4439 = vpop.f32.mrb[0].mxu0
    %4440 = vdwg.mxu0
    %v4441 = vadd.f32 %v4229, %v4433
    %v4442 = vadd.f32 %v4230, %v4438
    %s4443 = scalar_lea.vmem [#allocation20], 1
    %v4444 = vld [vmem:[%s4443] sm:$0x1]
    %s4445 = scalar_lea.vmem [#allocation22], 1
    %v4446 = vld [vmem:[%s4445] sm:$0x1]
    %v4447 = vsel %vm283, %v4441, 0.0
    %4448 = vadd.xlane.f32.xlu0 %v4447
    %v4449 = vpop.xlane.xlu0 %4448
    %v4450 = vsel %vm283, %v4442, 0.0
    %4451 = vadd.xlane.f32.xlu0 %v4450
    %v4452 = vpop.xlane.xlu0 %4451
    %v4453 = vmul.f32 %v4449, %v290
    %v4454 = vmul.f32 %v4452, %v290
    %v4455 = vsub.f32 %v4441, %v4453
    %v4456 = vsub.f32 %v4442, %v4454
    %v4457 = vmul.f32 %v4455, %v4455
    %v4458 = vmul.f32 %v4456, %v4456
    %v4459 = vsel %vm283, %v4457, 0.0
    %4460 = vadd.xlane.f32.xlu0 %v4459
    %v4461 = vpop.xlane.xlu0 %4460
    %v4462 = vsel %vm283, %v4458, 0.0
    %4463 = vadd.xlane.f32.xlu0 %v4462
    %v4464 = vpop.xlane.xlu0 %4463
    %v4465 = vmul.f32 %v4461, %v290
    %v4466 = vmul.f32 %v4464, %v290
    %v4467 = vadd.f32 %v4465, 1e-05
    %v4468 = vadd.f32 %v4466, 1e-05
    %v4469 = vrsqrt.pop %v4467
    %v4470 = vrsqrt.pop %v4468
    %v4471 = vmul.f32 %v4455, %v4469
    %v4472 = vmul.f32 %v4456, %v4470
    %v4474 = vlaneseq
    %v4475 = vshrl.u32 %v4474, 7
    %v4476 = vsub.s32 0, %v4475
    %v4477 = vrot.slane %v4444, %v4476
    %v4479 = vmul.f32 %v4471, %v4477
    %v4480 = vmul.f32 %v4472, %v4477
    %v4482 = vlaneseq
    %v4483 = vshrl.u32 %v4482, 7
    %v4484 = vsub.s32 0, %v4483
    %v4485 = vrot.slane %v4446, %v4484
    %v4487 = vadd.f32 %v4479, %v4485
    %v4488 = vadd.f32 %v4480, %v4485
    %v4489 = vld [vmem:[%s17] sm:$0xff]
    %v4490 = vld [vmem:[%s17 + $0x8] sm:$0xff]
    %v4491 = vld [vmem:[%s17 + $0x10] sm:$0xff]
    %v4492 = vld [vmem:[%s17 + $0x18] sm:$0xff]
    %v4493 = vld [vmem:[%s19] sm:$0x1]
    %v4495 = vlaneseq
    %v4496 = vshrl.u32 %v4495, 7
    %v4497 = vsub.s32 0, %v4496
    %v4498 = vrot.slane %v4493, %v4497
    %v4501 = vsel %vm283, %v4487, 0
    %v4504 = vsel %vm283, %v4488, 0
    %4506 = vmatprep.subr.mxu0 0.0
    %4507 = vmatpush1.msra.mxu0 %v4489
    %4508 = vmatprep.subr.mxu0 0.0
    %4509 = vmatpush1.msra.mxu0 %v4490
    %4510 = vmatprep.subr.mxu0 0.0
    %4511 = vmatpush1.msra.mxu0 %v4491
    %4512 = vmatprep.subr.mxu0 0.0
    %4513 = vmatpush1.msra.mxu0 %v4492
    %4514 = vmatprep.subr.mxu0 0.0
    %4515 = vmatpush1.msra.mxu0 0.0
    %4516 = vmatprep.subr.mxu0 0.0
    %4517 = vmatpush1.msra.mxu0 0.0
    %4518 = vmatprep.subr.mxu0 0.0
    %4519 = vmatpush1.msra.mxu0 0.0
    %4520 = vmatprep.subr.mxu0 0.0
    %4521 = vmatpush1.msra.mxu0 0.0
    %4522 = vmatprep.subr.mxu0 0.0
    %4523 = vmatpush1.msra.mxu0 0.0
    %4524 = vmatprep.subr.mxu0 0.0
    %4525 = vmatpush1.msra.mxu0 0.0
    %4526 = vmatprep.subr.mxu0 0.0
    %4527 = vmatpush1.msra.mxu0 0.0
    %4528 = vmatprep.subr.mxu0 0.0
    %4529 = vmatpush1.msra.mxu0 0.0
    %4530 = vmatprep.subr.mxu0 0.0
    %4531 = vmatpush1.msra.mxu0 0.0
    %4532 = vmatprep.subr.mxu0 0.0
    %4533 = vmatpush1.msra.mxu0 0.0
    %4534 = vmatprep.subr.mxu0 0.0
    %4535 = vmatpush1.msra.mxu0 0.0
    %4536 = vmatprep.subr.mxu0 0.0
    %4537 = vmatpush1.msra.mxu0 0.0
    %4538 = vmatprep.subr.mxu0 0.0
    %4539 = vmatpush1.msra.mxu0 0.0
    %4540 = vmatprep.subr.mxu0 0.0
    %4541 = vmatpush1.msra.mxu0 0.0
    %4542 = vmatprep.subr.mxu0 0.0
    %4543 = vmatpush1.msra.mxu0 0.0
    %4544 = vmatprep.subr.mxu0 0.0
    %4545 = vmatpush1.msra.mxu0 0.0
    %4546 = vmatprep.subr.mxu0 0.0
    %4547 = vmatpush1.msra.mxu0 0.0
    %4548 = vmatprep.subr.mxu0 0.0
    %4549 = vmatpush1.msra.mxu0 0.0
    %4550 = vmatprep.subr.mxu0 0.0
    %4551 = vmatpush1.msra.mxu0 0.0
    %4552 = vmatprep.subr.mxu0 0.0
    %4553 = vmatpush1.msra.mxu0 0.0
    %4554 = vmatprep.subr.mxu0 0.0
    %4555 = vmatpush1.msra.mxu0 0.0
    %4556 = vmatprep.subr.mxu0 0.0
    %4557 = vmatpush1.msra.mxu0 0.0
    %4558 = vmatprep.subr.mxu0 0.0
    %4559 = vmatpush1.msra.mxu0 0.0
    %4560 = vmatprep.subr.mxu0 0.0
    %4561 = vmatpush1.msra.mxu0 0.0
    %4562 = vmatprep.subr.mxu0 0.0
    %4563 = vmatpush1.msra.mxu0 0.0
    %4564 = vmatprep.subr.mxu0 0.0
    %4565 = vmatpush1.msra.mxu0 0.0
    %4566 = vmatprep.subr.mxu0 0.0
    %4567 = vmatpush1.msra.mxu0 0.0
    %4568 = vmatprep.subr.mxu0 0.0
    %4569 = vmatpush1.msra.mxu0 0.0
    %4570 = vmatprep.mubr.f32.mxu0 0.0
    %4571 = vmatmul.mubr.f32.gmra.mrb[0].mxu0 %v4501
    %v4572 = vpop.f32.mrb[0].mxu0
    %v4573 = vadd.f32 %v4498, %v4572
    %v4574 = vpop.f32.mrb[0].mxu0
    %4575 = vmatprep.mubr.f32.mxu0 0.0
    %4576 = vmatmul.mubr.f32.gmra.mrb[0].mxu0 %v4504
    %v4577 = vpop.f32.mrb[0].mxu0
    %v4578 = vadd.f32 %v4498, %v4577
    %v4579 = vpop.f32.mrb[0].mxu0
    %4580 = vdwg.mxu0
    %v4581 = vld [vmem:[#allocation23] sm:$0xff]
    %v4582 = vld [vmem:[#allocation23 + $0x8] sm:$0xff]
    %v4583 = vld [vmem:[#allocation23 + $0x10] sm:$0xff]
    %v4584 = vld [vmem:[#allocation23 + $0x18] sm:$0xff]
    %v4585 = vld [vmem:[%s22] sm:$0x1]
    %v4587 = vlaneseq
    %v4588 = vshrl.u32 %v4587, 7
    %v4589 = vsub.s32 0, %v4588
    %v4590 = vrot.slane %v4585, %v4589
    %4592 = vmatprep.subr.mxu0 0.0
    %4593 = vmatpush1.msra.mxu0 %v4581
    %4594 = vmatprep.subr.mxu0 0.0
    %4595 = vmatpush1.msra.mxu0 %v4582
    %4596 = vmatprep.subr.mxu0 0.0
    %4597 = vmatpush1.msra.mxu0 %v4583
    %4598 = vmatprep.subr.mxu0 0.0
    %4599 = vmatpush1.msra.mxu0 %v4584
    %4600 = vmatprep.subr.mxu0 0.0
    %4601 = vmatpush1.msra.mxu0 0.0
    %4602 = vmatprep.subr.mxu0 0.0
    %4603 = vmatpush1.msra.mxu0 0.0
    %4604 = vmatprep.subr.mxu0 0.0
    %4605 = vmatpush1.msra.mxu0 0.0
    %4606 = vmatprep.subr.mxu0 0.0
    %4607 = vmatpush1.msra.mxu0 0.0
    %4608 = vmatprep.subr.mxu0 0.0
    %4609 = vmatpush1.msra.mxu0 0.0
    %4610 = vmatprep.subr.mxu0 0.0
    %4611 = vmatpush1.msra.mxu0 0.0
    %4612 = vmatprep.subr.mxu0 0.0
    %4613 = vmatpush1.msra.mxu0 0.0
    %4614 = vmatprep.subr.mxu0 0.0
    %4615 = vmatpush1.msra.mxu0 0.0
    %4616 = vmatprep.subr.mxu0 0.0
    %4617 = vmatpush1.msra.mxu0 0.0
    %4618 = vmatprep.subr.mxu0 0.0
    %4619 = vmatpush1.msra.mxu0 0.0
    %4620 = vmatprep.subr.mxu0 0.0
    %4621 = vmatpush1.msra.mxu0 0.0
    %4622 = vmatprep.subr.mxu0 0.0
    %4623 = vmatpush1.msra.mxu0 0.0
    %4624 = vmatprep.subr.mxu0 0.0
    %4625 = vmatpush1.msra.mxu0 0.0
    %4626 = vmatprep.subr.mxu0 0.0
    %4627 = vmatpush1.msra.mxu0 0.0
    %4628 = vmatprep.subr.mxu0 0.0
    %4629 = vmatpush1.msra.mxu0 0.0
    %4630 = vmatprep.subr.mxu0 0.0
    %4631 = vmatpush1.msra.mxu0 0.0
    %4632 = vmatprep.subr.mxu0 0.0
    %4633 = vmatpush1.msra.mxu0 0.0
    %4634 = vmatprep.subr.mxu0 0.0
    %4635 = vmatpush1.msra.mxu0 0.0
    %4636 = vmatprep.subr.mxu0 0.0
    %4637 = vmatpush1.msra.mxu0 0.0
    %4638 = vmatprep.subr.mxu0 0.0
    %4639 = vmatpush1.msra.mxu0 0.0
    %4640 = vmatprep.subr.mxu0 0.0
    %4641 = vmatpush1.msra.mxu0 0.0
    %4642 = vmatprep.subr.mxu0 0.0
    %4643 = vmatpush1.msra.mxu0 0.0
    %4644 = vmatprep.subr.mxu0 0.0
    %4645 = vmatpush1.msra.mxu0 0.0
    %4646 = vmatprep.subr.mxu0 0.0
    %4647 = vmatpush1.msra.mxu0 0.0
    %4648 = vmatprep.subr.mxu0 0.0
    %4649 = vmatpush1.msra.mxu0 0.0
    %4650 = vmatprep.subr.mxu0 0.0
    %4651 = vmatpush1.msra.mxu0 0.0
    %4652 = vmatprep.subr.mxu0 0.0
    %4653 = vmatpush1.msra.mxu0 0.0
    %4654 = vmatprep.subr.mxu0 0.0
    %4655 = vmatpush1.msra.mxu0 0.0
    %4656 = vmatprep.mubr.f32.mxu0 0.0
    %4657 = vmatmul.mubr.f32.gmra.mrb[0].mxu0 %v4501
    %v4658 = vpop.f32.mrb[0].mxu0
    %v4659 = vadd.f32 %v4590, %v4658
    %v4660 = vpop.f32.mrb[0].mxu0
    %4661 = vmatprep.mubr.f32.mxu0 0.0
    %4662 = vmatmul.mubr.f32.gmra.mrb[0].mxu0 %v4504
    %v4663 = vpop.f32.mrb[0].mxu0
    %v4664 = vadd.f32 %v4590, %v4663
    %v4665 = vpop.f32.mrb[0].mxu0
    %4666 = vdwg.mxu0
    %v4667 = vld [vmem:[%s18] sm:$0xff]
    %v4668 = vld [vmem:[%s18 + $0x8] sm:$0xff]
    %v4669 = vld [vmem:[%s18 + $0x10] sm:$0xff]
    %v4670 = vld [vmem:[%s18 + $0x18] sm:$0xff]
    %v4671 = vld [vmem:[#allocation25] sm:$0xff]
    %v4672 = vld [vmem:[#allocation25 + $0x8] sm:$0xff]
    %v4673 = vld [vmem:[#allocation25 + $0x10] sm:$0xff]
    %v4674 = vld [vmem:[#allocation25 + $0x18] sm:$0xff]
    %v4676 = vsel %vm283, 0.0, 0
    %4678 = vmatprep.subr.mxu0 0.0
    %4679 = vmatpush1.msra.mxu0 %v4667
    %4680 = vmatprep.subr.mxu0 0.0
    %4681 = vmatpush1.msra.mxu0 %v4668
    %4682 = vmatprep.subr.mxu0 0.0
    %4683 = vmatpush1.msra.mxu0 %v4669
    %4684 = vmatprep.subr.mxu0 0.0
    %4685 = vmatpush1.msra.mxu0 %v4670
    %4686 = vmatprep.subr.mxu0 0.0
    %4687 = vmatpush1.msra.mxu0 0.0
    %4688 = vmatprep.subr.mxu0 0.0
    %4689 = vmatpush1.msra.mxu0 0.0
    %4690 = vmatprep.subr.mxu0 0.0
    %4691 = vmatpush1.msra.mxu0 0.0
    %4692 = vmatprep.subr.mxu0 0.0
    %4693 = vmatpush1.msra.mxu0 0.0
    %4694 = vmatprep.subr.mxu0 0.0
    %4695 = vmatpush1.msra.mxu0 0.0
    %4696 = vmatprep.subr.mxu0 0.0
    %4697 = vmatpush1.msra.mxu0 0.0
    %4698 = vmatprep.subr.mxu0 0.0
    %4699 = vmatpush1.msra.mxu0 0.0
    %4700 = vmatprep.subr.mxu0 0.0
    %4701 = vmatpush1.msra.mxu0 0.0
    %4702 = vmatprep.subr.mxu0 0.0
    %4703 = vmatpush1.msra.mxu0 0.0
    %4704 = vmatprep.subr.mxu0 0.0
    %4705 = vmatpush1.msra.mxu0 0.0
    %4706 = vmatprep.subr.mxu0 0.0
    %4707 = vmatpush1.msra.mxu0 0.0
    %4708 = vmatprep.subr.mxu0 0.0
    %4709 = vmatpush1.msra.mxu0 0.0
    %4710 = vmatprep.subr.mxu0 0.0
    %4711 = vmatpush1.msra.mxu0 0.0
    %4712 = vmatprep.subr.mxu0 0.0
    %4713 = vmatpush1.msra.mxu0 0.0
    %4714 = vmatprep.subr.mxu0 0.0
    %4715 = vmatpush1.msra.mxu0 0.0
    %4716 = vmatprep.subr.mxu0 0.0
    %4717 = vmatpush1.msra.mxu0 0.0
    %4718 = vmatprep.subr.mxu0 0.0
    %4719 = vmatpush1.msra.mxu0 0.0
    %4720 = vmatprep.subr.mxu0 0.0
    %4721 = vmatpush1.msra.mxu0 0.0
    %4722 = vmatprep.subr.mxu0 0.0
    %4723 = vmatpush1.msra.mxu0 0.0
    %4724 = vmatprep.subr.mxu0 0.0
    %4725 = vmatpush1.msra.mxu0 0.0
    %4726 = vmatprep.subr.mxu0 0.0
    %4727 = vmatpush1.msra.mxu0 0.0
    %4728 = vmatprep.subr.mxu0 0.0
    %4729 = vmatpush1.msra.mxu0 0.0
    %4730 = vmatprep.subr.mxu0 0.0
    %4731 = vmatpush1.msra.mxu0 0.0
    %4732 = vmatprep.subr.mxu0 0.0
    %4733 = vmatpush1.msra.mxu0 0.0
    %4734 = vmatprep.subr.mxu0 0.0
    %4735 = vmatpush1.msra.mxu0 0.0
    %4736 = vmatprep.subr.mxu0 0.0
    %4737 = vmatpush1.msra.mxu0 0.0
    %4738 = vmatprep.subr.mxu0 0.0
    %4739 = vmatpush1.msra.mxu0 0.0
    %4740 = vmatprep.subr.mxu0 0.0
    %4741 = vmatpush1.msra.mxu0 0.0
    %4742 = vmatprep.mubr.f32.mxu0 0.0
    %4743 = vmatmul.mubr.f32.gmra.mrb[0].mxu0 %v4676
    %v4744 = vpop.f32.mrb[0].mxu0
    %v4745 = vadd.f32 0.0, %v4744
    %v4746 = vpop.f32.mrb[0].mxu0
    %4747 = vdwg.mxu0
    %v4749 = vrot.slane %v4745, 1
    %v4752 = vadd.f32 %v4573, %v4745
    %v4753 = vadd.f32 %v4578, %v4749
    %4754 = vmatprep.subr.mxu0 0.0
    %4755 = vmatpush1.msra.mxu0 %v4671
    %4756 = vmatprep.subr.mxu0 0.0
    %4757 = vmatpush1.msra.mxu0 %v4672
    %4758 = vmatprep.subr.mxu0 0.0
    %4759 = vmatpush1.msra.mxu0 %v4673
    %4760 = vmatprep.subr.mxu0 0.0
    %4761 = vmatpush1.msra.mxu0 %v4674
    %4762 = vmatprep.subr.mxu0 0.0
    %4763 = vmatpush1.msra.mxu0 0.0
    %4764 = vmatprep.subr.mxu0 0.0
    %4765 = vmatpush1.msra.mxu0 0.0
    %4766 = vmatprep.subr.mxu0 0.0
    %4767 = vmatpush1.msra.mxu0 0.0
    %4768 = vmatprep.subr.mxu0 0.0
    %4769 = vmatpush1.msra.mxu0 0.0
    %4770 = vmatprep.subr.mxu0 0.0
    %4771 = vmatpush1.msra.mxu0 0.0
    %4772 = vmatprep.subr.mxu0 0.0
    %4773 = vmatpush1.msra.mxu0 0.0
    %4774 = vmatprep.subr.mxu0 0.0
    %4775 = vmatpush1.msra.mxu0 0.0
    %4776 = vmatprep.subr.mxu0 0.0
    %4777 = vmatpush1.msra.mxu0 0.0
    %4778 = vmatprep.subr.mxu0 0.0
    %4779 = vmatpush1.msra.mxu0 0.0
    %4780 = vmatprep.subr.mxu0 0.0
    %4781 = vmatpush1.msra.mxu0 0.0
    %4782 = vmatprep.subr.mxu0 0.0
    %4783 = vmatpush1.msra.mxu0 0.0
    %4784 = vmatprep.subr.mxu0 0.0
    %4785 = vmatpush1.msra.mxu0 0.0
    %4786 = vmatprep.subr.mxu0 0.0
    %4787 = vmatpush1.msra.mxu0 0.0
    %4788 = vmatprep.subr.mxu0 0.0
    %4789 = vmatpush1.msra.mxu0 0.0
    %4790 = vmatprep.subr.mxu0 0.0
    %4791 = vmatpush1.msra.mxu0 0.0
    %4792 = vmatprep.subr.mxu0 0.0
    %4793 = vmatpush1.msra.mxu0 0.0
    %4794 = vmatprep.subr.mxu0 0.0
    %4795 = vmatpush1.msra.mxu0 0.0
    %4796 = vmatprep.subr.mxu0 0.0
    %4797 = vmatpush1.msra.mxu0 0.0
    %4798 = vmatprep.subr.mxu0 0.0
    %4799 = vmatpush1.msra.mxu0 0.0
    %4800 = vmatprep.subr.mxu0 0.0
    %4801 = vmatpush1.msra.mxu0 0.0
    %4802 = vmatprep.subr.mxu0 0.0
    %4803 = vmatpush1.msra.mxu0 0.0
    %4804 = vmatprep.subr.mxu0 0.0
    %4805 = vmatpush1.msra.mxu0 0.0
    %4806 = vmatprep.subr.mxu0 0.0
    %4807 = vmatpush1.msra.mxu0 0.0
    %4808 = vmatprep.subr.mxu0 0.0
    %4809 = vmatpush1.msra.mxu0 0.0
    %4810 = vmatprep.subr.mxu0 0.0
    %4811 = vmatpush1.msra.mxu0 0.0
    %4812 = vmatprep.subr.mxu0 0.0
    %4813 = vmatpush1.msra.mxu0 0.0
    %4814 = vmatprep.subr.mxu0 0.0
    %4815 = vmatpush1.msra.mxu0 0.0
    %4816 = vmatprep.subr.mxu0 0.0
    %4817 = vmatpush1.msra.mxu0 0.0
    %4818 = vmatprep.mubr.f32.mxu0 0.0
    %4819 = vmatmul.mubr.f32.gmra.mrb[0].mxu0 %v4676
    %v4820 = vpop.f32.mrb[0].mxu0
    %v4821 = vadd.f32 0.0, %v4820
    %v4822 = vpop.f32.mrb[0].mxu0
    %4823 = vdwg.mxu0
    %v4825 = vrot.slane %v4821, 1
    %v4826 = vrot.slane %v4821, 2
    %v4829 = vadd.f32 %v4659, %v4825
    %v4830 = vadd.f32 %v4664, %v4826
    %v4831 = vxor.u32 %v4752, 2147483648
    %v4832 = vxor.u32 %v4753, 2147483648
    %v4833 = vmul.f32 %v4831, 1.442695
    %v4834 = vpow.pop %v4833
    %v4835 = vmul.f32 %v4832, 1.442695
    %v4836 = vpow.pop %v4835
    %v4837 = vadd.f32 %v4834, 1.0
    %v4838 = vadd.f32 %v4836, 1.0
    %v4839 = vrcp.pop %v4837
    %v4840 = vmul.f32 1.0, %v4839
    %v4841 = vrcp.pop %v4838
    %v4842 = vmul.f32 1.0, %v4841
    %v4843 = vtanh.pop %v4752
    %v4844 = vtanh.pop %v4753
    %v4845 = vmul.f32 %v4840, 0.0
    %v4846 = vmul.f32 %v4842, 0.0
    %4849 = vrot.lane.b32.xlu0 %v4843, 64
    %v4850 = vpop.permute.xlu0 %4849
    %4851 = vrot.lane.b32.xlu0 %v4844, 64
    %v4852 = vpop.permute.xlu0 %4851
    %v4855 = vmul.f32 %v4840, %v4850
    %v4856 = vmul.f32 %v4842, %v4852
    %4859 = vrot.lane.b32.xlu0 %v4855, 32
    %v4860 = vpop.permute.xlu0 %4859
    %4861 = vrot.lane.b32.xlu0 %v4856, 32
    %v4862 = vpop.permute.xlu0 %4861
    %v4865 = vadd.f32 %v4845, %v4860
    %v4866 = vadd.f32 %v4846, %v4862
    %v4867 = vtanh.pop %v4865
    %v4868 = vtanh.pop %v4866
    %4871 = vrot.lane.b32.xlu0 %v4867, 64
    %v4872 = vpop.permute.xlu0 %4871
    %4873 = vrot.lane.b32.xlu0 %v4868, 64
    %v4874 = vpop.permute.xlu0 %4873
    %v4877 = vmul.f32 %v4840, %v4872
    %v4878 = vmul.f32 %v4842, %v4874
    %v4879 = vxor.u32 %v4829, 2147483648
    %v4880 = vxor.u32 %v4830, 2147483648
    %v4881 = vmul.f32 %v4879, 1.442695
    %v4882 = vpow.pop %v4881
    %v4883 = vmul.f32 %v4880, 1.442695
    %v4884 = vpow.pop %v4883
    %v4885 = vadd.f32 %v4882, 1.0
    %v4886 = vadd.f32 %v4884, 1.0
    %v4887 = vrcp.pop %v4885
    %v4888 = vmul.f32 1.0, %v4887
    %v4889 = vrcp.pop %v4886
    %v4890 = vmul.f32 1.0, %v4889
    %v4891 = vtanh.pop %v4829
    %v4892 = vtanh.pop %v4830
    %v4893 = vmul.f32 %v4888, 0.0
    %v4894 = vmul.f32 %v4890, 0.0
    %4897 = vrot.lane.b32.xlu0 %v4891, 64
    %v4898 = vpop.permute.xlu0 %4897
    %4899 = vrot.lane.b32.xlu0 %v4892, 64
    %v4900 = vpop.permute.xlu0 %4899
    %v4903 = vmul.f32 %v4888, %v4898
    %v4904 = vmul.f32 %v4890, %v4900
    %4907 = vrot.lane.b32.xlu0 %v4903, 32
    %v4908 = vpop.permute.xlu0 %4907
    %4909 = vrot.lane.b32.xlu0 %v4904, 32
    %v4910 = vpop.permute.xlu0 %4909
    %v4913 = vadd.f32 %v4893, %v4908
    %v4914 = vadd.f32 %v4894, %v4910
    %v4915 = vtanh.pop %v4913
    %v4916 = vtanh.pop %v4914
    %4919 = vrot.lane.b32.xlu0 %v4915, 64
    %v4920 = vpop.permute.xlu0 %4919
    %4921 = vrot.lane.b32.xlu0 %v4916, 64
    %v4922 = vpop.permute.xlu0 %4921
    %v4925 = vmul.f32 %v4888, %v4920
    %v4926 = vmul.f32 %v4890, %v4922
    %v4929 = vrot.slane %v4878, 7
    %vm4930 = vcmask 1041409
    %v4931 = vsel %vm4930, %v4929, %v4877
    %4932 = vrot.lane.b32.xlu0 %v4931, 32
    %v4933 = vpop.permute.xlu0 %4932
    %v4934 = vsel %vm283, %v4933, 0
    %4936 = vmatprep.subr.mxu0 0.0
    %4937 = vmatpush1.msra.mxu0 %v4667
    %4938 = vmatprep.subr.mxu0 0.0
    %4939 = vmatpush1.msra.mxu0 %v4668
    %4940 = vmatprep.subr.mxu0 0.0
    %4941 = vmatpush1.msra.mxu0 %v4669
    %4942 = vmatprep.subr.mxu0 0.0
    %4943 = vmatpush1.msra.mxu0 %v4670
    %4944 = vmatprep.subr.mxu0 0.0
    %4945 = vmatpush1.msra.mxu0 0.0
    %4946 = vmatprep.subr.mxu0 0.0
    %4947 = vmatpush1.msra.mxu0 0.0
    %4948 = vmatprep.subr.mxu0 0.0
    %4949 = vmatpush1.msra.mxu0 0.0
    %4950 = vmatprep.subr.mxu0 0.0
    %4951 = vmatpush1.msra.mxu0 0.0
    %4952 = vmatprep.subr.mxu0 0.0
    %4953 = vmatpush1.msra.mxu0 0.0
    %4954 = vmatprep.subr.mxu0 0.0
    %4955 = vmatpush1.msra.mxu0 0.0
    %4956 = vmatprep.subr.mxu0 0.0
    %4957 = vmatpush1.msra.mxu0 0.0
    %4958 = vmatprep.subr.mxu0 0.0
    %4959 = vmatpush1.msra.mxu0 0.0
    %4960 = vmatprep.subr.mxu0 0.0
    %4961 = vmatpush1.msra.mxu0 0.0
    %4962 = vmatprep.subr.mxu0 0.0
    %4963 = vmatpush1.msra.mxu0 0.0
    %4964 = vmatprep.subr.mxu0 0.0
    %4965 = vmatpush1.msra.mxu0 0.0
    %4966 = vmatprep.subr.mxu0 0.0
    %4967 = vmatpush1.msra.mxu0 0.0
    %4968 = vmatprep.subr.mxu0 0.0
    %4969 = vmatpush1.msra.mxu0 0.0
    %4970 = vmatprep.subr.mxu0 0.0
    %4971 = vmatpush1.msra.mxu0 0.0
    %4972 = vmatprep.subr.mxu0 0.0
    %4973 = vmatpush1.msra.mxu0 0.0
    %4974 = vmatprep.subr.mxu0 0.0
    %4975 = vmatpush1.msra.mxu0 0.0
    %4976 = vmatprep.subr.mxu0 0.0
    %4977 = vmatpush1.msra.mxu0 0.0
    %4978 = vmatprep.subr.mxu0 0.0
    %4979 = vmatpush1.msra.mxu0 0.0
    %4980 = vmatprep.subr.mxu0 0.0
    %4981 = vmatpush1.msra.mxu0 0.0
    %4982 = vmatprep.subr.mxu0 0.0
    %4983 = vmatpush1.msra.mxu0 0.0
    %4984 = vmatprep.subr.mxu0 0.0
    %4985 = vmatpush1.msra.mxu0 0.0
    %4986 = vmatprep.subr.mxu0 0.0
    %4987 = vmatpush1.msra.mxu0 0.0
    %4988 = vmatprep.subr.mxu0 0.0
    %4989 = vmatpush1.msra.mxu0 0.0
    %4990 = vmatprep.subr.mxu0 0.0
    %4991 = vmatpush1.msra.mxu0 0.0
    %4992 = vmatprep.subr.mxu0 0.0
    %4993 = vmatpush1.msra.mxu0 0.0
    %4994 = vmatprep.subr.mxu0 0.0
    %4995 = vmatpush1.msra.mxu0 0.0
    %4996 = vmatprep.subr.mxu0 0.0
    %4997 = vmatpush1.msra.mxu0 0.0
    %4998 = vmatprep.subr.mxu0 0.0
    %4999 = vmatpush1.msra.mxu0 0.0
    %5000 = vmatprep.mubr.f32.mxu0 0.0
    %5001 = vmatmul.mubr.f32.gmra.mrb[0].mxu0 %v4934
    %v5002 = vpop.f32.mrb[0].mxu0
    %v5003 = vadd.f32 0.0, %v5002
    %v5004 = vpop.f32.mrb[0].mxu0
    %5005 = vdwg.mxu0
    %v5007 = vrot.slane %v5003, 7
    %v5010 = vadd.f32 %v4573, %v5007
    %v5011 = vadd.f32 %v4578, %v5003
    %v5014 = vrot.slane %v4925, 7
    %v5015 = vrot.slane %v4926, 6
    %v5016 = vsel %vm4930, %v5015, %v5014
    %5017 = vrot.lane.b32.xlu0 %v5016, 32
    %v5018 = vpop.permute.xlu0 %5017
    %v5019 = vsel %vm283, %v5018, 0
    %5021 = vmatprep.subr.mxu0 0.0
    %5022 = vmatpush1.msra.mxu0 %v4671
    %5023 = vmatprep.subr.mxu0 0.0
    %5024 = vmatpush1.msra.mxu0 %v4672
    %5025 = vmatprep.subr.mxu0 0.0
    %5026 = vmatpush1.msra.mxu0 %v4673
    %5027 = vmatprep.subr.mxu0 0.0
    %5028 = vmatpush1.msra.mxu0 %v4674
    %5029 = vmatprep.subr.mxu0 0.0
    %5030 = vmatpush1.msra.mxu0 0.0
    %5031 = vmatprep.subr.mxu0 0.0
    %5032 = vmatpush1.msra.mxu0 0.0
    %5033 = vmatprep.subr.mxu0 0.0
    %5034 = vmatpush1.msra.mxu0 0.0
    %5035 = vmatprep.subr.mxu0 0.0
    %5036 = vmatpush1.msra.mxu0 0.0
    %5037 = vmatprep.subr.mxu0 0.0
    %5038 = vmatpush1.msra.mxu0 0.0
    %5039 = vmatprep.subr.mxu0 0.0
    %5040 = vmatpush1.msra.mxu0 0.0
    %5041 = vmatprep.subr.mxu0 0.0
    %5042 = vmatpush1.msra.mxu0 0.0
    %5043 = vmatprep.subr.mxu0 0.0
    %5044 = vmatpush1.msra.mxu0 0.0
    %5045 = vmatprep.subr.mxu0 0.0
    %5046 = vmatpush1.msra.mxu0 0.0
    %5047 = vmatprep.subr.mxu0 0.0
    %5048 = vmatpush1.msra.mxu0 0.0
    %5049 = vmatprep.subr.mxu0 0.0
    %5050 = vmatpush1.msra.mxu0 0.0
    %5051 = vmatprep.subr.mxu0 0.0
    %5052 = vmatpush1.msra.mxu0 0.0
    %5053 = vmatprep.subr.mxu0 0.0
    %5054 = vmatpush1.msra.mxu0 0.0
    %5055 = vmatprep.subr.mxu0 0.0
    %5056 = vmatpush1.msra.mxu0 0.0
    %5057 = vmatprep.subr.mxu0 0.0
    %5058 = vmatpush1.msra.mxu0 0.0
    %5059 = vmatprep.subr.mxu0 0.0
    %5060 = vmatpush1.msra.mxu0 0.0
    %5061 = vmatprep.subr.mxu0 0.0
    %5062 = vmatpush1.msra.mxu0 0.0
    %5063 = vmatprep.subr.mxu0 0.0
    %5064 = vmatpush1.msra.mxu0 0.0
    %5065 = vmatprep.subr.mxu0 0.0
    %5066 = vmatpush1.msra.mxu0 0.0
    %5067 = vmatprep.subr.mxu0 0.0
    %5068 = vmatpush1.msra.mxu0 0.0
    %5069 = vmatprep.subr.mxu0 0.0
    %5070 = vmatpush1.msra.mxu0 0.0
    %5071 = vmatprep.subr.mxu0 0.0
    %5072 = vmatpush1.msra.mxu0 0.0
    %5073 = vmatprep.subr.mxu0 0.0
    %5074 = vmatpush1.msra.mxu0 0.0
    %5075 = vmatprep.subr.mxu0 0.0
    %5076 = vmatpush1.msra.mxu0 0.0
    %5077 = vmatprep.subr.mxu0 0.0
    %5078 = vmatpush1.msra.mxu0 0.0
    %5079 = vmatprep.subr.mxu0 0.0
    %5080 = vmatpush1.msra.mxu0 0.0
    %5081 = vmatprep.subr.mxu0 0.0
    %5082 = vmatpush1.msra.mxu0 0.0
    %5083 = vmatprep.subr.mxu0 0.0
    %5084 = vmatpush1.msra.mxu0 0.0
    %5085 = vmatprep.mubr.f32.mxu0 0.0
    %5086 = vmatmul.mubr.f32.gmra.mrb[0].mxu0 %v5019
    %v5087 = vpop.f32.mrb[0].mxu0
    %v5088 = vadd.f32 0.0, %v5087
    %v5089 = vpop.f32.mrb[0].mxu0
    %5090 = vdwg.mxu0
    %v5092 = vrot.slane %v5088, 2
    %v5093 = vrot.slane %v5088, 3
    %v5096 = vadd.f32 %v4659, %v5092
    %v5097 = vadd.f32 %v4664, %v5093
    %v5098 = vxor.u32 %v5010, 2147483648
    %v5099 = vxor.u32 %v5011, 2147483648
    %v5100 = vmul.f32 %v5098, 1.442695
    %v5101 = vpow.pop %v5100
    %v5102 = vmul.f32 %v5099, 1.442695
    %v5103 = vpow.pop %v5102
    %v5104 = vadd.f32 %v5101, 1.0
    %v5105 = vadd.f32 %v5103, 1.0
    %v5106 = vrcp.pop %v5104
    %v5107 = vmul.f32 1.0, %v5106
    %v5108 = vrcp.pop %v5105
    %v5109 = vmul.f32 1.0, %v5108
    %v5110 = vtanh.pop %v5010
    %v5111 = vtanh.pop %v5011
    %v5114 = vrot.slane %v4865, 7
    %v5115 = vrot.slane %v4866, 7
    %v5118 = vmul.f32 %v5107, %v5114
    %v5119 = vmul.f32 %v5109, %v5115
    %5122 = vrot.lane.b32.xlu0 %v5110, 64
    %v5123 = vpop.permute.xlu0 %5122
    %5124 = vrot.lane.b32.xlu0 %v5111, 64
    %v5125 = vpop.permute.xlu0 %5124
    %v5128 = vmul.f32 %v5107, %v5123
    %v5129 = vmul.f32 %v5109, %v5125
    %5132 = vrot.lane.b32.xlu0 %v5128, 32
    %v5133 = vpop.permute.xlu0 %5132
    %5134 = vrot.lane.b32.xlu0 %v5129, 32
    %v5135 = vpop.permute.xlu0 %5134
    %v5138 = vadd.f32 %v5118, %v5133
    %v5139 = vadd.f32 %v5119, %v5135
    %v5140 = vtanh.pop %v5138
    %v5141 = vtanh.pop %v5139
    %5144 = vrot.lane.b32.xlu0 %v5140, 64
    %v5145 = vpop.permute.xlu0 %5144
    %5146 = vrot.lane.b32.xlu0 %v5141, 64
    %v5147 = vpop.permute.xlu0 %5146
    %v5150 = vmul.f32 %v5107, %v5145
    %v5151 = vmul.f32 %v5109, %v5147
    %v5152 = vxor.u32 %v5096, 2147483648
    %v5153 = vxor.u32 %v5097, 2147483648
    %v5154 = vmul.f32 %v5152, 1.442695
    %v5155 = vpow.pop %v5154
    %v5156 = vmul.f32 %v5153, 1.442695
    %v5157 = vpow.pop %v5156
    %v5158 = vadd.f32 %v5155, 1.0
    %v5159 = vadd.f32 %v5157, 1.0
    %v5160 = vrcp.pop %v5158
    %v5161 = vmul.f32 1.0, %v5160
    %v5162 = vrcp.pop %v5159
    %v5163 = vmul.f32 1.0, %v5162
    %v5164 = vtanh.pop %v5096
    %v5165 = vtanh.pop %v5097
    %v5168 = vrot.slane %v4913, 1
    %v5169 = vrot.slane %v4914, 1
    %v5172 = vmul.f32 %v5161, %v5168
    %v5173 = vmul.f32 %v5163, %v5169
    %5176 = vrot.lane.b32.xlu0 %v5164, 64
    %v5177 = vpop.permute.xlu0 %5176
    %5178 = vrot.lane.b32.xlu0 %v5165, 64
    %v5179 = vpop.permute.xlu0 %5178
    %v5182 = vmul.f32 %v5161, %v5177
    %v5183 = vmul.f32 %v5163, %v5179
    %5186 = vrot.lane.b32.xlu0 %v5182, 32
    %v5187 = vpop.permute.xlu0 %5186
    %5188 = vrot.lane.b32.xlu0 %v5183, 32
    %v5189 = vpop.permute.xlu0 %5188
    %v5192 = vadd.f32 %v5172, %v5187
    %v5193 = vadd.f32 %v5173, %v5189
    %v5194 = vtanh.pop %v5192
    %v5195 = vtanh.pop %v5193
    %5198 = vrot.lane.b32.xlu0 %v5194, 64
    %v5199 = vpop.permute.xlu0 %5198
    %5200 = vrot.lane.b32.xlu0 %v5195, 64
    %v5201 = vpop.permute.xlu0 %5200
    %v5204 = vmul.f32 %v5161, %v5199
    %v5205 = vmul.f32 %v5163, %v5201
    %v5208 = vrot.slane %v5150, 1
    %v5209 = vsel %vm4930, %v5151, %v5208
    %5210 = vrot.lane.b32.xlu0 %v5209, 32
    %v5211 = vpop.permute.xlu0 %5210
    %v5212 = vsel %vm283, %v5211, 0
    %5214 = vmatprep.subr.mxu0 0.0
    %5215 = vmatpush1.msra.mxu0 %v4667
    %5216 = vmatprep.subr.mxu0 0.0
    %5217 = vmatpush1.msra.mxu0 %v4668
    %5218 = vmatprep.subr.mxu0 0.0
    %5219 = vmatpush1.msra.mxu0 %v4669
    %5220 = vmatprep.subr.mxu0 0.0
    %5221 = vmatpush1.msra.mxu0 %v4670
    %5222 = vmatprep.subr.mxu0 0.0
    %5223 = vmatpush1.msra.mxu0 0.0
    %5224 = vmatprep.subr.mxu0 0.0
    %5225 = vmatpush1.msra.mxu0 0.0
    %5226 = vmatprep.subr.mxu0 0.0
    %5227 = vmatpush1.msra.mxu0 0.0
    %5228 = vmatprep.subr.mxu0 0.0
    %5229 = vmatpush1.msra.mxu0 0.0
    %5230 = vmatprep.subr.mxu0 0.0
    %5231 = vmatpush1.msra.mxu0 0.0
    %5232 = vmatprep.subr.mxu0 0.0
    %5233 = vmatpush1.msra.mxu0 0.0
    %5234 = vmatprep.subr.mxu0 0.0
    %5235 = vmatpush1.msra.mxu0 0.0
    %5236 = vmatprep.subr.mxu0 0.0
    %5237 = vmatpush1.msra.mxu0 0.0
    %5238 = vmatprep.subr.mxu0 0.0
    %5239 = vmatpush1.msra.mxu0 0.0
    %5240 = vmatprep.subr.mxu0 0.0
    %5241 = vmatpush1.msra.mxu0 0.0
    %5242 = vmatprep.subr.mxu0 0.0
    %5243 = vmatpush1.msra.mxu0 0.0
    %5244 = vmatprep.subr.mxu0 0.0
    %5245 = vmatpush1.msra.mxu0 0.0
    %5246 = vmatprep.subr.mxu0 0.0
    %5247 = vmatpush1.msra.mxu0 0.0
    %5248 = vmatprep.subr.mxu0 0.0
    %5249 = vmatpush1.msra.mxu0 0.0
    %5250 = vmatprep.subr.mxu0 0.0
    %5251 = vmatpush1.msra.mxu0 0.0
    %5252 = vmatprep.subr.mxu0 0.0
    %5253 = vmatpush1.msra.mxu0 0.0
    %5254 = vmatprep.subr.mxu0 0.0
    %5255 = vmatpush1.msra.mxu0 0.0
    %5256 = vmatprep.subr.mxu0 0.0
    %5257 = vmatpush1.msra.mxu0 0.0
    %5258 = vmatprep.subr.mxu0 0.0
    %5259 = vmatpush1.msra.mxu0 0.0
    %5260 = vmatprep.subr.mxu0 0.0
    %5261 = vmatpush1.msra.mxu0 0.0
    %5262 = vmatprep.subr.mxu0 0.0
    %5263 = vmatpush1.msra.mxu0 0.0
    %5264 = vmatprep.subr.mxu0 0.0
    %5265 = vmatpush1.msra.mxu0 0.0
    %5266 = vmatprep.subr.mxu0 0.0
    %5267 = vmatpush1.msra.mxu0 0.0
    %5268 = vmatprep.subr.mxu0 0.0
    %5269 = vmatpush1.msra.mxu0 0.0
    %5270 = vmatprep.subr.mxu0 0.0
    %5271 = vmatpush1.msra.mxu0 0.0
    %5272 = vmatprep.subr.mxu0 0.0
    %5273 = vmatpush1.msra.mxu0 0.0
    %5274 = vmatprep.subr.mxu0 0.0
    %5275 = vmatpush1.msra.mxu0 0.0
    %5276 = vmatprep.subr.mxu0 0.0
    %5277 = vmatpush1.msra.mxu0 0.0
    %5278 = vmatprep.mubr.f32.mxu0 0.0
    %5279 = vmatmul.mubr.f32.gmra.mrb[0].mxu0 %v5212
    %v5280 = vpop.f32.mrb[0].mxu0
    %v5281 = vadd.f32 0.0, %v5280
    %v5282 = vpop.f32.mrb[0].mxu0
    %5283 = vdwg.mxu0
    %v5285 = vrot.slane %v5281, 6
    %v5286 = vrot.slane %v5281, 7
    %v5289 = vadd.f32 %v4573, %v5285
    %v5290 = vadd.f32 %v4578, %v5286
    %v5293 = vrot.slane %v5204, 6
    %v5294 = vrot.slane %v5205, 5
    %v5295 = vsel %vm4930, %v5294, %v5293
    %5296 = vrot.lane.b32.xlu0 %v5295, 32
    %v5297 = vpop.permute.xlu0 %5296
    %v5298 = vsel %vm283, %v5297, 0
    %5300 = vmatprep.subr.mxu0 0.0
    %5301 = vmatpush1.msra.mxu0 %v4671
    %5302 = vmatprep.subr.mxu0 0.0
    %5303 = vmatpush1.msra.mxu0 %v4672
    %5304 = vmatprep.subr.mxu0 0.0
    %5305 = vmatpush1.msra.mxu0 %v4673
    %5306 = vmatprep.subr.mxu0 0.0
    %5307 = vmatpush1.msra.mxu0 %v4674
    %5308 = vmatprep.subr.mxu0 0.0
    %5309 = vmatpush1.msra.mxu0 0.0
    %5310 = vmatprep.subr.mxu0 0.0
    %5311 = vmatpush1.msra.mxu0 0.0
    %5312 = vmatprep.subr.mxu0 0.0
    %5313 = vmatpush1.msra.mxu0 0.0
    %5314 = vmatprep.subr.mxu0 0.0
    %5315 = vmatpush1.msra.mxu0 0.0
    %5316 = vmatprep.subr.mxu0 0.0
    %5317 = vmatpush1.msra.mxu0 0.0
    %5318 = vmatprep.subr.mxu0 0.0
    %5319 = vmatpush1.msra.mxu0 0.0
    %5320 = vmatprep.subr.mxu0 0.0
    %5321 = vmatpush1.msra.mxu0 0.0
    %5322 = vmatprep.subr.mxu0 0.0
    %5323 = vmatpush1.msra.mxu0 0.0
    %5324 = vmatprep.subr.mxu0 0.0
    %5325 = vmatpush1.msra.mxu0 0.0
    %5326 = vmatprep.subr.mxu0 0.0
    %5327 = vmatpush1.msra.mxu0 0.0
    %5328 = vmatprep.subr.mxu0 0.0
    %5329 = vmatpush1.msra.mxu0 0.0
    %5330 = vmatprep.subr.mxu0 0.0
    %5331 = vmatpush1.msra.mxu0 0.0
    %5332 = vmatprep.subr.mxu0 0.0
    %5333 = vmatpush1.msra.mxu0 0.0
    %5334 = vmatprep.subr.mxu0 0.0
    %5335 = vmatpush1.msra.mxu0 0.0
    %5336 = vmatprep.subr.mxu0 0.0
    %5337 = vmatpush1.msra.mxu0 0.0
    %5338 = vmatprep.subr.mxu0 0.0
    %5339 = vmatpush1.msra.mxu0 0.0
    %5340 = vmatprep.subr.mxu0 0.0
    %5341 = vmatpush1.msra.mxu0 0.0
    %5342 = vmatprep.subr.mxu0 0.0
    %5343 = vmatpush1.msra.mxu0 0.0
    %5344 = vmatprep.subr.mxu0 0.0
    %5345 = vmatpush1.msra.mxu0 0.0
    %5346 = vmatprep.subr.mxu0 0.0
    %5347 = vmatpush1.msra.mxu0 0.0
    %5348 = vmatprep.subr.mxu0 0.0
    %5349 = vmatpush1.msra.mxu0 0.0
    %5350 = vmatprep.subr.mxu0 0.0
    %5351 = vmatpush1.msra.mxu0 0.0
    %5352 = vmatprep.subr.mxu0 0.0
    %5353 = vmatpush1.msra.mxu0 0.0
    %5354 = vmatprep.subr.mxu0 0.0
    %5355 = vmatpush1.msra.mxu0 0.0
    %5356 = vmatprep.subr.mxu0 0.0
    %5357 = vmatpush1.msra.mxu0 0.0
    %5358 = vmatprep.subr.mxu0 0.0
    %5359 = vmatpush1.msra.mxu0 0.0
    %5360 = vmatprep.subr.mxu0 0.0
    %5361 = vmatpush1.msra.mxu0 0.0
    %5362 = vmatprep.subr.mxu0 0.0
    %5363 = vmatpush1.msra.mxu0 0.0
    %5364 = vmatprep.mubr.f32.mxu0 0.0
    %5365 = vmatmul.mubr.f32.gmra.mrb[0].mxu0 %v5298
    %v5366 = vpop.f32.mrb[0].mxu0
    %v5367 = vadd.f32 0.0, %v5366
    %v5368 = vpop.f32.mrb[0].mxu0
    %5369 = vdwg.mxu0
    %v5371 = vrot.slane %v5367, 3
    %v5372 = vrot.slane %v5367, 4
    %v5375 = vadd.f32 %v4659, %v5371
    %v5376 = vadd.f32 %v4664, %v5372
    %v5377 = vxor.u32 %v5289, 2147483648
    %v5378 = vxor.u32 %v5290, 2147483648
    %v5379 = vmul.f32 %v5377, 1.442695
    %v5380 = vpow.pop %v5379
    %v5381 = vmul.f32 %v5378, 1.442695
    %v5382 = vpow.pop %v5381
    %v5383 = vadd.f32 %v5380, 1.0
    %v5384 = vadd.f32 %v5382, 1.0
    %v5385 = vrcp.pop %v5383
    %v5386 = vmul.f32 1.0, %v5385
    %v5387 = vrcp.pop %v5384
    %v5388 = vmul.f32 1.0, %v5387
    %v5389 = vtanh.pop %v5289
    %v5390 = vtanh.pop %v5290
    %v5393 = vrot.slane %v5138, 7
    %v5394 = vrot.slane %v5139, 7
    %v5397 = vmul.f32 %v5386, %v5393
    %v5398 = vmul.f32 %v5388, %v5394
    %5401 = vrot.lane.b32.xlu0 %v5389, 64
    %v5402 = vpop.permute.xlu0 %5401
    %5403 = vrot.lane.b32.xlu0 %v5390, 64
    %v5404 = vpop.permute.xlu0 %5403
    %v5407 = vmul.f32 %v5386, %v5402
    %v5408 = vmul.f32 %v5388, %v5404
    %5411 = vrot.lane.b32.xlu0 %v5407, 32
    %v5412 = vpop.permute.xlu0 %5411
    %5413 = vrot.lane.b32.xlu0 %v5408, 32
    %v5414 = vpop.permute.xlu0 %5413
    %v5417 = vadd.f32 %v5397, %v5412
    %v5418 = vadd.f32 %v5398, %v5414
    %v5419 = vtanh.pop %v5417
    %v5420 = vtanh.pop %v5418
    %5423 = vrot.lane.b32.xlu0 %v5419, 64
    %v5424 = vpop.permute.xlu0 %5423
    %5425 = vrot.lane.b32.xlu0 %v5420, 64
    %v5426 = vpop.permute.xlu0 %5425
    %v5429 = vmul.f32 %v5386, %v5424
    %v5430 = vmul.f32 %v5388, %v5426
    %v5431 = vxor.u32 %v5375, 2147483648
    %v5432 = vxor.u32 %v5376, 2147483648
    %v5433 = vmul.f32 %v5431, 1.442695
    %v5434 = vpow.pop %v5433
    %v5435 = vmul.f32 %v5432, 1.442695
    %v5436 = vpow.pop %v5435
    %v5437 = vadd.f32 %v5434, 1.0
    %v5438 = vadd.f32 %v5436, 1.0
    %v5439 = vrcp.pop %v5437
    %v5440 = vmul.f32 1.0, %v5439
    %v5441 = vrcp.pop %v5438
    %v5442 = vmul.f32 1.0, %v5441
    %v5443 = vtanh.pop %v5375
    %v5444 = vtanh.pop %v5376
    %v5447 = vrot.slane %v5192, 1
    %v5448 = vrot.slane %v5193, 1
    %v5451 = vmul.f32 %v5440, %v5447
    %v5452 = vmul.f32 %v5442, %v5448
    %5455 = vrot.lane.b32.xlu0 %v5443, 64
    %v5456 = vpop.permute.xlu0 %5455
    %5457 = vrot.lane.b32.xlu0 %v5444, 64
    %v5458 = vpop.permute.xlu0 %5457
    %v5461 = vmul.f32 %v5440, %v5456
    %v5462 = vmul.f32 %v5442, %v5458
    %5465 = vrot.lane.b32.xlu0 %v5461, 32
    %v5466 = vpop.permute.xlu0 %5465
    %5467 = vrot.lane.b32.xlu0 %v5462, 32
    %v5468 = vpop.permute.xlu0 %5467
    %v5471 = vadd.f32 %v5451, %v5466
    %v5472 = vadd.f32 %v5452, %v5468
    %v5473 = vtanh.pop %v5471
    %v5474 = vtanh.pop %v5472
    %5477 = vrot.lane.b32.xlu0 %v5473, 64
    %v5478 = vpop.permute.xlu0 %5477
    %5479 = vrot.lane.b32.xlu0 %v5474, 64
    %v5480 = vpop.permute.xlu0 %5479
    %v5483 = vmul.f32 %v5440, %v5478
    %v5484 = vmul.f32 %v5442, %v5480
    %v5487 = vrot.slane %v5429, 2
    %v5488 = vrot.slane %v5430, 1
    %v5489 = vsel %vm4930, %v5488, %v5487
    %5490 = vrot.lane.b32.xlu0 %v5489, 32
    %v5491 = vpop.permute.xlu0 %5490
    %v5492 = vsel %vm283, %v5491, 0
    %5494 = vmatprep.subr.mxu0 0.0
    %5495 = vmatpush1.msra.mxu0 %v4667
    %5496 = vmatprep.subr.mxu0 0.0
    %5497 = vmatpush1.msra.mxu0 %v4668
    %5498 = vmatprep.subr.mxu0 0.0
    %5499 = vmatpush1.msra.mxu0 %v4669
    %5500 = vmatprep.subr.mxu0 0.0
    %5501 = vmatpush1.msra.mxu0 %v4670
    %5502 = vmatprep.subr.mxu0 0.0
    %5503 = vmatpush1.msra.mxu0 0.0
    %5504 = vmatprep.subr.mxu0 0.0
    %5505 = vmatpush1.msra.mxu0 0.0
    %5506 = vmatprep.subr.mxu0 0.0
    %5507 = vmatpush1.msra.mxu0 0.0
    %5508 = vmatprep.subr.mxu0 0.0
    %5509 = vmatpush1.msra.mxu0 0.0
    %5510 = vmatprep.subr.mxu0 0.0
    %5511 = vmatpush1.msra.mxu0 0.0
    %5512 = vmatprep.subr.mxu0 0.0
    %5513 = vmatpush1.msra.mxu0 0.0
    %5514 = vmatprep.subr.mxu0 0.0
    %5515 = vmatpush1.msra.mxu0 0.0
    %5516 = vmatprep.subr.mxu0 0.0
    %5517 = vmatpush1.msra.mxu0 0.0
    %5518 = vmatprep.subr.mxu0 0.0
    %5519 = vmatpush1.msra.mxu0 0.0
    %5520 = vmatprep.subr.mxu0 0.0
    %5521 = vmatpush1.msra.mxu0 0.0
    %5522 = vmatprep.subr.mxu0 0.0
    %5523 = vmatpush1.msra.mxu0 0.0
    %5524 = vmatprep.subr.mxu0 0.0
    %5525 = vmatpush1.msra.mxu0 0.0
    %5526 = vmatprep.subr.mxu0 0.0
    %5527 = vmatpush1.msra.mxu0 0.0
    %5528 = vmatprep.subr.mxu0 0.0
    %5529 = vmatpush1.msra.mxu0 0.0
    %5530 = vmatprep.subr.mxu0 0.0
    %5531 = vmatpush1.msra.mxu0 0.0
    %5532 = vmatprep.subr.mxu0 0.0
    %5533 = vmatpush1.msra.mxu0 0.0
    %5534 = vmatprep.subr.mxu0 0.0
    %5535 = vmatpush1.msra.mxu0 0.0
    %5536 = vmatprep.subr.mxu0 0.0
    %5537 = vmatpush1.msra.mxu0 0.0
    %5538 = vmatprep.subr.mxu0 0.0
    %5539 = vmatpush1.msra.mxu0 0.0
    %5540 = vmatprep.subr.mxu0 0.0
    %5541 = vmatpush1.msra.mxu0 0.0
    %5542 = vmatprep.subr.mxu0 0.0
    %5543 = vmatpush1.msra.mxu0 0.0
    %5544 = vmatprep.subr.mxu0 0.0
    %5545 = vmatpush1.msra.mxu0 0.0
    %5546 = vmatprep.subr.mxu0 0.0
    %5547 = vmatpush1.msra.mxu0 0.0
    %5548 = vmatprep.subr.mxu0 0.0
    %5549 = vmatpush1.msra.mxu0 0.0
    %5550 = vmatprep.subr.mxu0 0.0
    %5551 = vmatpush1.msra.mxu0 0.0
    %5552 = vmatprep.subr.mxu0 0.0
    %5553 = vmatpush1.msra.mxu0 0.0
    %5554 = vmatprep.subr.mxu0 0.0
    %5555 = vmatpush1.msra.mxu0 0.0
    %5556 = vmatprep.subr.mxu0 0.0
    %5557 = vmatpush1.msra.mxu0 0.0
    %5558 = vmatprep.mubr.f32.mxu0 0.0
    %5559 = vmatmul.mubr.f32.gmra.mrb[0].mxu0 %v5492
    %v5560 = vpop.f32.mrb[0].mxu0
    %v5561 = vadd.f32 0.0, %v5560
    %v5562 = vpop.f32.mrb[0].mxu0
    %5563 = vdwg.mxu0
    %v5565 = vrot.slane %v5561, 5
    %v5566 = vrot.slane %v5561, 6
    %v5569 = vadd.f32 %v4573, %v5565
    %v5570 = vadd.f32 %v4578, %v5566
    %v5573 = vrot.slane %v5483, 5
    %v5574 = vrot.slane %v5484, 4
    %v5575 = vsel %vm4930, %v5574, %v5573
    %5576 = vrot.lane.b32.xlu0 %v5575, 32
    %v5577 = vpop.permute.xlu0 %5576
    %v5578 = vsel %vm283, %v5577, 0
    %5580 = vmatprep.subr.mxu0 0.0
    %5581 = vmatpush1.msra.mxu0 %v4671
    %5582 = vmatprep.subr.mxu0 0.0
    %5583 = vmatpush1.msra.mxu0 %v4672
    %5584 = vmatprep.subr.mxu0 0.0
    %5585 = vmatpush1.msra.mxu0 %v4673
    %5586 = vmatprep.subr.mxu0 0.0
    %5587 = vmatpush1.msra.mxu0 %v4674
    %5588 = vmatprep.subr.mxu0 0.0
    %5589 = vmatpush1.msra.mxu0 0.0
    %5590 = vmatprep.subr.mxu0 0.0
    %5591 = vmatpush1.msra.mxu0 0.0
    %5592 = vmatprep.subr.mxu0 0.0
    %5593 = vmatpush1.msra.mxu0 0.0
    %5594 = vmatprep.subr.mxu0 0.0
    %5595 = vmatpush1.msra.mxu0 0.0
    %5596 = vmatprep.subr.mxu0 0.0
    %5597 = vmatpush1.msra.mxu0 0.0
    %5598 = vmatprep.subr.mxu0 0.0
    %5599 = vmatpush1.msra.mxu0 0.0
    %5600 = vmatprep.subr.mxu0 0.0
    %5601 = vmatpush1.msra.mxu0 0.0
    %5602 = vmatprep.subr.mxu0 0.0
    %5603 = vmatpush1.msra.mxu0 0.0
    %5604 = vmatprep.subr.mxu0 0.0
    %5605 = vmatpush1.msra.mxu0 0.0
    %5606 = vmatprep.subr.mxu0 0.0
    %5607 = vmatpush1.msra.mxu0 0.0
    %5608 = vmatprep.subr.mxu0 0.0
    %5609 = vmatpush1.msra.mxu0 0.0
    %5610 = vmatprep.subr.mxu0 0.0
    %5611 = vmatpush1.msra.mxu0 0.0
    %5612 = vmatprep.subr.mxu0 0.0
    %5613 = vmatpush1.msra.mxu0 0.0
    %5614 = vmatprep.subr.mxu0 0.0
    %5615 = vmatpush1.msra.mxu0 0.0
    %5616 = vmatprep.subr.mxu0 0.0
    %5617 = vmatpush1.msra.mxu0 0.0
    %5618 = vmatprep.subr.mxu0 0.0
    %5619 = vmatpush1.msra.mxu0 0.0
    %5620 = vmatprep.subr.mxu0 0.0
    %5621 = vmatpush1.msra.mxu0 0.0
    %5622 = vmatprep.subr.mxu0 0.0
    %5623 = vmatpush1.msra.mxu0 0.0
    %5624 = vmatprep.subr.mxu0 0.0
    %5625 = vmatpush1.msra.mxu0 0.0
    %5626 = vmatprep.subr.mxu0 0.0
    %5627 = vmatpush1.msra.mxu0 0.0
    %5628 = vmatprep.subr.mxu0 0.0
    %5629 = vmatpush1.msra.mxu0 0.0
    %5630 = vmatprep.subr.mxu0 0.0
    %5631 = vmatpush1.msra.mxu0 0.0
    %5632 = vmatprep.subr.mxu0 0.0
    %5633 = vmatpush1.msra.mxu0 0.0
    %5634 = vmatprep.subr.mxu0 0.0
    %5635 = vmatpush1.msra.mxu0 0.0
    %5636 = vmatprep.subr.mxu0 0.0
    %5637 = vmatpush1.msra.mxu0 0.0
    %5638 = vmatprep.subr.mxu0 0.0
    %5639 = vmatpush1.msra.mxu0 0.0
    %5640 = vmatprep.subr.mxu0 0.0
    %5641 = vmatpush1.msra.mxu0 0.0
    %5642 = vmatprep.subr.mxu0 0.0
    %5643 = vmatpush1.msra.mxu0 0.0
    %5644 = vmatprep.mubr.f32.mxu0 0.0
    %5645 = vmatmul.mubr.f32.gmra.mrb[0].mxu0 %v5578
    %v5646 = vpop.f32.mrb[0].mxu0
    %v5647 = vadd.f32 0.0, %v5646
    %v5648 = vpop.f32.mrb[0].mxu0
    %5649 = vdwg.mxu0
    %v5651 = vrot.slane %v5647, 4
    %v5652 = vrot.slane %v5647, 5
    %v5655 = vadd.f32 %v4659, %v5651
    %v5656 = vadd.f32 %v4664, %v5652
    %v5657 = vxor.u32 %v5569, 2147483648
    %v5658 = vxor.u32 %v5570, 2147483648
    %v5659 = vmul.f32 %v5657, 1.442695
    %v5660 = vpow.pop %v5659
    %v5661 = vmul.f32 %v5658, 1.442695
    %v5662 = vpow.pop %v5661
    %v5663 = vadd.f32 %v5660, 1.0
    %v5664 = vadd.f32 %v5662, 1.0
    %v5665 = vrcp.pop %v5663
    %v5666 = vmul.f32 1.0, %v5665
    %v5667 = vrcp.pop %v5664
    %v5668 = vmul.f32 1.0, %v5667
    %v5669 = vtanh.pop %v5569
    %v5670 = vtanh.pop %v5570
    %v5673 = vrot.slane %v5417, 7
    %v5674 = vrot.slane %v5418, 7
    %v5677 = vmul.f32 %v5666, %v5673
    %v5678 = vmul.f32 %v5668, %v5674
    %5681 = vrot.lane.b32.xlu0 %v5669, 64
    %v5682 = vpop.permute.xlu0 %5681
    %5683 = vrot.lane.b32.xlu0 %v5670, 64
    %v5684 = vpop.permute.xlu0 %5683
    %v5687 = vmul.f32 %v5666, %v5682
    %v5688 = vmul.f32 %v5668, %v5684
    %5691 = vrot.lane.b32.xlu0 %v5687, 32
    %v5692 = vpop.permute.xlu0 %5691
    %5693 = vrot.lane.b32.xlu0 %v5688, 32
    %v5694 = vpop.permute.xlu0 %5693
    %v5697 = vadd.f32 %v5677, %v5692
    %v5698 = vadd.f32 %v5678, %v5694
    %v5699 = vtanh.pop %v5697
    %v5700 = vtanh.pop %v5698
    %5703 = vrot.lane.b32.xlu0 %v5699, 64
    %v5704 = vpop.permute.xlu0 %5703
    %5705 = vrot.lane.b32.xlu0 %v5700, 64
    %v5706 = vpop.permute.xlu0 %5705
    %v5709 = vmul.f32 %v5666, %v5704
    %v5710 = vmul.f32 %v5668, %v5706
    %v5711 = vxor.u32 %v5655, 2147483648
    %v5712 = vxor.u32 %v5656, 2147483648
    %v5713 = vmul.f32 %v5711, 1.442695
    %v5714 = vpow.pop %v5713
    %v5715 = vmul.f32 %v5712, 1.442695
    %v5716 = vpow.pop %v5715
    %v5717 = vadd.f32 %v5714, 1.0
    %v5718 = vadd.f32 %v5716, 1.0
    %v5719 = vrcp.pop %v5717
    %v5720 = vmul.f32 1.0, %v5719
    %v5721 = vrcp.pop %v5718
    %v5722 = vmul.f32 1.0, %v5721
    %v5723 = vtanh.pop %v5655
    %v5724 = vtanh.pop %v5656
    %v5727 = vrot.slane %v5471, 1
    %v5728 = vrot.slane %v5472, 1
    %v5731 = vmul.f32 %v5720, %v5727
    %v5732 = vmul.f32 %v5722, %v5728
    %5735 = vrot.lane.b32.xlu0 %v5723, 64
    %v5736 = vpop.permute.xlu0 %5735
    %5737 = vrot.lane.b32.xlu0 %v5724, 64
    %v5738 = vpop.permute.xlu0 %5737
    %v5741 = vmul.f32 %v5720, %v5736
    %v5742 = vmul.f32 %v5722, %v5738
    %5745 = vrot.lane.b32.xlu0 %v5741, 32
    %v5746 = vpop.permute.xlu0 %5745
    %5747 = vrot.lane.b32.xlu0 %v5742, 32
    %v5748 = vpop.permute.xlu0 %5747
    %v5751 = vadd.f32 %v5731, %v5746
    %v5752 = vadd.f32 %v5732, %v5748
    %v5753 = vtanh.pop %v5751
    %v5754 = vtanh.pop %v5752
    %5757 = vrot.lane.b32.xlu0 %v5753, 64
    %v5758 = vpop.permute.xlu0 %5757
    %5759 = vrot.lane.b32.xlu0 %v5754, 64
    %v5760 = vpop.permute.xlu0 %5759
    %v5763 = vmul.f32 %v5720, %v5758
    %v5764 = vmul.f32 %v5722, %v5760
    %v5767 = vrot.slane %v5709, 3
    %v5768 = vrot.slane %v5710, 2
    %v5769 = vsel %vm4930, %v5768, %v5767
    %5770 = vrot.lane.b32.xlu0 %v5769, 32
    %v5771 = vpop.permute.xlu0 %5770
    %v5772 = vsel %vm283, %v5771, 0
    %5774 = vmatprep.subr.mxu0 0.0
    %5775 = vmatpush1.msra.mxu0 %v4667
    %5776 = vmatprep.subr.mxu0 0.0
    %5777 = vmatpush1.msra.mxu0 %v4668
    %5778 = vmatprep.subr.mxu0 0.0
    %5779 = vmatpush1.msra.mxu0 %v4669
    %5780 = vmatprep.subr.mxu0 0.0
    %5781 = vmatpush1.msra.mxu0 %v4670
    %5782 = vmatprep.subr.mxu0 0.0
    %5783 = vmatpush1.msra.mxu0 0.0
    %5784 = vmatprep.subr.mxu0 0.0
    %5785 = vmatpush1.msra.mxu0 0.0
    %5786 = vmatprep.subr.mxu0 0.0
    %5787 = vmatpush1.msra.mxu0 0.0
    %5788 = vmatprep.subr.mxu0 0.0
    %5789 = vmatpush1.msra.mxu0 0.0
    %5790 = vmatprep.subr.mxu0 0.0
    %5791 = vmatpush1.msra.mxu0 0.0
    %5792 = vmatprep.subr.mxu0 0.0
    %5793 = vmatpush1.msra.mxu0 0.0
    %5794 = vmatprep.subr.mxu0 0.0
    %5795 = vmatpush1.msra.mxu0 0.0
    %5796 = vmatprep.subr.mxu0 0.0
    %5797 = vmatpush1.msra.mxu0 0.0
    %5798 = vmatprep.subr.mxu0 0.0
    %5799 = vmatpush1.msra.mxu0 0.0
    %5800 = vmatprep.subr.mxu0 0.0
    %5801 = vmatpush1.msra.mxu0 0.0
    %5802 = vmatprep.subr.mxu0 0.0
    %5803 = vmatpush1.msra.mxu0 0.0
    %5804 = vmatprep.subr.mxu0 0.0
    %5805 = vmatpush1.msra.mxu0 0.0
    %5806 = vmatprep.subr.mxu0 0.0
    %5807 = vmatpush1.msra.mxu0 0.0
    %5808 = vmatprep.subr.mxu0 0.0
    %5809 = vmatpush1.msra.mxu0 0.0
    %5810 = vmatprep.subr.mxu0 0.0
    %5811 = vmatpush1.msra.mxu0 0.0
    %5812 = vmatprep.subr.mxu0 0.0
    %5813 = vmatpush1.msra.mxu0 0.0
    %5814 = vmatprep.subr.mxu0 0.0
    %5815 = vmatpush1.msra.mxu0 0.0
    %5816 = vmatprep.subr.mxu0 0.0
    %5817 = vmatpush1.msra.mxu0 0.0
    %5818 = vmatprep.subr.mxu0 0.0
    %5819 = vmatpush1.msra.mxu0 0.0
    %5820 = vmatprep.subr.mxu0 0.0
    %5821 = vmatpush1.msra.mxu0 0.0
    %5822 = vmatprep.subr.mxu0 0.0
    %5823 = vmatpush1.msra.mxu0 0.0
    %5824 = vmatprep.subr.mxu0 0.0
    %5825 = vmatpush1.msra.mxu0 0.0
    %5826 = vmatprep.subr.mxu0 0.0
    %5827 = vmatpush1.msra.mxu0 0.0
    %5828 = vmatprep.subr.mxu0 0.0
    %5829 = vmatpush1.msra.mxu0 0.0
    %5830 = vmatprep.subr.mxu0 0.0
    %5831 = vmatpush1.msra.mxu0 0.0
    %5832 = vmatprep.subr.mxu0 0.0
    %5833 = vmatpush1.msra.mxu0 0.0
    %5834 = vmatprep.subr.mxu0 0.0
    %5835 = vmatpush1.msra.mxu0 0.0
    %5836 = vmatprep.subr.mxu0 0.0
    %5837 = vmatpush1.msra.mxu0 0.0
    %5838 = vmatprep.mubr.f32.mxu0 0.0
    %5839 = vmatmul.mubr.f32.gmra.mrb[0].mxu0 %v5772
    %v5840 = vpop.f32.mrb[0].mxu0
    %v5841 = vadd.f32 0.0, %v5840
    %v5842 = vpop.f32.mrb[0].mxu0
    %5843 = vdwg.mxu0
    %v5845 = vrot.slane %v5841, 4
    %v5846 = vrot.slane %v5841, 5
    %v5849 = vadd.f32 %v4573, %v5845
    %v5850 = vadd.f32 %v4578, %v5846
    %v5853 = vrot.slane %v5763, 4
    %v5854 = vrot.slane %v5764, 3
    %v5855 = vsel %vm4930, %v5854, %v5853
    %5856 = vrot.lane.b32.xlu0 %v5855, 32
    %v5857 = vpop.permute.xlu0 %5856
    %v5858 = vsel %vm283, %v5857, 0
    %5860 = vmatprep.subr.mxu0 0.0
    %5861 = vmatpush1.msra.mxu0 %v4671
    %5862 = vmatprep.subr.mxu0 0.0
    %5863 = vmatpush1.msra.mxu0 %v4672
    %5864 = vmatprep.subr.mxu0 0.0
    %5865 = vmatpush1.msra.mxu0 %v4673
    %5866 = vmatprep.subr.mxu0 0.0
    %5867 = vmatpush1.msra.mxu0 %v4674
    %5868 = vmatprep.subr.mxu0 0.0
    %5869 = vmatpush1.msra.mxu0 0.0
    %5870 = vmatprep.subr.mxu0 0.0
    %5871 = vmatpush1.msra.mxu0 0.0
    %5872 = vmatprep.subr.mxu0 0.0
    %5873 = vmatpush1.msra.mxu0 0.0
    %5874 = vmatprep.subr.mxu0 0.0
    %5875 = vmatpush1.msra.mxu0 0.0
    %5876 = vmatprep.subr.mxu0 0.0
    %5877 = vmatpush1.msra.mxu0 0.0
    %5878 = vmatprep.subr.mxu0 0.0
    %5879 = vmatpush1.msra.mxu0 0.0
    %5880 = vmatprep.subr.mxu0 0.0
    %5881 = vmatpush1.msra.mxu0 0.0
    %5882 = vmatprep.subr.mxu0 0.0
    %5883 = vmatpush1.msra.mxu0 0.0
    %5884 = vmatprep.subr.mxu0 0.0
    %5885 = vmatpush1.msra.mxu0 0.0
    %5886 = vmatprep.subr.mxu0 0.0
    %5887 = vmatpush1.msra.mxu0 0.0
    %5888 = vmatprep.subr.mxu0 0.0
    %5889 = vmatpush1.msra.mxu0 0.0
    %5890 = vmatprep.subr.mxu0 0.0
    %5891 = vmatpush1.msra.mxu0 0.0
    %5892 = vmatprep.subr.mxu0 0.0
    %5893 = vmatpush1.msra.mxu0 0.0
    %5894 = vmatprep.subr.mxu0 0.0
    %5895 = vmatpush1.msra.mxu0 0.0
    %5896 = vmatprep.subr.mxu0 0.0
    %5897 = vmatpush1.msra.mxu0 0.0
    %5898 = vmatprep.subr.mxu0 0.0
    %5899 = vmatpush1.msra.mxu0 0.0
    %5900 = vmatprep.subr.mxu0 0.0
    %5901 = vmatpush1.msra.mxu0 0.0
    %5902 = vmatprep.subr.mxu0 0.0
    %5903 = vmatpush1.msra.mxu0 0.0
    %5904 = vmatprep.subr.mxu0 0.0
    %5905 = vmatpush1.msra.mxu0 0.0
    %5906 = vmatprep.subr.mxu0 0.0
    %5907 = vmatpush1.msra.mxu0 0.0
    %5908 = vmatprep.subr.mxu0 0.0
    %5909 = vmatpush1.msra.mxu0 0.0
    %5910 = vmatprep.subr.mxu0 0.0
    %5911 = vmatpush1.msra.mxu0 0.0
    %5912 = vmatprep.subr.mxu0 0.0
    %5913 = vmatpush1.msra.mxu0 0.0
    %5914 = vmatprep.subr.mxu0 0.0
    %5915 = vmatpush1.msra.mxu0 0.0
    %5916 = vmatprep.subr.mxu0 0.0
    %5917 = vmatpush1.msra.mxu0 0.0
    %5918 = vmatprep.subr.mxu0 0.0
    %5919 = vmatpush1.msra.mxu0 0.0
    %5920 = vmatprep.subr.mxu0 0.0
    %5921 = vmatpush1.msra.mxu0 0.0
    %5922 = vmatprep.subr.mxu0 0.0
    %5923 = vmatpush1.msra.mxu0 0.0
    %5924 = vmatprep.mubr.f32.mxu0 0.0
    %5925 = vmatmul.mubr.f32.gmra.mrb[0].mxu0 %v5858
    %v5926 = vpop.f32.mrb[0].mxu0
    %v5927 = vadd.f32 0.0, %v5926
    %v5928 = vpop.f32.mrb[0].mxu0
    %5929 = vdwg.mxu0
    %v5931 = vrot.slane %v5927, 5
    %v5932 = vrot.slane %v5927, 6
    %v5935 = vadd.f32 %v4659, %v5931
    %v5936 = vadd.f32 %v4664, %v5932
    %v5937 = vxor.u32 %v5849, 2147483648
    %v5938 = vxor.u32 %v5850, 2147483648
    %v5939 = vmul.f32 %v5937, 1.442695
    %v5940 = vpow.pop %v5939
    %v5941 = vmul.f32 %v5938, 1.442695
    %v5942 = vpow.pop %v5941
    %v5943 = vadd.f32 %v5940, 1.0
    %v5944 = vadd.f32 %v5942, 1.0
    %v5945 = vrcp.pop %v5943
    %v5946 = vmul.f32 1.0, %v5945
    %v5947 = vrcp.pop %v5944
    %v5948 = vmul.f32 1.0, %v5947
    %v5949 = vtanh.pop %v5849
    %v5950 = vtanh.pop %v5850
    %v5953 = vrot.slane %v5697, 7
    %v5954 = vrot.slane %v5698, 7
    %v5957 = vmul.f32 %v5946, %v5953
    %v5958 = vmul.f32 %v5948, %v5954
    %5961 = vrot.lane.b32.xlu0 %v5949, 64
    %v5962 = vpop.permute.xlu0 %5961
    %5963 = vrot.lane.b32.xlu0 %v5950, 64
    %v5964 = vpop.permute.xlu0 %5963
    %v5967 = vmul.f32 %v5946, %v5962
    %v5968 = vmul.f32 %v5948, %v5964
    %5971 = vrot.lane.b32.xlu0 %v5967, 32
    %v5972 = vpop.permute.xlu0 %5971
    %5973 = vrot.lane.b32.xlu0 %v5968, 32
    %v5974 = vpop.permute.xlu0 %5973
    %v5977 = vadd.f32 %v5957, %v5972
    %v5978 = vadd.f32 %v5958, %v5974
    %v5979 = vtanh.pop %v5977
    %v5980 = vtanh.pop %v5978
    %5983 = vrot.lane.b32.xlu0 %v5979, 64
    %v5984 = vpop.permute.xlu0 %5983
    %5985 = vrot.lane.b32.xlu0 %v5980, 64
    %v5986 = vpop.permute.xlu0 %5985
    %v5989 = vmul.f32 %v5946, %v5984
    %v5990 = vmul.f32 %v5948, %v5986
    %v5991 = vxor.u32 %v5935, 2147483648
    %v5992 = vxor.u32 %v5936, 2147483648
    %v5993 = vmul.f32 %v5991, 1.442695
    %v5994 = vpow.pop %v5993
    %v5995 = vmul.f32 %v5992, 1.442695
    %v5996 = vpow.pop %v5995
    %v5997 = vadd.f32 %v5994, 1.0
    %v5998 = vadd.f32 %v5996, 1.0
    %v5999 = vrcp.pop %v5997
    %v6000 = vmul.f32 1.0, %v5999
    %v6001 = vrcp.pop %v5998
    %v6002 = vmul.f32 1.0, %v6001
    %v6003 = vtanh.pop %v5935
    %v6004 = vtanh.pop %v5936
    %v6007 = vrot.slane %v5751, 1
    %v6008 = vrot.slane %v5752, 1
    %v6011 = vmul.f32 %v6000, %v6007
    %v6012 = vmul.f32 %v6002, %v6008
    %6015 = vrot.lane.b32.xlu0 %v6003, 64
    %v6016 = vpop.permute.xlu0 %6015
    %6017 = vrot.lane.b32.xlu0 %v6004, 64
    %v6018 = vpop.permute.xlu0 %6017
    %v6021 = vmul.f32 %v6000, %v6016
    %v6022 = vmul.f32 %v6002, %v6018
    %6025 = vrot.lane.b32.xlu0 %v6021, 32
    %v6026 = vpop.permute.xlu0 %6025
    %6027 = vrot.lane.b32.xlu0 %v6022, 32
    %v6028 = vpop.permute.xlu0 %6027
    %v6031 = vadd.f32 %v6011, %v6026
    %v6032 = vadd.f32 %v6012, %v6028
    %v6033 = vtanh.pop %v6031
    %v6034 = vtanh.pop %v6032
    %6037 = vrot.lane.b32.xlu0 %v6033, 64
    %v6038 = vpop.permute.xlu0 %6037
    %6039 = vrot.lane.b32.xlu0 %v6034, 64
    %v6040 = vpop.permute.xlu0 %6039
    %v6043 = vmul.f32 %v6000, %v6038
    %v6044 = vmul.f32 %v6002, %v6040
    %v6047 = vrot.slane %v5989, 4
    %v6048 = vrot.slane %v5990, 3
    %v6049 = vsel %vm4930, %v6048, %v6047
    %6050 = vrot.lane.b32.xlu0 %v6049, 32
    %v6051 = vpop.permute.xlu0 %6050
    %v6052 = vsel %vm283, %v6051, 0
    %6054 = vmatprep.subr.mxu0 0.0
    %6055 = vmatpush1.msra.mxu0 %v4667
    %6056 = vmatprep.subr.mxu0 0.0
    %6057 = vmatpush1.msra.mxu0 %v4668
    %6058 = vmatprep.subr.mxu0 0.0
    %6059 = vmatpush1.msra.mxu0 %v4669
    %6060 = vmatprep.subr.mxu0 0.0
    %6061 = vmatpush1.msra.mxu0 %v4670
    %6062 = vmatprep.subr.mxu0 0.0
    %6063 = vmatpush1.msra.mxu0 0.0
    %6064 = vmatprep.subr.mxu0 0.0
    %6065 = vmatpush1.msra.mxu0 0.0
    %6066 = vmatprep.subr.mxu0 0.0
    %6067 = vmatpush1.msra.mxu0 0.0
    %6068 = vmatprep.subr.mxu0 0.0
    %6069 = vmatpush1.msra.mxu0 0.0
    %6070 = vmatprep.subr.mxu0 0.0
    %6071 = vmatpush1.msra.mxu0 0.0
    %6072 = vmatprep.subr.mxu0 0.0
    %6073 = vmatpush1.msra.mxu0 0.0
    %6074 = vmatprep.subr.mxu0 0.0
    %6075 = vmatpush1.msra.mxu0 0.0
    %6076 = vmatprep.subr.mxu0 0.0
    %6077 = vmatpush1.msra.mxu0 0.0
    %6078 = vmatprep.subr.mxu0 0.0
    %6079 = vmatpush1.msra.mxu0 0.0
    %6080 = vmatprep.subr.mxu0 0.0
    %6081 = vmatpush1.msra.mxu0 0.0
    %6082 = vmatprep.subr.mxu0 0.0
    %6083 = vmatpush1.msra.mxu0 0.0
    %6084 = vmatprep.subr.mxu0 0.0
    %6085 = vmatpush1.msra.mxu0 0.0
    %6086 = vmatprep.subr.mxu0 0.0
    %6087 = vmatpush1.msra.mxu0 0.0
    %6088 = vmatprep.subr.mxu0 0.0
    %6089 = vmatpush1.msra.mxu0 0.0
    %6090 = vmatprep.subr.mxu0 0.0
    %6091 = vmatpush1.msra.mxu0 0.0
    %6092 = vmatprep.subr.mxu0 0.0
    %6093 = vmatpush1.msra.mxu0 0.0
    %6094 = vmatprep.subr.mxu0 0.0
    %6095 = vmatpush1.msra.mxu0 0.0
    %6096 = vmatprep.subr.mxu0 0.0
    %6097 = vmatpush1.msra.mxu0 0.0
    %6098 = vmatprep.subr.mxu0 0.0
    %6099 = vmatpush1.msra.mxu0 0.0
    %6100 = vmatprep.subr.mxu0 0.0
    %6101 = vmatpush1.msra.mxu0 0.0
    %6102 = vmatprep.subr.mxu0 0.0
    %6103 = vmatpush1.msra.mxu0 0.0
    %6104 = vmatprep.subr.mxu0 0.0
    %6105 = vmatpush1.msra.mxu0 0.0
    %6106 = vmatprep.subr.mxu0 0.0
    %6107 = vmatpush1.msra.mxu0 0.0
    %6108 = vmatprep.subr.mxu0 0.0
    %6109 = vmatpush1.msra.mxu0 0.0
    %6110 = vmatprep.subr.mxu0 0.0
    %6111 = vmatpush1.msra.mxu0 0.0
    %6112 = vmatprep.subr.mxu0 0.0
    %6113 = vmatpush1.msra.mxu0 0.0
    %6114 = vmatprep.subr.mxu0 0.0
    %6115 = vmatpush1.msra.mxu0 0.0
    %6116 = vmatprep.subr.mxu0 0.0
    %6117 = vmatpush1.msra.mxu0 0.0
    %6118 = vmatprep.mubr.f32.mxu0 0.0
    %6119 = vmatmul.mubr.f32.gmra.mrb[0].mxu0 %v6052
    %v6120 = vpop.f32.mrb[0].mxu0
    %v6121 = vadd.f32 0.0, %v6120
    %v6122 = vpop.f32.mrb[0].mxu0
    %6123 = vdwg.mxu0
    %v6125 = vrot.slane %v6121, 3
    %v6126 = vrot.slane %v6121, 4
    %v6129 = vadd.f32 %v4573, %v6125
    %v6130 = vadd.f32 %v4578, %v6126
    %v6133 = vrot.slane %v6043, 3
    %v6134 = vrot.slane %v6044, 2
    %v6135 = vsel %vm4930, %v6134, %v6133
    %6136 = vrot.lane.b32.xlu0 %v6135, 32
    %v6137 = vpop.permute.xlu0 %6136
    %v6138 = vsel %vm283, %v6137, 0
    %6140 = vmatprep.subr.mxu0 0.0
    %6141 = vmatpush1.msra.mxu0 %v4671
    %6142 = vmatprep.subr.mxu0 0.0
    %6143 = vmatpush1.msra.mxu0 %v4672
    %6144 = vmatprep.subr.mxu0 0.0
    %6145 = vmatpush1.msra.mxu0 %v4673
    %6146 = vmatprep.subr.mxu0 0.0
    %6147 = vmatpush1.msra.mxu0 %v4674
    %6148 = vmatprep.subr.mxu0 0.0
    %6149 = vmatpush1.msra.mxu0 0.0
    %6150 = vmatprep.subr.mxu0 0.0
    %6151 = vmatpush1.msra.mxu0 0.0
    %6152 = vmatprep.subr.mxu0 0.0
    %6153 = vmatpush1.msra.mxu0 0.0
    %6154 = vmatprep.subr.mxu0 0.0
    %6155 = vmatpush1.msra.mxu0 0.0
    %6156 = vmatprep.subr.mxu0 0.0
    %6157 = vmatpush1.msra.mxu0 0.0
    %6158 = vmatprep.subr.mxu0 0.0
    %6159 = vmatpush1.msra.mxu0 0.0
    %6160 = vmatprep.subr.mxu0 0.0
    %6161 = vmatpush1.msra.mxu0 0.0
    %6162 = vmatprep.subr.mxu0 0.0
    %6163 = vmatpush1.msra.mxu0 0.0
    %6164 = vmatprep.subr.mxu0 0.0
    %6165 = vmatpush1.msra.mxu0 0.0
    %6166 = vmatprep.subr.mxu0 0.0
    %6167 = vmatpush1.msra.mxu0 0.0
    %6168 = vmatprep.subr.mxu0 0.0
    %6169 = vmatpush1.msra.mxu0 0.0
    %6170 = vmatprep.subr.mxu0 0.0
    %6171 = vmatpush1.msra.mxu0 0.0
    %6172 = vmatprep.subr.mxu0 0.0
    %6173 = vmatpush1.msra.mxu0 0.0
    %6174 = vmatprep.subr.mxu0 0.0
    %6175 = vmatpush1.msra.mxu0 0.0
    %6176 = vmatprep.subr.mxu0 0.0
    %6177 = vmatpush1.msra.mxu0 0.0
    %6178 = vmatprep.subr.mxu0 0.0
    %6179 = vmatpush1.msra.mxu0 0.0
    %6180 = vmatprep.subr.mxu0 0.0
    %6181 = vmatpush1.msra.mxu0 0.0
    %6182 = vmatprep.subr.mxu0 0.0
    %6183 = vmatpush1.msra.mxu0 0.0
    %6184 = vmatprep.subr.mxu0 0.0
    %6185 = vmatpush1.msra.mxu0 0.0
    %6186 = vmatprep.subr.mxu0 0.0
    %6187 = vmatpush1.msra.mxu0 0.0
    %6188 = vmatprep.subr.mxu0 0.0
    %6189 = vmatpush1.msra.mxu0 0.0
    %6190 = vmatprep.subr.mxu0 0.0
    %6191 = vmatpush1.msra.mxu0 0.0
    %6192 = vmatprep.subr.mxu0 0.0
    %6193 = vmatpush1.msra.mxu0 0.0
    %6194 = vmatprep.subr.mxu0 0.0
    %6195 = vmatpush1.msra.mxu0 0.0
    %6196 = vmatprep.subr.mxu0 0.0
    %6197 = vmatpush1.msra.mxu0 0.0
    %6198 = vmatprep.subr.mxu0 0.0
    %6199 = vmatpush1.msra.mxu0 0.0
    %6200 = vmatprep.subr.mxu0 0.0
    %6201 = vmatpush1.msra.mxu0 0.0
    %6202 = vmatprep.subr.mxu0 0.0
    %6203 = vmatpush1.msra.mxu0 0.0
    %6204 = vmatprep.mubr.f32.mxu0 0.0
    %6205 = vmatmul.mubr.f32.gmra.mrb[0].mxu0 %v6138
    %v6206 = vpop.f32.mrb[0].mxu0
    %v6207 = vadd.f32 0.0, %v6206
    %v6208 = vpop.f32.mrb[0].mxu0
    %6209 = vdwg.mxu0
    %v6211 = vrot.slane %v6207, 6
    %v6212 = vrot.slane %v6207, 7
    %v6215 = vadd.f32 %v4659, %v6211
    %v6216 = vadd.f32 %v4664, %v6212
    %v6217 = vxor.u32 %v6129, 2147483648
    %v6218 = vxor.u32 %v6130, 2147483648
    %v6219 = vmul.f32 %v6217, 1.442695
    %v6220 = vpow.pop %v6219
    %v6221 = vmul.f32 %v6218, 1.442695
    %v6222 = vpow.pop %v6221
    %v6223 = vadd.f32 %v6220, 1.0
    %v6224 = vadd.f32 %v6222, 1.0
    %v6225 = vrcp.pop %v6223
    %v6226 = vmul.f32 1.0, %v6225
    %v6227 = vrcp.pop %v6224
    %v6228 = vmul.f32 1.0, %v6227
    %v6229 = vtanh.pop %v6129
    %v6230 = vtanh.pop %v6130
    %v6233 = vrot.slane %v5977, 7
    %v6234 = vrot.slane %v5978, 7
    %v6237 = vmul.f32 %v6226, %v6233
    %v6238 = vmul.f32 %v6228, %v6234
    %6241 = vrot.lane.b32.xlu0 %v6229, 64
    %v6242 = vpop.permute.xlu0 %6241
    %6243 = vrot.lane.b32.xlu0 %v6230, 64
    %v6244 = vpop.permute.xlu0 %6243
    %v6247 = vmul.f32 %v6226, %v6242
    %v6248 = vmul.f32 %v6228, %v6244
    %6251 = vrot.lane.b32.xlu0 %v6247, 32
    %v6252 = vpop.permute.xlu0 %6251
    %6253 = vrot.lane.b32.xlu0 %v6248, 32
    %v6254 = vpop.permute.xlu0 %6253
    %v6257 = vadd.f32 %v6237, %v6252
    %v6258 = vadd.f32 %v6238, %v6254
    %v6259 = vtanh.pop %v6257
    %v6260 = vtanh.pop %v6258
    %6263 = vrot.lane.b32.xlu0 %v6259, 64
    %v6264 = vpop.permute.xlu0 %6263
    %6265 = vrot.lane.b32.xlu0 %v6260, 64
    %v6266 = vpop.permute.xlu0 %6265
    %v6269 = vmul.f32 %v6226, %v6264
    %v6270 = vmul.f32 %v6228, %v6266
    %v6271 = vxor.u32 %v6215, 2147483648
    %v6272 = vxor.u32 %v6216, 2147483648
    %v6273 = vmul.f32 %v6271, 1.442695
    %v6274 = vpow.pop %v6273
    %v6275 = vmul.f32 %v6272, 1.442695
    %v6276 = vpow.pop %v6275
    %v6277 = vadd.f32 %v6274, 1.0
    %v6278 = vadd.f32 %v6276, 1.0
    %v6279 = vrcp.pop %v6277
    %v6280 = vmul.f32 1.0, %v6279
    %v6281 = vrcp.pop %v6278
    %v6282 = vmul.f32 1.0, %v6281
    %v6283 = vtanh.pop %v6215
    %v6284 = vtanh.pop %v6216
    %v6287 = vrot.slane %v6031, 1
    %v6288 = vrot.slane %v6032, 1
    %v6291 = vmul.f32 %v6280, %v6287
    %v6292 = vmul.f32 %v6282, %v6288
    %6295 = vrot.lane.b32.xlu0 %v6283, 64
    %v6296 = vpop.permute.xlu0 %6295
    %6297 = vrot.lane.b32.xlu0 %v6284, 64
    %v6298 = vpop.permute.xlu0 %6297
    %v6301 = vmul.f32 %v6280, %v6296
    %v6302 = vmul.f32 %v6282, %v6298
    %6305 = vrot.lane.b32.xlu0 %v6301, 32
    %v6306 = vpop.permute.xlu0 %6305
    %6307 = vrot.lane.b32.xlu0 %v6302, 32
    %v6308 = vpop.permute.xlu0 %6307
    %v6311 = vadd.f32 %v6291, %v6306
    %v6312 = vadd.f32 %v6292, %v6308
    %v6313 = vtanh.pop %v6311
    %v6314 = vtanh.pop %v6312
    %6317 = vrot.lane.b32.xlu0 %v6313, 64
    %v6318 = vpop.permute.xlu0 %6317
    %6319 = vrot.lane.b32.xlu0 %v6314, 64
    %v6320 = vpop.permute.xlu0 %6319
    %v6323 = vmul.f32 %v6280, %v6318
    %v6324 = vmul.f32 %v6282, %v6320
    %v6327 = vrot.slane %v6269, 5
    %v6328 = vrot.slane %v6270, 4
    %v6329 = vsel %vm4930, %v6328, %v6327
    %6330 = vrot.lane.b32.xlu0 %v6329, 32
    %v6331 = vpop.permute.xlu0 %6330
    %v6332 = vsel %vm283, %v6331, 0
    %6334 = vmatprep.subr.mxu0 0.0
    %6335 = vmatpush1.msra.mxu0 %v4667
    %6336 = vmatprep.subr.mxu0 0.0
    %6337 = vmatpush1.msra.mxu0 %v4668
    %6338 = vmatprep.subr.mxu0 0.0
    %6339 = vmatpush1.msra.mxu0 %v4669
    %6340 = vmatprep.subr.mxu0 0.0
    %6341 = vmatpush1.msra.mxu0 %v4670
    %6342 = vmatprep.subr.mxu0 0.0
    %6343 = vmatpush1.msra.mxu0 0.0
    %6344 = vmatprep.subr.mxu0 0.0
    %6345 = vmatpush1.msra.mxu0 0.0
    %6346 = vmatprep.subr.mxu0 0.0
    %6347 = vmatpush1.msra.mxu0 0.0
    %6348 = vmatprep.subr.mxu0 0.0
    %6349 = vmatpush1.msra.mxu0 0.0
    %6350 = vmatprep.subr.mxu0 0.0
    %6351 = vmatpush1.msra.mxu0 0.0
    %6352 = vmatprep.subr.mxu0 0.0
    %6353 = vmatpush1.msra.mxu0 0.0
    %6354 = vmatprep.subr.mxu0 0.0
    %6355 = vmatpush1.msra.mxu0 0.0
    %6356 = vmatprep.subr.mxu0 0.0
    %6357 = vmatpush1.msra.mxu0 0.0
    %6358 = vmatprep.subr.mxu0 0.0
    %6359 = vmatpush1.msra.mxu0 0.0
    %6360 = vmatprep.subr.mxu0 0.0
    %6361 = vmatpush1.msra.mxu0 0.0
    %6362 = vmatprep.subr.mxu0 0.0
    %6363 = vmatpush1.msra.mxu0 0.0
    %6364 = vmatprep.subr.mxu0 0.0
    %6365 = vmatpush1.msra.mxu0 0.0
    %6366 = vmatprep.subr.mxu0 0.0
    %6367 = vmatpush1.msra.mxu0 0.0
    %6368 = vmatprep.subr.mxu0 0.0
    %6369 = vmatpush1.msra.mxu0 0.0
    %6370 = vmatprep.subr.mxu0 0.0
    %6371 = vmatpush1.msra.mxu0 0.0
    %6372 = vmatprep.subr.mxu0 0.0
    %6373 = vmatpush1.msra.mxu0 0.0
    %6374 = vmatprep.subr.mxu0 0.0
    %6375 = vmatpush1.msra.mxu0 0.0
    %6376 = vmatprep.subr.mxu0 0.0
    %6377 = vmatpush1.msra.mxu0 0.0
    %6378 = vmatprep.subr.mxu0 0.0
    %6379 = vmatpush1.msra.mxu0 0.0
    %6380 = vmatprep.subr.mxu0 0.0
    %6381 = vmatpush1.msra.mxu0 0.0
    %6382 = vmatprep.subr.mxu0 0.0
    %6383 = vmatpush1.msra.mxu0 0.0
    %6384 = vmatprep.subr.mxu0 0.0
    %6385 = vmatpush1.msra.mxu0 0.0
    %6386 = vmatprep.subr.mxu0 0.0
    %6387 = vmatpush1.msra.mxu0 0.0
    %6388 = vmatprep.subr.mxu0 0.0
    %6389 = vmatpush1.msra.mxu0 0.0
    %6390 = vmatprep.subr.mxu0 0.0
    %6391 = vmatpush1.msra.mxu0 0.0
    %6392 = vmatprep.subr.mxu0 0.0
    %6393 = vmatpush1.msra.mxu0 0.0
    %6394 = vmatprep.subr.mxu0 0.0
    %6395 = vmatpush1.msra.mxu0 0.0
    %6396 = vmatprep.subr.mxu0 0.0
    %6397 = vmatpush1.msra.mxu0 0.0
    %6398 = vmatprep.mubr.f32.mxu0 0.0
    %6399 = vmatmul.mubr.f32.gmra.mrb[0].mxu0 %v6332
    %v6400 = vpop.f32.mrb[0].mxu0
    %v6401 = vadd.f32 0.0, %v6400
    %v6402 = vpop.f32.mrb[0].mxu0
    %6403 = vdwg.mxu0
    %v6405 = vrot.slane %v6401, 2
    %v6406 = vrot.slane %v6401, 3
    %v6409 = vadd.f32 %v4573, %v6405
    %v6410 = vadd.f32 %v4578, %v6406
    %v6413 = vrot.slane %v6323, 2
    %v6414 = vrot.slane %v6324, 1
    %v6415 = vsel %vm4930, %v6414, %v6413
    %6416 = vrot.lane.b32.xlu0 %v6415, 32
    %v6417 = vpop.permute.xlu0 %6416
    %v6418 = vsel %vm283, %v6417, 0
    %6420 = vmatprep.subr.mxu0 0.0
    %6421 = vmatpush1.msra.mxu0 %v4671
    %6422 = vmatprep.subr.mxu0 0.0
    %6423 = vmatpush1.msra.mxu0 %v4672
    %6424 = vmatprep.subr.mxu0 0.0
    %6425 = vmatpush1.msra.mxu0 %v4673
    %6426 = vmatprep.subr.mxu0 0.0
    %6427 = vmatpush1.msra.mxu0 %v4674
    %6428 = vmatprep.subr.mxu0 0.0
    %6429 = vmatpush1.msra.mxu0 0.0
    %6430 = vmatprep.subr.mxu0 0.0
    %6431 = vmatpush1.msra.mxu0 0.0
    %6432 = vmatprep.subr.mxu0 0.0
    %6433 = vmatpush1.msra.mxu0 0.0
    %6434 = vmatprep.subr.mxu0 0.0
    %6435 = vmatpush1.msra.mxu0 0.0
    %6436 = vmatprep.subr.mxu0 0.0
    %6437 = vmatpush1.msra.mxu0 0.0
    %6438 = vmatprep.subr.mxu0 0.0
    %6439 = vmatpush1.msra.mxu0 0.0
    %6440 = vmatprep.subr.mxu0 0.0
    %6441 = vmatpush1.msra.mxu0 0.0
    %6442 = vmatprep.subr.mxu0 0.0
    %6443 = vmatpush1.msra.mxu0 0.0
    %6444 = vmatprep.subr.mxu0 0.0
    %6445 = vmatpush1.msra.mxu0 0.0
    %6446 = vmatprep.subr.mxu0 0.0
    %6447 = vmatpush1.msra.mxu0 0.0
    %6448 = vmatprep.subr.mxu0 0.0
    %6449 = vmatpush1.msra.mxu0 0.0
    %6450 = vmatprep.subr.mxu0 0.0
    %6451 = vmatpush1.msra.mxu0 0.0
    %6452 = vmatprep.subr.mxu0 0.0
    %6453 = vmatpush1.msra.mxu0 0.0
    %6454 = vmatprep.subr.mxu0 0.0
    %6455 = vmatpush1.msra.mxu0 0.0
    %6456 = vmatprep.subr.mxu0 0.0
    %6457 = vmatpush1.msra.mxu0 0.0
    %6458 = vmatprep.subr.mxu0 0.0
    %6459 = vmatpush1.msra.mxu0 0.0
    %6460 = vmatprep.subr.mxu0 0.0
    %6461 = vmatpush1.msra.mxu0 0.0
    %6462 = vmatprep.subr.mxu0 0.0
    %6463 = vmatpush1.msra.mxu0 0.0
    %6464 = vmatprep.subr.mxu0 0.0
    %6465 = vmatpush1.msra.mxu0 0.0
    %6466 = vmatprep.subr.mxu0 0.0
    %6467 = vmatpush1.msra.mxu0 0.0
    %6468 = vmatprep.subr.mxu0 0.0
    %6469 = vmatpush1.msra.mxu0 0.0
    %6470 = vmatprep.subr.mxu0 0.0
    %6471 = vmatpush1.msra.mxu0 0.0
    %6472 = vmatprep.subr.mxu0 0.0
    %6473 = vmatpush1.msra.mxu0 0.0
    %6474 = vmatprep.subr.mxu0 0.0
    %6475 = vmatpush1.msra.mxu0 0.0
    %6476 = vmatprep.subr.mxu0 0.0
    %6477 = vmatpush1.msra.mxu0 0.0
    %6478 = vmatprep.subr.mxu0 0.0
    %6479 = vmatpush1.msra.mxu0 0.0
    %6480 = vmatprep.subr.mxu0 0.0
    %6481 = vmatpush1.msra.mxu0 0.0
    %6482 = vmatprep.subr.mxu0 0.0
    %6483 = vmatpush1.msra.mxu0 0.0
    %6484 = vmatprep.mubr.f32.mxu0 0.0
    %6485 = vmatmul.mubr.f32.gmra.mrb[0].mxu0 %v6418
    %v6486 = vpop.f32.mrb[0].mxu0
    %v6487 = vadd.f32 0.0, %v6486
    %v6488 = vpop.f32.mrb[0].mxu0
    %6489 = vdwg.mxu0
    %v6491 = vrot.slane %v6487, 7
    %v6494 = vadd.f32 %v4659, %v6491
    %v6495 = vadd.f32 %v4664, %v6487
    %v6496 = vxor.u32 %v6409, 2147483648
    %v6497 = vxor.u32 %v6410, 2147483648
    %v6498 = vmul.f32 %v6496, 1.442695
    %v6499 = vpow.pop %v6498
    %v6500 = vmul.f32 %v6497, 1.442695
    %v6501 = vpow.pop %v6500
    %v6502 = vadd.f32 %v6499, 1.0
    %v6503 = vadd.f32 %v6501, 1.0
    %v6504 = vrcp.pop %v6502
    %v6505 = vmul.f32 1.0, %v6504
    %v6506 = vrcp.pop %v6503
    %v6507 = vmul.f32 1.0, %v6506
    %v6508 = vtanh.pop %v6409
    %v6509 = vtanh.pop %v6410
    %v6512 = vrot.slane %v6257, 7
    %v6513 = vrot.slane %v6258, 7
    %v6516 = vmul.f32 %v6505, %v6512
    %v6517 = vmul.f32 %v6507, %v6513
    %6520 = vrot.lane.b32.xlu0 %v6508, 64
    %v6521 = vpop.permute.xlu0 %6520
    %6522 = vrot.lane.b32.xlu0 %v6509, 64
    %v6523 = vpop.permute.xlu0 %6522
    %v6526 = vmul.f32 %v6505, %v6521
    %v6527 = vmul.f32 %v6507, %v6523
    %6530 = vrot.lane.b32.xlu0 %v6526, 32
    %v6531 = vpop.permute.xlu0 %6530
    %6532 = vrot.lane.b32.xlu0 %v6527, 32
    %v6533 = vpop.permute.xlu0 %6532
    %v6536 = vadd.f32 %v6516, %v6531
    %v6537 = vadd.f32 %v6517, %v6533
    %v6538 = vtanh.pop %v6536
    %v6539 = vtanh.pop %v6537
    %6542 = vrot.lane.b32.xlu0 %v6538, 64
    %v6543 = vpop.permute.xlu0 %6542
    %6544 = vrot.lane.b32.xlu0 %v6539, 64
    %v6545 = vpop.permute.xlu0 %6544
    %v6548 = vmul.f32 %v6505, %v6543
    %v6549 = vmul.f32 %v6507, %v6545
    %v6550 = vxor.u32 %v6494, 2147483648
    %v6551 = vxor.u32 %v6495, 2147483648
    %v6552 = vmul.f32 %v6550, 1.442695
    %v6553 = vpow.pop %v6552
    %v6554 = vmul.f32 %v6551, 1.442695
    %v6555 = vpow.pop %v6554
    %v6556 = vadd.f32 %v6553, 1.0
    %v6557 = vadd.f32 %v6555, 1.0
    %v6558 = vrcp.pop %v6556
    %v6559 = vmul.f32 1.0, %v6558
    %v6560 = vrcp.pop %v6557
    %v6561 = vmul.f32 1.0, %v6560
    %v6562 = vtanh.pop %v6494
    %v6563 = vtanh.pop %v6495
    %v6566 = vrot.slane %v6311, 1
    %v6567 = vrot.slane %v6312, 1
    %v6570 = vmul.f32 %v6559, %v6566
    %v6571 = vmul.f32 %v6561, %v6567
    %6574 = vrot.lane.b32.xlu0 %v6562, 64
    %v6575 = vpop.permute.xlu0 %6574
    %6576 = vrot.lane.b32.xlu0 %v6563, 64
    %v6577 = vpop.permute.xlu0 %6576
    %v6580 = vmul.f32 %v6559, %v6575
    %v6581 = vmul.f32 %v6561, %v6577
    %6584 = vrot.lane.b32.xlu0 %v6580, 32
    %v6585 = vpop.permute.xlu0 %6584
    %6586 = vrot.lane.b32.xlu0 %v6581, 32
    %v6587 = vpop.permute.xlu0 %6586
    %v6590 = vadd.f32 %v6570, %v6585
    %v6591 = vadd.f32 %v6571, %v6587
    %v6592 = vtanh.pop %v6590
    %v6593 = vtanh.pop %v6591
    %6596 = vrot.lane.b32.xlu0 %v6592, 64
    %v6597 = vpop.permute.xlu0 %6596
    %6598 = vrot.lane.b32.xlu0 %v6593, 64
    %v6599 = vpop.permute.xlu0 %6598
    %v6602 = vmul.f32 %v6559, %v6597
    %v6603 = vmul.f32 %v6561, %v6599
    %v6606 = vrot.slane %v6548, 6
    %v6607 = vrot.slane %v6549, 5
    %v6608 = vsel %vm4930, %v6607, %v6606
    %6609 = vrot.lane.b32.xlu0 %v6608, 32
    %v6610 = vpop.permute.xlu0 %6609
    %v6611 = vsel %vm283, %v6610, 0
    %6613 = vmatprep.subr.mxu0 0.0
    %6614 = vmatpush1.msra.mxu0 %v4667
    %6615 = vmatprep.subr.mxu0 0.0
    %6616 = vmatpush1.msra.mxu0 %v4668
    %6617 = vmatprep.subr.mxu0 0.0
    %6618 = vmatpush1.msra.mxu0 %v4669
    %6619 = vmatprep.subr.mxu0 0.0
    %6620 = vmatpush1.msra.mxu0 %v4670
    %6621 = vmatprep.subr.mxu0 0.0
    %6622 = vmatpush1.msra.mxu0 0.0
    %6623 = vmatprep.subr.mxu0 0.0
    %6624 = vmatpush1.msra.mxu0 0.0
    %6625 = vmatprep.subr.mxu0 0.0
    %6626 = vmatpush1.msra.mxu0 0.0
    %6627 = vmatprep.subr.mxu0 0.0
    %6628 = vmatpush1.msra.mxu0 0.0
    %6629 = vmatprep.subr.mxu0 0.0
    %6630 = vmatpush1.msra.mxu0 0.0
    %6631 = vmatprep.subr.mxu0 0.0
    %6632 = vmatpush1.msra.mxu0 0.0
    %6633 = vmatprep.subr.mxu0 0.0
    %6634 = vmatpush1.msra.mxu0 0.0
    %6635 = vmatprep.subr.mxu0 0.0
    %6636 = vmatpush1.msra.mxu0 0.0
    %6637 = vmatprep.subr.mxu0 0.0
    %6638 = vmatpush1.msra.mxu0 0.0
    %6639 = vmatprep.subr.mxu0 0.0
    %6640 = vmatpush1.msra.mxu0 0.0
    %6641 = vmatprep.subr.mxu0 0.0
    %6642 = vmatpush1.msra.mxu0 0.0
    %6643 = vmatprep.subr.mxu0 0.0
    %6644 = vmatpush1.msra.mxu0 0.0
    %6645 = vmatprep.subr.mxu0 0.0
    %6646 = vmatpush1.msra.mxu0 0.0
    %6647 = vmatprep.subr.mxu0 0.0
    %6648 = vmatpush1.msra.mxu0 0.0
    %6649 = vmatprep.subr.mxu0 0.0
    %6650 = vmatpush1.msra.mxu0 0.0
    %6651 = vmatprep.subr.mxu0 0.0
    %6652 = vmatpush1.msra.mxu0 0.0
    %6653 = vmatprep.subr.mxu0 0.0
    %6654 = vmatpush1.msra.mxu0 0.0
    %6655 = vmatprep.subr.mxu0 0.0
    %6656 = vmatpush1.msra.mxu0 0.0
    %6657 = vmatprep.subr.mxu0 0.0
    %6658 = vmatpush1.msra.mxu0 0.0
    %6659 = vmatprep.subr.mxu0 0.0
    %6660 = vmatpush1.msra.mxu0 0.0
    %6661 = vmatprep.subr.mxu0 0.0
    %6662 = vmatpush1.msra.mxu0 0.0
    %6663 = vmatprep.subr.mxu0 0.0
    %6664 = vmatpush1.msra.mxu0 0.0
    %6665 = vmatprep.subr.mxu0 0.0
    %6666 = vmatpush1.msra.mxu0 0.0
    %6667 = vmatprep.subr.mxu0 0.0
    %6668 = vmatpush1.msra.mxu0 0.0
    %6669 = vmatprep.subr.mxu0 0.0
    %6670 = vmatpush1.msra.mxu0 0.0
    %6671 = vmatprep.subr.mxu0 0.0
    %6672 = vmatpush1.msra.mxu0 0.0
    %6673 = vmatprep.subr.mxu0 0.0
    %6674 = vmatpush1.msra.mxu0 0.0
    %6675 = vmatprep.subr.mxu0 0.0
    %6676 = vmatpush1.msra.mxu0 0.0
    %6677 = vmatprep.mubr.f32.mxu0 0.0
    %6678 = vmatmul.mubr.f32.gmra.mrb[0].mxu0 %v6611
    %v6679 = vpop.f32.mrb[0].mxu0
    %v6680 = vadd.f32 0.0, %v6679
    %v6681 = vpop.f32.mrb[0].mxu0
    %6682 = vdwg.mxu0
    %v6684 = vrot.slane %v6680, 1
    %v6685 = vrot.slane %v6680, 2
    %v6688 = vadd.f32 %v4573, %v6684
    %v6689 = vadd.f32 %v4578, %v6685
    %v6692 = vrot.slane %v6602, 1
    %v6693 = vsel %vm4930, %v6603, %v6692
    %6694 = vrot.lane.b32.xlu0 %v6693, 32
    %v6695 = vpop.permute.xlu0 %6694
    %v6696 = vsel %vm283, %v6695, 0
    %6698 = vmatprep.subr.mxu0 0.0
    %6699 = vmatpush1.msra.mxu0 %v4671
    %6700 = vmatprep.subr.mxu0 0.0
    %6701 = vmatpush1.msra.mxu0 %v4672
    %6702 = vmatprep.subr.mxu0 0.0
    %6703 = vmatpush1.msra.mxu0 %v4673
    %6704 = vmatprep.subr.mxu0 0.0
    %6705 = vmatpush1.msra.mxu0 %v4674
    %6706 = vmatprep.subr.mxu0 0.0
    %6707 = vmatpush1.msra.mxu0 0.0
    %6708 = vmatprep.subr.mxu0 0.0
    %6709 = vmatpush1.msra.mxu0 0.0
    %6710 = vmatprep.subr.mxu0 0.0
    %6711 = vmatpush1.msra.mxu0 0.0
    %6712 = vmatprep.subr.mxu0 0.0
    %6713 = vmatpush1.msra.mxu0 0.0
    %6714 = vmatprep.subr.mxu0 0.0
    %6715 = vmatpush1.msra.mxu0 0.0
    %6716 = vmatprep.subr.mxu0 0.0
    %6717 = vmatpush1.msra.mxu0 0.0
    %6718 = vmatprep.subr.mxu0 0.0
    %6719 = vmatpush1.msra.mxu0 0.0
    %6720 = vmatprep.subr.mxu0 0.0
    %6721 = vmatpush1.msra.mxu0 0.0
    %6722 = vmatprep.subr.mxu0 0.0
    %6723 = vmatpush1.msra.mxu0 0.0
    %6724 = vmatprep.subr.mxu0 0.0
    %6725 = vmatpush1.msra.mxu0 0.0
    %6726 = vmatprep.subr.mxu0 0.0
    %6727 = vmatpush1.msra.mxu0 0.0
    %6728 = vmatprep.subr.mxu0 0.0
    %6729 = vmatpush1.msra.mxu0 0.0
    %6730 = vmatprep.subr.mxu0 0.0
    %6731 = vmatpush1.msra.mxu0 0.0
    %6732 = vmatprep.subr.mxu0 0.0
    %6733 = vmatpush1.msra.mxu0 0.0
    %6734 = vmatprep.subr.mxu0 0.0
    %6735 = vmatpush1.msra.mxu0 0.0
    %6736 = vmatprep.subr.mxu0 0.0
    %6737 = vmatpush1.msra.mxu0 0.0
    %6738 = vmatprep.subr.mxu0 0.0
    %6739 = vmatpush1.msra.mxu0 0.0
    %6740 = vmatprep.subr.mxu0 0.0
    %6741 = vmatpush1.msra.mxu0 0.0
    %6742 = vmatprep.subr.mxu0 0.0
    %6743 = vmatpush1.msra.mxu0 0.0
    %6744 = vmatprep.subr.mxu0 0.0
    %6745 = vmatpush1.msra.mxu0 0.0
    %6746 = vmatprep.subr.mxu0 0.0
    %6747 = vmatpush1.msra.mxu0 0.0
    %6748 = vmatprep.subr.mxu0 0.0
    %6749 = vmatpush1.msra.mxu0 0.0
    %6750 = vmatprep.subr.mxu0 0.0
    %6751 = vmatpush1.msra.mxu0 0.0
    %6752 = vmatprep.subr.mxu0 0.0
    %6753 = vmatpush1.msra.mxu0 0.0
    %6754 = vmatprep.subr.mxu0 0.0
    %6755 = vmatpush1.msra.mxu0 0.0
    %6756 = vmatprep.subr.mxu0 0.0
    %6757 = vmatpush1.msra.mxu0 0.0
    %6758 = vmatprep.subr.mxu0 0.0
    %6759 = vmatpush1.msra.mxu0 0.0
    %6760 = vmatprep.subr.mxu0 0.0
    %6761 = vmatpush1.msra.mxu0 0.0
    %6762 = vmatprep.mubr.f32.mxu0 0.0
    %6763 = vmatmul.mubr.f32.gmra.mrb[0].mxu0 %v6696
    %v6764 = vpop.f32.mrb[0].mxu0
    %v6765 = vadd.f32 0.0, %v6764
    %v6766 = vpop.f32.mrb[0].mxu0
    %6767 = vdwg.mxu0
    %v6769 = vrot.slane %v6765, 1
    %v6772 = vadd.f32 %v4659, %v6765
    %v6773 = vadd.f32 %v4664, %v6769
    %v6774 = vxor.u32 %v6688, 2147483648
    %v6775 = vxor.u32 %v6689, 2147483648
    %v6776 = vmul.f32 %v6774, 1.442695
    %v6777 = vpow.pop %v6776
    %v6778 = vmul.f32 %v6775, 1.442695
    %v6779 = vpow.pop %v6778
    %v6780 = vadd.f32 %v6777, 1.0
    %v6781 = vadd.f32 %v6779, 1.0
    %v6782 = vrcp.pop %v6780
    %v6783 = vmul.f32 1.0, %v6782
    %v6784 = vrcp.pop %v6781
    %v6785 = vmul.f32 1.0, %v6784
    %v6786 = vtanh.pop %v6688
    %v6787 = vtanh.pop %v6689
    %v6790 = vrot.slane %v6536, 7
    %v6791 = vrot.slane %v6537, 7
    %v6794 = vmul.f32 %v6783, %v6790
    %v6795 = vmul.f32 %v6785, %v6791
    %6798 = vrot.lane.b32.xlu0 %v6786, 64
    %v6799 = vpop.permute.xlu0 %6798
    %6800 = vrot.lane.b32.xlu0 %v6787, 64
    %v6801 = vpop.permute.xlu0 %6800
    %v6804 = vmul.f32 %v6783, %v6799
    %v6805 = vmul.f32 %v6785, %v6801
    %6808 = vrot.lane.b32.xlu0 %v6804, 32
    %v6809 = vpop.permute.xlu0 %6808
    %6810 = vrot.lane.b32.xlu0 %v6805, 32
    %v6811 = vpop.permute.xlu0 %6810
    %v6814 = vadd.f32 %v6794, %v6809
    %v6815 = vadd.f32 %v6795, %v6811
    %v6816 = vtanh.pop %v6814
    %v6817 = vtanh.pop %v6815
    %6820 = vrot.lane.b32.xlu0 %v6816, 64
    %v6821 = vpop.permute.xlu0 %6820
    %6822 = vrot.lane.b32.xlu0 %v6817, 64
    %v6823 = vpop.permute.xlu0 %6822
    %v6826 = vmul.f32 %v6783, %v6821
    %v6827 = vmul.f32 %v6785, %v6823
    %v6828 = vxor.u32 %v6772, 2147483648
    %v6829 = vxor.u32 %v6773, 2147483648
    %v6830 = vmul.f32 %v6828, 1.442695
    %v6831 = vpow.pop %v6830
    %v6832 = vmul.f32 %v6829, 1.442695
    %v6833 = vpow.pop %v6832
    %v6834 = vadd.f32 %v6831, 1.0
    %v6835 = vadd.f32 %v6833, 1.0
    %v6836 = vrcp.pop %v6834
    %v6837 = vmul.f32 1.0, %v6836
    %v6838 = vrcp.pop %v6835
    %v6839 = vmul.f32 1.0, %v6838
    %v6840 = vtanh.pop %v6772
    %v6841 = vtanh.pop %v6773
    %v6844 = vrot.slane %v6590, 1
    %v6845 = vrot.slane %v6591, 1
    %v6848 = vmul.f32 %v6837, %v6844
    %v6849 = vmul.f32 %v6839, %v6845
    %6852 = vrot.lane.b32.xlu0 %v6840, 64
    %v6853 = vpop.permute.xlu0 %6852
    %6854 = vrot.lane.b32.xlu0 %v6841, 64
    %v6855 = vpop.permute.xlu0 %6854
    %v6858 = vmul.f32 %v6837, %v6853
    %v6859 = vmul.f32 %v6839, %v6855
    %6862 = vrot.lane.b32.xlu0 %v6858, 32
    %v6863 = vpop.permute.xlu0 %6862
    %6864 = vrot.lane.b32.xlu0 %v6859, 32
    %v6865 = vpop.permute.xlu0 %6864
    %v6868 = vadd.f32 %v6848, %v6863
    %v6869 = vadd.f32 %v6849, %v6865
    %v6870 = vtanh.pop %v6868
    %v6871 = vtanh.pop %v6869
    %6874 = vrot.lane.b32.xlu0 %v6870, 64
    %v6875 = vpop.permute.xlu0 %6874
    %6876 = vrot.lane.b32.xlu0 %v6871, 64
    %v6877 = vpop.permute.xlu0 %6876
    %v6880 = vmul.f32 %v6837, %v6875
    %v6881 = vmul.f32 %v6839, %v6877
    %v6884 = vrot.slane %v6827, 7
    %6885 = vrot.lane.b32.xlu0 %v6826, 32
    %v6886 = vpop.permute.xlu0 %6885
    %6887 = vrot.lane.b32.xlu0 %v6884, 32
    %v6888 = vpop.permute.xlu0 %6887
    %v6893 = vrot.slane %v6880, 1
    %6894 = vrot.lane.b32.xlu0 %v6893, 64
    %v6895 = vpop.permute.xlu0 %6894
    %6896 = vrot.lane.b32.xlu0 %v6881, 64
    %v6897 = vpop.permute.xlu0 %6896
    %v6900 = vsel %vm283, %v6886, %v6895
    %v6901 = vsel %vm283, %v6888, %v6897
    %v6902 = vld [vmem:[#allocation7] sm:$0x3]
    %v6904 = vrot.slane %v6902, 1
    %v6906 = vmul.f32 %v6900, %v6904
    %v6907 = vmul.f32 %v6901, %v6904
    %v6908 = vld [vmem:[%s23] sm:$0xff]
    %v6909 = vld [vmem:[%s23 + $0x8] sm:$0xff]
    %v6910 = vld [vmem:[%s23 + $0x10] sm:$0xff]
    %v6911 = vld [vmem:[%s23 + $0x18] sm:$0xff]
    %v6912 = vld [vmem:[%s23 + $0x20] sm:$0xff]
    %v6913 = vld [vmem:[%s23 + $0x28] sm:$0xff]
    %v6914 = vld [vmem:[%s23 + $0x30] sm:$0xff]
    %v6915 = vld [vmem:[%s23 + $0x38] sm:$0xff]
    %v6916 = vld [vmem:[#allocation2] sm:$0x1]
    %v6918 = vlaneseq
    %v6919 = vshrl.u32 %v6918, 7
    %v6920 = vsub.s32 0, %v6919
    %v6921 = vrot.slane %v6916, %v6920
    %vm6925 = vcmask 1040384
    %v6926 = vrot.slane %v6906, 7
    %v6927 = vrot.slane %v6907, 7
    %v6928 = vsel %vm6925, %v6926, %v6927
    %v6929 = vsel %vm2282, %v6928, 0
    %6931 = vmatprep.subr.mxu0 0.0
    %6932 = vmatpush1.msra.mxu0 %v6908
    %6933 = vmatprep.subr.mxu0 0.0
    %6934 = vmatpush1.msra.mxu0 %v6909
    %6935 = vmatprep.subr.mxu0 0.0
    %6936 = vmatpush1.msra.mxu0 %v6910
    %6937 = vmatprep.subr.mxu0 0.0
    %6938 = vmatpush1.msra.mxu0 %v6911
    %6939 = vmatprep.subr.mxu0 0.0
    %6940 = vmatpush1.msra.mxu0 %v6912
    %6941 = vmatprep.subr.mxu0 0.0
    %6942 = vmatpush1.msra.mxu0 %v6913
    %6943 = vmatprep.subr.mxu0 0.0
    %6944 = vmatpush1.msra.mxu0 %v6914
    %6945 = vmatprep.subr.mxu0 0.0
    %6946 = vmatpush1.msra.mxu0 %v6915
    %6947 = vmatprep.subr.mxu0 0.0
    %6948 = vmatpush1.msra.mxu0 0.0
    %6949 = vmatprep.subr.mxu0 0.0
    %6950 = vmatpush1.msra.mxu0 0.0
    %6951 = vmatprep.subr.mxu0 0.0
    %6952 = vmatpush1.msra.mxu0 0.0
    %6953 = vmatprep.subr.mxu0 0.0
    %6954 = vmatpush1.msra.mxu0 0.0
    %6955 = vmatprep.subr.mxu0 0.0
    %6956 = vmatpush1.msra.mxu0 0.0
    %6957 = vmatprep.subr.mxu0 0.0
    %6958 = vmatpush1.msra.mxu0 0.0
    %6959 = vmatprep.subr.mxu0 0.0
    %6960 = vmatpush1.msra.mxu0 0.0
    %6961 = vmatprep.subr.mxu0 0.0
    %6962 = vmatpush1.msra.mxu0 0.0
    %6963 = vmatprep.subr.mxu0 0.0
    %6964 = vmatpush1.msra.mxu0 0.0
    %6965 = vmatprep.subr.mxu0 0.0
    %6966 = vmatpush1.msra.mxu0 0.0
    %6967 = vmatprep.subr.mxu0 0.0
    %6968 = vmatpush1.msra.mxu0 0.0
    %6969 = vmatprep.subr.mxu0 0.0
    %6970 = vmatpush1.msra.mxu0 0.0
    %6971 = vmatprep.subr.mxu0 0.0
    %6972 = vmatpush1.msra.mxu0 0.0
    %6973 = vmatprep.subr.mxu0 0.0
    %6974 = vmatpush1.msra.mxu0 0.0
    %6975 = vmatprep.subr.mxu0 0.0
    %6976 = vmatpush1.msra.mxu0 0.0
    %6977 = vmatprep.subr.mxu0 0.0
    %6978 = vmatpush1.msra.mxu0 0.0
    %6979 = vmatprep.subr.mxu0 0.0
    %6980 = vmatpush1.msra.mxu0 0.0
    %6981 = vmatprep.subr.mxu0 0.0
    %6982 = vmatpush1.msra.mxu0 0.0
    %6983 = vmatprep.subr.mxu0 0.0
    %6984 = vmatpush1.msra.mxu0 0.0
    %6985 = vmatprep.subr.mxu0 0.0
    %6986 = vmatpush1.msra.mxu0 0.0
    %6987 = vmatprep.subr.mxu0 0.0
    %6988 = vmatpush1.msra.mxu0 0.0
    %6989 = vmatprep.subr.mxu0 0.0
    %6990 = vmatpush1.msra.mxu0 0.0
    %6991 = vmatprep.subr.mxu0 0.0
    %6992 = vmatpush1.msra.mxu0 0.0
    %6993 = vmatprep.subr.mxu0 0.0
    %6994 = vmatpush1.msra.mxu0 0.0
    %6995 = vmatprep.mubr.f32.mxu0 0.0
    %6996 = vmatmul.mubr.f32.gmra.mrb[0].mxu0 %v6929
    %v6997 = vpop.f32.mrb[0].mxu0
    %v6998 = vadd.f32 %v6921, %v6997
    %v6999 = vpop.f32.mrb[0].mxu0
    %7000 = vdwg.mxu0
    %vm7001 = vcmask 1024
    %7002 = vst.msk [vmem:[%s25] sm:$0x3] %vm7001, %v6998
    // Predicated region
    $region162: #{tpu_custom_call.1} parent=1 // pred_check
      _
    $region163: #{tpu_custom_call.1} parent=1 // pred_check_branch
      %7004 = sbr.rel (0) target = $region165
    $region164: #{tpu_custom_call.1} parent=1 // pred_region
      _
    $region165: #{tpu_custom_call.1} parent=1 // pred_fallthru
      _
    // Predicated region
    $region166: #{tpu_custom_call.1} parent=1 // pred_check
      _
    $region167: #{tpu_custom_call.1} parent=1 // pred_check_branch
      %7006 = sbr.rel (0) target = $region169
    $region168: #{tpu_custom_call.1} parent=1 // pred_region
      _
    $region169: #{tpu_custom_call.1} parent=1 // pred_fallthru
      _
    %7007 = vsyncpa [#allocation4], 1
    %7008 = vsyncpa [#allocation6], 1
    %7009 = vsyncpa [#allocation9], 1
    %7010 = vsyncpa [#allocation12], 1
    %7011 = vsyncpa [#allocation15], 1
    %7012 = vsyncpa [#allocation18], 1
    %7013 = vsyncpa [#allocation21], 1
    %7014 = vsyncpa [#allocation24], 1

</llo_original>
